<compile_context>
chip_gen: v5e
topology: v5e:2x2
jax: 0.10.0
libtpu: 0.0.40
codegen_flags: <defaults>
</compile_context>

<pallas_src>
import functools

import jax
import jax.numpy as jnp
from jax import lax
from jax.experimental import pallas as pl
from jax.experimental.pallas import tpu as pltpu

EPS = 1e-5          # nn.BatchNorm2d default eps
EXPANSION = 4
VMEM_LIMIT_BYTES = 32 * 1024 * 1024   # safe explicit budget on v5e/v6e/v7x


def _round_up(x, m):
    return (x + m - 1) // m * m


def _row_tile(p):
    """Row (pixel) tile for the 1x1-conv matmul kernels."""
    if p >= 8192:
        return 1024
    if p >= 2048:
        return 512
    return 128


def _cparams(semantics):
    return pltpu.CompilerParams(dimension_semantics=semantics,
                                vmem_limit_bytes=VMEM_LIMIT_BYTES)


# ---------------------------------------------------------------------------
# Kernel 1: conv1 (1x1) [+ fused projection-shortcut conv], partial BN stats.
# Tiled over P rows; every tile writes its own partial (sum, sum_sq) block.
# ---------------------------------------------------------------------------
def _conv1_kernel(x_ref, w1_ref, h1_ref, s1_ref, q1_ref):
    x = x_ref[...].astype(jnp.bfloat16)
    h = jnp.dot(x, w1_ref[...], preferred_element_type=jnp.float32)
    h1_ref[...] = h.astype(h1_ref.dtype)
    s1_ref[...] = jnp.sum(h, axis=0, keepdims=True)
    q1_ref[...] = jnp.sum(h * h, axis=0, keepdims=True)


def _conv1_proj_kernel(x_ref, w1_ref, ws_ref, h1_ref, sc_ref,
                       s1_ref, q1_ref, ss_ref, qs_ref):
    x = x_ref[...].astype(jnp.bfloat16)          # one x DMA feeds both convs
    h = jnp.dot(x, w1_ref[...], preferred_element_type=jnp.float32)
    s = jnp.dot(x, ws_ref[...], preferred_element_type=jnp.float32)
    h1_ref[...] = h.astype(h1_ref.dtype)
    sc_ref[...] = s.astype(sc_ref.dtype)
    s1_ref[...] = jnp.sum(h, axis=0, keepdims=True)
    q1_ref[...] = jnp.sum(h * h, axis=0, keepdims=True)
    ss_ref[...] = jnp.sum(s, axis=0, keepdims=True)
    qs_ref[...] = jnp.sum(s * s, axis=0, keepdims=True)


def _conv1(x_pad, w1_bf, ws_bf, tp):
    p_pad, cin = x_pad.shape
    c1 = w1_bf.shape[1]
    nt = p_pad // tp

    x_spec = pl.BlockSpec((tp, cin), lambda i: (i, 0))
    w1_spec = pl.BlockSpec((cin, c1), lambda i: (0, 0))
    h1_spec = pl.BlockSpec((tp, c1), lambda i: (i, 0))
    st1 = jax.ShapeDtypeStruct((nt, 1, c1), jnp.float32)
    st1_spec = pl.BlockSpec((None, 1, c1), lambda i: (i, 0, 0))

    if ws_bf is None:                           # identity shortcut: no extras
        return pl.pallas_call(
            _conv1_kernel,
            grid=(nt,),
            in_specs=[x_spec, w1_spec],
            out_specs=(h1_spec, st1_spec, st1_spec),
            out_shape=(jax.ShapeDtypeStruct((p_pad, c1), jnp.bfloat16),
                       st1, st1),
            compiler_params=_cparams(("parallel",)),
        )(x_pad, w1_bf)

    c4 = ws_bf.shape[1]
    st4 = jax.ShapeDtypeStruct((nt, 1, c4), jnp.float32)
    st4_spec = pl.BlockSpec((None, 1, c4), lambda i: (i, 0, 0))
    return pl.pallas_call(
        _conv1_proj_kernel,
        grid=(nt,),
        in_specs=[x_spec, w1_spec, pl.BlockSpec((cin, c4), lambda i: (0, 0))],
        out_specs=(h1_spec, pl.BlockSpec((tp, c4), lambda i: (i, 0)),
                   st1_spec, st1_spec, st4_spec, st4_spec),
        out_shape=(jax.ShapeDtypeStruct((p_pad, c1), jnp.bfloat16),
                   jax.ShapeDtypeStruct((p_pad, c4), jnp.bfloat16),
                   st1, st1, st4, st4),
        compiler_params=_cparams(("parallel",)),
    )(x_pad, w1_bf, ws_bf)


# ---------------------------------------------------------------------------
# Kernel 2: conv2 (3x3, pad=1) as 9 accumulated MXU dots per output row.
# Grid = (image, row-block).  Input is one zero-padded image (read once per
# image, reused across its row-blocks) — no im2col HBM blow-up.
# Emits per-(image, row-block) partial BN2 statistics.
# ---------------------------------------------------------------------------
def _conv3x3_kernel(a1p_ref, w2_ref, h2_ref, s_ref, q_ref, *, th):
    t = pl.program_id(1)
    w_out = h2_ref.shape[1]
    c1 = h2_ref.shape[2]
    y0 = t * th
    ssum = jnp.zeros((1, c1), jnp.float32)
    ssq = jnp.zeros((1, c1), jnp.float32)
    for ly in range(th):                               # static unroll
        acc = jnp.zeros((w_out, c1), jnp.float32)
        for dy in range(3):
            row = a1p_ref[y0 + ly + dy]                # (W+2, C1) bf16
            for dx in range(3):
                acc = acc + jnp.dot(row[dx:dx + w_out, :],
                                    w2_ref[dy * 3 + dx],
                                    preferred_element_type=jnp.float32)
        h2_ref[ly] = acc.astype(h2_ref.dtype)
        ssum = ssum + jnp.sum(acc, axis=0, keepdims=True)
        ssq = ssq + jnp.sum(acc * acc, axis=0, keepdims=True)
    s_ref[...] = ssum
    q_ref[...] = ssq


def _conv3x3(a1p, w2_bf):
    n, hp2, wp2, c1 = a1p.shape
    hs, ws_out = hp2 - 2, wp2 - 2
    th = next(t for t in (8, 4, 2, 1) if hs % t == 0)  # rows per grid step
    hb = hs // th

    stat = jax.ShapeDtypeStruct((n, hb, 1, c1), jnp.float32)
    stat_spec = pl.BlockSpec((None, None, 1, c1), lambda i, t: (i, t, 0, 0))
    return pl.pallas_call(
        functools.partial(_conv3x3_kernel, th=th),
        grid=(n, hb),
        in_specs=[
            pl.BlockSpec((None, hp2, wp2, c1), lambda i, t: (i, 0, 0, 0)),
            pl.BlockSpec((9, c1, c1), lambda i, t: (0, 0, 0)),
        ],
        out_specs=(pl.BlockSpec((None, th, ws_out, c1),
                                lambda i, t: (i, t, 0, 0)),
                   stat_spec, stat_spec),
        out_shape=(jax.ShapeDtypeStruct((n, hs, ws_out, c1), jnp.bfloat16),
                   stat, stat),
        compiler_params=_cparams(("parallel", "parallel")),
    )(a1p, w2_bf)


# ---------------------------------------------------------------------------
# Kernel 3: BN2-apply + ReLU fused into conv3 (1x1), partial BN3 stats.
# ---------------------------------------------------------------------------
def _conv3_kernel(h2_ref, aff2_ref, w3_ref, h3_ref, s3_ref, q3_ref, *,
                  tp, valid_rows, need_mask):
    h2 = h2_ref[...].astype(jnp.float32)
    a2 = jnp.maximum(h2 * aff2_ref[0:1, :] + aff2_ref[1:2, :], 0.0)
    if need_mask:   # zero the P-padding rows so they do not pollute BN3 stats
        row = (lax.broadcasted_iota(jnp.int32, (tp, 1), 0)
               + pl.program_id(0) * tp)
        a2 = jnp.where(row < valid_rows, a2, 0.0)
    h3 = jnp.dot(a2.astype(jnp.bfloat16), w3_ref[...],
                 preferred_element_type=jnp.float32)
    h3_ref[...] = h3.astype(h3_ref.dtype)
    s3_ref[...] = jnp.sum(h3, axis=0, keepdims=True)
    q3_ref[...] = jnp.sum(h3 * h3, axis=0, keepdims=True)


def _conv3(h2_pad, aff2, w3_bf, tp, valid_rows):
    p_pad, c1 = h2_pad.shape
    c4 = w3_bf.shape[1]
    nt = p_pad // tp
    stat = jax.ShapeDtypeStruct((nt, 1, c4), jnp.float32)
    stat_spec = pl.BlockSpec((None, 1, c4), lambda i: (i, 0, 0))
    return pl.pallas_call(
        functools.partial(_conv3_kernel, tp=tp, valid_rows=valid_rows,
                          need_mask=(p_pad != valid_rows)),
        grid=(nt,),
        in_specs=[pl.BlockSpec((tp, c1), lambda i: (i, 0)),
                  pl.BlockSpec((2, c1), lambda i: (0, 0)),
                  pl.BlockSpec((c1, c4), lambda i: (0, 0))],
        out_specs=(pl.BlockSpec((tp, c4), lambda i: (i, 0)),
                   stat_spec, stat_spec),
        out_shape=(jax.ShapeDtypeStruct((p_pad, c4), jnp.bfloat16),
                   stat, stat),
        compiler_params=_cparams(("parallel",)),
    )(h2_pad, aff2, w3_bf)


# ---------------------------------------------------------------------------
# Kernel 4: BN3-apply + shortcut (+BN) + residual add + ReLU.
# ---------------------------------------------------------------------------
def _merge_proj_kernel(h3_ref, s_ref, aff3_ref, affs_ref, o_ref):
    y = h3_ref[...].astype(jnp.float32) * aff3_ref[0:1, :] + aff3_ref[1:2, :]
    sc = s_ref[...].astype(jnp.float32) * affs_ref[0:1, :] + affs_ref[1:2, :]
    o_ref[...] = jnp.maximum(y + sc, 0.0).astype(o_ref.dtype)


def _merge_ident_kernel(h3_ref, x_ref, aff3_ref, o_ref):
    y = h3_ref[...].astype(jnp.float32) * aff3_ref[0:1, :] + aff3_ref[1:2, :]
    o_ref[...] = jnp.maximum(y + x_ref[...].astype(jnp.float32),
                             0.0).astype(o_ref.dtype)


def _merge(h3_pad, shortcut_pad, aff3, affs, tp, identity):
    p_pad, c4 = h3_pad.shape
    nt = p_pad // tp
    row_spec = pl.BlockSpec((tp, c4), lambda i: (i, 0))
    aff_spec = pl.BlockSpec((2, c4), lambda i: (0, 0))
    out_shape = jax.ShapeDtypeStruct((p_pad, c4), jnp.float32)
    if identity:
        return pl.pallas_call(
            _merge_ident_kernel, grid=(nt,),
            in_specs=[row_spec, row_spec, aff_spec],
            out_specs=row_spec, out_shape=out_shape,
            compiler_params=_cparams(("parallel",)),
        )(h3_pad, shortcut_pad, aff3)
    return pl.pallas_call(
        _merge_proj_kernel, grid=(nt,),
        in_specs=[row_spec, row_spec, aff_spec, aff_spec],
        out_specs=row_spec, out_shape=out_shape,
        compiler_params=_cparams(("parallel",)),
    )(h3_pad, shortcut_pad, aff3, affs)


# ---------------------------------------------------------------------------
# Tiny host-side BN finalization: reduce per-tile partials -> (scale, shift).
#   scale = gamma / sqrt(var + eps),  shift = beta - mean * scale
# ---------------------------------------------------------------------------
def _bn_affine(sum_parts, sq_parts, count, gamma, beta):
    c = sum_parts.shape[-1]
    total = jnp.sum(sum_parts.reshape(-1, c), axis=0)
    total_sq = jnp.sum(sq_parts.reshape(-1, c), axis=0)
    mean = total / count
    var = jnp.maximum(total_sq / count - mean * mean, 0.0)   # biased batch var
    scale = gamma * lax.rsqrt(var + EPS)
    shift = beta - mean * scale
    return scale, shift


def _affine_pair(scale, shift):
    return jnp.concatenate([scale[None, :], shift[None, :]], axis=0)


# ---------------------------------------------------------------------------
# Wrapper reproducing Bottleneck.forward (NCHW in / NCHW out like PyTorch).
# ---------------------------------------------------------------------------
def bottleneck_forward(x_nchw, params, *, stride=1):
    n, cin, h, w = x_nchw.shape
    c1 = params["w1"].shape[1]
    c4 = params["w3"].shape[1]
    identity = (stride == 1) and (cin == c4)

    # layout glue (XLA): NCHW -> NHWC; 1x1-conv stride == spatial subsample.
    x = jnp.transpose(x_nchw, (0, 2, 3, 1))
    xs = x[:, ::stride, ::stride, :]
    hs, wout = xs.shape[1], xs.shape[2]
    p = n * hs * wout
    tp = _row_tile(p)
    p_pad = _round_up(p, tp)
    x_flat = xs.reshape(p, cin).astype(jnp.float32)
    x_pad = jnp.pad(x_flat, ((0, p_pad - p), (0, 0)))   # zero rows -> zero stats

    w1_bf = params["w1"].astype(jnp.bfloat16)
    w2_bf = params["w2"].reshape(9, c1, c1).astype(jnp.bfloat16)
    w3_bf = params["w3"].astype(jnp.bfloat16)
    ws_bf = None if identity else params["ws"].astype(jnp.bfloat16)

    # conv1 (+ fused projection shortcut) with partial BN stats
    if identity:
        h1, s1, q1 = _conv1(x_pad, w1_bf, None, tp)
        s_sc = None
    else:
        h1, s_sc, s1, q1, ss, qs = _conv1(x_pad, w1_bf, ws_bf, tp)
    scale1, shift1 = _bn_affine(s1, q1, p, params["g1"], params["b1"])

    # BN1-apply + ReLU + zero-pad (one fused XLA elementwise/pad pass);
    # the 3x3 kernel then consumes the padded bf16 image directly from HBM.
    a1 = jnp.maximum(h1[:p].astype(jnp.float32) * scale1 + shift1, 0.0)
    a1 = a1.reshape(n, hs, wout, c1).astype(jnp.bfloat16)
    a1p = jnp.pad(a1, ((0, 0), (1, 1), (1, 1), (0, 0)))

    # conv2 (3x3, pad=1) with partial BN2 stats
    h2_img, s2, q2 = _conv3x3(a1p, w2_bf)
    scale2, shift2 = _bn_affine(s2, q2, p, params["g2"], params["b2"])
    aff2 = _affine_pair(scale2, shift2)
    h2_pad = jnp.pad(h2_img.reshape(p, c1), ((0, p_pad - p), (0, 0)))

    # conv3 (1x1) with fused BN2-apply + ReLU prologue, partial BN3 stats
    h3, s3, q3 = _conv3(h2_pad, aff2, w3_bf, tp, p)
    scale3, shift3 = _bn_affine(s3, q3, p, params["g3"], params["b3"])
    aff3 = _affine_pair(scale3, shift3)

    # BN3-apply + shortcut(+BN) + residual add + ReLU
    if identity:
        out_pad = _merge(h3, x_pad, aff3, None, tp, True)
    else:
        scale_s, shift_s = _bn_affine(ss, qs, p, params["gs"], params["bs"])
        out_pad = _merge(h3, s_sc, aff3, _affine_pair(scale_s, shift_s),
                         tp, False)

    out = out_pad[:p].reshape(n, hs, wout, c4)
    return jnp.transpose(out, (0, 3, 1, 2))              # NHWC -> NCHW


# ---------------------------------------------------------------------------
# Deterministic parameter construction + run
# ---------------------------------------------------------------------------
def make_params(key, in_channels, out_channels):
    c1 = out_channels
    c4 = out_channels * EXPANSION
    ks = jax.random.split(key, 12)
    f32 = jnp.float32
    return {
        # matmul-ready weight layouts: (Cin, Cout) and (kh, kw, Cin, Cout)
        "w1": 0.1 * jax.random.normal(ks[0], (in_channels, c1), f32),
        "g1": 1.0 + 0.1 * jax.random.normal(ks[1], (c1,), f32),
        "b1": 0.1 * jax.random.normal(ks[2], (c1,), f32),
        "w2": 0.1 * jax.random.normal(ks[3], (3, 3, c1, c1), f32),
        "g2": 1.0 + 0.1 * jax.random.normal(ks[4], (c1,), f32),
        "b2": 0.1 * jax.random.normal(ks[5], (c1,), f32),
        "w3": 0.1 * jax.random.normal(ks[6], (c1, c4), f32),
        "g3": 1.0 + 0.1 * jax.random.normal(ks[7], (c4,), f32),
        "b3": 0.1 * jax.random.normal(ks[8], (c4,), f32),
        # projection shortcut (used when stride != 1 or in_channels != c4)
        "ws": 0.1 * jax.random.normal(ks[9], (in_channels, c4), f32),
        "gs": 1.0 + 0.1 * jax.random.normal(ks[10], (c4,), f32),
        "bs": 0.1 * jax.random.normal(ks[11], (c4,), f32),
    }


if __name__ == "__main__":
    key = jax.random.PRNGKey(0)
    k_x, k_p, k_x2, k_p2 = jax.random.split(key, 4)
    fwd = jax.jit(bottleneck_forward, static_argnames=("stride",))

    # 1) projection-shortcut config (in_channels != out_channels*4)
    n, cin, hh, ww = 2, 64, 16, 16
    cout, stride = 32, 1
    x = jax.random.normal(k_x, (n, cin, hh, ww), jnp.float32)
    params = make_params(k_p, cin, cout)
    y = jax.block_until_ready(fwd(x, params, stride=stride))
    assert y.shape == (n, cout * EXPANSION, hh // stride, ww // stride)
    assert bool(jnp.all(jnp.isfinite(y)))
    assert bool(jnp.all(y >= 0.0))            # final ReLU

    # 2) identity-shortcut config (stride=1 and in_channels == out_channels*4)
    n2, cin2, hh2, ww2 = 1, 64, 8, 8
    cout2 = 16
    x2 = jax.random.normal(k_x2, (n2, cin2, hh2, ww2), jnp.float32)
    params2 = make_params(k_p2, cin2, cout2)
    y2 = jax.block_until_ready(fwd(x2, params2, stride=1))
    assert y2.shape == (n2, cout2 * EXPANSION, hh2, ww2)
    assert bool(jnp.all(jnp.isfinite(y2)))
    assert bool(jnp.all(y2 >= 0.0))

    print("KERNEL_OK")
</pallas_src>

<mosaic_0001>
module attributes {stable_mosaic.version = 11 : i64} {
  func.func @_conv1_proj_kernel(%arg0: i32, %arg1: memref<128x64xf32, #tpu.memory_space<vmem>>, %arg2: memref<64x32xbf16, #tpu.memory_space<vmem>>, %arg3: memref<64x128xbf16, #tpu.memory_space<vmem>>, %arg4: memref<128x32xbf16, #tpu.memory_space<vmem>>, %arg5: memref<128x128xbf16, #tpu.memory_space<vmem>>, %arg6: memref<1x1x32xf32, #tpu.memory_space<vmem>>, %arg7: memref<1x1x32xf32, #tpu.memory_space<vmem>>, %arg8: memref<1x1x128xf32, #tpu.memory_space<vmem>>, %arg9: memref<1x1x128xf32, #tpu.memory_space<vmem>>) attributes {dimension_semantics = [#tpu.dimension_semantics<parallel>], iteration_bounds = array<i64: 4>, scalar_prefetch = 0 : i64, scratch_operands = 0 : i64, tpu.core_type = #tpu.core_type<tc>, window_params = [{transform_indices = @transform_0, window_bounds = array<i64: 128, 64>}, {pipeline_mode = #tpu.pipeline_mode<synchronous>, transform_indices = @transform_1, window_bounds = array<i64: 64, 32>}, {pipeline_mode = #tpu.pipeline_mode<synchronous>, transform_indices = @transform_2, window_bounds = array<i64: 64, 128>}, {transform_indices = @transform_3, window_bounds = array<i64: 128, 32>}, {transform_indices = @transform_4, window_bounds = array<i64: 128, 128>}, {transform_indices = @transform_5, window_bounds = array<i64: 1, 1, 32>}, {transform_indices = @transform_6, window_bounds = array<i64: 1, 1, 32>}, {transform_indices = @transform_7, window_bounds = array<i64: 1, 1, 128>}, {transform_indices = @transform_8, window_bounds = array<i64: 1, 1, 128>}]} {
    %c0 = arith.constant 0 : index
    %c0_0 = arith.constant 0 : index
    %0 = vector.load %arg1[%c0, %c0_0] : memref<128x64xf32, #tpu.memory_space<vmem>>, vector<128x64xf32>
    %1 = arith.truncf %0 : vector<128x64xf32> to vector<128x64xbf16>
    %c0_1 = arith.constant 0 : index
    %c0_2 = arith.constant 0 : index
    %2 = vector.load %arg2[%c0_1, %c0_2] : memref<64x32xbf16, #tpu.memory_space<vmem>>, vector<64x32xbf16>
    %cst = arith.constant dense<0.000000e+00> : vector<128x32xf32>
    %3 = tpu.matmul %1, %2, %cst {dimension_numbers = #tpu.dot_dimension_numbers<[1], [0], [0], [1], [0, 0, 1, 1], [], []>} : vector<128x64xbf16>, vector<64x32xbf16>, vector<128x32xf32> -> vector<128x32xf32>
    %c0_3 = arith.constant 0 : index
    %c0_4 = arith.constant 0 : index
    %4 = vector.load %arg3[%c0_3, %c0_4] : memref<64x128xbf16, #tpu.memory_space<vmem>>, vector<64x128xbf16>
    %cst_5 = arith.constant dense<0.000000e+00> : vector<128x128xf32>
    %5 = tpu.matmul %1, %4, %cst_5 {dimension_numbers = #tpu.dot_dimension_numbers<[1], [0], [0], [1], [0, 0, 1, 1], [], []>} : vector<128x64xbf16>, vector<64x128xbf16>, vector<128x128xf32> -> vector<128x128xf32>
    %6 = arith.truncf %3 : vector<128x32xf32> to vector<128x32xbf16>
    %c0_6 = arith.constant 0 : index
    %c0_7 = arith.constant 0 : index
    %7 = vector.load %arg4[%c0_6, %c0_7] : memref<128x32xbf16, #tpu.memory_space<vmem>>, vector<128x32xbf16>
    tpu.vector_store %arg4[%c0_6, %c0_7], %6 {strides = array<i32>} : memref<128x32xbf16, #tpu.memory_space<vmem>>, vector<128x32xbf16>,
    %8 = arith.truncf %5 : vector<128x128xf32> to vector<128x128xbf16>
    %c0_8 = arith.constant 0 : index
    %c0_9 = arith.constant 0 : index
    %9 = vector.load %arg5[%c0_8, %c0_9] : memref<128x128xbf16, #tpu.memory_space<vmem>>, vector<128x128xbf16>
    tpu.vector_store %arg5[%c0_8, %c0_9], %8 {strides = array<i32>} : memref<128x128xbf16, #tpu.memory_space<vmem>>, vector<128x128xbf16>,
    %cst_10 = arith.constant dense<0.000000e+00> : vector<32xf32>
    %10 = vector.multi_reduction <add>, %3, %cst_10 [0] : vector<128x32xf32> to vector<32xf32>
    %11 = vector.shape_cast %10 : vector<32xf32> to vector<1x32xf32>
    %c0_11 = arith.constant 0 : index
    %c0_12 = arith.constant 0 : index
    %c0_13 = arith.constant 0 : index
    %12 = vector.load %arg6[%c0_11, %c0_12, %c0_13] : memref<1x1x32xf32, #tpu.memory_space<vmem>>, vector<1x1x32xf32>
    %13 = vector.shape_cast %12 : vector<1x1x32xf32> to vector<1x32xf32>
    %14 = vector.shape_cast %11 : vector<1x32xf32> to vector<1x1x32xf32>
    tpu.vector_store %arg6[%c0_11, %c0_12, %c0_13], %14 {strides = array<i32>} : memref<1x1x32xf32, #tpu.memory_space<vmem>>, vector<1x1x32xf32>,
    %15 = arith.mulf %3, %3 : vector<128x32xf32>
    %cst_14 = arith.constant dense<0.000000e+00> : vector<32xf32>
    %16 = vector.multi_reduction <add>, %15, %cst_14 [0] : vector<128x32xf32> to vector<32xf32>
    %17 = vector.shape_cast %16 : vector<32xf32> to vector<1x32xf32>
    %c0_15 = arith.constant 0 : index
    %c0_16 = arith.constant 0 : index
    %c0_17 = arith.constant 0 : index
    %18 = vector.load %arg7[%c0_15, %c0_16, %c0_17] : memref<1x1x32xf32, #tpu.memory_space<vmem>>, vector<1x1x32xf32>
    %19 = vector.shape_cast %18 : vector<1x1x32xf32> to vector<1x32xf32>
    %20 = vector.shape_cast %17 : vector<1x32xf32> to vector<1x1x32xf32>
    tpu.vector_store %arg7[%c0_15, %c0_16, %c0_17], %20 {strides = array<i32>} : memref<1x1x32xf32, #tpu.memory_space<vmem>>, vector<1x1x32xf32>,
    %cst_18 = arith.constant dense<0.000000e+00> : vector<128xf32>
    %21 = vector.multi_reduction <add>, %5, %cst_18 [0] : vector<128x128xf32> to vector<128xf32>
    %22 = vector.shape_cast %21 : vector<128xf32> to vector<1x128xf32>
    %c0_19 = arith.constant 0 : index
    %c0_20 = arith.constant 0 : index
    %c0_21 = arith.constant 0 : index
    %23 = vector.load %arg8[%c0_19, %c0_20, %c0_21] : memref<1x1x128xf32, #tpu.memory_space<vmem>>, vector<1x1x128xf32>
    %24 = vector.shape_cast %23 : vector<1x1x128xf32> to vector<1x128xf32>
    %25 = vector.shape_cast %22 : vector<1x128xf32> to vector<1x1x128xf32>
    tpu.vector_store %arg8[%c0_19, %c0_20, %c0_21], %25 {strides = array<i32>} : memref<1x1x128xf32, #tpu.memory_space<vmem>>, vector<1x1x128xf32>,
    %26 = arith.mulf %5, %5 : vector<128x128xf32>
    %cst_22 = arith.constant dense<0.000000e+00> : vector<128xf32>
    %27 = vector.multi_reduction <add>, %26, %cst_22 [0] : vector<128x128xf32> to vector<128xf32>
    %28 = vector.shape_cast %27 : vector<128xf32> to vector<1x128xf32>
    %c0_23 = arith.constant 0 : index
    %c0_24 = arith.constant 0 : index
    %c0_25 = arith.constant 0 : index
    %29 = vector.load %arg9[%c0_23, %c0_24, %c0_25] : memref<1x1x128xf32, #tpu.memory_space<vmem>>, vector<1x1x128xf32>
    %30 = vector.shape_cast %29 : vector<1x1x128xf32> to vector<1x128xf32>
    %31 = vector.shape_cast %28 : vector<1x128xf32> to vector<1x1x128xf32>
    tpu.vector_store %arg9[%c0_23, %c0_24, %c0_25], %31 {strides = array<i32>} : memref<1x1x128xf32, #tpu.memory_space<vmem>>, vector<1x1x128xf32>,
    return
  }
  func.func @transform_0(%arg0: i32) -> (i32, i32) {
    %c0_i32 = arith.constant 0 : i32
    %c0_i32_0 = arith.constant 0 : i32
    return %arg0, %c0_i32 : i32, i32
  }
  func.func @transform_1(%arg0: i32) -> (i32, i32) {
    %c0_i32 = arith.constant 0 : i32
    %c0_i32_0 = arith.constant 0 : i32
    %c0_i32_1 = arith.constant 0 : i32
    return %c0_i32, %c0_i32_0 : i32, i32
  }
  func.func @transform_2(%arg0: i32) -> (i32, i32) {
    %c0_i32 = arith.constant 0 : i32
    %c0_i32_0 = arith.constant 0 : i32
    %c0_i32_1 = arith.constant 0 : i32
    return %c0_i32, %c0_i32_0 : i32, i32
  }
  func.func @transform_3(%arg0: i32) -> (i32, i32) {
    %c0_i32 = arith.constant 0 : i32
    %c0_i32_0 = arith.constant 0 : i32
    return %arg0, %c0_i32 : i32, i32
  }
  func.func @transform_4(%arg0: i32) -> (i32, i32) {
    %c0_i32 = arith.constant 0 : i32
    %c0_i32_0 = arith.constant 0 : i32
    return %arg0, %c0_i32 : i32, i32
  }
  func.func @transform_5(%arg0: i32) -> (i32, i32, i32) {
    %c0_i32 = arith.constant 0 : i32
    %c0_i32_0 = arith.constant 0 : i32
    %c0_i32_1 = arith.constant 0 : i32
    return %arg0, %c0_i32, %c0_i32_0 : i32, i32, i32
  }
  func.func @transform_6(%arg0: i32) -> (i32, i32, i32) {
    %c0_i32 = arith.constant 0 : i32
    %c0_i32_0 = arith.constant 0 : i32
    %c0_i32_1 = arith.constant 0 : i32
    return %arg0, %c0_i32, %c0_i32_0 : i32, i32, i32
  }
  func.func @transform_7(%arg0: i32) -> (i32, i32, i32) {
    %c0_i32 = arith.constant 0 : i32
    %c0_i32_0 = arith.constant 0 : i32
    %c0_i32_1 = arith.constant 0 : i32
    return %arg0, %c0_i32, %c0_i32_0 : i32, i32, i32
  }
  func.func @transform_8(%arg0: i32) -> (i32, i32, i32) {
    %c0_i32 = arith.constant 0 : i32
    %c0_i32_0 = arith.constant 0 : i32
    %c0_i32_1 = arith.constant 0 : i32
    return %arg0, %c0_i32, %c0_i32_0 : i32, i32, i32
  }
}

module attributes {stable_mosaic.version = 11 : i64} {
  func.func @_conv3x3_kernel(%arg0: i32, %arg1: i32, %arg2: memref<1x18x18x32xbf16, #tpu.memory_space<vmem>>, %arg3: memref<9x32x32xbf16, #tpu.memory_space<vmem>>, %arg4: memref<1x8x16x32xbf16, #tpu.memory_space<vmem>>, %arg5: memref<1x1x1x32xf32, #tpu.memory_space<vmem>>, %arg6: memref<1x1x1x32xf32, #tpu.memory_space<vmem>>) attributes {dimension_semantics = [#tpu.dimension_semantics<parallel>, #tpu.dimension_semantics<parallel>], iteration_bounds = array<i64: 2, 2>, scalar_prefetch = 0 : i64, scratch_operands = 0 : i64, tpu.core_type = #tpu.core_type<tc>, window_params = [{transform_indices = @transform_0, window_bounds = array<i64: 1, 18, 18, 32>}, {pipeline_mode = #tpu.pipeline_mode<synchronous>, transform_indices = @transform_1, window_bounds = array<i64: 9, 32, 32>}, {transform_indices = @transform_2, window_bounds = array<i64: 1, 8, 16, 32>}, {transform_indices = @transform_3, window_bounds = array<i64: 1, 1, 1, 32>}, {transform_indices = @transform_4, window_bounds = array<i64: 1, 1, 1, 32>}]} {
    %c8_i32 = arith.constant 8 : i32
    %0 = arith.muli %arg1, %c8_i32 : i32
    %cst = arith.constant 0.000000e+00 : f32
    %1 = vector.broadcast %cst : f32 to vector<1x32xf32>
    %cst_0 = arith.constant 0.000000e+00 : f32
    %2 = vector.broadcast %cst_0 : f32 to vector<1x32xf32>
    %cst_1 = arith.constant 0.000000e+00 : f32
    %3 = vector.broadcast %cst_1 : f32 to vector<16x32xf32>
    %c0_i32 = arith.constant 0 : i32
    %4 = arith.addi %0, %c0_i32 : i32
    %c0_i32_2 = arith.constant 0 : i32
    %5 = arith.addi %4, %c0_i32_2 : i32
    %c0 = arith.constant 0 : index
    %6 = arith.index_cast %5 : i32 to index
    %c0_3 = arith.constant 0 : index
    %c0_4 = arith.constant 0 : index
    %7 = vector.load %arg2[%c0, %6, %c0_3, %c0_4] : memref<1x18x18x32xbf16, #tpu.memory_space<vmem>>, vector<1x1x18x32xbf16>
    %8 = vector.shape_cast %7 : vector<1x1x18x32xbf16> to vector<18x32xbf16>
    %9 = vector.extract_strided_slice %8 {offsets = [0, 0], sizes = [16, 32], strides = [1, 1]} : vector<18x32xbf16> to vector<16x32xbf16>
    %c0_5 = arith.constant 0 : index
    %c0_6 = arith.constant 0 : index
    %c0_7 = arith.constant 0 : index
    %10 = vector.load %arg3[%c0_5, %c0_6, %c0_7] : memref<9x32x32xbf16, #tpu.memory_space<vmem>>, vector<1x32x32xbf16>
    %11 = vector.shape_cast %10 : vector<1x32x32xbf16> to vector<32x32xbf16>
    %cst_8 = arith.constant dense<0.000000e+00> : vector<16x32xf32>
    %12 = tpu.matmul %9, %11, %cst_8 {dimension_numbers = #tpu.dot_dimension_numbers<[1], [0], [0], [1], [0, 0, 1, 1], [], []>} : vector<16x32xbf16>, vector<32x32xbf16>, vector<16x32xf32> -> vector<16x32xf32>
    %13 = arith.addf %3, %12 : vector<16x32xf32>
    %14 = vector.extract_strided_slice %8 {offsets = [1, 0], sizes = [16, 32], strides = [1, 1]} : vector<18x32xbf16> to vector<16x32xbf16>
    %c1 = arith.constant 1 : index
    %c0_9 = arith.constant 0 : index
    %c0_10 = arith.constant 0 : index
    %15 = vector.load %arg3[%c1, %c0_9, %c0_10] : memref<9x32x32xbf16, #tpu.memory_space<vmem>>, vector<1x32x32xbf16>
    %16 = vector.shape_cast %15 : vector<1x32x32xbf16> to vector<32x32xbf16>
    %cst_11 = arith.constant dense<0.000000e+00> : vector<16x32xf32>
    %17 = tpu.matmul %14, %16, %cst_11 {dimension_numbers = #tpu.dot_dimension_numbers<[1], [0], [0], [1], [0, 0, 1, 1], [], []>} : vector<16x32xbf16>, vector<32x32xbf16>, vector<16x32xf32> -> vector<16x32xf32>
    %18 = arith.addf %13, %17 : vector<16x32xf32>
    %19 = vector.extract_strided_slice %8 {offsets = [2, 0], sizes = [16, 32], strides = [1, 1]} : vector<18x32xbf16> to vector<16x32xbf16>
    %c2 = arith.constant 2 : index
    %c0_12 = arith.constant 0 : index
    %c0_13 = arith.constant 0 : index
    %20 = vector.load %arg3[%c2, %c0_12, %c0_13] : memref<9x32x32xbf16, #tpu.memory_space<vmem>>, vector<1x32x32xbf16>
    %21 = vector.shape_cast %20 : vector<1x32x32xbf16> to vector<32x32xbf16>
    %cst_14 = arith.constant dense<0.000000e+00> : vector<16x32xf32>
    %22 = tpu.matmul %19, %21, %cst_14 {dimension_numbers = #tpu.dot_dimension_numbers<[1], [0], [0], [1], [0, 0, 1, 1], [], []>} : vector<16x32xbf16>, vector<32x32xbf16>, vector<16x32xf32> -> vector<16x32xf32>
    %23 = arith.addf %18, %22 : vector<16x32xf32>
    %c0_i32_15 = arith.constant 0 : i32
    %24 = arith.addi %0, %c0_i32_15 : i32
    %c1_i32 = arith.constant 1 : i32
    %25 = arith.addi %24, %c1_i32 : i32
    %c0_16 = arith.constant 0 : index
    %26 = arith.index_cast %25 : i32 to index
    %c0_17 = arith.constant 0 : index
    %c0_18 = arith.constant 0 : index
    %27 = vector.load %arg2[%c0_16, %26, %c0_17, %c0_18] : memref<1x18x18x32xbf16, #tpu.memory_space<vmem>>, vector<1x1x18x32xbf16>
    %28 = vector.shape_cast %27 : vector<1x1x18x32xbf16> to vector<18x32xbf16>
    %29 = vector.extract_strided_slice %28 {offsets = [0, 0], sizes = [16, 32], strides = [1, 1]} : vector<18x32xbf16> to vector<16x32xbf16>
    %c3 = arith.constant 3 : index
    %c0_19 = arith.constant 0 : index
    %c0_20 = arith.constant 0 : index
    %30 = vector.load %arg3[%c3, %c0_19, %c0_20] : memref<9x32x32xbf16, #tpu.memory_space<vmem>>, vector<1x32x32xbf16>
    %31 = vector.shape_cast %30 : vector<1x32x32xbf16> to vector<32x32xbf16>
    %cst_21 = arith.constant dense<0.000000e+00> : vector<16x32xf32>
    %32 = tpu.matmul %29, %31, %cst_21 {dimension_numbers = #tpu.dot_dimension_numbers<[1], [0], [0], [1], [0, 0, 1, 1], [], []>} : vector<16x32xbf16>, vector<32x32xbf16>, vector<16x32xf32> -> vector<16x32xf32>
    %33 = arith.addf %23, %32 : vector<16x32xf32>
    %34 = vector.extract_strided_slice %28 {offsets = [1, 0], sizes = [16, 32], strides = [1, 1]} : vector<18x32xbf16> to vector<16x32xbf16>
    %c4 = arith.constant 4 : index
    %c0_22 = arith.constant 0 : index
    %c0_23 = arith.constant 0 : index
    %35 = vector.load %arg3[%c4, %c0_22, %c0_23] : memref<9x32x32xbf16, #tpu.memory_space<vmem>>, vector<1x32x32xbf16>
    %36 = vector.shape_cast %35 : vector<1x32x32xbf16> to vector<32x32xbf16>
    %cst_24 = arith.constant dense<0.000000e+00> : vector<16x32xf32>
    %37 = tpu.matmul %34, %36, %cst_24 {dimension_numbers = #tpu.dot_dimension_numbers<[1], [0], [0], [1], [0, 0, 1, 1], [], []>} : vector<16x32xbf16>, vector<32x32xbf16>, vector<16x32xf32> -> vector<16x32xf32>
    %38 = arith.addf %33, %37 : vector<16x32xf32>
    %39 = vector.extract_strided_slice %28 {offsets = [2, 0], sizes = [16, 32], strides = [1, 1]} : vector<18x32xbf16> to vector<16x32xbf16>
    %c5 = arith.constant 5 : index
    %c0_25 = arith.constant 0 : index
    %c0_26 = arith.constant 0 : index
    %40 = vector.load %arg3[%c5, %c0_25, %c0_26] : memref<9x32x32xbf16, #tpu.memory_space<vmem>>, vector<1x32x32xbf16>
    %41 = vector.shape_cast %40 : vector<1x32x32xbf16> to vector<32x32xbf16>
    %cst_27 = arith.constant dense<0.000000e+00> : vector<16x32xf32>
    %42 = tpu.matmul %39, %41, %cst_27 {dimension_numbers = #tpu.dot_dimension_numbers<[1], [0], [0], [1], [0, 0, 1, 1], [], []>} : vector<16x32xbf16>, vector<32x32xbf16>, vector<16x32xf32> -> vector<16x32xf32>
    %43 = arith.addf %38, %42 : vector<16x32xf32>
    %c0_i32_28 = arith.constant 0 : i32
    %44 = arith.addi %0, %c0_i32_28 : i32
    %c2_i32 = arith.constant 2 : i32
    %45 = arith.addi %44, %c2_i32 : i32
    %c0_29 = arith.constant 0 : index
    %46 = arith.index_cast %45 : i32 to index
    %c0_30 = arith.constant 0 : index
    %c0_31 = arith.constant 0 : index
    %47 = vector.load %arg2[%c0_29, %46, %c0_30, %c0_31] : memref<1x18x18x32xbf16, #tpu.memory_space<vmem>>, vector<1x1x18x32xbf16>
    %48 = vector.shape_cast %47 : vector<1x1x18x32xbf16> to vector<18x32xbf16>
    %49 = vector.extract_strided_slice %48 {offsets = [0, 0], sizes = [16, 32], strides = [1, 1]} : vector<18x32xbf16> to vector<16x32xbf16>
    %c6 = arith.constant 6 : index
    %c0_32 = arith.constant 0 : index
    %c0_33 = arith.constant 0 : index
    %50 = vector.load %arg3[%c6, %c0_32, %c0_33] : memref<9x32x32xbf16, #tpu.memory_space<vmem>>, vector<1x32x32xbf16>
    %51 = vector.shape_cast %50 : vector<1x32x32xbf16> to vector<32x32xbf16>
    %cst_34 = arith.constant dense<0.000000e+00> : vector<16x32xf32>
    %52 = tpu.matmul %49, %51, %cst_34 {dimension_numbers = #tpu.dot_dimension_numbers<[1], [0], [0], [1], [0, 0, 1, 1], [], []>} : vector<16x32xbf16>, vector<32x32xbf16>, vector<16x32xf32> -> vector<16x32xf32>
    %53 = arith.addf %43, %52 : vector<16x32xf32>
    %54 = vector.extract_strided_slice %48 {offsets = [1, 0], sizes = [16, 32], strides = [1, 1]} : vector<18x32xbf16> to vector<16x32xbf16>
    %c7 = arith.constant 7 : index
    %c0_35 = arith.constant 0 : index
    %c0_36 = arith.constant 0 : index
    %55 = vector.load %arg3[%c7, %c0_35, %c0_36] : memref<9x32x32xbf16, #tpu.memory_space<vmem>>, vector<1x32x32xbf16>
    %56 = vector.shape_cast %55 : vector<1x32x32xbf16> to vector<32x32xbf16>
    %cst_37 = arith.constant dense<0.000000e+00> : vector<16x32xf32>
    %57 = tpu.matmul %54, %56, %cst_37 {dimension_numbers = #tpu.dot_dimension_numbers<[1], [0], [0], [1], [0, 0, 1, 1], [], []>} : vector<16x32xbf16>, vector<32x32xbf16>, vector<16x32xf32> -> vector<16x32xf32>
    %58 = arith.addf %53, %57 : vector<16x32xf32>
    %59 = vector.extract_strided_slice %48 {offsets = [2, 0], sizes = [16, 32], strides = [1, 1]} : vector<18x32xbf16> to vector<16x32xbf16>
    %c8 = arith.constant 8 : index
    %c0_38 = arith.constant 0 : index
    %c0_39 = arith.constant 0 : index
    %60 = vector.load %arg3[%c8, %c0_38, %c0_39] : memref<9x32x32xbf16, #tpu.memory_space<vmem>>, vector<1x32x32xbf16>
    %61 = vector.shape_cast %60 : vector<1x32x32xbf16> to vector<32x32xbf16>
    %cst_40 = arith.constant dense<0.000000e+00> : vector<16x32xf32>
    %62 = tpu.matmul %59, %61, %cst_40 {dimension_numbers = #tpu.dot_dimension_numbers<[1], [0], [0], [1], [0, 0, 1, 1], [], []>} : vector<16x32xbf16>, vector<32x32xbf16>, vector<16x32xf32> -> vector<16x32xf32>
    %63 = arith.addf %58, %62 : vector<16x32xf32>
    %64 = arith.truncf %63 : vector<16x32xf32> to vector<16x32xbf16>
    %c0_41 = arith.constant 0 : index
    %c0_42 = arith.constant 0 : index
    %c0_43 = arith.constant 0 : index
    %c0_44 = arith.constant 0 : index
    %65 = vector.load %arg4[%c0_41, %c0_42, %c0_43, %c0_44] : memref<1x8x16x32xbf16, #tpu.memory_space<vmem>>, vector<1x1x16x32xbf16>
    %66 = vector.shape_cast %65 : vector<1x1x16x32xbf16> to vector<16x32xbf16>
    %67 = vector.shape_cast %64 : vector<16x32xbf16> to vector<1x1x16x32xbf16>
    tpu.vector_store %arg4[%c0_41, %c0_42, %c0_43, %c0_44], %67 {strides = array<i32>} : memref<1x8x16x32xbf16, #tpu.memory_space<vmem>>, vector<1x1x16x32xbf16>,
    %cst_45 = arith.constant dense<0.000000e+00> : vector<32xf32>
    %68 = vector.multi_reduction <add>, %63, %cst_45 [0] : vector<16x32xf32> to vector<32xf32>
    %69 = vector.shape_cast %68 : vector<32xf32> to vector<1x32xf32>
    %70 = arith.addf %1, %69 : vector<1x32xf32>
    %71 = arith.mulf %63, %63 : vector<16x32xf32>
    %cst_46 = arith.constant dense<0.000000e+00> : vector<32xf32>
    %72 = vector.multi_reduction <add>, %71, %cst_46 [0] : vector<16x32xf32> to vector<32xf32>
    %73 = vector.shape_cast %72 : vector<32xf32> to vector<1x32xf32>
    %74 = arith.addf %2, %73 : vector<1x32xf32>
    %cst_47 = arith.constant 0.000000e+00 : f32
    %75 = vector.broadcast %cst_47 : f32 to vector<16x32xf32>
    %c1_i32_48 = arith.constant 1 : i32
    %76 = arith.addi %0, %c1_i32_48 : i32
    %c0_i32_49 = arith.constant 0 : i32
    %77 = arith.addi %76, %c0_i32_49 : i32
    %c0_50 = arith.constant 0 : index
    %78 = arith.index_cast %77 : i32 to index
    %c0_51 = arith.constant 0 : index
    %c0_52 = arith.constant 0 : index
    %79 = vector.load %arg2[%c0_50, %78, %c0_51, %c0_52] : memref<1x18x18x32xbf16, #tpu.memory_space<vmem>>, vector<1x1x18x32xbf16>
    %80 = vector.shape_cast %79 : vector<1x1x18x32xbf16> to vector<18x32xbf16>
    %81 = vector.extract_strided_slice %80 {offsets = [0, 0], sizes = [16, 32], strides = [1, 1]} : vector<18x32xbf16> to vector<16x32xbf16>
    %c0_53 = arith.constant 0 : index
    %c0_54 = arith.constant 0 : index
    %c0_55 = arith.constant 0 : index
    %82 = vector.load %arg3[%c0_53, %c0_54, %c0_55] : memref<9x32x32xbf16, #tpu.memory_space<vmem>>, vector<1x32x32xbf16>
    %83 = vector.shape_cast %82 : vector<1x32x32xbf16> to vector<32x32xbf16>
    %cst_56 = arith.constant dense<0.000000e+00> : vector<16x32xf32>
    %84 = tpu.matmul %81, %83, %cst_56 {dimension_numbers = #tpu.dot_dimension_numbers<[1], [0], [0], [1], [0, 0, 1, 1], [], []>} : vector<16x32xbf16>, vector<32x32xbf16>, vector<16x32xf32> -> vector<16x32xf32>
    %85 = arith.addf %75, %84 : vector<16x32xf32>
    %86 = vector.extract_strided_slice %80 {offsets = [1, 0], sizes = [16, 32], strides = [1, 1]} : vector<18x32xbf16> to vector<16x32xbf16>
    %c1_57 = arith.constant 1 : index
    %c0_58 = arith.constant 0 : index
    %c0_59 = arith.constant 0 : index
    %87 = vector.load %arg3[%c1_57, %c0_58, %c0_59] : memref<9x32x32xbf16, #tpu.memory_space<vmem>>, vector<1x32x32xbf16>
    %88 = vector.shape_cast %87 : vector<1x32x32xbf16> to vector<32x32xbf16>
    %cst_60 = arith.constant dense<0.000000e+00> : vector<16x32xf32>
    %89 = tpu.matmul %86, %88, %cst_60 {dimension_numbers = #tpu.dot_dimension_numbers<[1], [0], [0], [1], [0, 0, 1, 1], [], []>} : vector<16x32xbf16>, vector<32x32xbf16>, vector<16x32xf32> -> vector<16x32xf32>
    %90 = arith.addf %85, %89 : vector<16x32xf32>
    %91 = vector.extract_strided_slice %80 {offsets = [2, 0], sizes = [16, 32], strides = [1, 1]} : vector<18x32xbf16> to vector<16x32xbf16>
    %c2_61 = arith.constant 2 : index
    %c0_62 = arith.constant 0 : index
    %c0_63 = arith.constant 0 : index
    %92 = vector.load %arg3[%c2_61, %c0_62, %c0_63] : memref<9x32x32xbf16, #tpu.memory_space<vmem>>, vector<1x32x32xbf16>
    %93 = vector.shape_cast %92 : vector<1x32x32xbf16> to vector<32x32xbf16>
    %cst_64 = arith.constant dense<0.000000e+00> : vector<16x32xf32>
    %94 = tpu.matmul %91, %93, %cst_64 {dimension_numbers = #tpu.dot_dimension_numbers<[1], [0], [0], [1], [0, 0, 1, 1], [], []>} : vector<16x32xbf16>, vector<32x32xbf16>, vector<16x32xf32> -> vector<16x32xf32>
    %95 = arith.addf %90, %94 : vector<16x32xf32>
    %c1_i32_65 = arith.constant 1 : i32
    %96 = arith.addi %0, %c1_i32_65 : i32
    %c1_i32_66 = arith.constant 1 : i32
    %97 = arith.addi %96, %c1_i32_66 : i32
    %c0_67 = arith.constant 0 : index
    %98 = arith.index_cast %97 : i32 to index
    %c0_68 = arith.constant 0 : index
    %c0_69 = arith.constant 0 : index
    %99 = vector.load %arg2[%c0_67, %98, %c0_68, %c0_69] : memref<1x18x18x32xbf16, #tpu.memory_space<vmem>>, vector<1x1x18x32xbf16>
    %100 = vector.shape_cast %99 : vector<1x1x18x32xbf16> to vector<18x32xbf16>
    %101 = vector.extract_strided_slice %100 {offsets = [0, 0], sizes = [16, 32], strides = [1, 1]} : vector<18x32xbf16> to vector<16x32xbf16>
    %c3_70 = arith.constant 3 : index
    %c0_71 = arith.constant 0 : index
    %c0_72 = arith.constant 0 : index
    %102 = vector.load %arg3[%c3_70, %c0_71, %c0_72] : memref<9x32x32xbf16, #tpu.memory_space<vmem>>, vector<1x32x32xbf16>
    %103 = vector.shape_cast %102 : vector<1x32x32xbf16> to vector<32x32xbf16>
    %cst_73 = arith.constant dense<0.000000e+00> : vector<16x32xf32>
    %104 = tpu.matmul %101, %103, %cst_73 {dimension_numbers = #tpu.dot_dimension_numbers<[1], [0], [0], [1], [0, 0, 1, 1], [], []>} : vector<16x32xbf16>, vector<32x32xbf16>, vector<16x32xf32> -> vector<16x32xf32>
    %105 = arith.addf %95, %104 : vector<16x32xf32>
    %106 = vector.extract_strided_slice %100 {offsets = [1, 0], sizes = [16, 32], strides = [1, 1]} : vector<18x32xbf16> to vector<16x32xbf16>
    %c4_74 = arith.constant 4 : index
    %c0_75 = arith.constant 0 : index
    %c0_76 = arith.constant 0 : index
    %107 = vector.load %arg3[%c4_74, %c0_75, %c0_76] : memref<9x32x32xbf16, #tpu.memory_space<vmem>>, vector<1x32x32xbf16>
    %108 = vector.shape_cast %107 : vector<1x32x32xbf16> to vector<32x32xbf16>
    %cst_77 = arith.constant dense<0.000000e+00> : vector<16x32xf32>
    %109 = tpu.matmul %106, %108, %cst_77 {dimension_numbers = #tpu.dot_dimension_numbers<[1], [0], [0], [1], [0, 0, 1, 1], [], []>} : vector<16x32xbf16>, vector<32x32xbf16>, vector<16x32xf32> -> vector<16x32xf32>
    %110 = arith.addf %105, %109 : vector<16x32xf32>
    %111 = vector.extract_strided_slice %100 {offsets = [2, 0], sizes = [16, 32], strides = [1, 1]} : vector<18x32xbf16> to vector<16x32xbf16>
    %c5_78 = arith.constant 5 : index
    %c0_79 = arith.constant 0 : index
    %c0_80 = arith.constant 0 : index
    %112 = vector.load %arg3[%c5_78, %c0_79, %c0_80] : memref<9x32x32xbf16, #tpu.memory_space<vmem>>, vector<1x32x32xbf16>
    %113 = vector.shape_cast %112 : vector<1x32x32xbf16> to vector<32x32xbf16>
    %cst_81 = arith.constant dense<0.000000e+00> : vector<16x32xf32>
    %114 = tpu.matmul %111, %113, %cst_81 {dimension_numbers = #tpu.dot_dimension_numbers<[1], [0], [0], [1], [0, 0, 1, 1], [], []>} : vector<16x32xbf16>, vector<32x32xbf16>, vector<16x32xf32> -> vector<16x32xf32>
    %115 = arith.addf %110, %114 : vector<16x32xf32>
    %c1_i32_82 = arith.constant 1 : i32
    %116 = arith.addi %0, %c1_i32_82 : i32
    %c2_i32_83 = arith.constant 2 : i32
    %117 = arith.addi %116, %c2_i32_83 : i32
    %c0_84 = arith.constant 0 : index
    %118 = arith.index_cast %117 : i32 to index
    %c0_85 = arith.constant 0 : index
    %c0_86 = arith.constant 0 : index
    %119 = vector.load %arg2[%c0_84, %118, %c0_85, %c0_86] : memref<1x18x18x32xbf16, #tpu.memory_space<vmem>>, vector<1x1x18x32xbf16>
    %120 = vector.shape_cast %119 : vector<1x1x18x32xbf16> to vector<18x32xbf16>
    %121 = vector.extract_strided_slice %120 {offsets = [0, 0], sizes = [16, 32], strides = [1, 1]} : vector<18x32xbf16> to vector<16x32xbf16>
    %c6_87 = arith.constant 6 : index
    %c0_88 = arith.constant 0 : index
    %c0_89 = arith.constant 0 : index
    %122 = vector.load %arg3[%c6_87, %c0_88, %c0_89] : memref<9x32x32xbf16, #tpu.memory_space<vmem>>, vector<1x32x32xbf16>
    %123 = vector.shape_cast %122 : vector<1x32x32xbf16> to vector<32x32xbf16>
    %cst_90 = arith.constant dense<0.000000e+00> : vector<16x32xf32>
    %124 = tpu.matmul %121, %123, %cst_90 {dimension_numbers = #tpu.dot_dimension_numbers<[1], [0], [0], [1], [0, 0, 1, 1], [], []>} : vector<16x32xbf16>, vector<32x32xbf16>, vector<16x32xf32> -> vector<16x32xf32>
    %125 = arith.addf %115, %124 : vector<16x32xf32>
    %126 = vector.extract_strided_slice %120 {offsets = [1, 0], sizes = [16, 32], strides = [1, 1]} : vector<18x32xbf16> to vector<16x32xbf16>
    %c7_91 = arith.constant 7 : index
    %c0_92 = arith.constant 0 : index
    %c0_93 = arith.constant 0 : index
    %127 = vector.load %arg3[%c7_91, %c0_92, %c0_93] : memref<9x32x32xbf16, #tpu.memory_space<vmem>>, vector<1x32x32xbf16>
    %128 = vector.shape_cast %127 : vector<1x32x32xbf16> to vector<32x32xbf16>
    %cst_94 = arith.constant dense<0.000000e+00> : vector<16x32xf32>
    %129 = tpu.matmul %126, %128, %cst_94 {dimension_numbers = #tpu.dot_dimension_numbers<[1], [0], [0], [1], [0, 0, 1, 1], [], []>} : vector<16x32xbf16>, vector<32x32xbf16>, vector<16x32xf32> -> vector<16x32xf32>
    %130 = arith.addf %125, %129 : vector<16x32xf32>
    %131 = vector.extract_strided_slice %120 {offsets = [2, 0], sizes = [16, 32], strides = [1, 1]} : vector<18x32xbf16> to vector<16x32xbf16>
    %c8_95 = arith.constant 8 : index
    %c0_96 = arith.constant 0 : index
    %c0_97 = arith.constant 0 : index
    %132 = vector.load %arg3[%c8_95, %c0_96, %c0_97] : memref<9x32x32xbf16, #tpu.memory_space<vmem>>, vector<1x32x32xbf16>
    %133 = vector.shape_cast %132 : vector<1x32x32xbf16> to vector<32x32xbf16>
    %cst_98 = arith.constant dense<0.000000e+00> : vector<16x32xf32>
    %134 = tpu.matmul %131, %133, %cst_98 {dimension_numbers = #tpu.dot_dimension_numbers<[1], [0], [0], [1], [0, 0, 1, 1], [], []>} : vector<16x32xbf16>, vector<32x32xbf16>, vector<16x32xf32> -> vector<16x32xf32>
    %135 = arith.addf %130, %134 : vector<16x32xf32>
    %136 = arith.truncf %135 : vector<16x32xf32> to vector<16x32xbf16>
    %c0_99 = arith.constant 0 : index
    %c1_100 = arith.constant 1 : index
    %c0_101 = arith.constant 0 : index
    %c0_102 = arith.constant 0 : index
    %137 = vector.load %arg4[%c0_99, %c1_100, %c0_101, %c0_102] : memref<1x8x16x32xbf16, #tpu.memory_space<vmem>>, vector<1x1x16x32xbf16>
    %138 = vector.shape_cast %137 : vector<1x1x16x32xbf16> to vector<16x32xbf16>
    %139 = vector.shape_cast %136 : vector<16x32xbf16> to vector<1x1x16x32xbf16>
    tpu.vector_store %arg4[%c0_99, %c1_100, %c0_101, %c0_102], %139 {strides = array<i32>} : memref<1x8x16x32xbf16, #tpu.memory_space<vmem>>, vector<1x1x16x32xbf16>,
    %cst_103 = arith.constant dense<0.000000e+00> : vector<32xf32>
    %140 = vector.multi_reduction <add>, %135, %cst_103 [0] : vector<16x32xf32> to vector<32xf32>
    %141 = vector.shape_cast %140 : vector<32xf32> to vector<1x32xf32>
    %142 = arith.addf %70, %141 : vector<1x32xf32>
    %143 = arith.mulf %135, %135 : vector<16x32xf32>
    %cst_104 = arith.constant dense<0.000000e+00> : vector<32xf32>
    %144 = vector.multi_reduction <add>, %143, %cst_104 [0] : vector<16x32xf32> to vector<32xf32>
    %145 = vector.shape_cast %144 : vector<32xf32> to vector<1x32xf32>
    %146 = arith.addf %74, %145 : vector<1x32xf32>
    %cst_105 = arith.constant 0.000000e+00 : f32
    %147 = vector.broadcast %cst_105 : f32 to vector<16x32xf32>
    %c2_i32_106 = arith.constant 2 : i32
    %148 = arith.addi %0, %c2_i32_106 : i32
    %c0_i32_107 = arith.constant 0 : i32
    %149 = arith.addi %148, %c0_i32_107 : i32
    %c0_108 = arith.constant 0 : index
    %150 = arith.index_cast %149 : i32 to index
    %c0_109 = arith.constant 0 : index
    %c0_110 = arith.constant 0 : index
    %151 = vector.load %arg2[%c0_108, %150, %c0_109, %c0_110] : memref<1x18x18x32xbf16, #tpu.memory_space<vmem>>, vector<1x1x18x32xbf16>
    %152 = vector.shape_cast %151 : vector<1x1x18x32xbf16> to vector<18x32xbf16>
    %153 = vector.extract_strided_slice %152 {offsets = [0, 0], sizes = [16, 32], strides = [1, 1]} : vector<18x32xbf16> to vector<16x32xbf16>
    %c0_111 = arith.constant 0 : index
    %c0_112 = arith.constant 0 : index
    %c0_113 = arith.constant 0 : index
    %154 = vector.load %arg3[%c0_111, %c0_112, %c0_113] : memref<9x32x32xbf16, #tpu.memory_space<vmem>>, vector<1x32x32xbf16>
    %155 = vector.shape_cast %154 : vector<1x32x32xbf16> to vector<32x32xbf16>
    %cst_114 = arith.constant dense<0.000000e+00> : vector<16x32xf32>
    %156 = tpu.matmul %153, %155, %cst_114 {dimension_numbers = #tpu.dot_dimension_numbers<[1], [0], [0], [1], [0, 0, 1, 1], [], []>} : vector<16x32xbf16>, vector<32x32xbf16>, vector<16x32xf32> -> vector<16x32xf32>
    %157 = arith.addf %147, %156 : vector<16x32xf32>
    %158 = vector.extract_strided_slice %152 {offsets = [1, 0], sizes = [16, 32], strides = [1, 1]} : vector<18x32xbf16> to vector<16x32xbf16>
    %c1_115 = arith.constant 1 : index
    %c0_116 = arith.constant 0 : index
    %c0_117 = arith.constant 0 : index
    %159 = vector.load %arg3[%c1_115, %c0_116, %c0_117] : memref<9x32x32xbf16, #tpu.memory_space<vmem>>, vector<1x32x32xbf16>
    %160 = vector.shape_cast %159 : vector<1x32x32xbf16> to vector<32x32xbf16>
    %cst_118 = arith.constant dense<0.000000e+00> : vector<16x32xf32>
    %161 = tpu.matmul %158, %160, %cst_118 {dimension_numbers = #tpu.dot_dimension_numbers<[1], [0], [0], [1], [0, 0, 1, 1], [], []>} : vector<16x32xbf16>, vector<32x32xbf16>, vector<16x32xf32> -> vector<16x32xf32>
    %162 = arith.addf %157, %161 : vector<16x32xf32>
    %163 = vector.extract_strided_slice %152 {offsets = [2, 0], sizes = [16, 32], strides = [1, 1]} : vector<18x32xbf16> to vector<16x32xbf16>
    %c2_119 = arith.constant 2 : index
    %c0_120 = arith.constant 0 : index
    %c0_121 = arith.constant 0 : index
    %164 = vector.load %arg3[%c2_119, %c0_120, %c0_121] : memref<9x32x32xbf16, #tpu.memory_space<vmem>>, vector<1x32x32xbf16>
    %165 = vector.shape_cast %164 : vector<1x32x32xbf16> to vector<32x32xbf16>
    %cst_122 = arith.constant dense<0.000000e+00> : vector<16x32xf32>
    %166 = tpu.matmul %163, %165, %cst_122 {dimension_numbers = #tpu.dot_dimension_numbers<[1], [0], [0], [1], [0, 0, 1, 1], [], []>} : vector<16x32xbf16>, vector<32x32xbf16>, vector<16x32xf32> -> vector<16x32xf32>
    %167 = arith.addf %162, %166 : vector<16x32xf32>
    %c2_i32_123 = arith.constant 2 : i32
    %168 = arith.addi %0, %c2_i32_123 : i32
    %c1_i32_124 = arith.constant 1 : i32
    %169 = arith.addi %168, %c1_i32_124 : i32
    %c0_125 = arith.constant 0 : index
    %170 = arith.index_cast %169 : i32 to index
    %c0_126 = arith.constant 0 : index
    %c0_127 = arith.constant 0 : index
    %171 = vector.load %arg2[%c0_125, %170, %c0_126, %c0_127] : memref<1x18x18x32xbf16, #tpu.memory_space<vmem>>, vector<1x1x18x32xbf16>
    %172 = vector.shape_cast %171 : vector<1x1x18x32xbf16> to vector<18x32xbf16>
    %173 = vector.extract_strided_slice %172 {offsets = [0, 0], sizes = [16, 32], strides = [1, 1]} : vector<18x32xbf16> to vector<16x32xbf16>
    %c3_128 = arith.constant 3 : index
    %c0_129 = arith.constant 0 : index
    %c0_130 = arith.constant 0 : index
    %174 = vector.load %arg3[%c3_128, %c0_129, %c0_130] : memref<9x32x32xbf16, #tpu.memory_space<vmem>>, vector<1x32x32xbf16>
    %175 = vector.shape_cast %174 : vector<1x32x32xbf16> to vector<32x32xbf16>
    %cst_131 = arith.constant dense<0.000000e+00> : vector<16x32xf32>
    %176 = tpu.matmul %173, %175, %cst_131 {dimension_numbers = #tpu.dot_dimension_numbers<[1], [0], [0], [1], [0, 0, 1, 1], [], []>} : vector<16x32xbf16>, vector<32x32xbf16>, vector<16x32xf32> -> vector<16x32xf32>
    %177 = arith.addf %167, %176 : vector<16x32xf32>
    %178 = vector.extract_strided_slice %172 {offsets = [1, 0], sizes = [16, 32], strides = [1, 1]} : vector<18x32xbf16> to vector<16x32xbf16>
    %c4_132 = arith.constant 4 : index
    %c0_133 = arith.constant 0 : index
    %c0_134 = arith.constant 0 : index
    %179 = vector.load %arg3[%c4_132, %c0_133, %c0_134] : memref<9x32x32xbf16, #tpu.memory_space<vmem>>, vector<1x32x32xbf16>
    %180 = vector.shape_cast %179 : vector<1x32x32xbf16> to vector<32x32xbf16>
    %cst_135 = arith.constant dense<0.000000e+00> : vector<16x32xf32>
    %181 = tpu.matmul %178, %180, %cst_135 {dimension_numbers = #tpu.dot_dimension_numbers<[1], [0], [0], [1], [0, 0, 1, 1], [], []>} : vector<16x32xbf16>, vector<32x32xbf16>, vector<16x32xf32> -> vector<16x32xf32>
    %182 = arith.addf %177, %181 : vector<16x32xf32>
    %183 = vector.extract_strided_slice %172 {offsets = [2, 0], sizes = [16, 32], strides = [1, 1]} : vector<18x32xbf16> to vector<16x32xbf16>
    %c5_136 = arith.constant 5 : index
    %c0_137 = arith.constant 0 : index
    %c0_138 = arith.constant 0 : index
    %184 = vector.load %arg3[%c5_136, %c0_137, %c0_138] : memref<9x32x32xbf16, #tpu.memory_space<vmem>>, vector<1x32x32xbf16>
    %185 = vector.shape_cast %184 : vector<1x32x32xbf16> to vector<32x32xbf16>
    %cst_139 = arith.constant dense<0.000000e+00> : vector<16x32xf32>
    %186 = tpu.matmul %183, %185, %cst_139 {dimension_numbers = #tpu.dot_dimension_numbers<[1], [0], [0], [1], [0, 0, 1, 1], [], []>} : vector<16x32xbf16>, vector<32x32xbf16>, vector<16x32xf32> -> vector<16x32xf32>
    %187 = arith.addf %182, %186 : vector<16x32xf32>
    %c2_i32_140 = arith.constant 2 : i32
    %188 = arith.addi %0, %c2_i32_140 : i32
    %c2_i32_141 = arith.constant 2 : i32
    %189 = arith.addi %188, %c2_i32_141 : i32
    %c0_142 = arith.constant 0 : index
    %190 = arith.index_cast %189 : i32 to index
    %c0_143 = arith.constant 0 : index
    %c0_144 = arith.constant 0 : index
    %191 = vector.load %arg2[%c0_142, %190, %c0_143, %c0_144] : memref<1x18x18x32xbf16, #tpu.memory_space<vmem>>, vector<1x1x18x32xbf16>
    %192 = vector.shape_cast %191 : vector<1x1x18x32xbf16> to vector<18x32xbf16>
    %193 = vector.extract_strided_slice %192 {offsets = [0, 0], sizes = [16, 32], strides = [1, 1]} : vector<18x32xbf16> to vector<16x32xbf16>
    %c6_145 = arith.constant 6 : index
    %c0_146 = arith.constant 0 : index
    %c0_147 = arith.constant 0 : index
    %194 = vector.load %arg3[%c6_145, %c0_146, %c0_147] : memref<9x32x32xbf16, #tpu.memory_space<vmem>>, vector<1x32x32xbf16>
    %195 = vector.shape_cast %194 : vector<1x32x32xbf16> to vector<32x32xbf16>
    %cst_148 = arith.constant dense<0.000000e+00> : vector<16x32xf32>
    %196 = tpu.matmul %193, %195, %cst_148 {dimension_numbers = #tpu.dot_dimension_numbers<[1], [0], [0], [1], [0, 0, 1, 1], [], []>} : vector<16x32xbf16>, vector<32x32xbf16>, vector<16x32xf32> -> vector<16x32xf32>
    %197 = arith.addf %187, %196 : vector<16x32xf32>
    %198 = vector.extract_strided_slice %192 {offsets = [1, 0], sizes = [16, 32], strides = [1, 1]} : vector<18x32xbf16> to vector<16x32xbf16>
    %c7_149 = arith.constant 7 : index
    %c0_150 = arith.constant 0 : index
    %c0_151 = arith.constant 0 : index
    %199 = vector.load %arg3[%c7_149, %c0_150, %c0_151] : memref<9x32x32xbf16, #tpu.memory_space<vmem>>, vector<1x32x32xbf16>
    %200 = vector.shape_cast %199 : vector<1x32x32xbf16> to vector<32x32xbf16>
    %cst_152 = arith.constant dense<0.000000e+00> : vector<16x32xf32>
    %201 = tpu.matmul %198, %200, %cst_152 {dimension_numbers = #tpu.dot_dimension_numbers<[1], [0], [0], [1], [0, 0, 1, 1], [], []>} : vector<16x32xbf16>, vector<32x32xbf16>, vector<16x32xf32> -> vector<16x32xf32>
    %202 = arith.addf %197, %201 : vector<16x32xf32>
    %203 = vector.extract_strided_slice %192 {offsets = [2, 0], sizes = [16, 32], strides = [1, 1]} : vector<18x32xbf16> to vector<16x32xbf16>
    %c8_153 = arith.constant 8 : index
    %c0_154 = arith.constant 0 : index
    %c0_155 = arith.constant 0 : index
    %204 = vector.load %arg3[%c8_153, %c0_154, %c0_155] : memref<9x32x32xbf16, #tpu.memory_space<vmem>>, vector<1x32x32xbf16>
    %205 = vector.shape_cast %204 : vector<1x32x32xbf16> to vector<32x32xbf16>
    %cst_156 = arith.constant dense<0.000000e+00> : vector<16x32xf32>
    %206 = tpu.matmul %203, %205, %cst_156 {dimension_numbers = #tpu.dot_dimension_numbers<[1], [0], [0], [1], [0, 0, 1, 1], [], []>} : vector<16x32xbf16>, vector<32x32xbf16>, vector<16x32xf32> -> vector<16x32xf32>
    %207 = arith.addf %202, %206 : vector<16x32xf32>
    %208 = arith.truncf %207 : vector<16x32xf32> to vector<16x32xbf16>
    %c0_157 = arith.constant 0 : index
    %c2_158 = arith.constant 2 : index
    %c0_159 = arith.constant 0 : index
    %c0_160 = arith.constant 0 : index
    %209 = vector.load %arg4[%c0_157, %c2_158, %c0_159, %c0_160] : memref<1x8x16x32xbf16, #tpu.memory_space<vmem>>, vector<1x1x16x32xbf16>
    %210 = vector.shape_cast %209 : vector<1x1x16x32xbf16> to vector<16x32xbf16>
    %211 = vector.shape_cast %208 : vector<16x32xbf16> to vector<1x1x16x32xbf16>
    tpu.vector_store %arg4[%c0_157, %c2_158, %c0_159, %c0_160], %211 {strides = array<i32>} : memref<1x8x16x32xbf16, #tpu.memory_space<vmem>>, vector<1x1x16x32xbf16>,
    %cst_161 = arith.constant dense<0.000000e+00> : vector<32xf32>
    %212 = vector.multi_reduction <add>, %207, %cst_161 [0] : vector<16x32xf32> to vector<32xf32>
    %213 = vector.shape_cast %212 : vector<32xf32> to vector<1x32xf32>
    %214 = arith.addf %142, %213 : vector<1x32xf32>
    %215 = arith.mulf %207, %207 : vector<16x32xf32>
    %cst_162 = arith.constant dense<0.000000e+00> : vector<32xf32>
    %216 = vector.multi_reduction <add>, %215, %cst_162 [0] : vector<16x32xf32> to vector<32xf32>
    %217 = vector.shape_cast %216 : vector<32xf32> to vector<1x32xf32>
    %218 = arith.addf %146, %217 : vector<1x32xf32>
    %cst_163 = arith.constant 0.000000e+00 : f32
    %219 = vector.broadcast %cst_163 : f32 to vector<16x32xf32>
    %c3_i32 = arith.constant 3 : i32
    %220 = arith.addi %0, %c3_i32 : i32
    %c0_i32_164 = arith.constant 0 : i32
    %221 = arith.addi %220, %c0_i32_164 : i32
    %c0_165 = arith.constant 0 : index
    %222 = arith.index_cast %221 : i32 to index
    %c0_166 = arith.constant 0 : index
    %c0_167 = arith.constant 0 : index
    %223 = vector.load %arg2[%c0_165, %222, %c0_166, %c0_167] : memref<1x18x18x32xbf16, #tpu.memory_space<vmem>>, vector<1x1x18x32xbf16>
    %224 = vector.shape_cast %223 : vector<1x1x18x32xbf16> to vector<18x32xbf16>
    %225 = vector.extract_strided_slice %224 {offsets = [0, 0], sizes = [16, 32], strides = [1, 1]} : vector<18x32xbf16> to vector<16x32xbf16>
    %c0_168 = arith.constant 0 : index
    %c0_169 = arith.constant 0 : index
    %c0_170 = arith.constant 0 : index
    %226 = vector.load %arg3[%c0_168, %c0_169, %c0_170] : memref<9x32x32xbf16, #tpu.memory_space<vmem>>, vector<1x32x32xbf16>
    %227 = vector.shape_cast %226 : vector<1x32x32xbf16> to vector<32x32xbf16>
    %cst_171 = arith.constant dense<0.000000e+00> : vector<16x32xf32>
    %228 = tpu.matmul %225, %227, %cst_171 {dimension_numbers = #tpu.dot_dimension_numbers<[1], [0], [0], [1], [0, 0, 1, 1], [], []>} : vector<16x32xbf16>, vector<32x32xbf16>, vector<16x32xf32> -> vector<16x32xf32>
    %229 = arith.addf %219, %228 : vector<16x32xf32>
    %230 = vector.extract_strided_slice %224 {offsets = [1, 0], sizes = [16, 32], strides = [1, 1]} : vector<18x32xbf16> to vector<16x32xbf16>
    %c1_172 = arith.constant 1 : index
    %c0_173 = arith.constant 0 : index
    %c0_174 = arith.constant 0 : index
    %231 = vector.load %arg3[%c1_172, %c0_173, %c0_174] : memref<9x32x32xbf16, #tpu.memory_space<vmem>>, vector<1x32x32xbf16>
    %232 = vector.shape_cast %231 : vector<1x32x32xbf16> to vector<32x32xbf16>
    %cst_175 = arith.constant dense<0.000000e+00> : vector<16x32xf32>
    %233 = tpu.matmul %230, %232, %cst_175 {dimension_numbers = #tpu.dot_dimension_numbers<[1], [0], [0], [1], [0, 0, 1, 1], [], []>} : vector<16x32xbf16>, vector<32x32xbf16>, vector<16x32xf32> -> vector<16x32xf32>
    %234 = arith.addf %229, %233 : vector<16x32xf32>
    %235 = vector.extract_strided_slice %224 {offsets = [2, 0], sizes = [16, 32], strides = [1, 1]} : vector<18x32xbf16> to vector<16x32xbf16>
    %c2_176 = arith.constant 2 : index
    %c0_177 = arith.constant 0 : index
    %c0_178 = arith.constant 0 : index
    %236 = vector.load %arg3[%c2_176, %c0_177, %c0_178] : memref<9x32x32xbf16, #tpu.memory_space<vmem>>, vector<1x32x32xbf16>
    %237 = vector.shape_cast %236 : vector<1x32x32xbf16> to vector<32x32xbf16>
    %cst_179 = arith.constant dense<0.000000e+00> : vector<16x32xf32>
    %238 = tpu.matmul %235, %237, %cst_179 {dimension_numbers = #tpu.dot_dimension_numbers<[1], [0], [0], [1], [0, 0, 1, 1], [], []>} : vector<16x32xbf16>, vector<32x32xbf16>, vector<16x32xf32> -> vector<16x32xf32>
    %239 = arith.addf %234, %238 : vector<16x32xf32>
    %c3_i32_180 = arith.constant 3 : i32
    %240 = arith.addi %0, %c3_i32_180 : i32
    %c1_i32_181 = arith.constant 1 : i32
    %241 = arith.addi %240, %c1_i32_181 : i32
    %c0_182 = arith.constant 0 : index
    %242 = arith.index_cast %241 : i32 to index
    %c0_183 = arith.constant 0 : index
    %c0_184 = arith.constant 0 : index
    %243 = vector.load %arg2[%c0_182, %242, %c0_183, %c0_184] : memref<1x18x18x32xbf16, #tpu.memory_space<vmem>>, vector<1x1x18x32xbf16>
    %244 = vector.shape_cast %243 : vector<1x1x18x32xbf16> to vector<18x32xbf16>
    %245 = vector.extract_strided_slice %244 {offsets = [0, 0], sizes = [16, 32], strides = [1, 1]} : vector<18x32xbf16> to vector<16x32xbf16>
    %c3_185 = arith.constant 3 : index
    %c0_186 = arith.constant 0 : index
    %c0_187 = arith.constant 0 : index
    %246 = vector.load %arg3[%c3_185, %c0_186, %c0_187] : memref<9x32x32xbf16, #tpu.memory_space<vmem>>, vector<1x32x32xbf16>
    %247 = vector.shape_cast %246 : vector<1x32x32xbf16> to vector<32x32xbf16>
    %cst_188 = arith.constant dense<0.000000e+00> : vector<16x32xf32>
    %248 = tpu.matmul %245, %247, %cst_188 {dimension_numbers = #tpu.dot_dimension_numbers<[1], [0], [0], [1], [0, 0, 1, 1], [], []>} : vector<16x32xbf16>, vector<32x32xbf16>, vector<16x32xf32> -> vector<16x32xf32>
    %249 = arith.addf %239, %248 : vector<16x32xf32>
    %250 = vector.extract_strided_slice %244 {offsets = [1, 0], sizes = [16, 32], strides = [1, 1]} : vector<18x32xbf16> to vector<16x32xbf16>
    %c4_189 = arith.constant 4 : index
    %c0_190 = arith.constant 0 : index
    %c0_191 = arith.constant 0 : index
    %251 = vector.load %arg3[%c4_189, %c0_190, %c0_191] : memref<9x32x32xbf16, #tpu.memory_space<vmem>>, vector<1x32x32xbf16>
    %252 = vector.shape_cast %251 : vector<1x32x32xbf16> to vector<32x32xbf16>
    %cst_192 = arith.constant dense<0.000000e+00> : vector<16x32xf32>
    %253 = tpu.matmul %250, %252, %cst_192 {dimension_numbers = #tpu.dot_dimension_numbers<[1], [0], [0], [1], [0, 0, 1, 1], [], []>} : vector<16x32xbf16>, vector<32x32xbf16>, vector<16x32xf32> -> vector<16x32xf32>
    %254 = arith.addf %249, %253 : vector<16x32xf32>
    %255 = vector.extract_strided_slice %244 {offsets = [2, 0], sizes = [16, 32], strides = [1, 1]} : vector<18x32xbf16> to vector<16x32xbf16>
    %c5_193 = arith.constant 5 : index
    %c0_194 = arith.constant 0 : index
    %c0_195 = arith.constant 0 : index
    %256 = vector.load %arg3[%c5_193, %c0_194, %c0_195] : memref<9x32x32xbf16, #tpu.memory_space<vmem>>, vector<1x32x32xbf16>
    %257 = vector.shape_cast %256 : vector<1x32x32xbf16> to vector<32x32xbf16>
    %cst_196 = arith.constant dense<0.000000e+00> : vector<16x32xf32>
    %258 = tpu.matmul %255, %257, %cst_196 {dimension_numbers = #tpu.dot_dimension_numbers<[1], [0], [0], [1], [0, 0, 1, 1], [], []>} : vector<16x32xbf16>, vector<32x32xbf16>, vector<16x32xf32> -> vector<16x32xf32>
    %259 = arith.addf %254, %258 : vector<16x32xf32>
    %c3_i32_197 = arith.constant 3 : i32
    %260 = arith.addi %0, %c3_i32_197 : i32
    %c2_i32_198 = arith.constant 2 : i32
    %261 = arith.addi %260, %c2_i32_198 : i32
    %c0_199 = arith.constant 0 : index
    %262 = arith.index_cast %261 : i32 to index
    %c0_200 = arith.constant 0 : index
    %c0_201 = arith.constant 0 : index
    %263 = vector.load %arg2[%c0_199, %262, %c0_200, %c0_201] : memref<1x18x18x32xbf16, #tpu.memory_space<vmem>>, vector<1x1x18x32xbf16>
    %264 = vector.shape_cast %263 : vector<1x1x18x32xbf16> to vector<18x32xbf16>
    %265 = vector.extract_strided_slice %264 {offsets = [0, 0], sizes = [16, 32], strides = [1, 1]} : vector<18x32xbf16> to vector<16x32xbf16>
    %c6_202 = arith.constant 6 : index
    %c0_203 = arith.constant 0 : index
    %c0_204 = arith.constant 0 : index
    %266 = vector.load %arg3[%c6_202, %c0_203, %c0_204] : memref<9x32x32xbf16, #tpu.memory_space<vmem>>, vector<1x32x32xbf16>
    %267 = vector.shape_cast %266 : vector<1x32x32xbf16> to vector<32x32xbf16>
    %cst_205 = arith.constant dense<0.000000e+00> : vector<16x32xf32>
    %268 = tpu.matmul %265, %267, %cst_205 {dimension_numbers = #tpu.dot_dimension_numbers<[1], [0], [0], [1], [0, 0, 1, 1], [], []>} : vector<16x32xbf16>, vector<32x32xbf16>, vector<16x32xf32> -> vector<16x32xf32>
    %269 = arith.addf %259, %268 : vector<16x32xf32>
    %270 = vector.extract_strided_slice %264 {offsets = [1, 0], sizes = [16, 32], strides = [1, 1]} : vector<18x32xbf16> to vector<16x32xbf16>
    %c7_206 = arith.constant 7 : index
    %c0_207 = arith.constant 0 : index
    %c0_208 = arith.constant 0 : index
    %271 = vector.load %arg3[%c7_206, %c0_207, %c0_208] : memref<9x32x32xbf16, #tpu.memory_space<vmem>>, vector<1x32x32xbf16>
    %272 = vector.shape_cast %271 : vector<1x32x32xbf16> to vector<32x32xbf16>
    %cst_209 = arith.constant dense<0.000000e+00> : vector<16x32xf32>
    %273 = tpu.matmul %270, %272, %cst_209 {dimension_numbers = #tpu.dot_dimension_numbers<[1], [0], [0], [1], [0, 0, 1, 1], [], []>} : vector<16x32xbf16>, vector<32x32xbf16>, vector<16x32xf32> -> vector<16x32xf32>
    %274 = arith.addf %269, %273 : vector<16x32xf32>
    %275 = vector.extract_strided_slice %264 {offsets = [2, 0], sizes = [16, 32], strides = [1, 1]} : vector<18x32xbf16> to vector<16x32xbf16>
    %c8_210 = arith.constant 8 : index
    %c0_211 = arith.constant 0 : index
    %c0_212 = arith.constant 0 : index
    %276 = vector.load %arg3[%c8_210, %c0_211, %c0_212] : memref<9x32x32xbf16, #tpu.memory_space<vmem>>, vector<1x32x32xbf16>
    %277 = vector.shape_cast %276 : vector<1x32x32xbf16> to vector<32x32xbf16>
    %cst_213 = arith.constant dense<0.000000e+00> : vector<16x32xf32>
    %278 = tpu.matmul %275, %277, %cst_213 {dimension_numbers = #tpu.dot_dimension_numbers<[1], [0], [0], [1], [0, 0, 1, 1], [], []>} : vector<16x32xbf16>, vector<32x32xbf16>, vector<16x32xf32> -> vector<16x32xf32>
    %279 = arith.addf %274, %278 : vector<16x32xf32>
    %280 = arith.truncf %279 : vector<16x32xf32> to vector<16x32xbf16>
    %c0_214 = arith.constant 0 : index
    %c3_215 = arith.constant 3 : index
    %c0_216 = arith.constant 0 : index
    %c0_217 = arith.constant 0 : index
    %281 = vector.load %arg4[%c0_214, %c3_215, %c0_216, %c0_217] : memref<1x8x16x32xbf16, #tpu.memory_space<vmem>>, vector<1x1x16x32xbf16>
    %282 = vector.shape_cast %281 : vector<1x1x16x32xbf16> to vector<16x32xbf16>
    %283 = vector.shape_cast %280 : vector<16x32xbf16> to vector<1x1x16x32xbf16>
    tpu.vector_store %arg4[%c0_214, %c3_215, %c0_216, %c0_217], %283 {strides = array<i32>} : memref<1x8x16x32xbf16, #tpu.memory_space<vmem>>, vector<1x1x16x32xbf16>,
    %cst_218 = arith.constant dense<0.000000e+00> : vector<32xf32>
    %284 = vector.multi_reduction <add>, %279, %cst_218 [0] : vector<16x32xf32> to vector<32xf32>
    %285 = vector.shape_cast %284 : vector<32xf32> to vector<1x32xf32>
    %286 = arith.addf %214, %285 : vector<1x32xf32>
    %287 = arith.mulf %279, %279 : vector<16x32xf32>
    %cst_219 = arith.constant dense<0.000000e+00> : vector<32xf32>
    %288 = vector.multi_reduction <add>, %287, %cst_219 [0] : vector<16x32xf32> to vector<32xf32>
    %289 = vector.shape_cast %288 : vector<32xf32> to vector<1x32xf32>
    %290 = arith.addf %218, %289 : vector<1x32xf32>
    %cst_220 = arith.constant 0.000000e+00 : f32
    %291 = vector.broadcast %cst_220 : f32 to vector<16x32xf32>
    %c4_i32 = arith.constant 4 : i32
    %292 = arith.addi %0, %c4_i32 : i32
    %c0_i32_221 = arith.constant 0 : i32
    %293 = arith.addi %292, %c0_i32_221 : i32
    %c0_222 = arith.constant 0 : index
    %294 = arith.index_cast %293 : i32 to index
    %c0_223 = arith.constant 0 : index
    %c0_224 = arith.constant 0 : index
    %295 = vector.load %arg2[%c0_222, %294, %c0_223, %c0_224] : memref<1x18x18x32xbf16, #tpu.memory_space<vmem>>, vector<1x1x18x32xbf16>
    %296 = vector.shape_cast %295 : vector<1x1x18x32xbf16> to vector<18x32xbf16>
    %297 = vector.extract_strided_slice %296 {offsets = [0, 0], sizes = [16, 32], strides = [1, 1]} : vector<18x32xbf16> to vector<16x32xbf16>
    %c0_225 = arith.constant 0 : index
    %c0_226 = arith.constant 0 : index
    %c0_227 = arith.constant 0 : index
    %298 = vector.load %arg3[%c0_225, %c0_226, %c0_227] : memref<9x32x32xbf16, #tpu.memory_space<vmem>>, vector<1x32x32xbf16>
    %299 = vector.shape_cast %298 : vector<1x32x32xbf16> to vector<32x32xbf16>
    %cst_228 = arith.constant dense<0.000000e+00> : vector<16x32xf32>
    %300 = tpu.matmul %297, %299, %cst_228 {dimension_numbers = #tpu.dot_dimension_numbers<[1], [0], [0], [1], [0, 0, 1, 1], [], []>} : vector<16x32xbf16>, vector<32x32xbf16>, vector<16x32xf32> -> vector<16x32xf32>
    %301 = arith.addf %291, %300 : vector<16x32xf32>
    %302 = vector.extract_strided_slice %296 {offsets = [1, 0], sizes = [16, 32], strides = [1, 1]} : vector<18x32xbf16> to vector<16x32xbf16>
    %c1_229 = arith.constant 1 : index
    %c0_230 = arith.constant 0 : index
    %c0_231 = arith.constant 0 : index
    %303 = vector.load %arg3[%c1_229, %c0_230, %c0_231] : memref<9x32x32xbf16, #tpu.memory_space<vmem>>, vector<1x32x32xbf16>
    %304 = vector.shape_cast %303 : vector<1x32x32xbf16> to vector<32x32xbf16>
    %cst_232 = arith.constant dense<0.000000e+00> : vector<16x32xf32>
    %305 = tpu.matmul %302, %304, %cst_232 {dimension_numbers = #tpu.dot_dimension_numbers<[1], [0], [0], [1], [0, 0, 1, 1], [], []>} : vector<16x32xbf16>, vector<32x32xbf16>, vector<16x32xf32> -> vector<16x32xf32>
    %306 = arith.addf %301, %305 : vector<16x32xf32>
    %307 = vector.extract_strided_slice %296 {offsets = [2, 0], sizes = [16, 32], strides = [1, 1]} : vector<18x32xbf16> to vector<16x32xbf16>
    %c2_233 = arith.constant 2 : index
    %c0_234 = arith.constant 0 : index
    %c0_235 = arith.constant 0 : index
    %308 = vector.load %arg3[%c2_233, %c0_234, %c0_235] : memref<9x32x32xbf16, #tpu.memory_space<vmem>>, vector<1x32x32xbf16>
    %309 = vector.shape_cast %308 : vector<1x32x32xbf16> to vector<32x32xbf16>
    %cst_236 = arith.constant dense<0.000000e+00> : vector<16x32xf32>
    %310 = tpu.matmul %307, %309, %cst_236 {dimension_numbers = #tpu.dot_dimension_numbers<[1], [0], [0], [1], [0, 0, 1, 1], [], []>} : vector<16x32xbf16>, vector<32x32xbf16>, vector<16x32xf32> -> vector<16x32xf32>
    %311 = arith.addf %306, %310 : vector<16x32xf32>
    %c4_i32_237 = arith.constant 4 : i32
    %312 = arith.addi %0, %c4_i32_237 : i32
    %c1_i32_238 = arith.constant 1 : i32
    %313 = arith.addi %312, %c1_i32_238 : i32
    %c0_239 = arith.constant 0 : index
    %314 = arith.index_cast %313 : i32 to index
    %c0_240 = arith.constant 0 : index
    %c0_241 = arith.constant 0 : index
    %315 = vector.load %arg2[%c0_239, %314, %c0_240, %c0_241] : memref<1x18x18x32xbf16, #tpu.memory_space<vmem>>, vector<1x1x18x32xbf16>
    %316 = vector.shape_cast %315 : vector<1x1x18x32xbf16> to vector<18x32xbf16>
    %317 = vector.extract_strided_slice %316 {offsets = [0, 0], sizes = [16, 32], strides = [1, 1]} : vector<18x32xbf16> to vector<16x32xbf16>
    %c3_242 = arith.constant 3 : index
    %c0_243 = arith.constant 0 : index
    %c0_244 = arith.constant 0 : index
    %318 = vector.load %arg3[%c3_242, %c0_243, %c0_244] : memref<9x32x32xbf16, #tpu.memory_space<vmem>>, vector<1x32x32xbf16>
    %319 = vector.shape_cast %318 : vector<1x32x32xbf16> to vector<32x32xbf16>
    %cst_245 = arith.constant dense<0.000000e+00> : vector<16x32xf32>
    %320 = tpu.matmul %317, %319, %cst_245 {dimension_numbers = #tpu.dot_dimension_numbers<[1], [0], [0], [1], [0, 0, 1, 1], [], []>} : vector<16x32xbf16>, vector<32x32xbf16>, vector<16x32xf32> -> vector<16x32xf32>
    %321 = arith.addf %311, %320 : vector<16x32xf32>
    %322 = vector.extract_strided_slice %316 {offsets = [1, 0], sizes = [16, 32], strides = [1, 1]} : vector<18x32xbf16> to vector<16x32xbf16>
    %c4_246 = arith.constant 4 : index
    %c0_247 = arith.constant 0 : index
    %c0_248 = arith.constant 0 : index
    %323 = vector.load %arg3[%c4_246, %c0_247, %c0_248] : memref<9x32x32xbf16, #tpu.memory_space<vmem>>, vector<1x32x32xbf16>
    %324 = vector.shape_cast %323 : vector<1x32x32xbf16> to vector<32x32xbf16>
    %cst_249 = arith.constant dense<0.000000e+00> : vector<16x32xf32>
    %325 = tpu.matmul %322, %324, %cst_249 {dimension_numbers = #tpu.dot_dimension_numbers<[1], [0], [0], [1], [0, 0, 1, 1], [], []>} : vector<16x32xbf16>, vector<32x32xbf16>, vector<16x32xf32> -> vector<16x32xf32>
    %326 = arith.addf %321, %325 : vector<16x32xf32>
    %327 = vector.extract_strided_slice %316 {offsets = [2, 0], sizes = [16, 32], strides = [1, 1]} : vector<18x32xbf16> to vector<16x32xbf16>
    %c5_250 = arith.constant 5 : index
    %c0_251 = arith.constant 0 : index
    %c0_252 = arith.constant 0 : index
    %328 = vector.load %arg3[%c5_250, %c0_251, %c0_252] : memref<9x32x32xbf16, #tpu.memory_space<vmem>>, vector<1x32x32xbf16>
    %329 = vector.shape_cast %328 : vector<1x32x32xbf16> to vector<32x32xbf16>
    %cst_253 = arith.constant dense<0.000000e+00> : vector<16x32xf32>
    %330 = tpu.matmul %327, %329, %cst_253 {dimension_numbers = #tpu.dot_dimension_numbers<[1], [0], [0], [1], [0, 0, 1, 1], [], []>} : vector<16x32xbf16>, vector<32x32xbf16>, vector<16x32xf32> -> vector<16x32xf32>
    %331 = arith.addf %326, %330 : vector<16x32xf32>
    %c4_i32_254 = arith.constant 4 : i32
    %332 = arith.addi %0, %c4_i32_254 : i32
    %c2_i32_255 = arith.constant 2 : i32
    %333 = arith.addi %332, %c2_i32_255 : i32
    %c0_256 = arith.constant 0 : index
    %334 = arith.index_cast %333 : i32 to index
    %c0_257 = arith.constant 0 : index
    %c0_258 = arith.constant 0 : index
    %335 = vector.load %arg2[%c0_256, %334, %c0_257, %c0_258] : memref<1x18x18x32xbf16, #tpu.memory_space<vmem>>, vector<1x1x18x32xbf16>
    %336 = vector.shape_cast %335 : vector<1x1x18x32xbf16> to vector<18x32xbf16>
    %337 = vector.extract_strided_slice %336 {offsets = [0, 0], sizes = [16, 32], strides = [1, 1]} : vector<18x32xbf16> to vector<16x32xbf16>
    %c6_259 = arith.constant 6 : index
    %c0_260 = arith.constant 0 : index
    %c0_261 = arith.constant 0 : index
    %338 = vector.load %arg3[%c6_259, %c0_260, %c0_261] : memref<9x32x32xbf16, #tpu.memory_space<vmem>>, vector<1x32x32xbf16>
    %339 = vector.shape_cast %338 : vector<1x32x32xbf16> to vector<32x32xbf16>
    %cst_262 = arith.constant dense<0.000000e+00> : vector<16x32xf32>
    %340 = tpu.matmul %337, %339, %cst_262 {dimension_numbers = #tpu.dot_dimension_numbers<[1], [0], [0], [1], [0, 0, 1, 1], [], []>} : vector<16x32xbf16>, vector<32x32xbf16>, vector<16x32xf32> -> vector<16x32xf32>
    %341 = arith.addf %331, %340 : vector<16x32xf32>
    %342 = vector.extract_strided_slice %336 {offsets = [1, 0], sizes = [16, 32], strides = [1, 1]} : vector<18x32xbf16> to vector<16x32xbf16>
    %c7_263 = arith.constant 7 : index
    %c0_264 = arith.constant 0 : index
    %c0_265 = arith.constant 0 : index
    %343 = vector.load %arg3[%c7_263, %c0_264, %c0_265] : memref<9x32x32xbf16, #tpu.memory_space<vmem>>, vector<1x32x32xbf16>
    %344 = vector.shape_cast %343 : vector<1x32x32xbf16> to vector<32x32xbf16>
    %cst_266 = arith.constant dense<0.000000e+00> : vector<16x32xf32>
    %345 = tpu.matmul %342, %344, %cst_266 {dimension_numbers = #tpu.dot_dimension_numbers<[1], [0], [0], [1], [0, 0, 1, 1], [], []>} : vector<16x32xbf16>, vector<32x32xbf16>, vector<16x32xf32> -> vector<16x32xf32>
    %346 = arith.addf %341, %345 : vector<16x32xf32>
    %347 = vector.extract_strided_slice %336 {offsets = [2, 0], sizes = [16, 32], strides = [1, 1]} : vector<18x32xbf16> to vector<16x32xbf16>
    %c8_267 = arith.constant 8 : index
    %c0_268 = arith.constant 0 : index
    %c0_269 = arith.constant 0 : index
    %348 = vector.load %arg3[%c8_267, %c0_268, %c0_269] : memref<9x32x32xbf16, #tpu.memory_space<vmem>>, vector<1x32x32xbf16>
    %349 = vector.shape_cast %348 : vector<1x32x32xbf16> to vector<32x32xbf16>
    %cst_270 = arith.constant dense<0.000000e+00> : vector<16x32xf32>
    %350 = tpu.matmul %347, %349, %cst_270 {dimension_numbers = #tpu.dot_dimension_numbers<[1], [0], [0], [1], [0, 0, 1, 1], [], []>} : vector<16x32xbf16>, vector<32x32xbf16>, vector<16x32xf32> -> vector<16x32xf32>
    %351 = arith.addf %346, %350 : vector<16x32xf32>
    %352 = arith.truncf %351 : vector<16x32xf32> to vector<16x32xbf16>
    %c0_271 = arith.constant 0 : index
    %c4_272 = arith.constant 4 : index
    %c0_273 = arith.constant 0 : index
    %c0_274 = arith.constant 0 : index
    %353 = vector.load %arg4[%c0_271, %c4_272, %c0_273, %c0_274] : memref<1x8x16x32xbf16, #tpu.memory_space<vmem>>, vector<1x1x16x32xbf16>
    %354 = vector.shape_cast %353 : vector<1x1x16x32xbf16> to vector<16x32xbf16>
    %355 = vector.shape_cast %352 : vector<16x32xbf16> to vector<1x1x16x32xbf16>
    tpu.vector_store %arg4[%c0_271, %c4_272, %c0_273, %c0_274], %355 {strides = array<i32>} : memref<1x8x16x32xbf16, #tpu.memory_space<vmem>>, vector<1x1x16x32xbf16>,
    %cst_275 = arith.constant dense<0.000000e+00> : vector<32xf32>
    %356 = vector.multi_reduction <add>, %351, %cst_275 [0] : vector<16x32xf32> to vector<32xf32>
    %357 = vector.shape_cast %356 : vector<32xf32> to vector<1x32xf32>
    %358 = arith.addf %286, %357 : vector<1x32xf32>
    %359 = arith.mulf %351, %351 : vector<16x32xf32>
    %cst_276 = arith.constant dense<0.000000e+00> : vector<32xf32>
    %360 = vector.multi_reduction <add>, %359, %cst_276 [0] : vector<16x32xf32> to vector<32xf32>
    %361 = vector.shape_cast %360 : vector<32xf32> to vector<1x32xf32>
    %362 = arith.addf %290, %361 : vector<1x32xf32>
    %cst_277 = arith.constant 0.000000e+00 : f32
    %363 = vector.broadcast %cst_277 : f32 to vector<16x32xf32>
    %c5_i32 = arith.constant 5 : i32
    %364 = arith.addi %0, %c5_i32 : i32
    %c0_i32_278 = arith.constant 0 : i32
    %365 = arith.addi %364, %c0_i32_278 : i32
    %c0_279 = arith.constant 0 : index
    %366 = arith.index_cast %365 : i32 to index
    %c0_280 = arith.constant 0 : index
    %c0_281 = arith.constant 0 : index
    %367 = vector.load %arg2[%c0_279, %366, %c0_280, %c0_281] : memref<1x18x18x32xbf16, #tpu.memory_space<vmem>>, vector<1x1x18x32xbf16>
    %368 = vector.shape_cast %367 : vector<1x1x18x32xbf16> to vector<18x32xbf16>
    %369 = vector.extract_strided_slice %368 {offsets = [0, 0], sizes = [16, 32], strides = [1, 1]} : vector<18x32xbf16> to vector<16x32xbf16>
    %c0_282 = arith.constant 0 : index
    %c0_283 = arith.constant 0 : index
    %c0_284 = arith.constant 0 : index
    %370 = vector.load %arg3[%c0_282, %c0_283, %c0_284] : memref<9x32x32xbf16, #tpu.memory_space<vmem>>, vector<1x32x32xbf16>
    %371 = vector.shape_cast %370 : vector<1x32x32xbf16> to vector<32x32xbf16>
    %cst_285 = arith.constant dense<0.000000e+00> : vector<16x32xf32>
    %372 = tpu.matmul %369, %371, %cst_285 {dimension_numbers = #tpu.dot_dimension_numbers<[1], [0], [0], [1], [0, 0, 1, 1], [], []>} : vector<16x32xbf16>, vector<32x32xbf16>, vector<16x32xf32> -> vector<16x32xf32>
    %373 = arith.addf %363, %372 : vector<16x32xf32>
    %374 = vector.extract_strided_slice %368 {offsets = [1, 0], sizes = [16, 32], strides = [1, 1]} : vector<18x32xbf16> to vector<16x32xbf16>
    %c1_286 = arith.constant 1 : index
    %c0_287 = arith.constant 0 : index
    %c0_288 = arith.constant 0 : index
    %375 = vector.load %arg3[%c1_286, %c0_287, %c0_288] : memref<9x32x32xbf16, #tpu.memory_space<vmem>>, vector<1x32x32xbf16>
    %376 = vector.shape_cast %375 : vector<1x32x32xbf16> to vector<32x32xbf16>
    %cst_289 = arith.constant dense<0.000000e+00> : vector<16x32xf32>
    %377 = tpu.matmul %374, %376, %cst_289 {dimension_numbers = #tpu.dot_dimension_numbers<[1], [0], [0], [1], [0, 0, 1, 1], [], []>} : vector<16x32xbf16>, vector<32x32xbf16>, vector<16x32xf32> -> vector<16x32xf32>
    %378 = arith.addf %373, %377 : vector<16x32xf32>
    %379 = vector.extract_strided_slice %368 {offsets = [2, 0], sizes = [16, 32], strides = [1, 1]} : vector<18x32xbf16> to vector<16x32xbf16>
    %c2_290 = arith.constant 2 : index
    %c0_291 = arith.constant 0 : index
    %c0_292 = arith.constant 0 : index
    %380 = vector.load %arg3[%c2_290, %c0_291, %c0_292] : memref<9x32x32xbf16, #tpu.memory_space<vmem>>, vector<1x32x32xbf16>
    %381 = vector.shape_cast %380 : vector<1x32x32xbf16> to vector<32x32xbf16>
    %cst_293 = arith.constant dense<0.000000e+00> : vector<16x32xf32>
    %382 = tpu.matmul %379, %381, %cst_293 {dimension_numbers = #tpu.dot_dimension_numbers<[1], [0], [0], [1], [0, 0, 1, 1], [], []>} : vector<16x32xbf16>, vector<32x32xbf16>, vector<16x32xf32> -> vector<16x32xf32>
    %383 = arith.addf %378, %382 : vector<16x32xf32>
    %c5_i32_294 = arith.constant 5 : i32
    %384 = arith.addi %0, %c5_i32_294 : i32
    %c1_i32_295 = arith.constant 1 : i32
    %385 = arith.addi %384, %c1_i32_295 : i32
    %c0_296 = arith.constant 0 : index
    %386 = arith.index_cast %385 : i32 to index
    %c0_297 = arith.constant 0 : index
    %c0_298 = arith.constant 0 : index
    %387 = vector.load %arg2[%c0_296, %386, %c0_297, %c0_298] : memref<1x18x18x32xbf16, #tpu.memory_space<vmem>>, vector<1x1x18x32xbf16>
    %388 = vector.shape_cast %387 : vector<1x1x18x32xbf16> to vector<18x32xbf16>
    %389 = vector.extract_strided_slice %388 {offsets = [0, 0], sizes = [16, 32], strides = [1, 1]} : vector<18x32xbf16> to vector<16x32xbf16>
    %c3_299 = arith.constant 3 : index
    %c0_300 = arith.constant 0 : index
    %c0_301 = arith.constant 0 : index
    %390 = vector.load %arg3[%c3_299, %c0_300, %c0_301] : memref<9x32x32xbf16, #tpu.memory_space<vmem>>, vector<1x32x32xbf16>
    %391 = vector.shape_cast %390 : vector<1x32x32xbf16> to vector<32x32xbf16>
    %cst_302 = arith.constant dense<0.000000e+00> : vector<16x32xf32>
    %392 = tpu.matmul %389, %391, %cst_302 {dimension_numbers = #tpu.dot_dimension_numbers<[1], [0], [0], [1], [0, 0, 1, 1], [], []>} : vector<16x32xbf16>, vector<32x32xbf16>, vector<16x32xf32> -> vector<16x32xf32>
    %393 = arith.addf %383, %392 : vector<16x32xf32>
    %394 = vector.extract_strided_slice %388 {offsets = [1, 0], sizes = [16, 32], strides = [1, 1]} : vector<18x32xbf16> to vector<16x32xbf16>
    %c4_303 = arith.constant 4 : index
    %c0_304 = arith.constant 0 : index
    %c0_305 = arith.constant 0 : index
    %395 = vector.load %arg3[%c4_303, %c0_304, %c0_305] : memref<9x32x32xbf16, #tpu.memory_space<vmem>>, vector<1x32x32xbf16>
    %396 = vector.shape_cast %395 : vector<1x32x32xbf16> to vector<32x32xbf16>
    %cst_306 = arith.constant dense<0.000000e+00> : vector<16x32xf32>
    %397 = tpu.matmul %394, %396, %cst_306 {dimension_numbers = #tpu.dot_dimension_numbers<[1], [0], [0], [1], [0, 0, 1, 1], [], []>} : vector<16x32xbf16>, vector<32x32xbf16>, vector<16x32xf32> -> vector<16x32xf32>
    %398 = arith.addf %393, %397 : vector<16x32xf32>
    %399 = vector.extract_strided_slice %388 {offsets = [2, 0], sizes = [16, 32], strides = [1, 1]} : vector<18x32xbf16> to vector<16x32xbf16>
    %c5_307 = arith.constant 5 : index
    %c0_308 = arith.constant 0 : index
    %c0_309 = arith.constant 0 : index
    %400 = vector.load %arg3[%c5_307, %c0_308, %c0_309] : memref<9x32x32xbf16, #tpu.memory_space<vmem>>, vector<1x32x32xbf16>
    %401 = vector.shape_cast %400 : vector<1x32x32xbf16> to vector<32x32xbf16>
    %cst_310 = arith.constant dense<0.000000e+00> : vector<16x32xf32>
    %402 = tpu.matmul %399, %401, %cst_310 {dimension_numbers = #tpu.dot_dimension_numbers<[1], [0], [0], [1], [0, 0, 1, 1], [], []>} : vector<16x32xbf16>, vector<32x32xbf16>, vector<16x32xf32> -> vector<16x32xf32>
    %403 = arith.addf %398, %402 : vector<16x32xf32>
    %c5_i32_311 = arith.constant 5 : i32
    %404 = arith.addi %0, %c5_i32_311 : i32
    %c2_i32_312 = arith.constant 2 : i32
    %405 = arith.addi %404, %c2_i32_312 : i32
    %c0_313 = arith.constant 0 : index
    %406 = arith.index_cast %405 : i32 to index
    %c0_314 = arith.constant 0 : index
    %c0_315 = arith.constant 0 : index
    %407 = vector.load %arg2[%c0_313, %406, %c0_314, %c0_315] : memref<1x18x18x32xbf16, #tpu.memory_space<vmem>>, vector<1x1x18x32xbf16>
    %408 = vector.shape_cast %407 : vector<1x1x18x32xbf16> to vector<18x32xbf16>
    %409 = vector.extract_strided_slice %408 {offsets = [0, 0], sizes = [16, 32], strides = [1, 1]} : vector<18x32xbf16> to vector<16x32xbf16>
    %c6_316 = arith.constant 6 : index
    %c0_317 = arith.constant 0 : index
    %c0_318 = arith.constant 0 : index
    %410 = vector.load %arg3[%c6_316, %c0_317, %c0_318] : memref<9x32x32xbf16, #tpu.memory_space<vmem>>, vector<1x32x32xbf16>
    %411 = vector.shape_cast %410 : vector<1x32x32xbf16> to vector<32x32xbf16>
    %cst_319 = arith.constant dense<0.000000e+00> : vector<16x32xf32>
    %412 = tpu.matmul %409, %411, %cst_319 {dimension_numbers = #tpu.dot_dimension_numbers<[1], [0], [0], [1], [0, 0, 1, 1], [], []>} : vector<16x32xbf16>, vector<32x32xbf16>, vector<16x32xf32> -> vector<16x32xf32>
    %413 = arith.addf %403, %412 : vector<16x32xf32>
    %414 = vector.extract_strided_slice %408 {offsets = [1, 0], sizes = [16, 32], strides = [1, 1]} : vector<18x32xbf16> to vector<16x32xbf16>
    %c7_320 = arith.constant 7 : index
    %c0_321 = arith.constant 0 : index
    %c0_322 = arith.constant 0 : index
    %415 = vector.load %arg3[%c7_320, %c0_321, %c0_322] : memref<9x32x32xbf16, #tpu.memory_space<vmem>>, vector<1x32x32xbf16>
    %416 = vector.shape_cast %415 : vector<1x32x32xbf16> to vector<32x32xbf16>
    %cst_323 = arith.constant dense<0.000000e+00> : vector<16x32xf32>
    %417 = tpu.matmul %414, %416, %cst_323 {dimension_numbers = #tpu.dot_dimension_numbers<[1], [0], [0], [1], [0, 0, 1, 1], [], []>} : vector<16x32xbf16>, vector<32x32xbf16>, vector<16x32xf32> -> vector<16x32xf32>
    %418 = arith.addf %413, %417 : vector<16x32xf32>
    %419 = vector.extract_strided_slice %408 {offsets = [2, 0], sizes = [16, 32], strides = [1, 1]} : vector<18x32xbf16> to vector<16x32xbf16>
    %c8_324 = arith.constant 8 : index
    %c0_325 = arith.constant 0 : index
    %c0_326 = arith.constant 0 : index
    %420 = vector.load %arg3[%c8_324, %c0_325, %c0_326] : memref<9x32x32xbf16, #tpu.memory_space<vmem>>, vector<1x32x32xbf16>
    %421 = vector.shape_cast %420 : vector<1x32x32xbf16> to vector<32x32xbf16>
    %cst_327 = arith.constant dense<0.000000e+00> : vector<16x32xf32>
    %422 = tpu.matmul %419, %421, %cst_327 {dimension_numbers = #tpu.dot_dimension_numbers<[1], [0], [0], [1], [0, 0, 1, 1], [], []>} : vector<16x32xbf16>, vector<32x32xbf16>, vector<16x32xf32> -> vector<16x32xf32>
    %423 = arith.addf %418, %422 : vector<16x32xf32>
    %424 = arith.truncf %423 : vector<16x32xf32> to vector<16x32xbf16>
    %c0_328 = arith.constant 0 : index
    %c5_329 = arith.constant 5 : index
    %c0_330 = arith.constant 0 : index
    %c0_331 = arith.constant 0 : index
    %425 = vector.load %arg4[%c0_328, %c5_329, %c0_330, %c0_331] : memref<1x8x16x32xbf16, #tpu.memory_space<vmem>>, vector<1x1x16x32xbf16>
    %426 = vector.shape_cast %425 : vector<1x1x16x32xbf16> to vector<16x32xbf16>
    %427 = vector.shape_cast %424 : vector<16x32xbf16> to vector<1x1x16x32xbf16>
    tpu.vector_store %arg4[%c0_328, %c5_329, %c0_330, %c0_331], %427 {strides = array<i32>} : memref<1x8x16x32xbf16, #tpu.memory_space<vmem>>, vector<1x1x16x32xbf16>,
    %cst_332 = arith.constant dense<0.000000e+00> : vector<32xf32>
    %428 = vector.multi_reduction <add>, %423, %cst_332 [0] : vector<16x32xf32> to vector<32xf32>
    %429 = vector.shape_cast %428 : vector<32xf32> to vector<1x32xf32>
    %430 = arith.addf %358, %429 : vector<1x32xf32>
    %431 = arith.mulf %423, %423 : vector<16x32xf32>
    %cst_333 = arith.constant dense<0.000000e+00> : vector<32xf32>
    %432 = vector.multi_reduction <add>, %431, %cst_333 [0] : vector<16x32xf32> to vector<32xf32>
    %433 = vector.shape_cast %432 : vector<32xf32> to vector<1x32xf32>
    %434 = arith.addf %362, %433 : vector<1x32xf32>
    %cst_334 = arith.constant 0.000000e+00 : f32
    %435 = vector.broadcast %cst_334 : f32 to vector<16x32xf32>
    %c6_i32 = arith.constant 6 : i32
    %436 = arith.addi %0, %c6_i32 : i32
    %c0_i32_335 = arith.constant 0 : i32
    %437 = arith.addi %436, %c0_i32_335 : i32
    %c0_336 = arith.constant 0 : index
    %438 = arith.index_cast %437 : i32 to index
    %c0_337 = arith.constant 0 : index
    %c0_338 = arith.constant 0 : index
    %439 = vector.load %arg2[%c0_336, %438, %c0_337, %c0_338] : memref<1x18x18x32xbf16, #tpu.memory_space<vmem>>, vector<1x1x18x32xbf16>
    %440 = vector.shape_cast %439 : vector<1x1x18x32xbf16> to vector<18x32xbf16>
    %441 = vector.extract_strided_slice %440 {offsets = [0, 0], sizes = [16, 32], strides = [1, 1]} : vector<18x32xbf16> to vector<16x32xbf16>
    %c0_339 = arith.constant 0 : index
    %c0_340 = arith.constant 0 : index
    %c0_341 = arith.constant 0 : index
    %442 = vector.load %arg3[%c0_339, %c0_340, %c0_341] : memref<9x32x32xbf16, #tpu.memory_space<vmem>>, vector<1x32x32xbf16>
    %443 = vector.shape_cast %442 : vector<1x32x32xbf16> to vector<32x32xbf16>
    %cst_342 = arith.constant dense<0.000000e+00> : vector<16x32xf32>
    %444 = tpu.matmul %441, %443, %cst_342 {dimension_numbers = #tpu.dot_dimension_numbers<[1], [0], [0], [1], [0, 0, 1, 1], [], []>} : vector<16x32xbf16>, vector<32x32xbf16>, vector<16x32xf32> -> vector<16x32xf32>
    %445 = arith.addf %435, %444 : vector<16x32xf32>
    %446 = vector.extract_strided_slice %440 {offsets = [1, 0], sizes = [16, 32], strides = [1, 1]} : vector<18x32xbf16> to vector<16x32xbf16>
    %c1_343 = arith.constant 1 : index
    %c0_344 = arith.constant 0 : index
    %c0_345 = arith.constant 0 : index
    %447 = vector.load %arg3[%c1_343, %c0_344, %c0_345] : memref<9x32x32xbf16, #tpu.memory_space<vmem>>, vector<1x32x32xbf16>
    %448 = vector.shape_cast %447 : vector<1x32x32xbf16> to vector<32x32xbf16>
    %cst_346 = arith.constant dense<0.000000e+00> : vector<16x32xf32>
    %449 = tpu.matmul %446, %448, %cst_346 {dimension_numbers = #tpu.dot_dimension_numbers<[1], [0], [0], [1], [0, 0, 1, 1], [], []>} : vector<16x32xbf16>, vector<32x32xbf16>, vector<16x32xf32> -> vector<16x32xf32>
    %450 = arith.addf %445, %449 : vector<16x32xf32>
    %451 = vector.extract_strided_slice %440 {offsets = [2, 0], sizes = [16, 32], strides = [1, 1]} : vector<18x32xbf16> to vector<16x32xbf16>
    %c2_347 = arith.constant 2 : index
    %c0_348 = arith.constant 0 : index
    %c0_349 = arith.constant 0 : index
    %452 = vector.load %arg3[%c2_347, %c0_348, %c0_349] : memref<9x32x32xbf16, #tpu.memory_space<vmem>>, vector<1x32x32xbf16>
    %453 = vector.shape_cast %452 : vector<1x32x32xbf16> to vector<32x32xbf16>
    %cst_350 = arith.constant dense<0.000000e+00> : vector<16x32xf32>
    %454 = tpu.matmul %451, %453, %cst_350 {dimension_numbers = #tpu.dot_dimension_numbers<[1], [0], [0], [1], [0, 0, 1, 1], [], []>} : vector<16x32xbf16>, vector<32x32xbf16>, vector<16x32xf32> -> vector<16x32xf32>
    %455 = arith.addf %450, %454 : vector<16x32xf32>
    %c6_i32_351 = arith.constant 6 : i32
    %456 = arith.addi %0, %c6_i32_351 : i32
    %c1_i32_352 = arith.constant 1 : i32
    %457 = arith.addi %456, %c1_i32_352 : i32
    %c0_353 = arith.constant 0 : index
    %458 = arith.index_cast %457 : i32 to index
    %c0_354 = arith.constant 0 : index
    %c0_355 = arith.constant 0 : index
    %459 = vector.load %arg2[%c0_353, %458, %c0_354, %c0_355] : memref<1x18x18x32xbf16, #tpu.memory_space<vmem>>, vector<1x1x18x32xbf16>
    %460 = vector.shape_cast %459 : vector<1x1x18x32xbf16> to vector<18x32xbf16>
    %461 = vector.extract_strided_slice %460 {offsets = [0, 0], sizes = [16, 32], strides = [1, 1]} : vector<18x32xbf16> to vector<16x32xbf16>
    %c3_356 = arith.constant 3 : index
    %c0_357 = arith.constant 0 : index
    %c0_358 = arith.constant 0 : index
    %462 = vector.load %arg3[%c3_356, %c0_357, %c0_358] : memref<9x32x32xbf16, #tpu.memory_space<vmem>>, vector<1x32x32xbf16>
    %463 = vector.shape_cast %462 : vector<1x32x32xbf16> to vector<32x32xbf16>
    %cst_359 = arith.constant dense<0.000000e+00> : vector<16x32xf32>
    %464 = tpu.matmul %461, %463, %cst_359 {dimension_numbers = #tpu.dot_dimension_numbers<[1], [0], [0], [1], [0, 0, 1, 1], [], []>} : vector<16x32xbf16>, vector<32x32xbf16>, vector<16x32xf32> -> vector<16x32xf32>
    %465 = arith.addf %455, %464 : vector<16x32xf32>
    %466 = vector.extract_strided_slice %460 {offsets = [1, 0], sizes = [16, 32], strides = [1, 1]} : vector<18x32xbf16> to vector<16x32xbf16>
    %c4_360 = arith.constant 4 : index
    %c0_361 = arith.constant 0 : index
    %c0_362 = arith.constant 0 : index
    %467 = vector.load %arg3[%c4_360, %c0_361, %c0_362] : memref<9x32x32xbf16, #tpu.memory_space<vmem>>, vector<1x32x32xbf16>
    %468 = vector.shape_cast %467 : vector<1x32x32xbf16> to vector<32x32xbf16>
    %cst_363 = arith.constant dense<0.000000e+00> : vector<16x32xf32>
    %469 = tpu.matmul %466, %468, %cst_363 {dimension_numbers = #tpu.dot_dimension_numbers<[1], [0], [0], [1], [0, 0, 1, 1], [], []>} : vector<16x32xbf16>, vector<32x32xbf16>, vector<16x32xf32> -> vector<16x32xf32>
    %470 = arith.addf %465, %469 : vector<16x32xf32>
    %471 = vector.extract_strided_slice %460 {offsets = [2, 0], sizes = [16, 32], strides = [1, 1]} : vector<18x32xbf16> to vector<16x32xbf16>
    %c5_364 = arith.constant 5 : index
    %c0_365 = arith.constant 0 : index
    %c0_366 = arith.constant 0 : index
    %472 = vector.load %arg3[%c5_364, %c0_365, %c0_366] : memref<9x32x32xbf16, #tpu.memory_space<vmem>>, vector<1x32x32xbf16>
    %473 = vector.shape_cast %472 : vector<1x32x32xbf16> to vector<32x32xbf16>
    %cst_367 = arith.constant dense<0.000000e+00> : vector<16x32xf32>
    %474 = tpu.matmul %471, %473, %cst_367 {dimension_numbers = #tpu.dot_dimension_numbers<[1], [0], [0], [1], [0, 0, 1, 1], [], []>} : vector<16x32xbf16>, vector<32x32xbf16>, vector<16x32xf32> -> vector<16x32xf32>
    %475 = arith.addf %470, %474 : vector<16x32xf32>
    %c6_i32_368 = arith.constant 6 : i32
    %476 = arith.addi %0, %c6_i32_368 : i32
    %c2_i32_369 = arith.constant 2 : i32
    %477 = arith.addi %476, %c2_i32_369 : i32
    %c0_370 = arith.constant 0 : index
    %478 = arith.index_cast %477 : i32 to index
    %c0_371 = arith.constant 0 : index
    %c0_372 = arith.constant 0 : index
    %479 = vector.load %arg2[%c0_370, %478, %c0_371, %c0_372] : memref<1x18x18x32xbf16, #tpu.memory_space<vmem>>, vector<1x1x18x32xbf16>
    %480 = vector.shape_cast %479 : vector<1x1x18x32xbf16> to vector<18x32xbf16>
    %481 = vector.extract_strided_slice %480 {offsets = [0, 0], sizes = [16, 32], strides = [1, 1]} : vector<18x32xbf16> to vector<16x32xbf16>
    %c6_373 = arith.constant 6 : index
    %c0_374 = arith.constant 0 : index
    %c0_375 = arith.constant 0 : index
    %482 = vector.load %arg3[%c6_373, %c0_374, %c0_375] : memref<9x32x32xbf16, #tpu.memory_space<vmem>>, vector<1x32x32xbf16>
    %483 = vector.shape_cast %482 : vector<1x32x32xbf16> to vector<32x32xbf16>
    %cst_376 = arith.constant dense<0.000000e+00> : vector<16x32xf32>
    %484 = tpu.matmul %481, %483, %cst_376 {dimension_numbers = #tpu.dot_dimension_numbers<[1], [0], [0], [1], [0, 0, 1, 1], [], []>} : vector<16x32xbf16>, vector<32x32xbf16>, vector<16x32xf32> -> vector<16x32xf32>
    %485 = arith.addf %475, %484 : vector<16x32xf32>
    %486 = vector.extract_strided_slice %480 {offsets = [1, 0], sizes = [16, 32], strides = [1, 1]} : vector<18x32xbf16> to vector<16x32xbf16>
    %c7_377 = arith.constant 7 : index
    %c0_378 = arith.constant 0 : index
    %c0_379 = arith.constant 0 : index
    %487 = vector.load %arg3[%c7_377, %c0_378, %c0_379] : memref<9x32x32xbf16, #tpu.memory_space<vmem>>, vector<1x32x32xbf16>
    %488 = vector.shape_cast %487 : vector<1x32x32xbf16> to vector<32x32xbf16>
    %cst_380 = arith.constant dense<0.000000e+00> : vector<16x32xf32>
    %489 = tpu.matmul %486, %488, %cst_380 {dimension_numbers = #tpu.dot_dimension_numbers<[1], [0], [0], [1], [0, 0, 1, 1], [], []>} : vector<16x32xbf16>, vector<32x32xbf16>, vector<16x32xf32> -> vector<16x32xf32>
    %490 = arith.addf %485, %489 : vector<16x32xf32>
    %491 = vector.extract_strided_slice %480 {offsets = [2, 0], sizes = [16, 32], strides = [1, 1]} : vector<18x32xbf16> to vector<16x32xbf16>
    %c8_381 = arith.constant 8 : index
    %c0_382 = arith.constant 0 : index
    %c0_383 = arith.constant 0 : index
    %492 = vector.load %arg3[%c8_381, %c0_382, %c0_383] : memref<9x32x32xbf16, #tpu.memory_space<vmem>>, vector<1x32x32xbf16>
    %493 = vector.shape_cast %492 : vector<1x32x32xbf16> to vector<32x32xbf16>
    %cst_384 = arith.constant dense<0.000000e+00> : vector<16x32xf32>
    %494 = tpu.matmul %491, %493, %cst_384 {dimension_numbers = #tpu.dot_dimension_numbers<[1], [0], [0], [1], [0, 0, 1, 1], [], []>} : vector<16x32xbf16>, vector<32x32xbf16>, vector<16x32xf32> -> vector<16x32xf32>
    %495 = arith.addf %490, %494 : vector<16x32xf32>
    %496 = arith.truncf %495 : vector<16x32xf32> to vector<16x32xbf16>
    %c0_385 = arith.constant 0 : index
    %c6_386 = arith.constant 6 : index
    %c0_387 = arith.constant 0 : index
    %c0_388 = arith.constant 0 : index
    %497 = vector.load %arg4[%c0_385, %c6_386, %c0_387, %c0_388] : memref<1x8x16x32xbf16, #tpu.memory_space<vmem>>, vector<1x1x16x32xbf16>
    %498 = vector.shape_cast %497 : vector<1x1x16x32xbf16> to vector<16x32xbf16>
    %499 = vector.shape_cast %496 : vector<16x32xbf16> to vector<1x1x16x32xbf16>
    tpu.vector_store %arg4[%c0_385, %c6_386, %c0_387, %c0_388], %499 {strides = array<i32>} : memref<1x8x16x32xbf16, #tpu.memory_space<vmem>>, vector<1x1x16x32xbf16>,
    %cst_389 = arith.constant dense<0.000000e+00> : vector<32xf32>
    %500 = vector.multi_reduction <add>, %495, %cst_389 [0] : vector<16x32xf32> to vector<32xf32>
    %501 = vector.shape_cast %500 : vector<32xf32> to vector<1x32xf32>
    %502 = arith.addf %430, %501 : vector<1x32xf32>
    %503 = arith.mulf %495, %495 : vector<16x32xf32>
    %cst_390 = arith.constant dense<0.000000e+00> : vector<32xf32>
    %504 = vector.multi_reduction <add>, %503, %cst_390 [0] : vector<16x32xf32> to vector<32xf32>
    %505 = vector.shape_cast %504 : vector<32xf32> to vector<1x32xf32>
    %506 = arith.addf %434, %505 : vector<1x32xf32>
    %cst_391 = arith.constant 0.000000e+00 : f32
    %507 = vector.broadcast %cst_391 : f32 to vector<16x32xf32>
    %c7_i32 = arith.constant 7 : i32
    %508 = arith.addi %0, %c7_i32 : i32
    %c0_i32_392 = arith.constant 0 : i32
    %509 = arith.addi %508, %c0_i32_392 : i32
    %c0_393 = arith.constant 0 : index
    %510 = arith.index_cast %509 : i32 to index
    %c0_394 = arith.constant 0 : index
    %c0_395 = arith.constant 0 : index
    %511 = vector.load %arg2[%c0_393, %510, %c0_394, %c0_395] : memref<1x18x18x32xbf16, #tpu.memory_space<vmem>>, vector<1x1x18x32xbf16>
    %512 = vector.shape_cast %511 : vector<1x1x18x32xbf16> to vector<18x32xbf16>
    %513 = vector.extract_strided_slice %512 {offsets = [0, 0], sizes = [16, 32], strides = [1, 1]} : vector<18x32xbf16> to vector<16x32xbf16>
    %c0_396 = arith.constant 0 : index
    %c0_397 = arith.constant 0 : index
    %c0_398 = arith.constant 0 : index
    %514 = vector.load %arg3[%c0_396, %c0_397, %c0_398] : memref<9x32x32xbf16, #tpu.memory_space<vmem>>, vector<1x32x32xbf16>
    %515 = vector.shape_cast %514 : vector<1x32x32xbf16> to vector<32x32xbf16>
    %cst_399 = arith.constant dense<0.000000e+00> : vector<16x32xf32>
    %516 = tpu.matmul %513, %515, %cst_399 {dimension_numbers = #tpu.dot_dimension_numbers<[1], [0], [0], [1], [0, 0, 1, 1], [], []>} : vector<16x32xbf16>, vector<32x32xbf16>, vector<16x32xf32> -> vector<16x32xf32>
    %517 = arith.addf %507, %516 : vector<16x32xf32>
    %518 = vector.extract_strided_slice %512 {offsets = [1, 0], sizes = [16, 32], strides = [1, 1]} : vector<18x32xbf16> to vector<16x32xbf16>
    %c1_400 = arith.constant 1 : index
    %c0_401 = arith.constant 0 : index
    %c0_402 = arith.constant 0 : index
    %519 = vector.load %arg3[%c1_400, %c0_401, %c0_402] : memref<9x32x32xbf16, #tpu.memory_space<vmem>>, vector<1x32x32xbf16>
    %520 = vector.shape_cast %519 : vector<1x32x32xbf16> to vector<32x32xbf16>
    %cst_403 = arith.constant dense<0.000000e+00> : vector<16x32xf32>
    %521 = tpu.matmul %518, %520, %cst_403 {dimension_numbers = #tpu.dot_dimension_numbers<[1], [0], [0], [1], [0, 0, 1, 1], [], []>} : vector<16x32xbf16>, vector<32x32xbf16>, vector<16x32xf32> -> vector<16x32xf32>
    %522 = arith.addf %517, %521 : vector<16x32xf32>
    %523 = vector.extract_strided_slice %512 {offsets = [2, 0], sizes = [16, 32], strides = [1, 1]} : vector<18x32xbf16> to vector<16x32xbf16>
    %c2_404 = arith.constant 2 : index
    %c0_405 = arith.constant 0 : index
    %c0_406 = arith.constant 0 : index
    %524 = vector.load %arg3[%c2_404, %c0_405, %c0_406] : memref<9x32x32xbf16, #tpu.memory_space<vmem>>, vector<1x32x32xbf16>
    %525 = vector.shape_cast %524 : vector<1x32x32xbf16> to vector<32x32xbf16>
    %cst_407 = arith.constant dense<0.000000e+00> : vector<16x32xf32>
    %526 = tpu.matmul %523, %525, %cst_407 {dimension_numbers = #tpu.dot_dimension_numbers<[1], [0], [0], [1], [0, 0, 1, 1], [], []>} : vector<16x32xbf16>, vector<32x32xbf16>, vector<16x32xf32> -> vector<16x32xf32>
    %527 = arith.addf %522, %526 : vector<16x32xf32>
    %c7_i32_408 = arith.constant 7 : i32
    %528 = arith.addi %0, %c7_i32_408 : i32
    %c1_i32_409 = arith.constant 1 : i32
    %529 = arith.addi %528, %c1_i32_409 : i32
    %c0_410 = arith.constant 0 : index
    %530 = arith.index_cast %529 : i32 to index
    %c0_411 = arith.constant 0 : index
    %c0_412 = arith.constant 0 : index
    %531 = vector.load %arg2[%c0_410, %530, %c0_411, %c0_412] : memref<1x18x18x32xbf16, #tpu.memory_space<vmem>>, vector<1x1x18x32xbf16>
    %532 = vector.shape_cast %531 : vector<1x1x18x32xbf16> to vector<18x32xbf16>
    %533 = vector.extract_strided_slice %532 {offsets = [0, 0], sizes = [16, 32], strides = [1, 1]} : vector<18x32xbf16> to vector<16x32xbf16>
    %c3_413 = arith.constant 3 : index
    %c0_414 = arith.constant 0 : index
    %c0_415 = arith.constant 0 : index
    %534 = vector.load %arg3[%c3_413, %c0_414, %c0_415] : memref<9x32x32xbf16, #tpu.memory_space<vmem>>, vector<1x32x32xbf16>
    %535 = vector.shape_cast %534 : vector<1x32x32xbf16> to vector<32x32xbf16>
    %cst_416 = arith.constant dense<0.000000e+00> : vector<16x32xf32>
    %536 = tpu.matmul %533, %535, %cst_416 {dimension_numbers = #tpu.dot_dimension_numbers<[1], [0], [0], [1], [0, 0, 1, 1], [], []>} : vector<16x32xbf16>, vector<32x32xbf16>, vector<16x32xf32> -> vector<16x32xf32>
    %537 = arith.addf %527, %536 : vector<16x32xf32>
    %538 = vector.extract_strided_slice %532 {offsets = [1, 0], sizes = [16, 32], strides = [1, 1]} : vector<18x32xbf16> to vector<16x32xbf16>
    %c4_417 = arith.constant 4 : index
    %c0_418 = arith.constant 0 : index
    %c0_419 = arith.constant 0 : index
    %539 = vector.load %arg3[%c4_417, %c0_418, %c0_419] : memref<9x32x32xbf16, #tpu.memory_space<vmem>>, vector<1x32x32xbf16>
    %540 = vector.shape_cast %539 : vector<1x32x32xbf16> to vector<32x32xbf16>
    %cst_420 = arith.constant dense<0.000000e+00> : vector<16x32xf32>
    %541 = tpu.matmul %538, %540, %cst_420 {dimension_numbers = #tpu.dot_dimension_numbers<[1], [0], [0], [1], [0, 0, 1, 1], [], []>} : vector<16x32xbf16>, vector<32x32xbf16>, vector<16x32xf32> -> vector<16x32xf32>
    %542 = arith.addf %537, %541 : vector<16x32xf32>
    %543 = vector.extract_strided_slice %532 {offsets = [2, 0], sizes = [16, 32], strides = [1, 1]} : vector<18x32xbf16> to vector<16x32xbf16>
    %c5_421 = arith.constant 5 : index
    %c0_422 = arith.constant 0 : index
    %c0_423 = arith.constant 0 : index
    %544 = vector.load %arg3[%c5_421, %c0_422, %c0_423] : memref<9x32x32xbf16, #tpu.memory_space<vmem>>, vector<1x32x32xbf16>
    %545 = vector.shape_cast %544 : vector<1x32x32xbf16> to vector<32x32xbf16>
    %cst_424 = arith.constant dense<0.000000e+00> : vector<16x32xf32>
    %546 = tpu.matmul %543, %545, %cst_424 {dimension_numbers = #tpu.dot_dimension_numbers<[1], [0], [0], [1], [0, 0, 1, 1], [], []>} : vector<16x32xbf16>, vector<32x32xbf16>, vector<16x32xf32> -> vector<16x32xf32>
    %547 = arith.addf %542, %546 : vector<16x32xf32>
    %c7_i32_425 = arith.constant 7 : i32
    %548 = arith.addi %0, %c7_i32_425 : i32
    %c2_i32_426 = arith.constant 2 : i32
    %549 = arith.addi %548, %c2_i32_426 : i32
    %c0_427 = arith.constant 0 : index
    %550 = arith.index_cast %549 : i32 to index
    %c0_428 = arith.constant 0 : index
    %c0_429 = arith.constant 0 : index
    %551 = vector.load %arg2[%c0_427, %550, %c0_428, %c0_429] : memref<1x18x18x32xbf16, #tpu.memory_space<vmem>>, vector<1x1x18x32xbf16>
    %552 = vector.shape_cast %551 : vector<1x1x18x32xbf16> to vector<18x32xbf16>
    %553 = vector.extract_strided_slice %552 {offsets = [0, 0], sizes = [16, 32], strides = [1, 1]} : vector<18x32xbf16> to vector<16x32xbf16>
    %c6_430 = arith.constant 6 : index
    %c0_431 = arith.constant 0 : index
    %c0_432 = arith.constant 0 : index
    %554 = vector.load %arg3[%c6_430, %c0_431, %c0_432] : memref<9x32x32xbf16, #tpu.memory_space<vmem>>, vector<1x32x32xbf16>
    %555 = vector.shape_cast %554 : vector<1x32x32xbf16> to vector<32x32xbf16>
    %cst_433 = arith.constant dense<0.000000e+00> : vector<16x32xf32>
    %556 = tpu.matmul %553, %555, %cst_433 {dimension_numbers = #tpu.dot_dimension_numbers<[1], [0], [0], [1], [0, 0, 1, 1], [], []>} : vector<16x32xbf16>, vector<32x32xbf16>, vector<16x32xf32> -> vector<16x32xf32>
    %557 = arith.addf %547, %556 : vector<16x32xf32>
    %558 = vector.extract_strided_slice %552 {offsets = [1, 0], sizes = [16, 32], strides = [1, 1]} : vector<18x32xbf16> to vector<16x32xbf16>
    %c7_434 = arith.constant 7 : index
    %c0_435 = arith.constant 0 : index
    %c0_436 = arith.constant 0 : index
    %559 = vector.load %arg3[%c7_434, %c0_435, %c0_436] : memref<9x32x32xbf16, #tpu.memory_space<vmem>>, vector<1x32x32xbf16>
    %560 = vector.shape_cast %559 : vector<1x32x32xbf16> to vector<32x32xbf16>
    %cst_437 = arith.constant dense<0.000000e+00> : vector<16x32xf32>
    %561 = tpu.matmul %558, %560, %cst_437 {dimension_numbers = #tpu.dot_dimension_numbers<[1], [0], [0], [1], [0, 0, 1, 1], [], []>} : vector<16x32xbf16>, vector<32x32xbf16>, vector<16x32xf32> -> vector<16x32xf32>
    %562 = arith.addf %557, %561 : vector<16x32xf32>
    %563 = vector.extract_strided_slice %552 {offsets = [2, 0], sizes = [16, 32], strides = [1, 1]} : vector<18x32xbf16> to vector<16x32xbf16>
    %c8_438 = arith.constant 8 : index
    %c0_439 = arith.constant 0 : index
    %c0_440 = arith.constant 0 : index
    %564 = vector.load %arg3[%c8_438, %c0_439, %c0_440] : memref<9x32x32xbf16, #tpu.memory_space<vmem>>, vector<1x32x32xbf16>
    %565 = vector.shape_cast %564 : vector<1x32x32xbf16> to vector<32x32xbf16>
    %cst_441 = arith.constant dense<0.000000e+00> : vector<16x32xf32>
    %566 = tpu.matmul %563, %565, %cst_441 {dimension_numbers = #tpu.dot_dimension_numbers<[1], [0], [0], [1], [0, 0, 1, 1], [], []>} : vector<16x32xbf16>, vector<32x32xbf16>, vector<16x32xf32> -> vector<16x32xf32>
    %567 = arith.addf %562, %566 : vector<16x32xf32>
    %568 = arith.truncf %567 : vector<16x32xf32> to vector<16x32xbf16>
    %c0_442 = arith.constant 0 : index
    %c7_443 = arith.constant 7 : index
    %c0_444 = arith.constant 0 : index
    %c0_445 = arith.constant 0 : index
    %569 = vector.load %arg4[%c0_442, %c7_443, %c0_444, %c0_445] : memref<1x8x16x32xbf16, #tpu.memory_space<vmem>>, vector<1x1x16x32xbf16>
    %570 = vector.shape_cast %569 : vector<1x1x16x32xbf16> to vector<16x32xbf16>
    %571 = vector.shape_cast %568 : vector<16x32xbf16> to vector<1x1x16x32xbf16>
    tpu.vector_store %arg4[%c0_442, %c7_443, %c0_444, %c0_445], %571 {strides = array<i32>} : memref<1x8x16x32xbf16, #tpu.memory_space<vmem>>, vector<1x1x16x32xbf16>,
    %cst_446 = arith.constant dense<0.000000e+00> : vector<32xf32>
    %572 = vector.multi_reduction <add>, %567, %cst_446 [0] : vector<16x32xf32> to vector<32xf32>
    %573 = vector.shape_cast %572 : vector<32xf32> to vector<1x32xf32>
    %574 = arith.addf %502, %573 : vector<1x32xf32>
    %575 = arith.mulf %567, %567 : vector<16x32xf32>
    %cst_447 = arith.constant dense<0.000000e+00> : vector<32xf32>
    %576 = vector.multi_reduction <add>, %575, %cst_447 [0] : vector<16x32xf32> to vector<32xf32>
    %577 = vector.shape_cast %576 : vector<32xf32> to vector<1x32xf32>
    %578 = arith.addf %506, %577 : vector<1x32xf32>
    %c0_448 = arith.constant 0 : index
    %c0_449 = arith.constant 0 : index
    %c0_450 = arith.constant 0 : index
    %c0_451 = arith.constant 0 : index
    %579 = vector.load %arg5[%c0_448, %c0_449, %c0_450, %c0_451] : memref<1x1x1x32xf32, #tpu.memory_space<vmem>>, vector<1x1x1x32xf32>
    %580 = vector.shape_cast %579 : vector<1x1x1x32xf32> to vector<1x32xf32>
    %581 = vector.shape_cast %574 : vector<1x32xf32> to vector<1x1x1x32xf32>
    tpu.vector_store %arg5[%c0_448, %c0_449, %c0_450, %c0_451], %581 {strides = array<i32>} : memref<1x1x1x32xf32, #tpu.memory_space<vmem>>, vector<1x1x1x32xf32>,
    %c0_452 = arith.constant 0 : index
    %c0_453 = arith.constant 0 : index
    %c0_454 = arith.constant 0 : index
    %c0_455 = arith.constant 0 : index
    %582 = vector.load %arg6[%c0_452, %c0_453, %c0_454, %c0_455] : memref<1x1x1x32xf32, #tpu.memory_space<vmem>>, vector<1x1x1x32xf32>
    %583 = vector.shape_cast %582 : vector<1x1x1x32xf32> to vector<1x32xf32>
    %584 = vector.shape_cast %578 : vector<1x32xf32> to vector<1x1x1x32xf32>
    tpu.vector_store %arg6[%c0_452, %c0_453, %c0_454, %c0_455], %584 {strides = array<i32>} : memref<1x1x1x32xf32, #tpu.memory_space<vmem>>, vector<1x1x1x32xf32>,
    return
  }
  func.func @transform_0(%arg0: i32, %arg1: i32) -> (i32, i32, i32, i32) {
    %c0_i32 = arith.constant 0 : i32
    %c0_i32_0 = arith.constant 0 : i32
    %c0_i32_1 = arith.constant 0 : i32
    %c0_i32_2 = arith.constant 0 : i32
    return %arg0, %c0_i32, %c0_i32_0, %c0_i32_1 : i32, i32, i32, i32
  }
  func.func @transform_1(%arg0: i32, %arg1: i32) -> (i32, i32, i32) {
    %c0_i32 = arith.constant 0 : i32
    %c0_i32_0 = arith.constant 0 : i32
    %c0_i32_1 = arith.constant 0 : i32
    %c0_i32_2 = arith.constant 0 : i32
    return %c0_i32, %c0_i32_0, %c0_i32_1 : i32, i32, i32
  }
  func.func @transform_2(%arg0: i32, %arg1: i32) -> (i32, i32, i32, i32) {
    %c0_i32 = arith.constant 0 : i32
    %c0_i32_0 = arith.constant 0 : i32
    %c0_i32_1 = arith.constant 0 : i32
    return %arg0, %arg1, %c0_i32, %c0_i32_0 : i32, i32, i32, i32
  }
  func.func @transform_3(%arg0: i32, %arg1: i32) -> (i32, i32, i32, i32) {
    %c0_i32 = arith.constant 0 : i32
    %c0_i32_0 = arith.constant 0 : i32
    %c0_i32_1 = arith.constant 0 : i32
    return %arg0, %arg1, %c0_i32, %c0_i32_0 : i32, i32, i32, i32
  }
  func.func @transform_4(%arg0: i32, %arg1: i32) -> (i32, i32, i32, i32) {
    %c0_i32 = arith.constant 0 : i32
    %c0_i32_0 = arith.constant 0 : i32
    %c0_i32_1 = arith.constant 0 : i32
    return %arg0, %arg1, %c0_i32, %c0_i32_0 : i32, i32, i32, i32
  }
}

module attributes {stable_mosaic.version = 11 : i64} {
  func.func @_conv3_kernel(%arg0: i32, %arg1: memref<128x32xbf16, #tpu.memory_space<vmem>>, %arg2: memref<2x32xf32, #tpu.memory_space<vmem>>, %arg3: memref<32x128xbf16, #tpu.memory_space<vmem>>, %arg4: memref<128x128xbf16, #tpu.memory_space<vmem>>, %arg5: memref<1x1x128xf32, #tpu.memory_space<vmem>>, %arg6: memref<1x1x128xf32, #tpu.memory_space<vmem>>) attributes {dimension_semantics = [#tpu.dimension_semantics<parallel>], iteration_bounds = array<i64: 4>, scalar_prefetch = 0 : i64, scratch_operands = 0 : i64, tpu.core_type = #tpu.core_type<tc>, window_params = [{transform_indices = @transform_0, window_bounds = array<i64: 128, 32>}, {pipeline_mode = #tpu.pipeline_mode<synchronous>, transform_indices = @transform_1, window_bounds = array<i64: 2, 32>}, {pipeline_mode = #tpu.pipeline_mode<synchronous>, transform_indices = @transform_2, window_bounds = array<i64: 32, 128>}, {transform_indices = @transform_3, window_bounds = array<i64: 128, 128>}, {transform_indices = @transform_4, window_bounds = array<i64: 1, 1, 128>}, {transform_indices = @transform_5, window_bounds = array<i64: 1, 1, 128>}]} {
    %c0 = arith.constant 0 : index
    %c0_0 = arith.constant 0 : index
    %0 = vector.load %arg1[%c0, %c0_0] : memref<128x32xbf16, #tpu.memory_space<vmem>>, vector<128x32xbf16>
    %1 = arith.extf %0 : vector<128x32xbf16> to vector<128x32xf32>
    %c0_1 = arith.constant 0 : index
    %c0_2 = arith.constant 0 : index
    %2 = vector.load %arg2[%c0_1, %c0_2] : memref<2x32xf32, #tpu.memory_space<vmem>>, vector<1x32xf32>
    %3 = vector.broadcast %2 : vector<1x32xf32> to vector<128x32xf32>
    %4 = arith.mulf %1, %3 : vector<128x32xf32>
    %c1 = arith.constant 1 : index
    %c0_3 = arith.constant 0 : index
    %5 = vector.load %arg2[%c1, %c0_3] : memref<2x32xf32, #tpu.memory_space<vmem>>, vector<1x32xf32>
    %6 = vector.broadcast %5 : vector<1x32xf32> to vector<128x32xf32>
    %7 = arith.addf %4, %6 : vector<128x32xf32>
    %cst = arith.constant 0.000000e+00 : f32
    %8 = vector.broadcast %cst : f32 to vector<128x32xf32>
    %9 = arith.maximumf %7, %8 : vector<128x32xf32>
    %10 = arith.truncf %9 : vector<128x32xf32> to vector<128x32xbf16>
    %c0_4 = arith.constant 0 : index
    %c0_5 = arith.constant 0 : index
    %11 = vector.load %arg3[%c0_4, %c0_5] : memref<32x128xbf16, #tpu.memory_space<vmem>>, vector<32x128xbf16>
    %cst_6 = arith.constant dense<0.000000e+00> : vector<128x128xf32>
    %12 = tpu.matmul %10, %11, %cst_6 {dimension_numbers = #tpu.dot_dimension_numbers<[1], [0], [0], [1], [0, 0, 1, 1], [], []>} : vector<128x32xbf16>, vector<32x128xbf16>, vector<128x128xf32> -> vector<128x128xf32>
    %13 = arith.truncf %12 : vector<128x128xf32> to vector<128x128xbf16>
    %c0_7 = arith.constant 0 : index
    %c0_8 = arith.constant 0 : index
    %14 = vector.load %arg4[%c0_7, %c0_8] : memref<128x128xbf16, #tpu.memory_space<vmem>>, vector<128x128xbf16>
    tpu.vector_store %arg4[%c0_7, %c0_8], %13 {strides = array<i32>} : memref<128x128xbf16, #tpu.memory_space<vmem>>, vector<128x128xbf16>,
    %cst_9 = arith.constant dense<0.000000e+00> : vector<128xf32>
    %15 = vector.multi_reduction <add>, %12, %cst_9 [0] : vector<128x128xf32> to vector<128xf32>
    %16 = vector.shape_cast %15 : vector<128xf32> to vector<1x128xf32>
    %c0_10 = arith.constant 0 : index
    %c0_11 = arith.constant 0 : index
    %c0_12 = arith.constant 0 : index
    %17 = vector.load %arg5[%c0_10, %c0_11, %c0_12] : memref<1x1x128xf32, #tpu.memory_space<vmem>>, vector<1x1x128xf32>
    %18 = vector.shape_cast %17 : vector<1x1x128xf32> to vector<1x128xf32>
    %19 = vector.shape_cast %16 : vector<1x128xf32> to vector<1x1x128xf32>
    tpu.vector_store %arg5[%c0_10, %c0_11, %c0_12], %19 {strides = array<i32>} : memref<1x1x128xf32, #tpu.memory_space<vmem>>, vector<1x1x128xf32>,
    %20 = arith.mulf %12, %12 : vector<128x128xf32>
    %cst_13 = arith.constant dense<0.000000e+00> : vector<128xf32>
    %21 = vector.multi_reduction <add>, %20, %cst_13 [0] : vector<128x128xf32> to vector<128xf32>
    %22 = vector.shape_cast %21 : vector<128xf32> to vector<1x128xf32>
    %c0_14 = arith.constant 0 : index
    %c0_15 = arith.constant 0 : index
    %c0_16 = arith.constant 0 : index
    %23 = vector.load %arg6[%c0_14, %c0_15, %c0_16] : memref<1x1x128xf32, #tpu.memory_space<vmem>>, vector<1x1x128xf32>
    %24 = vector.shape_cast %23 : vector<1x1x128xf32> to vector<1x128xf32>
    %25 = vector.shape_cast %22 : vector<1x128xf32> to vector<1x1x128xf32>
    tpu.vector_store %arg6[%c0_14, %c0_15, %c0_16], %25 {strides = array<i32>} : memref<1x1x128xf32, #tpu.memory_space<vmem>>, vector<1x1x128xf32>,
    return
  }
  func.func @transform_0(%arg0: i32) -> (i32, i32) {
    %c0_i32 = arith.constant 0 : i32
    %c0_i32_0 = arith.constant 0 : i32
    return %arg0, %c0_i32 : i32, i32
  }
  func.func @transform_1(%arg0: i32) -> (i32, i32) {
    %c0_i32 = arith.constant 0 : i32
    %c0_i32_0 = arith.constant 0 : i32
    %c0_i32_1 = arith.constant 0 : i32
    return %c0_i32, %c0_i32_0 : i32, i32
  }
  func.func @transform_2(%arg0: i32) -> (i32, i32) {
    %c0_i32 = arith.constant 0 : i32
    %c0_i32_0 = arith.constant 0 : i32
    %c0_i32_1 = arith.constant 0 : i32
    return %c0_i32, %c0_i32_0 : i32, i32
  }
  func.func @transform_3(%arg0: i32) -> (i32, i32) {
    %c0_i32 = arith.constant 0 : i32
    %c0_i32_0 = arith.constant 0 : i32
    return %arg0, %c0_i32 : i32, i32
  }
  func.func @transform_4(%arg0: i32) -> (i32, i32, i32) {
    %c0_i32 = arith.constant 0 : i32
    %c0_i32_0 = arith.constant 0 : i32
    %c0_i32_1 = arith.constant 0 : i32
    return %arg0, %c0_i32, %c0_i32_0 : i32, i32, i32
  }
  func.func @transform_5(%arg0: i32) -> (i32, i32, i32) {
    %c0_i32 = arith.constant 0 : i32
    %c0_i32_0 = arith.constant 0 : i32
    %c0_i32_1 = arith.constant 0 : i32
    return %arg0, %c0_i32, %c0_i32_0 : i32, i32, i32
  }
}

module attributes {stable_mosaic.version = 11 : i64} {
  func.func @_merge_proj_kernel(%arg0: i32, %arg1: memref<128x128xbf16, #tpu.memory_space<vmem>>, %arg2: memref<128x128xbf16, #tpu.memory_space<vmem>>, %arg3: memref<2x128xf32, #tpu.memory_space<vmem>>, %arg4: memref<2x128xf32, #tpu.memory_space<vmem>>, %arg5: memref<128x128xf32, #tpu.memory_space<vmem>>) attributes {dimension_semantics = [#tpu.dimension_semantics<parallel>], iteration_bounds = array<i64: 4>, scalar_prefetch = 0 : i64, scratch_operands = 0 : i64, tpu.core_type = #tpu.core_type<tc>, window_params = [{transform_indices = @transform_0, window_bounds = array<i64: 128, 128>}, {transform_indices = @transform_1, window_bounds = array<i64: 128, 128>}, {pipeline_mode = #tpu.pipeline_mode<synchronous>, transform_indices = @transform_2, window_bounds = array<i64: 2, 128>}, {pipeline_mode = #tpu.pipeline_mode<synchronous>, transform_indices = @transform_3, window_bounds = array<i64: 2, 128>}, {transform_indices = @transform_4, window_bounds = array<i64: 128, 128>}]} {
    %c0 = arith.constant 0 : index
    %c0_0 = arith.constant 0 : index
    %0 = vector.load %arg1[%c0, %c0_0] : memref<128x128xbf16, #tpu.memory_space<vmem>>, vector<128x128xbf16>
    %1 = arith.extf %0 : vector<128x128xbf16> to vector<128x128xf32>
    %c0_1 = arith.constant 0 : index
    %c0_2 = arith.constant 0 : index
    %2 = vector.load %arg3[%c0_1, %c0_2] : memref<2x128xf32, #tpu.memory_space<vmem>>, vector<1x128xf32>
    %3 = vector.broadcast %2 : vector<1x128xf32> to vector<128x128xf32>
    %4 = arith.mulf %1, %3 : vector<128x128xf32>
    %c1 = arith.constant 1 : index
    %c0_3 = arith.constant 0 : index
    %5 = vector.load %arg3[%c1, %c0_3] : memref<2x128xf32, #tpu.memory_space<vmem>>, vector<1x128xf32>
    %6 = vector.broadcast %5 : vector<1x128xf32> to vector<128x128xf32>
    %7 = arith.addf %4, %6 : vector<128x128xf32>
    %c0_4 = arith.constant 0 : index
    %c0_5 = arith.constant 0 : index
    %8 = vector.load %arg2[%c0_4, %c0_5] : memref<128x128xbf16, #tpu.memory_space<vmem>>, vector<128x128xbf16>
    %9 = arith.extf %8 : vector<128x128xbf16> to vector<128x128xf32>
    %c0_6 = arith.constant 0 : index
    %c0_7 = arith.constant 0 : index
    %10 = vector.load %arg4[%c0_6, %c0_7] : memref<2x128xf32, #tpu.memory_space<vmem>>, vector<1x128xf32>
    %11 = vector.broadcast %10 : vector<1x128xf32> to vector<128x128xf32>
    %12 = arith.mulf %9, %11 : vector<128x128xf32>
    %c1_8 = arith.constant 1 : index
    %c0_9 = arith.constant 0 : index
    %13 = vector.load %arg4[%c1_8, %c0_9] : memref<2x128xf32, #tpu.memory_space<vmem>>, vector<1x128xf32>
    %14 = vector.broadcast %13 : vector<1x128xf32> to vector<128x128xf32>
    %15 = arith.addf %12, %14 : vector<128x128xf32>
    %16 = arith.addf %7, %15 : vector<128x128xf32>
    %cst = arith.constant 0.000000e+00 : f32
    %17 = vector.broadcast %cst : f32 to vector<128x128xf32>
    %18 = arith.maximumf %16, %17 : vector<128x128xf32>
    %c0_10 = arith.constant 0 : index
    %c0_11 = arith.constant 0 : index
    %19 = vector.load %arg5[%c0_10, %c0_11] : memref<128x128xf32, #tpu.memory_space<vmem>>, vector<128x128xf32>
    tpu.vector_store %arg5[%c0_10, %c0_11], %18 {strides = array<i32>} : memref<128x128xf32, #tpu.memory_space<vmem>>, vector<128x128xf32>,
    return
  }
  func.func @transform_0(%arg0: i32) -> (i32, i32) {
    %c0_i32 = arith.constant 0 : i32
    %c0_i32_0 = arith.constant 0 : i32
    return %arg0, %c0_i32 : i32, i32
  }
  func.func @transform_1(%arg0: i32) -> (i32, i32) {
    %c0_i32 = arith.constant 0 : i32
    %c0_i32_0 = arith.constant 0 : i32
    return %arg0, %c0_i32 : i32, i32
  }
  func.func @transform_2(%arg0: i32) -> (i32, i32) {
    %c0_i32 = arith.constant 0 : i32
    %c0_i32_0 = arith.constant 0 : i32
    %c0_i32_1 = arith.constant 0 : i32
    return %c0_i32, %c0_i32_0 : i32, i32
  }
  func.func @transform_3(%arg0: i32) -> (i32, i32) {
    %c0_i32 = arith.constant 0 : i32
    %c0_i32_0 = arith.constant 0 : i32
    %c0_i32_1 = arith.constant 0 : i32
    return %c0_i32, %c0_i32_0 : i32, i32
  }
  func.func @transform_4(%arg0: i32) -> (i32, i32) {
    %c0_i32 = arith.constant 0 : i32
    %c0_i32_0 = arith.constant 0 : i32
    return %arg0, %c0_i32 : i32, i32
  }
}

</mosaic_0001>

<llo_original>
// kernel: bottleneck_forward.4
$region0: #{bottleneck_forward.4}
  #allocation0 [shape = 'u32[]', space=smem, size = 0x4, offset = 0x4, fixed_abs, tag = 'smem constant byte address 0x4 - core index']
  #allocation1 [shape = 'u32[72,128]{1,0:T(1,128)}', space=vmem, size = 0x9000, scoped, tag = 'internal scratch']
  %s0 = inlined_call_operand.hbm [shape: f32[512,64], index: 0, kind: input, shape index: {}]
  %s1 = inlined_call_operand.vmem [shape: bf16[64,32], index: 1, kind: input, shape index: {}]
  %s2 = inlined_call_operand.vmem [shape: bf16[64,128], index: 2, kind: input, shape index: {}]
  %s3 = inlined_call_operand.vmem [shape: bf16[512,32], index: 3, kind: output, shape index: {0}]
  %s4 = inlined_call_operand.vmem [shape: bf16[512,128], index: 4, kind: output, shape index: {1}]
  %s5 = inlined_call_operand.vmem [shape: f32[4,1,32], index: 5, kind: output, shape index: {2}]
  %s6 = inlined_call_operand.vmem [shape: f32[4,1,32], index: 6, kind: output, shape index: {3}]
  %s7 = inlined_call_operand.vmem [shape: f32[4,1,128], index: 7, kind: output, shape index: {4}]
  %s8 = inlined_call_operand.vmem [shape: f32[4,1,128], index: 8, kind: output, shape index: {5}]
  %9 = xla_tuple %s3, %s4, %s5, %s6, %s7, %s8
  %s10 = sld [smem:[#allocation0]]
  $region89: #{bottleneck_forward.4} parent=0
    _
  %s12 = ssub.s32 1, %s10
  %s13 = scalar_select 0, %s12, %s10
  $region1: #{bottleneck_forward.4} parent=0
    #allocation2 [shape = 'u8[131072]{0}', space=vmem, size = 0x20000, scoped, tag = 'input window, operand 0']
    #allocation3 [shape = 's32[2]{0}', space=sflag, size = 0x8, scoped, tag = 'scoped memory for bottleneck_forward.4']
    %14 = vsyncpa [#allocation3], 0
    %s15 = scalar_lea.sflag [#allocation3], 1
    %16 = vsyncpa %s15, 0
    loop: start=0, step=1, limit=6
    $region2: #{bottleneck_forward.4} parent=1 // loop_pre_header
      _
    $region3: #{bottleneck_forward.4} parent=1 // loop_header
      %s18 = sphi 0, %s22
      %p19 = scmp.ge.s32.totalorder %s18, 6
      %s28 = sphi 0, %s30
      %s31 = sphi 0, %s28
      %s32 = sphi 0, %s31
      %s48 = sphi 0, %s32
      %s52 = sphi 0, %s52
      %s54 = sphi 0, %s52
      %s55 = sphi 0, %s54
      %s69 = sphi 0, %s55
      %s73 = sphi 0, %s73
      %s75 = sphi 0, %s73
      %s76 = sphi 0, %s75
      %s90 = sphi 0, %s76
      %s96 = sphi 0, %s98
      %s99 = sphi 0, %s96
      %s100 = sphi 0, %s99
      %s116 = sphi 0, %s100
      %s122 = sphi 0, %s124
      %s125 = sphi 0, %s122
      %s126 = sphi 0, %s125
      %s142 = sphi 0, %s126
      %s148 = sphi 0, %s150
      %s151 = sphi 0, %s148
      %s152 = sphi 0, %s151
      %s168 = sphi 0, %s152
      %s174 = sphi 0, %s176
      %s177 = sphi 0, %s174
      %s178 = sphi 0, %s177
      %s194 = sphi 0, %s178
      %s200 = sphi 0, %s202
      %s203 = sphi 0, %s200
      %s204 = sphi 0, %s203
      %s220 = sphi 0, %s204
      %s226 = sphi 0, %s228
      %s229 = sphi 0, %s226
      %s230 = sphi 0, %s229
      %s246 = sphi 0, %s230
    $region4: #{bottleneck_forward.4} parent=1 // loop_header_branch
      %21 = sbr.rel (%p19) target = $region8
    $region5: #{bottleneck_forward.4} parent=1 // loop_body
      %s23 = ssub.s32 %s18, 1
      %s24 = ssub.s32 %s18, 2
      %s25 = sadd.s32 %s18, 1
      %s26 = ssub.s32 %s18, %s25
      %p27 = scmp.eq.s32.totalorder %s26, 0
      %s29 = sadd.s32 %s28, 1
      %s30 = scalar_select %p27, %s28, %s29
      %p33 = pneg %p27
      %p34 = scmp.eq.s32.totalorder %s18, 3
      %p35 = por %p33, %p34
      %p36 = scmp.ne.s32.totalorder %s28, %s31
      %p37 = scmp.eq.s32.totalorder %s18, 0
      %p38 = por %p36, %p37
      %p39 = scmp.ne.s32.totalorder %s28, %s31
      %p40 = scmp.eq.s32.totalorder %s23, 3
      %p41 = por %p39, %p40
      %p42 = scmp.ne.s32.totalorder %s31, %s32
      %p43 = scmp.eq.s32.totalorder %s23, 0
      %p44 = por %p42, %p43
      %p45 = scmp.ne.s32.totalorder %s31, %s32
      %p46 = scmp.eq.s32.totalorder %s24, 3
      %p47 = por %p45, %p46
      %p49 = scmp.ne.s32.totalorder %s32, %s48
      %p50 = scmp.eq.s32.totalorder %s24, 0
      %p51 = por %p49, %p50
      %s53 = sadd.s32 %s52, 1
      %p56 = scmp.eq.s32.totalorder %s18, 3
      %p57 = scmp.ne.s32.totalorder %s52, %s54
      %p58 = scmp.eq.s32.totalorder %s18, 0
      %p59 = por %p57, %p58
      %p60 = scmp.ne.s32.totalorder %s52, %s54
      %p61 = scmp.eq.s32.totalorder %s23, 3
      %p62 = por %p60, %p61
      %p63 = scmp.ne.s32.totalorder %s54, %s55
      %p64 = scmp.eq.s32.totalorder %s23, 0
      %p65 = por %p63, %p64
      %p66 = scmp.ne.s32.totalorder %s54, %s55
      %p67 = scmp.eq.s32.totalorder %s24, 3
      %p68 = por %p66, %p67
      %p70 = scmp.ne.s32.totalorder %s55, %s69
      %p71 = scmp.eq.s32.totalorder %s24, 0
      %p72 = por %p70, %p71
      %s74 = sadd.s32 %s73, 1
      %p77 = scmp.eq.s32.totalorder %s18, 3
      %p78 = scmp.ne.s32.totalorder %s73, %s75
      %p79 = scmp.eq.s32.totalorder %s18, 0
      %p80 = por %p78, %p79
      %p81 = scmp.ne.s32.totalorder %s73, %s75
      %p82 = scmp.eq.s32.totalorder %s23, 3
      %p83 = por %p81, %p82
      %p84 = scmp.ne.s32.totalorder %s75, %s76
      %p85 = scmp.eq.s32.totalorder %s23, 0
      %p86 = por %p84, %p85
      %p87 = scmp.ne.s32.totalorder %s75, %s76
      %p88 = scmp.eq.s32.totalorder %s24, 3
      %p89 = por %p87, %p88
      %p91 = scmp.ne.s32.totalorder %s76, %s90
      %p92 = scmp.eq.s32.totalorder %s24, 0
      %p93 = por %p91, %p92
      %s94 = ssub.s32 %s18, %s25
      %p95 = scmp.eq.s32.totalorder %s94, 0
      %s97 = sadd.s32 %s96, 1
      %s98 = scalar_select %p95, %s96, %s97
      %p101 = pneg %p95
      %p102 = scmp.eq.s32.totalorder %s18, 3
      %p103 = por %p101, %p102
      %p104 = scmp.ne.s32.totalorder %s96, %s99
      %p105 = scmp.eq.s32.totalorder %s18, 0
      %p106 = por %p104, %p105
      %p107 = scmp.ne.s32.totalorder %s96, %s99
      %p108 = scmp.eq.s32.totalorder %s23, 3
      %p109 = por %p107, %p108
      %p110 = scmp.ne.s32.totalorder %s99, %s100
      %p111 = scmp.eq.s32.totalorder %s23, 0
      %p112 = por %p110, %p111
      %p113 = scmp.ne.s32.totalorder %s99, %s100
      %p114 = scmp.eq.s32.totalorder %s24, 3
      %p115 = por %p113, %p114
      %p117 = scmp.ne.s32.totalorder %s100, %s116
      %p118 = scmp.eq.s32.totalorder %s24, 0
      %p119 = por %p117, %p118
      %s120 = ssub.s32 %s18, %s25
      %p121 = scmp.eq.s32.totalorder %s120, 0
      %s123 = sadd.s32 %s122, 1
      %s124 = scalar_select %p121, %s122, %s123
      %p127 = pneg %p121
      %p128 = scmp.eq.s32.totalorder %s18, 3
      %p129 = por %p127, %p128
      %p130 = scmp.ne.s32.totalorder %s122, %s125
      %p131 = scmp.eq.s32.totalorder %s18, 0
      %p132 = por %p130, %p131
      %p133 = scmp.ne.s32.totalorder %s122, %s125
      %p134 = scmp.eq.s32.totalorder %s23, 3
      %p135 = por %p133, %p134
      %p136 = scmp.ne.s32.totalorder %s125, %s126
      %p137 = scmp.eq.s32.totalorder %s23, 0
      %p138 = por %p136, %p137
      %p139 = scmp.ne.s32.totalorder %s125, %s126
      %p140 = scmp.eq.s32.totalorder %s24, 3
      %p141 = por %p139, %p140
      %p143 = scmp.ne.s32.totalorder %s126, %s142
      %p144 = scmp.eq.s32.totalorder %s24, 0
      %p145 = por %p143, %p144
      %s146 = ssub.s32 %s18, %s25
      %p147 = scmp.eq.s32.totalorder %s146, 0
      %s149 = sadd.s32 %s148, 1
      %s150 = scalar_select %p147, %s148, %s149
      %p153 = pneg %p147
      %p154 = scmp.eq.s32.totalorder %s18, 3
      %p155 = por %p153, %p154
      %p156 = scmp.ne.s32.totalorder %s148, %s151
      %p157 = scmp.eq.s32.totalorder %s18, 0
      %p158 = por %p156, %p157
      %p159 = scmp.ne.s32.totalorder %s148, %s151
      %p160 = scmp.eq.s32.totalorder %s23, 3
      %p161 = por %p159, %p160
      %p162 = scmp.ne.s32.totalorder %s151, %s152
      %p163 = scmp.eq.s32.totalorder %s23, 0
      %p164 = por %p162, %p163
      %p165 = scmp.ne.s32.totalorder %s151, %s152
      %p166 = scmp.eq.s32.totalorder %s24, 3
      %p167 = por %p165, %p166
      %p169 = scmp.ne.s32.totalorder %s152, %s168
      %p170 = scmp.eq.s32.totalorder %s24, 0
      %p171 = por %p169, %p170
      %s172 = ssub.s32 %s18, %s25
      %p173 = scmp.eq.s32.totalorder %s172, 0
      %s175 = sadd.s32 %s174, 1
      %s176 = scalar_select %p173, %s174, %s175
      %p179 = pneg %p173
      %p180 = scmp.eq.s32.totalorder %s18, 3
      %p181 = por %p179, %p180
      %p182 = scmp.ne.s32.totalorder %s174, %s177
      %p183 = scmp.eq.s32.totalorder %s18, 0
      %p184 = por %p182, %p183
      %p185 = scmp.ne.s32.totalorder %s174, %s177
      %p186 = scmp.eq.s32.totalorder %s23, 3
      %p187 = por %p185, %p186
      %p188 = scmp.ne.s32.totalorder %s177, %s178
      %p189 = scmp.eq.s32.totalorder %s23, 0
      %p190 = por %p188, %p189
      %p191 = scmp.ne.s32.totalorder %s177, %s178
      %p192 = scmp.eq.s32.totalorder %s24, 3
      %p193 = por %p191, %p192
      %p195 = scmp.ne.s32.totalorder %s178, %s194
      %p196 = scmp.eq.s32.totalorder %s24, 0
      %p197 = por %p195, %p196
      %s198 = ssub.s32 %s18, %s25
      %p199 = scmp.eq.s32.totalorder %s198, 0
      %s201 = sadd.s32 %s200, 1
      %s202 = scalar_select %p199, %s200, %s201
      %p205 = pneg %p199
      %p206 = scmp.eq.s32.totalorder %s18, 3
      %p207 = por %p205, %p206
      %p208 = scmp.ne.s32.totalorder %s200, %s203
      %p209 = scmp.eq.s32.totalorder %s18, 0
      %p210 = por %p208, %p209
      %p211 = scmp.ne.s32.totalorder %s200, %s203
      %p212 = scmp.eq.s32.totalorder %s23, 3
      %p213 = por %p211, %p212
      %p214 = scmp.ne.s32.totalorder %s203, %s204
      %p215 = scmp.eq.s32.totalorder %s23, 0
      %p216 = por %p214, %p215
      %p217 = scmp.ne.s32.totalorder %s203, %s204
      %p218 = scmp.eq.s32.totalorder %s24, 3
      %p219 = por %p217, %p218
      %p221 = scmp.ne.s32.totalorder %s204, %s220
      %p222 = scmp.eq.s32.totalorder %s24, 0
      %p223 = por %p221, %p222
      %s224 = ssub.s32 %s18, %s25
      %p225 = scmp.eq.s32.totalorder %s224, 0
      %s227 = sadd.s32 %s226, 1
      %s228 = scalar_select %p225, %s226, %s227
      %p231 = pneg %p225
      %p232 = scmp.eq.s32.totalorder %s18, 3
      %p233 = por %p231, %p232
      %p234 = scmp.ne.s32.totalorder %s226, %s229
      %p235 = scmp.eq.s32.totalorder %s18, 0
      %p236 = por %p234, %p235
      %p237 = scmp.ne.s32.totalorder %s226, %s229
      %p238 = scmp.eq.s32.totalorder %s23, 3
      %p239 = por %p237, %p238
      %p240 = scmp.ne.s32.totalorder %s229, %s230
      %p241 = scmp.eq.s32.totalorder %s23, 0
      %p242 = por %p240, %p241
      %p243 = scmp.ne.s32.totalorder %s229, %s230
      %p244 = scmp.eq.s32.totalorder %s24, 3
      %p245 = por %p243, %p244
      %p247 = scmp.ne.s32.totalorder %s230, %s246
      %p248 = scmp.eq.s32.totalorder %s24, 0
      %p249 = por %p247, %p248
      %p250 = scmp.le.s32.totalorder 1, %s18
      %p251 = scmp.lt.s32.totalorder %s18, 5
      %p252 = pnand %p250, %p251
      %p253 = pneg %p252
      // Predicated region
      $region9: #{bottleneck_forward.4} parent=5 // pred_check
        _
      $region10: #{bottleneck_forward.4} parent=5 // pred_check_branch
        %255 = sbr.rel (%p252) target = $region12
      $region11: #{bottleneck_forward.4} parent=5 // pred_region
        %s256 = ssub.s32 %s18, 1
        // Predicated region
        $region13: #{bottleneck_forward.4} parent=11 // pred_check
          %p257 = pneg %p65
        $region14: #{bottleneck_forward.4} parent=11 // pred_check_branch
          %259 = sbr.rel (%p257) target = $region16
        $region15: #{bottleneck_forward.4} parent=11 // pred_region
          _
        $region16: #{bottleneck_forward.4} parent=11 // pred_fallthru
          _
        // Predicated region
        $region17: #{bottleneck_forward.4} parent=11 // pred_check
          %p260 = pneg %p86
        $region18: #{bottleneck_forward.4} parent=11 // pred_check_branch
          %262 = sbr.rel (%p260) target = $region20
        $region19: #{bottleneck_forward.4} parent=11 // pred_region
          _
        $region20: #{bottleneck_forward.4} parent=11 // pred_fallthru
          _
      $region12: #{bottleneck_forward.4} parent=5 // pred_fallthru
        _
      %p263 = scmp.lt.s32.totalorder %s18, 4
      // Predicated region
      $region21: #{bottleneck_forward.4} parent=5 // pred_check
        %p264 = pneg %p263
      $region22: #{bottleneck_forward.4} parent=5 // pred_check_branch
        %266 = sbr.rel (%p264) target = $region24
      $region23: #{bottleneck_forward.4} parent=5 // pred_region
        // Predicated region
        $region25: #{bottleneck_forward.4} parent=23 // pred_check
          %p267 = pneg %p38
        $region26: #{bottleneck_forward.4} parent=23 // pred_check_branch
          %269 = sbr.rel (%p267) target = $region28
        $region27: #{bottleneck_forward.4} parent=23 // pred_region
          %s270 = sand.u32 %s28, 1
          %s271 = scalar_lea.sflag [#allocation3], %s270
          %s272 = sand.u32 %s28, 1
          %s273 = smul.addr %s272, 128
          %s274 = scalar_lea.vmem [#allocation2], %s273
          %s275 = smul.u32 16, %s18
          %277 = vsyncadd %s271, 0
          %s278 = smul.addr %s275, 8
          %s279 = scalar_lea.hbm %s0, %s278
          %s280 = sshll.u32 %s279, 4
          %s281 = int_to_ptr.hbm [resolvable:$true] %s280
          %s282 = sshll.u32 %s274, 4
          %s283 = int_to_ptr.vmem [resolvable:$true] %s282
          %288 = dma.hbm_to_vmem [thread:$0]  %s281, 2048, %s283, %s271, 128, 128, 8
        $region28: #{bottleneck_forward.4} parent=23 // pred_fallthru
          _
      $region24: #{bottleneck_forward.4} parent=5 // pred_fallthru
        _
      %p289 = scmp.le.s32.totalorder 1, %s18
      %p290 = scmp.lt.s32.totalorder %s18, 5
      %p291 = pnand %p289, %p290
      %p292 = pneg %p291
      // Predicated region
      $region29: #{bottleneck_forward.4} parent=5 // pred_check
        _
      $region30: #{bottleneck_forward.4} parent=5 // pred_check_branch
        %294 = sbr.rel (%p291) target = $region32
      $region31: #{bottleneck_forward.4} parent=5 // pred_region
        %s295 = ssub.s32 %s18, 1
        %s296 = sand.u32 %s31, 1
        %s297 = scalar_lea.sflag [#allocation3], %s296
        %s298 = sand.u32 %s31, 1
        %s299 = smul.addr %s298, 128
        %s300 = scalar_lea.vmem [#allocation2], %s299
        // Predicated region
        $region33: #{bottleneck_forward.4} parent=31 // pred_check
          %p301 = pneg %p44
        $region34: #{bottleneck_forward.4} parent=31 // pred_check_branch
          %303 = sbr.rel (%p301) target = $region36
        $region35: #{bottleneck_forward.4} parent=31 // pred_region
          %305 = dma.done %s297, 2048
        $region36: #{bottleneck_forward.4} parent=31 // pred_fallthru
          _
        %s306 = sand.u32 %s31, 1
        %s307 = scalar_lea.sflag [#allocation3], %s306
        %s308 = sand.u32 %s31, 1
        %s309 = smul.addr %s308, 128
        %s310 = scalar_lea.vmem [#allocation2], %s309
        %p311 = pneg %p44
        %p312 = pneg %p41
        %p313 = pneg %p65
        %p314 = pneg %p62
        %p315 = pneg %p86
        %p316 = pneg %p83
        %p317 = pneg %p112
        %p318 = pneg %p109
        %s319 = smul.u32 16, %s23
        %p320 = scmp.lt.s32.totalorder %s319, 63
        %s321 = scalar_select %p320, %s319, 63
        %s322 = smul.addr %s321, 4
        %s323 = scalar_lea.vmem %s3, %s322
        %p324 = pneg %p138
        %p325 = pneg %p135
        %s326 = smul.u32 16, %s23
        %p327 = scmp.lt.s32.totalorder %s326, 63
        %s328 = scalar_select %p327, %s326, 63
        %s329 = smul.addr %s328, 4
        %s330 = scalar_lea.vmem %s4, %s329
        %p331 = pneg %p164
        %p332 = pneg %p161
        %p333 = scmp.lt.s32.totalorder %s23, 3
        %s334 = scalar_select %p333, %s23, 3
        %s335 = scalar_lea.vmem %s5, %s334
        %p336 = pneg %p190
        %p337 = pneg %p187
        %p338 = scmp.lt.s32.totalorder %s23, 3
        %s339 = scalar_select %p338, %s23, 3
        %s340 = scalar_lea.vmem %s6, %s339
        %p341 = pneg %p216
        %p342 = pneg %p213
        %p343 = scmp.lt.s32.totalorder %s23, 3
        %s344 = scalar_select %p343, %s23, 3
        %s345 = scalar_lea.vmem %s7, %s344
        %p346 = pneg %p242
        %p347 = pneg %p239
        %p348 = scmp.lt.s32.totalorder %s23, 3
        %s349 = scalar_select %p348, %s23, 3
        %s350 = scalar_lea.vmem %s8, %s349
        %s351 = smul.u32 16, %s23
        %s352 = smul.u32 16, %s23
        %p353 = scmp.lt.s32.totalorder %s352, 63
        %s354 = scalar_select %p353, %s352, 63
        %s355 = smul.addr %s354, 4
        %s356 = scalar_lea.vmem %s3, %s355
        %s357 = smul.u32 16, %s23
        %s358 = smul.u32 16, %s23
        %p359 = scmp.lt.s32.totalorder %s358, 63
        %s360 = scalar_select %p359, %s358, 63
        %s361 = smul.addr %s360, 4
        %s362 = scalar_lea.vmem %s4, %s361
        %s363 = smul.u32 16, %s23
        %p364 = scmp.lt.s32.totalorder %s23, 3
        %s365 = scalar_select %p364, %s23, 3
        %s366 = scalar_lea.vmem %s5, %s365
        %p367 = scmp.lt.s32.totalorder %s23, 3
        %s368 = scalar_select %p367, %s23, 3
        %s369 = scalar_lea.vmem %s6, %s368
        %p370 = scmp.lt.s32.totalorder %s23, 3
        %s371 = scalar_select %p370, %s23, 3
        %s372 = scalar_lea.vmem %s7, %s371
        %p373 = scmp.lt.s32.totalorder %s23, 3
        %s374 = scalar_select %p373, %s23, 3
        %s375 = scalar_lea.vmem %s8, %s374
        %v377 = vld [vmem:[%s300] sm:$0xff]
        %v378 = vld [vmem:[%s300 + $0x8] sm:$0xff]
        %v379 = vld [vmem:[%s300 + $0x10] sm:$0xff]
        %v380 = vld [vmem:[%s300 + $0x18] sm:$0xff]
        %v381 = vld [vmem:[%s300 + $0x20] sm:$0xff]
        %v382 = vld [vmem:[%s300 + $0x28] sm:$0xff]
        %v383 = vld [vmem:[%s300 + $0x30] sm:$0xff]
        %v384 = vld [vmem:[%s300 + $0x38] sm:$0xff]
        %v385 = vld [vmem:[%s300 + $0x40] sm:$0xff]
        %v386 = vld [vmem:[%s300 + $0x48] sm:$0xff]
        %v387 = vld [vmem:[%s300 + $0x50] sm:$0xff]
        %v388 = vld [vmem:[%s300 + $0x58] sm:$0xff]
        %v389 = vld [vmem:[%s300 + $0x60] sm:$0xff]
        %v390 = vld [vmem:[%s300 + $0x68] sm:$0xff]
        %v391 = vld [vmem:[%s300 + $0x70] sm:$0xff]
        %v392 = vld [vmem:[%s300 + $0x78] sm:$0xff]
        %v393 = vpack.c.bf16 %v378, %v377
        %v394 = vpack.c.bf16 %v380, %v379
        %v395 = vpack.c.bf16 %v382, %v381
        %v396 = vpack.c.bf16 %v384, %v383
        %v397 = vpack.c.bf16 %v386, %v385
        %v398 = vpack.c.bf16 %v388, %v387
        %v399 = vpack.c.bf16 %v390, %v389
        %v400 = vpack.c.bf16 %v392, %v391
        %v401 = vld [vmem:[%s1] sm:$0xf]
        %v402 = vld [vmem:[%s1 + $0x4] sm:$0xf]
        %v403 = vld [vmem:[%s1 + $0x8] sm:$0xf]
        %v404 = vld [vmem:[%s1 + $0xc] sm:$0xf]
        %v405 = vld [vmem:[%s1 + $0x10] sm:$0xf]
        %v406 = vld [vmem:[%s1 + $0x14] sm:$0xf]
        %v407 = vld [vmem:[%s1 + $0x18] sm:$0xf]
        %v408 = vld [vmem:[%s1 + $0x1c] sm:$0xf]
        %v417 = vunpack.c.l.b16 %v401
        %v418 = vunpack.c.l.b16 %v402
        %v419 = vunpack.c.l.b16 %v403
        %v420 = vunpack.c.l.b16 %v404
        %v421 = vunpack.c.l.b16 %v405
        %v422 = vunpack.c.l.b16 %v406
        %v423 = vunpack.c.l.b16 %v407
        %v424 = vunpack.c.l.b16 %v408
        %v425 = vpack.c.b16 %v418, %v417
        %v426 = vpack.c.b16 %v420, %v419
        %v427 = vpack.c.b16 %v422, %v421
        %v428 = vpack.c.b16 %v424, %v423
        %vm433 = vcmask 523264
        %v435 = vsel %vm433, %v393, 0
        %v438 = vsel %vm433, %v394, 0
        %v441 = vsel %vm433, %v395, 0
        %v444 = vsel %vm433, %v396, 0
        %v447 = vsel %vm433, %v397, 0
        %v450 = vsel %vm433, %v398, 0
        %v453 = vsel %vm433, %v399, 0
        %v456 = vsel %vm433, %v400, 0
        %458 = vmatpush.bf16.msra.mxu0 0
        %459 = vmatpush.bf16.msra.mxu0 0
        %460 = vmatpush.bf16.msra.mxu0 0
        %461 = vmatpush.bf16.msra.mxu0 0
        %462 = vmatpush.bf16.msra.mxu0 %v428
        %463 = vmatpush.bf16.msra.mxu0 %v427
        %464 = vmatpush.bf16.msra.mxu0 %v426
        %465 = vmatpush.bf16.msra.mxu0 %v425
        %466 = vmatmul.bf16.gmra.mxu0 %v435
        %v467 = vpop.f32.mrf.mxu0
        %v468 = vadd.f32 0.0, %v467
        %v469 = vpop.f32.mrf.mxu0
        %v470 = vadd.f32 0.0, %v469
        %471 = vmatmul.bf16.gmra.mxu0 %v438
        %v472 = vpop.f32.mrf.mxu0
        %v473 = vadd.f32 0.0, %v472
        %v474 = vpop.f32.mrf.mxu0
        %v475 = vadd.f32 0.0, %v474
        %476 = vmatmul.bf16.gmra.mxu0 %v441
        %v477 = vpop.f32.mrf.mxu0
        %v478 = vadd.f32 0.0, %v477
        %v479 = vpop.f32.mrf.mxu0
        %v480 = vadd.f32 0.0, %v479
        %481 = vmatmul.bf16.gmra.mxu0 %v444
        %v482 = vpop.f32.mrf.mxu0
        %v483 = vadd.f32 0.0, %v482
        %v484 = vpop.f32.mrf.mxu0
        %v485 = vadd.f32 0.0, %v484
        %486 = vmatmul.bf16.gmra.mxu0 %v447
        %v487 = vpop.f32.mrf.mxu0
        %v488 = vadd.f32 0.0, %v487
        %v489 = vpop.f32.mrf.mxu0
        %v490 = vadd.f32 0.0, %v489
        %491 = vmatmul.bf16.gmra.mxu0 %v450
        %v492 = vpop.f32.mrf.mxu0
        %v493 = vadd.f32 0.0, %v492
        %v494 = vpop.f32.mrf.mxu0
        %v495 = vadd.f32 0.0, %v494
        %496 = vmatmul.bf16.gmra.mxu0 %v453
        %v497 = vpop.f32.mrf.mxu0
        %v498 = vadd.f32 0.0, %v497
        %v499 = vpop.f32.mrf.mxu0
        %v500 = vadd.f32 0.0, %v499
        %501 = vmatmul.bf16.gmra.mxu0 %v456
        %v502 = vpop.f32.mrf.mxu0
        %v503 = vadd.f32 0.0, %v502
        %v504 = vpop.f32.mrf.mxu0
        %v505 = vadd.f32 0.0, %v504
        %506 = vdwg.mxu0
        %v507 = vld [vmem:[%s2] sm:$0xf]
        %v508 = vld [vmem:[%s2 + $0x4] sm:$0xf]
        %v509 = vld [vmem:[%s2 + $0x8] sm:$0xf]
        %v510 = vld [vmem:[%s2 + $0xc] sm:$0xf]
        %v511 = vld [vmem:[%s2 + $0x10] sm:$0xf]
        %v512 = vld [vmem:[%s2 + $0x14] sm:$0xf]
        %v513 = vld [vmem:[%s2 + $0x18] sm:$0xf]
        %v514 = vld [vmem:[%s2 + $0x1c] sm:$0xf]
        %v523 = vunpack.c.l.b16 %v507
        %v524 = vunpack.c.l.b16 %v508
        %v525 = vunpack.c.l.b16 %v509
        %v526 = vunpack.c.l.b16 %v510
        %v527 = vunpack.c.l.b16 %v511
        %v528 = vunpack.c.l.b16 %v512
        %v529 = vunpack.c.l.b16 %v513
        %v530 = vunpack.c.l.b16 %v514
        %v531 = vpack.c.b16 %v524, %v523
        %v532 = vpack.c.b16 %v526, %v525
        %v533 = vpack.c.b16 %v528, %v527
        %v534 = vpack.c.b16 %v530, %v529
        %539 = vmatpush.bf16.msra.mxu0 0
        %540 = vmatpush.bf16.msra.mxu0 0
        %541 = vmatpush.bf16.msra.mxu0 0
        %542 = vmatpush.bf16.msra.mxu0 0
        %543 = vmatpush.bf16.msra.mxu0 %v534
        %544 = vmatpush.bf16.msra.mxu0 %v533
        %545 = vmatpush.bf16.msra.mxu0 %v532
        %546 = vmatpush.bf16.msra.mxu0 %v531
        %547 = vmatmul.bf16.gmra.mxu0 %v435
        %v548 = vpop.f32.mrf.mxu0
        %v549 = vadd.f32 0.0, %v548
        %v550 = vpop.f32.mrf.mxu0
        %v551 = vadd.f32 0.0, %v550
        %552 = vmatmul.bf16.gmra.mxu0 %v438
        %v553 = vpop.f32.mrf.mxu0
        %v554 = vadd.f32 0.0, %v553
        %v555 = vpop.f32.mrf.mxu0
        %v556 = vadd.f32 0.0, %v555
        %557 = vmatmul.bf16.gmra.mxu0 %v441
        %v558 = vpop.f32.mrf.mxu0
        %v559 = vadd.f32 0.0, %v558
        %v560 = vpop.f32.mrf.mxu0
        %v561 = vadd.f32 0.0, %v560
        %562 = vmatmul.bf16.gmra.mxu0 %v444
        %v563 = vpop.f32.mrf.mxu0
        %v564 = vadd.f32 0.0, %v563
        %v565 = vpop.f32.mrf.mxu0
        %v566 = vadd.f32 0.0, %v565
        %567 = vmatmul.bf16.gmra.mxu0 %v447
        %v568 = vpop.f32.mrf.mxu0
        %v569 = vadd.f32 0.0, %v568
        %v570 = vpop.f32.mrf.mxu0
        %v571 = vadd.f32 0.0, %v570
        %572 = vmatmul.bf16.gmra.mxu0 %v450
        %v573 = vpop.f32.mrf.mxu0
        %v574 = vadd.f32 0.0, %v573
        %v575 = vpop.f32.mrf.mxu0
        %v576 = vadd.f32 0.0, %v575
        %577 = vmatmul.bf16.gmra.mxu0 %v453
        %v578 = vpop.f32.mrf.mxu0
        %v579 = vadd.f32 0.0, %v578
        %v580 = vpop.f32.mrf.mxu0
        %v581 = vadd.f32 0.0, %v580
        %582 = vmatmul.bf16.gmra.mxu0 %v456
        %v583 = vpop.f32.mrf.mxu0
        %v584 = vadd.f32 0.0, %v583
        %v585 = vpop.f32.mrf.mxu0
        %v586 = vadd.f32 0.0, %v585
        %587 = vdwg.mxu0
        %v588 = vpack.c.bf16 %v468, %v468
        %v589 = vpack.c.bf16 %v470, %v470
        %v590 = vpack.c.bf16 %v473, %v473
        %v591 = vpack.c.bf16 %v475, %v475
        %v592 = vpack.c.bf16 %v478, %v478
        %v593 = vpack.c.bf16 %v480, %v480
        %v594 = vpack.c.bf16 %v483, %v483
        %v595 = vpack.c.bf16 %v485, %v485
        %v596 = vpack.c.bf16 %v488, %v488
        %v597 = vpack.c.bf16 %v490, %v490
        %v598 = vpack.c.bf16 %v493, %v493
        %v599 = vpack.c.bf16 %v495, %v495
        %v600 = vpack.c.bf16 %v498, %v498
        %v601 = vpack.c.bf16 %v500, %v500
        %v602 = vpack.c.bf16 %v503, %v503
        %v603 = vpack.c.bf16 %v505, %v505
        %vm604 = vcmask 257024
        %605 = vst.msk [vmem:[%s356] sm:$0xf] %vm604, %v588
        %606 = vst.msk [vmem:[%s356 + $0x4] sm:$0xf] %vm604, %v589
        %607 = vst.msk [vmem:[%s356 + $0x8] sm:$0xf] %vm604, %v590
        %608 = vst.msk [vmem:[%s356 + $0xc] sm:$0xf] %vm604, %v591
        %609 = vst.msk [vmem:[%s356 + $0x10] sm:$0xf] %vm604, %v592
        %610 = vst.msk [vmem:[%s356 + $0x14] sm:$0xf] %vm604, %v593
        %611 = vst.msk [vmem:[%s356 + $0x18] sm:$0xf] %vm604, %v594
        %612 = vst.msk [vmem:[%s356 + $0x1c] sm:$0xf] %vm604, %v595
        %613 = vst.msk [vmem:[%s356 + $0x20] sm:$0xf] %vm604, %v596
        %614 = vst.msk [vmem:[%s356 + $0x24] sm:$0xf] %vm604, %v597
        %615 = vst.msk [vmem:[%s356 + $0x28] sm:$0xf] %vm604, %v598
        %616 = vst.msk [vmem:[%s356 + $0x2c] sm:$0xf] %vm604, %v599
        %617 = vst.msk [vmem:[%s356 + $0x30] sm:$0xf] %vm604, %v600
        %618 = vst.msk [vmem:[%s356 + $0x34] sm:$0xf] %vm604, %v601
        %619 = vst.msk [vmem:[%s356 + $0x38] sm:$0xf] %vm604, %v602
        %620 = vst.msk [vmem:[%s356 + $0x3c] sm:$0xf] %vm604, %v603
        %v621 = vpack.c.bf16 %v549, %v549
        %v622 = vpack.c.bf16 %v551, %v551
        %v623 = vpack.c.bf16 %v554, %v554
        %v624 = vpack.c.bf16 %v556, %v556
        %v625 = vpack.c.bf16 %v559, %v559
        %v626 = vpack.c.bf16 %v561, %v561
        %v627 = vpack.c.bf16 %v564, %v564
        %v628 = vpack.c.bf16 %v566, %v566
        %v629 = vpack.c.bf16 %v569, %v569
        %v630 = vpack.c.bf16 %v571, %v571
        %v631 = vpack.c.bf16 %v574, %v574
        %v632 = vpack.c.bf16 %v576, %v576
        %v633 = vpack.c.bf16 %v579, %v579
        %v634 = vpack.c.bf16 %v581, %v581
        %v635 = vpack.c.bf16 %v584, %v584
        %v636 = vpack.c.bf16 %v586, %v586
        %637 = vst [vmem:[%s362] sm:$0xf] %v621
        %638 = vst [vmem:[%s362 + $0x4] sm:$0xf] %v622
        %639 = vst [vmem:[%s362 + $0x8] sm:$0xf] %v623
        %640 = vst [vmem:[%s362 + $0xc] sm:$0xf] %v624
        %641 = vst [vmem:[%s362 + $0x10] sm:$0xf] %v625
        %642 = vst [vmem:[%s362 + $0x14] sm:$0xf] %v626
        %643 = vst [vmem:[%s362 + $0x18] sm:$0xf] %v627
        %644 = vst [vmem:[%s362 + $0x1c] sm:$0xf] %v628
        %645 = vst [vmem:[%s362 + $0x20] sm:$0xf] %v629
        %646 = vst [vmem:[%s362 + $0x24] sm:$0xf] %v630
        %647 = vst [vmem:[%s362 + $0x28] sm:$0xf] %v631
        %648 = vst [vmem:[%s362 + $0x2c] sm:$0xf] %v632
        %649 = vst [vmem:[%s362 + $0x30] sm:$0xf] %v633
        %650 = vst [vmem:[%s362 + $0x34] sm:$0xf] %v634
        %651 = vst [vmem:[%s362 + $0x38] sm:$0xf] %v635
        %652 = vst [vmem:[%s362 + $0x3c] sm:$0xf] %v636
        %vm653 = vcmask 261120
        %v654 = vsel %vm653, %v468, 0.0
        %v655 = vsel %vm653, %v470, 0.0
        %v656 = vadd.f32 %v654, %v655
        %v657 = vsel %vm653, %v473, 0.0
        %v658 = vadd.f32 %v656, %v657
        %v659 = vsel %vm653, %v475, 0.0
        %v660 = vadd.f32 %v658, %v659
        %v661 = vsel %vm653, %v478, 0.0
        %v662 = vadd.f32 %v660, %v661
        %v663 = vsel %vm653, %v480, 0.0
        %v664 = vadd.f32 %v662, %v663
        %v665 = vsel %vm653, %v483, 0.0
        %v666 = vadd.f32 %v664, %v665
        %v667 = vsel %vm653, %v485, 0.0
        %v668 = vadd.f32 %v666, %v667
        %v669 = vsel %vm653, %v488, 0.0
        %v670 = vadd.f32 %v668, %v669
        %v671 = vsel %vm653, %v490, 0.0
        %v672 = vadd.f32 %v670, %v671
        %v673 = vsel %vm653, %v493, 0.0
        %v674 = vadd.f32 %v672, %v673
        %v675 = vsel %vm653, %v495, 0.0
        %v676 = vadd.f32 %v674, %v675
        %v677 = vsel %vm653, %v498, 0.0
        %v678 = vadd.f32 %v676, %v677
        %v679 = vsel %vm653, %v500, 0.0
        %v680 = vadd.f32 %v678, %v679
        %v681 = vsel %vm653, %v503, 0.0
        %v682 = vadd.f32 %v680, %v681
        %v683 = vsel %vm653, %v505, 0.0
        %v684 = vadd.f32 %v682, %v683
        %v685 = vrot.slane %v684, 4
        %v686 = vadd.f32 %v684, %v685
        %v687 = vrot.slane %v686, 2
        %v688 = vadd.f32 %v686, %v687
        %v689 = vrot.slane %v688, 1
        %v690 = vadd.f32 %v688, %v689
        %vm691 = vcmask 253952
        %692 = vst.msk [vmem:[%s366] sm:$0x1] %vm691, %v690
        %v693 = vmul.f32 %v468, %v468
        %v694 = vmul.f32 %v470, %v470
        %v695 = vmul.f32 %v473, %v473
        %v696 = vmul.f32 %v475, %v475
        %v697 = vmul.f32 %v478, %v478
        %v698 = vmul.f32 %v480, %v480
        %v699 = vmul.f32 %v483, %v483
        %v700 = vmul.f32 %v485, %v485
        %v701 = vmul.f32 %v488, %v488
        %v702 = vmul.f32 %v490, %v490
        %v703 = vmul.f32 %v493, %v493
        %v704 = vmul.f32 %v495, %v495
        %v705 = vmul.f32 %v498, %v498
        %v706 = vmul.f32 %v500, %v500
        %v707 = vmul.f32 %v503, %v503
        %v708 = vmul.f32 %v505, %v505
        %v709 = vsel %vm653, %v693, 0.0
        %v710 = vsel %vm653, %v694, 0.0
        %v711 = vadd.f32 %v709, %v710
        %v712 = vsel %vm653, %v695, 0.0
        %v713 = vadd.f32 %v711, %v712
        %v714 = vsel %vm653, %v696, 0.0
        %v715 = vadd.f32 %v713, %v714
        %v716 = vsel %vm653, %v697, 0.0
        %v717 = vadd.f32 %v715, %v716
        %v718 = vsel %vm653, %v698, 0.0
        %v719 = vadd.f32 %v717, %v718
        %v720 = vsel %vm653, %v699, 0.0
        %v721 = vadd.f32 %v719, %v720
        %v722 = vsel %vm653, %v700, 0.0
        %v723 = vadd.f32 %v721, %v722
        %v724 = vsel %vm653, %v701, 0.0
        %v725 = vadd.f32 %v723, %v724
        %v726 = vsel %vm653, %v702, 0.0
        %v727 = vadd.f32 %v725, %v726
        %v728 = vsel %vm653, %v703, 0.0
        %v729 = vadd.f32 %v727, %v728
        %v730 = vsel %vm653, %v704, 0.0
        %v731 = vadd.f32 %v729, %v730
        %v732 = vsel %vm653, %v705, 0.0
        %v733 = vadd.f32 %v731, %v732
        %v734 = vsel %vm653, %v706, 0.0
        %v735 = vadd.f32 %v733, %v734
        %v736 = vsel %vm653, %v707, 0.0
        %v737 = vadd.f32 %v735, %v736
        %v738 = vsel %vm653, %v708, 0.0
        %v739 = vadd.f32 %v737, %v738
        %v740 = vrot.slane %v739, 4
        %v741 = vadd.f32 %v739, %v740
        %v742 = vrot.slane %v741, 2
        %v743 = vadd.f32 %v741, %v742
        %v744 = vrot.slane %v743, 1
        %v745 = vadd.f32 %v743, %v744
        %746 = vst.msk [vmem:[%s369] sm:$0x1] %vm691, %v745
        %v747 = vadd.f32 %v549, %v551
        %v748 = vadd.f32 %v747, %v554
        %v749 = vadd.f32 %v748, %v556
        %v750 = vadd.f32 %v749, %v559
        %v751 = vadd.f32 %v750, %v561
        %v752 = vadd.f32 %v751, %v564
        %v753 = vadd.f32 %v752, %v566
        %v754 = vadd.f32 %v753, %v569
        %v755 = vadd.f32 %v754, %v571
        %v756 = vadd.f32 %v755, %v574
        %v757 = vadd.f32 %v756, %v576
        %v758 = vadd.f32 %v757, %v579
        %v759 = vadd.f32 %v758, %v581
        %v760 = vadd.f32 %v759, %v584
        %v761 = vadd.f32 %v760, %v586
        %v762 = vrot.slane %v761, 4
        %v763 = vadd.f32 %v761, %v762
        %v764 = vrot.slane %v763, 2
        %v765 = vadd.f32 %v763, %v764
        %v766 = vrot.slane %v765, 1
        %v767 = vadd.f32 %v765, %v766
        %768 = vst [vmem:[%s372] sm:$0x1] %v767
        %v769 = vmul.f32 %v549, %v549
        %v770 = vmul.f32 %v551, %v551
        %v771 = vmul.f32 %v554, %v554
        %v772 = vmul.f32 %v556, %v556
        %v773 = vmul.f32 %v559, %v559
        %v774 = vmul.f32 %v561, %v561
        %v775 = vmul.f32 %v564, %v564
        %v776 = vmul.f32 %v566, %v566
        %v777 = vmul.f32 %v569, %v569
        %v778 = vmul.f32 %v571, %v571
        %v779 = vmul.f32 %v574, %v574
        %v780 = vmul.f32 %v576, %v576
        %v781 = vmul.f32 %v579, %v579
        %v782 = vmul.f32 %v581, %v581
        %v783 = vmul.f32 %v584, %v584
        %v784 = vmul.f32 %v586, %v586
        %v785 = vadd.f32 %v769, %v770
        %v786 = vadd.f32 %v785, %v771
        %v787 = vadd.f32 %v786, %v772
        %v788 = vadd.f32 %v787, %v773
        %v789 = vadd.f32 %v788, %v774
        %v790 = vadd.f32 %v789, %v775
        %v791 = vadd.f32 %v790, %v776
        %v792 = vadd.f32 %v791, %v777
        %v793 = vadd.f32 %v792, %v778
        %v794 = vadd.f32 %v793, %v779
        %v795 = vadd.f32 %v794, %v780
        %v796 = vadd.f32 %v795, %v781
        %v797 = vadd.f32 %v796, %v782
        %v798 = vadd.f32 %v797, %v783
        %v799 = vadd.f32 %v798, %v784
        %v800 = vrot.slane %v799, 4
        %v801 = vadd.f32 %v799, %v800
        %v802 = vrot.slane %v801, 2
        %v803 = vadd.f32 %v801, %v802
        %v804 = vrot.slane %v803, 1
        %v805 = vadd.f32 %v803, %v804
        %806 = vst [vmem:[%s375] sm:$0x1] %v805
        %s807 = smul.u32 16, %s23
        %p808 = scmp.lt.s32.totalorder %s807, 63
        %s809 = scalar_select %p808, %s807, 63
        %s810 = smul.addr %s809, 4
        %s811 = scalar_lea.vmem %s3, %s810
        %s812 = smul.u32 16, %s23
        %p813 = scmp.lt.s32.totalorder %s812, 63
        %s814 = scalar_select %p813, %s812, 63
        %s815 = smul.addr %s814, 4
        %s816 = scalar_lea.vmem %s4, %s815
        %p817 = scmp.lt.s32.totalorder %s23, 3
        %s818 = scalar_select %p817, %s23, 3
        %s819 = scalar_lea.vmem %s5, %s818
        %p820 = scmp.lt.s32.totalorder %s23, 3
        %s821 = scalar_select %p820, %s23, 3
        %s822 = scalar_lea.vmem %s6, %s821
        %p823 = scmp.lt.s32.totalorder %s23, 3
        %s824 = scalar_select %p823, %s23, 3
        %s825 = scalar_lea.vmem %s7, %s824
        %p826 = scmp.lt.s32.totalorder %s23, 3
        %s827 = scalar_select %p826, %s23, 3
        %s828 = scalar_lea.vmem %s8, %s827
        // Predicated region
        $region37: #{bottleneck_forward.4} parent=31 // pred_check
          %p829 = pneg %p109
        $region38: #{bottleneck_forward.4} parent=31 // pred_check_branch
          %831 = sbr.rel (%p829) target = $region40
        $region39: #{bottleneck_forward.4} parent=31 // pred_region
          %s832 = smul.u32 16, %s23
        $region40: #{bottleneck_forward.4} parent=31 // pred_fallthru
          _
        // Predicated region
        $region41: #{bottleneck_forward.4} parent=31 // pred_check
          %p833 = pneg %p135
        $region42: #{bottleneck_forward.4} parent=31 // pred_check_branch
          %835 = sbr.rel (%p833) target = $region44
        $region43: #{bottleneck_forward.4} parent=31 // pred_region
          %s836 = smul.u32 16, %s23
        $region44: #{bottleneck_forward.4} parent=31 // pred_fallthru
          _
        // Predicated region
        $region45: #{bottleneck_forward.4} parent=31 // pred_check
          %p837 = pneg %p161
        $region46: #{bottleneck_forward.4} parent=31 // pred_check_branch
          %839 = sbr.rel (%p837) target = $region48
        $region47: #{bottleneck_forward.4} parent=31 // pred_region
          _
        $region48: #{bottleneck_forward.4} parent=31 // pred_fallthru
          _
        // Predicated region
        $region49: #{bottleneck_forward.4} parent=31 // pred_check
          %p840 = pneg %p187
        $region50: #{bottleneck_forward.4} parent=31 // pred_check_branch
          %842 = sbr.rel (%p840) target = $region52
        $region51: #{bottleneck_forward.4} parent=31 // pred_region
          _
        $region52: #{bottleneck_forward.4} parent=31 // pred_fallthru
          _
        // Predicated region
        $region53: #{bottleneck_forward.4} parent=31 // pred_check
          %p843 = pneg %p213
        $region54: #{bottleneck_forward.4} parent=31 // pred_check_branch
          %845 = sbr.rel (%p843) target = $region56
        $region55: #{bottleneck_forward.4} parent=31 // pred_region
          _
        $region56: #{bottleneck_forward.4} parent=31 // pred_fallthru
          _
        // Predicated region
        $region57: #{bottleneck_forward.4} parent=31 // pred_check
          %p846 = pneg %p239
        $region58: #{bottleneck_forward.4} parent=31 // pred_check_branch
          %848 = sbr.rel (%p846) target = $region60
        $region59: #{bottleneck_forward.4} parent=31 // pred_region
          _
        $region60: #{bottleneck_forward.4} parent=31 // pred_fallthru
          _
      $region32: #{bottleneck_forward.4} parent=5 // pred_fallthru
        _
      %p849 = scmp.le.s32.totalorder 2, %s18
      // Predicated region
      $region61: #{bottleneck_forward.4} parent=5 // pred_check
        %p850 = pneg %p849
      $region62: #{bottleneck_forward.4} parent=5 // pred_check_branch
        %852 = sbr.rel (%p850) target = $region64
      $region63: #{bottleneck_forward.4} parent=5 // pred_region
        %s853 = ssub.s32 %s18, 2
        // Predicated region
        $region65: #{bottleneck_forward.4} parent=63 // pred_check
          %p854 = pneg %p115
        $region66: #{bottleneck_forward.4} parent=63 // pred_check_branch
          %856 = sbr.rel (%p854) target = $region68
        $region67: #{bottleneck_forward.4} parent=63 // pred_region
          %s857 = smul.u32 16, %s24
          %p858 = scmp.lt.s32.totalorder %s857, 63
          %s859 = scalar_select %p858, %s857, 63
          %s860 = smul.addr %s859, 4
          %s861 = scalar_lea.vmem %s3, %s860
        $region68: #{bottleneck_forward.4} parent=63 // pred_fallthru
          _
        // Predicated region
        $region69: #{bottleneck_forward.4} parent=63 // pred_check
          %p862 = pneg %p141
        $region70: #{bottleneck_forward.4} parent=63 // pred_check_branch
          %864 = sbr.rel (%p862) target = $region72
        $region71: #{bottleneck_forward.4} parent=63 // pred_region
          %s865 = smul.u32 16, %s24
          %p866 = scmp.lt.s32.totalorder %s865, 63
          %s867 = scalar_select %p866, %s865, 63
          %s868 = smul.addr %s867, 4
          %s869 = scalar_lea.vmem %s4, %s868
        $region72: #{bottleneck_forward.4} parent=63 // pred_fallthru
          _
        // Predicated region
        $region73: #{bottleneck_forward.4} parent=63 // pred_check
          %p870 = pneg %p167
        $region74: #{bottleneck_forward.4} parent=63 // pred_check_branch
          %872 = sbr.rel (%p870) target = $region76
        $region75: #{bottleneck_forward.4} parent=63 // pred_region
          %p873 = scmp.lt.s32.totalorder %s24, 3
          %s874 = scalar_select %p873, %s24, 3
          %s875 = scalar_lea.vmem %s5, %s874
        $region76: #{bottleneck_forward.4} parent=63 // pred_fallthru
          _
        // Predicated region
        $region77: #{bottleneck_forward.4} parent=63 // pred_check
          %p876 = pneg %p193
        $region78: #{bottleneck_forward.4} parent=63 // pred_check_branch
          %878 = sbr.rel (%p876) target = $region80
        $region79: #{bottleneck_forward.4} parent=63 // pred_region
          %p879 = scmp.lt.s32.totalorder %s24, 3
          %s880 = scalar_select %p879, %s24, 3
          %s881 = scalar_lea.vmem %s6, %s880
        $region80: #{bottleneck_forward.4} parent=63 // pred_fallthru
          _
        // Predicated region
        $region81: #{bottleneck_forward.4} parent=63 // pred_check
          %p882 = pneg %p219
        $region82: #{bottleneck_forward.4} parent=63 // pred_check_branch
          %884 = sbr.rel (%p882) target = $region84
        $region83: #{bottleneck_forward.4} parent=63 // pred_region
          %p885 = scmp.lt.s32.totalorder %s24, 3
          %s886 = scalar_select %p885, %s24, 3
          %s887 = scalar_lea.vmem %s7, %s886
        $region84: #{bottleneck_forward.4} parent=63 // pred_fallthru
          _
        // Predicated region
        $region85: #{bottleneck_forward.4} parent=63 // pred_check
          %p888 = pneg %p245
        $region86: #{bottleneck_forward.4} parent=63 // pred_check_branch
          %890 = sbr.rel (%p888) target = $region88
        $region87: #{bottleneck_forward.4} parent=63 // pred_region
          %p891 = scmp.lt.s32.totalorder %s24, 3
          %s892 = scalar_select %p891, %s24, 3
          %s893 = scalar_lea.vmem %s8, %s892
        $region88: #{bottleneck_forward.4} parent=63 // pred_fallthru
          _
      $region64: #{bottleneck_forward.4} parent=5 // pred_fallthru
        _
    $region6: #{bottleneck_forward.4} parent=1 // loop_footer
      %s22 = sadd.s32 1, %s18
    $region7: #{bottleneck_forward.4} parent=1 // loop_footer_branch
      %17 = sbr.rel target = $region3
    $region8: #{bottleneck_forward.4} parent=1 // loop_exit
      _
    %894 = vsyncpa [#allocation3], 1
    %s895 = scalar_lea.sflag [#allocation3], 1
    %896 = vsyncpa %s895, 1

// kernel: bottleneck_forward.6
$region0: #{bottleneck_forward.6}
  #allocation0 [shape = 'u32[]', space=smem, size = 0x4, offset = 0x4, fixed_abs, tag = 'smem constant byte address 0x4 - core index']
  #allocation1 [shape = 'u32[72,128]{1,0:T(1,128)}', space=vmem, size = 0x9000, scoped, tag = 'internal scratch']
  %s0 = inlined_call_operand.vmem [shape: bf16[512,32], index: 0, kind: input, shape index: {}]
  %s1 = inlined_call_operand.vmem [shape: f32[2,32], index: 1, kind: input, shape index: {}]
  %s2 = inlined_call_operand.vmem [shape: bf16[32,128], index: 2, kind: input, shape index: {}]
  %s3 = inlined_call_operand.vmem [shape: bf16[512,128], index: 3, kind: output, shape index: {0}]
  %s4 = inlined_call_operand.vmem [shape: f32[4,1,128], index: 4, kind: output, shape index: {1}]
  %s5 = inlined_call_operand.vmem [shape: f32[4,1,128], index: 5, kind: output, shape index: {2}]
  %6 = xla_tuple %s3, %s4, %s5
  %s7 = sld [smem:[#allocation0]]
  $region61: #{bottleneck_forward.6} parent=0
    _
  %s9 = ssub.s32 1, %s7
  %s10 = scalar_select 0, %s9, %s7
  loop: start=0, step=1, limit=6
  $region2: #{bottleneck_forward.6} parent=0 // loop_pre_header
    _
  $region3: #{bottleneck_forward.6} parent=0 // loop_header
    %s12 = sphi 0, %s16
    %p13 = scmp.ge.s32.totalorder %s12, 6
    %s22 = sphi 0, %s24
    %s25 = sphi 0, %s22
    %s26 = sphi 0, %s25
    %s42 = sphi 0, %s26
    %s46 = sphi 0, %s46
    %s48 = sphi 0, %s46
    %s49 = sphi 0, %s48
    %s63 = sphi 0, %s49
    %s67 = sphi 0, %s67
    %s69 = sphi 0, %s67
    %s70 = sphi 0, %s69
    %s84 = sphi 0, %s70
    %s90 = sphi 0, %s92
    %s93 = sphi 0, %s90
    %s94 = sphi 0, %s93
    %s110 = sphi 0, %s94
    %s116 = sphi 0, %s118
    %s119 = sphi 0, %s116
    %s120 = sphi 0, %s119
    %s136 = sphi 0, %s120
    %s142 = sphi 0, %s144
    %s145 = sphi 0, %s142
    %s146 = sphi 0, %s145
    %s162 = sphi 0, %s146
  $region4: #{bottleneck_forward.6} parent=0 // loop_header_branch
    %15 = sbr.rel (%p13) target = $region8
  $region5: #{bottleneck_forward.6} parent=0 // loop_body
    %s17 = ssub.s32 %s12, 1
    %s18 = ssub.s32 %s12, 2
    %s19 = sadd.s32 %s12, 1
    %s20 = ssub.s32 %s12, %s19
    %p21 = scmp.eq.s32.totalorder %s20, 0
    %s23 = sadd.s32 %s22, 1
    %s24 = scalar_select %p21, %s22, %s23
    %p27 = pneg %p21
    %p28 = scmp.eq.s32.totalorder %s12, 3
    %p29 = por %p27, %p28
    %p30 = scmp.ne.s32.totalorder %s22, %s25
    %p31 = scmp.eq.s32.totalorder %s12, 0
    %p32 = por %p30, %p31
    %p33 = scmp.ne.s32.totalorder %s22, %s25
    %p34 = scmp.eq.s32.totalorder %s17, 3
    %p35 = por %p33, %p34
    %p36 = scmp.ne.s32.totalorder %s25, %s26
    %p37 = scmp.eq.s32.totalorder %s17, 0
    %p38 = por %p36, %p37
    %p39 = scmp.ne.s32.totalorder %s25, %s26
    %p40 = scmp.eq.s32.totalorder %s18, 3
    %p41 = por %p39, %p40
    %p43 = scmp.ne.s32.totalorder %s26, %s42
    %p44 = scmp.eq.s32.totalorder %s18, 0
    %p45 = por %p43, %p44
    %s47 = sadd.s32 %s46, 1
    %p50 = scmp.eq.s32.totalorder %s12, 3
    %p51 = scmp.ne.s32.totalorder %s46, %s48
    %p52 = scmp.eq.s32.totalorder %s12, 0
    %p53 = por %p51, %p52
    %p54 = scmp.ne.s32.totalorder %s46, %s48
    %p55 = scmp.eq.s32.totalorder %s17, 3
    %p56 = por %p54, %p55
    %p57 = scmp.ne.s32.totalorder %s48, %s49
    %p58 = scmp.eq.s32.totalorder %s17, 0
    %p59 = por %p57, %p58
    %p60 = scmp.ne.s32.totalorder %s48, %s49
    %p61 = scmp.eq.s32.totalorder %s18, 3
    %p62 = por %p60, %p61
    %p64 = scmp.ne.s32.totalorder %s49, %s63
    %p65 = scmp.eq.s32.totalorder %s18, 0
    %p66 = por %p64, %p65
    %s68 = sadd.s32 %s67, 1
    %p71 = scmp.eq.s32.totalorder %s12, 3
    %p72 = scmp.ne.s32.totalorder %s67, %s69
    %p73 = scmp.eq.s32.totalorder %s12, 0
    %p74 = por %p72, %p73
    %p75 = scmp.ne.s32.totalorder %s67, %s69
    %p76 = scmp.eq.s32.totalorder %s17, 3
    %p77 = por %p75, %p76
    %p78 = scmp.ne.s32.totalorder %s69, %s70
    %p79 = scmp.eq.s32.totalorder %s17, 0
    %p80 = por %p78, %p79
    %p81 = scmp.ne.s32.totalorder %s69, %s70
    %p82 = scmp.eq.s32.totalorder %s18, 3
    %p83 = por %p81, %p82
    %p85 = scmp.ne.s32.totalorder %s70, %s84
    %p86 = scmp.eq.s32.totalorder %s18, 0
    %p87 = por %p85, %p86
    %s88 = ssub.s32 %s12, %s19
    %p89 = scmp.eq.s32.totalorder %s88, 0
    %s91 = sadd.s32 %s90, 1
    %s92 = scalar_select %p89, %s90, %s91
    %p95 = pneg %p89
    %p96 = scmp.eq.s32.totalorder %s12, 3
    %p97 = por %p95, %p96
    %p98 = scmp.ne.s32.totalorder %s90, %s93
    %p99 = scmp.eq.s32.totalorder %s12, 0
    %p100 = por %p98, %p99
    %p101 = scmp.ne.s32.totalorder %s90, %s93
    %p102 = scmp.eq.s32.totalorder %s17, 3
    %p103 = por %p101, %p102
    %p104 = scmp.ne.s32.totalorder %s93, %s94
    %p105 = scmp.eq.s32.totalorder %s17, 0
    %p106 = por %p104, %p105
    %p107 = scmp.ne.s32.totalorder %s93, %s94
    %p108 = scmp.eq.s32.totalorder %s18, 3
    %p109 = por %p107, %p108
    %p111 = scmp.ne.s32.totalorder %s94, %s110
    %p112 = scmp.eq.s32.totalorder %s18, 0
    %p113 = por %p111, %p112
    %s114 = ssub.s32 %s12, %s19
    %p115 = scmp.eq.s32.totalorder %s114, 0
    %s117 = sadd.s32 %s116, 1
    %s118 = scalar_select %p115, %s116, %s117
    %p121 = pneg %p115
    %p122 = scmp.eq.s32.totalorder %s12, 3
    %p123 = por %p121, %p122
    %p124 = scmp.ne.s32.totalorder %s116, %s119
    %p125 = scmp.eq.s32.totalorder %s12, 0
    %p126 = por %p124, %p125
    %p127 = scmp.ne.s32.totalorder %s116, %s119
    %p128 = scmp.eq.s32.totalorder %s17, 3
    %p129 = por %p127, %p128
    %p130 = scmp.ne.s32.totalorder %s119, %s120
    %p131 = scmp.eq.s32.totalorder %s17, 0
    %p132 = por %p130, %p131
    %p133 = scmp.ne.s32.totalorder %s119, %s120
    %p134 = scmp.eq.s32.totalorder %s18, 3
    %p135 = por %p133, %p134
    %p137 = scmp.ne.s32.totalorder %s120, %s136
    %p138 = scmp.eq.s32.totalorder %s18, 0
    %p139 = por %p137, %p138
    %s140 = ssub.s32 %s12, %s19
    %p141 = scmp.eq.s32.totalorder %s140, 0
    %s143 = sadd.s32 %s142, 1
    %s144 = scalar_select %p141, %s142, %s143
    %p147 = pneg %p141
    %p148 = scmp.eq.s32.totalorder %s12, 3
    %p149 = por %p147, %p148
    %p150 = scmp.ne.s32.totalorder %s142, %s145
    %p151 = scmp.eq.s32.totalorder %s12, 0
    %p152 = por %p150, %p151
    %p153 = scmp.ne.s32.totalorder %s142, %s145
    %p154 = scmp.eq.s32.totalorder %s17, 3
    %p155 = por %p153, %p154
    %p156 = scmp.ne.s32.totalorder %s145, %s146
    %p157 = scmp.eq.s32.totalorder %s17, 0
    %p158 = por %p156, %p157
    %p159 = scmp.ne.s32.totalorder %s145, %s146
    %p160 = scmp.eq.s32.totalorder %s18, 3
    %p161 = por %p159, %p160
    %p163 = scmp.ne.s32.totalorder %s146, %s162
    %p164 = scmp.eq.s32.totalorder %s18, 0
    %p165 = por %p163, %p164
    %p166 = scmp.le.s32.totalorder 1, %s12
    %p167 = scmp.lt.s32.totalorder %s12, 5
    %p168 = pnand %p166, %p167
    %p169 = pneg %p168
    // Predicated region
    $region9: #{bottleneck_forward.6} parent=5 // pred_check
      _
    $region10: #{bottleneck_forward.6} parent=5 // pred_check_branch
      %171 = sbr.rel (%p168) target = $region12
    $region11: #{bottleneck_forward.6} parent=5 // pred_region
      %s172 = ssub.s32 %s12, 1
      // Predicated region
      $region13: #{bottleneck_forward.6} parent=11 // pred_check
        %p173 = pneg %p59
      $region14: #{bottleneck_forward.6} parent=11 // pred_check_branch
        %175 = sbr.rel (%p173) target = $region16
      $region15: #{bottleneck_forward.6} parent=11 // pred_region
        _
      $region16: #{bottleneck_forward.6} parent=11 // pred_fallthru
        _
      // Predicated region
      $region17: #{bottleneck_forward.6} parent=11 // pred_check
        %p176 = pneg %p80
      $region18: #{bottleneck_forward.6} parent=11 // pred_check_branch
        %178 = sbr.rel (%p176) target = $region20
      $region19: #{bottleneck_forward.6} parent=11 // pred_region
        _
      $region20: #{bottleneck_forward.6} parent=11 // pred_fallthru
        _
    $region12: #{bottleneck_forward.6} parent=5 // pred_fallthru
      _
    %p179 = scmp.lt.s32.totalorder %s12, 4
    // Predicated region
    $region21: #{bottleneck_forward.6} parent=5 // pred_check
      %p180 = pneg %p179
    $region22: #{bottleneck_forward.6} parent=5 // pred_check_branch
      %182 = sbr.rel (%p180) target = $region24
    $region23: #{bottleneck_forward.6} parent=5 // pred_region
      // Predicated region
      $region25: #{bottleneck_forward.6} parent=23 // pred_check
        %p183 = pneg %p32
      $region26: #{bottleneck_forward.6} parent=23 // pred_check_branch
        %185 = sbr.rel (%p183) target = $region28
      $region27: #{bottleneck_forward.6} parent=23 // pred_region
        %s186 = smul.u32 16, %s12
        %p187 = scmp.lt.s32.totalorder %s186, 63
        %s188 = scalar_select %p187, %s186, 63
        %s189 = smul.addr %s188, 4
        %s190 = scalar_lea.vmem %s0, %s189
        %s191 = smul.u32 16, %s12
      $region28: #{bottleneck_forward.6} parent=23 // pred_fallthru
        _
    $region24: #{bottleneck_forward.6} parent=5 // pred_fallthru
      _
    %p192 = scmp.le.s32.totalorder 1, %s12
    %p193 = scmp.lt.s32.totalorder %s12, 5
    %p194 = pnand %p192, %p193
    %p195 = pneg %p194
    // Predicated region
    $region29: #{bottleneck_forward.6} parent=5 // pred_check
      _
    $region30: #{bottleneck_forward.6} parent=5 // pred_check_branch
      %197 = sbr.rel (%p194) target = $region32
    $region31: #{bottleneck_forward.6} parent=5 // pred_region
      %s198 = ssub.s32 %s12, 1
      %s199 = smul.u32 16, %s17
      %p200 = scmp.lt.s32.totalorder %s199, 63
      %s201 = scalar_select %p200, %s199, 63
      %s202 = smul.addr %s201, 4
      %s203 = scalar_lea.vmem %s0, %s202
      %p204 = pneg %p38
      %p205 = pneg %p35
      %p206 = pneg %p59
      %p207 = pneg %p56
      %p208 = pneg %p80
      %p209 = pneg %p77
      %p210 = pneg %p106
      %p211 = pneg %p103
      %s212 = smul.u32 16, %s17
      %p213 = scmp.lt.s32.totalorder %s212, 63
      %s214 = scalar_select %p213, %s212, 63
      %s215 = smul.addr %s214, 4
      %s216 = scalar_lea.vmem %s3, %s215
      %p217 = pneg %p132
      %p218 = pneg %p129
      %p219 = scmp.lt.s32.totalorder %s17, 3
      %s220 = scalar_select %p219, %s17, 3
      %s221 = scalar_lea.vmem %s4, %s220
      %p222 = pneg %p158
      %p223 = pneg %p155
      %p224 = scmp.lt.s32.totalorder %s17, 3
      %s225 = scalar_select %p224, %s17, 3
      %s226 = scalar_lea.vmem %s5, %s225
      %s227 = smul.u32 16, %s17
      %p228 = scmp.lt.s32.totalorder %s227, 63
      %s229 = scalar_select %p228, %s227, 63
      %s230 = smul.addr %s229, 4
      %s231 = scalar_lea.vmem %s0, %s230
      %s232 = smul.u32 16, %s17
      %s233 = smul.u32 16, %s17
      %p234 = scmp.lt.s32.totalorder %s233, 63
      %s235 = scalar_select %p234, %s233, 63
      %s236 = smul.addr %s235, 4
      %s237 = scalar_lea.vmem %s3, %s236
      %s238 = smul.u32 16, %s17
      %p239 = scmp.lt.s32.totalorder %s17, 3
      %s240 = scalar_select %p239, %s17, 3
      %s241 = scalar_lea.vmem %s4, %s240
      %p242 = scmp.lt.s32.totalorder %s17, 3
      %s243 = scalar_select %p242, %s17, 3
      %s244 = scalar_lea.vmem %s5, %s243
      %v246 = vld [vmem:[%s231] sm:$0xf]
      %v247 = vld [vmem:[%s231 + $0x4] sm:$0xf]
      %v248 = vld [vmem:[%s231 + $0x8] sm:$0xf]
      %v249 = vld [vmem:[%s231 + $0xc] sm:$0xf]
      %v250 = vld [vmem:[%s231 + $0x10] sm:$0xf]
      %v251 = vld [vmem:[%s231 + $0x14] sm:$0xf]
      %v252 = vld [vmem:[%s231 + $0x18] sm:$0xf]
      %v253 = vld [vmem:[%s231 + $0x1c] sm:$0xf]
      %v254 = vld [vmem:[%s231 + $0x20] sm:$0xf]
      %v255 = vld [vmem:[%s231 + $0x24] sm:$0xf]
      %v256 = vld [vmem:[%s231 + $0x28] sm:$0xf]
      %v257 = vld [vmem:[%s231 + $0x2c] sm:$0xf]
      %v258 = vld [vmem:[%s231 + $0x30] sm:$0xf]
      %v259 = vld [vmem:[%s231 + $0x34] sm:$0xf]
      %v260 = vld [vmem:[%s231 + $0x38] sm:$0xf]
      %v261 = vld [vmem:[%s231 + $0x3c] sm:$0xf]
      %v262 = vunpack.c.l.bf16 %v246
      %v263 = vunpack.c.l.bf16 %v247
      %v264 = vunpack.c.l.bf16 %v248
      %v265 = vunpack.c.l.bf16 %v249
      %v266 = vunpack.c.l.bf16 %v250
      %v267 = vunpack.c.l.bf16 %v251
      %v268 = vunpack.c.l.bf16 %v252
      %v269 = vunpack.c.l.bf16 %v253
      %v270 = vunpack.c.l.bf16 %v254
      %v271 = vunpack.c.l.bf16 %v255
      %v272 = vunpack.c.l.bf16 %v256
      %v273 = vunpack.c.l.bf16 %v257
      %v274 = vunpack.c.l.bf16 %v258
      %v275 = vunpack.c.l.bf16 %v259
      %v276 = vunpack.c.l.bf16 %v260
      %v277 = vunpack.c.l.bf16 %v261
      %v278 = vld [vmem:[%s1] sm:$0x1]
      %v279 = vperm.slane %v278, 0
      %v280 = vmul.f32 %v262, %v279
      %v281 = vmul.f32 %v263, %v279
      %v282 = vmul.f32 %v264, %v279
      %v283 = vmul.f32 %v265, %v279
      %v284 = vmul.f32 %v266, %v279
      %v285 = vmul.f32 %v267, %v279
      %v286 = vmul.f32 %v268, %v279
      %v287 = vmul.f32 %v269, %v279
      %v288 = vmul.f32 %v270, %v279
      %v289 = vmul.f32 %v271, %v279
      %v290 = vmul.f32 %v272, %v279
      %v291 = vmul.f32 %v273, %v279
      %v292 = vmul.f32 %v274, %v279
      %v293 = vmul.f32 %v275, %v279
      %v294 = vmul.f32 %v276, %v279
      %v295 = vmul.f32 %v277, %v279
      %v296 = vld [vmem:[%s1 + $0x1] sm:$0x1]
      %v297 = vperm.slane %v296, 0
      %v298 = vadd.f32 %v280, %v297
      %v299 = vadd.f32 %v281, %v297
      %v300 = vadd.f32 %v282, %v297
      %v301 = vadd.f32 %v283, %v297
      %v302 = vadd.f32 %v284, %v297
      %v303 = vadd.f32 %v285, %v297
      %v304 = vadd.f32 %v286, %v297
      %v305 = vadd.f32 %v287, %v297
      %v306 = vadd.f32 %v288, %v297
      %v307 = vadd.f32 %v289, %v297
      %v308 = vadd.f32 %v290, %v297
      %v309 = vadd.f32 %v291, %v297
      %v310 = vadd.f32 %v292, %v297
      %v311 = vadd.f32 %v293, %v297
      %v312 = vadd.f32 %v294, %v297
      %v313 = vadd.f32 %v295, %v297
      %v314 = vmax.f32 %v298, 0.0
      %v315 = vmax.f32 %v299, 0.0
      %v316 = vmax.f32 %v300, 0.0
      %v317 = vmax.f32 %v301, 0.0
      %v318 = vmax.f32 %v302, 0.0
      %v319 = vmax.f32 %v303, 0.0
      %v320 = vmax.f32 %v304, 0.0
      %v321 = vmax.f32 %v305, 0.0
      %v322 = vmax.f32 %v306, 0.0
      %v323 = vmax.f32 %v307, 0.0
      %v324 = vmax.f32 %v308, 0.0
      %v325 = vmax.f32 %v309, 0.0
      %v326 = vmax.f32 %v310, 0.0
      %v327 = vmax.f32 %v311, 0.0
      %v328 = vmax.f32 %v312, 0.0
      %v329 = vmax.f32 %v313, 0.0
      %v330 = vpack.c.bf16 %v315, %v314
      %v331 = vpack.c.bf16 %v317, %v316
      %v332 = vpack.c.bf16 %v319, %v318
      %v333 = vpack.c.bf16 %v321, %v320
      %v334 = vpack.c.bf16 %v323, %v322
      %v335 = vpack.c.bf16 %v325, %v324
      %v336 = vpack.c.bf16 %v327, %v326
      %v337 = vpack.c.bf16 %v329, %v328
      %v338 = vld [vmem:[%s2] sm:$0xf]
      %v339 = vld [vmem:[%s2 + $0x4] sm:$0xf]
      %v340 = vld [vmem:[%s2 + $0x8] sm:$0xf]
      %v341 = vld [vmem:[%s2 + $0xc] sm:$0xf]
      %v346 = vunpack.c.l.b16 %v338
      %v347 = vunpack.c.l.b16 %v339
      %v348 = vunpack.c.l.b16 %v340
      %v349 = vunpack.c.l.b16 %v341
      %v350 = vpack.c.b16 %v347, %v346
      %v351 = vpack.c.b16 %v349, %v348
      %vm354 = vcmask 261120
      %v356 = vsel %vm354, %v330, 0
      %v359 = vsel %vm354, %v331, 0
      %v362 = vsel %vm354, %v332, 0
      %v365 = vsel %vm354, %v333, 0
      %v368 = vsel %vm354, %v334, 0
      %v371 = vsel %vm354, %v335, 0
      %v374 = vsel %vm354, %v336, 0
      %v377 = vsel %vm354, %v337, 0
      %379 = vmatpush.bf16.msra.mxu0 0
      %380 = vmatpush.bf16.msra.mxu0 0
      %381 = vmatpush.bf16.msra.mxu0 0
      %382 = vmatpush.bf16.msra.mxu0 0
      %383 = vmatpush.bf16.msra.mxu0 0
      %384 = vmatpush.bf16.msra.mxu0 0
      %385 = vmatpush.bf16.msra.mxu0 %v351
      %386 = vmatpush.bf16.msra.mxu0 %v350
      %387 = vmatmul.bf16.gmra.mxu0 %v356
      %v388 = vpop.f32.mrf.mxu0
      %v389 = vadd.f32 0.0, %v388
      %v390 = vpop.f32.mrf.mxu0
      %v391 = vadd.f32 0.0, %v390
      %392 = vmatmul.bf16.gmra.mxu0 %v359
      %v393 = vpop.f32.mrf.mxu0
      %v394 = vadd.f32 0.0, %v393
      %v395 = vpop.f32.mrf.mxu0
      %v396 = vadd.f32 0.0, %v395
      %397 = vmatmul.bf16.gmra.mxu0 %v362
      %v398 = vpop.f32.mrf.mxu0
      %v399 = vadd.f32 0.0, %v398
      %v400 = vpop.f32.mrf.mxu0
      %v401 = vadd.f32 0.0, %v400
      %402 = vmatmul.bf16.gmra.mxu0 %v365
      %v403 = vpop.f32.mrf.mxu0
      %v404 = vadd.f32 0.0, %v403
      %v405 = vpop.f32.mrf.mxu0
      %v406 = vadd.f32 0.0, %v405
      %407 = vmatmul.bf16.gmra.mxu0 %v368
      %v408 = vpop.f32.mrf.mxu0
      %v409 = vadd.f32 0.0, %v408
      %v410 = vpop.f32.mrf.mxu0
      %v411 = vadd.f32 0.0, %v410
      %412 = vmatmul.bf16.gmra.mxu0 %v371
      %v413 = vpop.f32.mrf.mxu0
      %v414 = vadd.f32 0.0, %v413
      %v415 = vpop.f32.mrf.mxu0
      %v416 = vadd.f32 0.0, %v415
      %417 = vmatmul.bf16.gmra.mxu0 %v374
      %v418 = vpop.f32.mrf.mxu0
      %v419 = vadd.f32 0.0, %v418
      %v420 = vpop.f32.mrf.mxu0
      %v421 = vadd.f32 0.0, %v420
      %422 = vmatmul.bf16.gmra.mxu0 %v377
      %v423 = vpop.f32.mrf.mxu0
      %v424 = vadd.f32 0.0, %v423
      %v425 = vpop.f32.mrf.mxu0
      %v426 = vadd.f32 0.0, %v425
      %427 = vdwg.mxu0
      %v428 = vpack.c.bf16 %v389, %v389
      %v429 = vpack.c.bf16 %v391, %v391
      %v430 = vpack.c.bf16 %v394, %v394
      %v431 = vpack.c.bf16 %v396, %v396
      %v432 = vpack.c.bf16 %v399, %v399
      %v433 = vpack.c.bf16 %v401, %v401
      %v434 = vpack.c.bf16 %v404, %v404
      %v435 = vpack.c.bf16 %v406, %v406
      %v436 = vpack.c.bf16 %v409, %v409
      %v437 = vpack.c.bf16 %v411, %v411
      %v438 = vpack.c.bf16 %v414, %v414
      %v439 = vpack.c.bf16 %v416, %v416
      %v440 = vpack.c.bf16 %v419, %v419
      %v441 = vpack.c.bf16 %v421, %v421
      %v442 = vpack.c.bf16 %v424, %v424
      %v443 = vpack.c.bf16 %v426, %v426
      %444 = vst [vmem:[%s237] sm:$0xf] %v428
      %445 = vst [vmem:[%s237 + $0x4] sm:$0xf] %v429
      %446 = vst [vmem:[%s237 + $0x8] sm:$0xf] %v430
      %447 = vst [vmem:[%s237 + $0xc] sm:$0xf] %v431
      %448 = vst [vmem:[%s237 + $0x10] sm:$0xf] %v432
      %449 = vst [vmem:[%s237 + $0x14] sm:$0xf] %v433
      %450 = vst [vmem:[%s237 + $0x18] sm:$0xf] %v434
      %451 = vst [vmem:[%s237 + $0x1c] sm:$0xf] %v435
      %452 = vst [vmem:[%s237 + $0x20] sm:$0xf] %v436
      %453 = vst [vmem:[%s237 + $0x24] sm:$0xf] %v437
      %454 = vst [vmem:[%s237 + $0x28] sm:$0xf] %v438
      %455 = vst [vmem:[%s237 + $0x2c] sm:$0xf] %v439
      %456 = vst [vmem:[%s237 + $0x30] sm:$0xf] %v440
      %457 = vst [vmem:[%s237 + $0x34] sm:$0xf] %v441
      %458 = vst [vmem:[%s237 + $0x38] sm:$0xf] %v442
      %459 = vst [vmem:[%s237 + $0x3c] sm:$0xf] %v443
      %v460 = vadd.f32 %v389, %v391
      %v461 = vadd.f32 %v460, %v394
      %v462 = vadd.f32 %v461, %v396
      %v463 = vadd.f32 %v462, %v399
      %v464 = vadd.f32 %v463, %v401
      %v465 = vadd.f32 %v464, %v404
      %v466 = vadd.f32 %v465, %v406
      %v467 = vadd.f32 %v466, %v409
      %v468 = vadd.f32 %v467, %v411
      %v469 = vadd.f32 %v468, %v414
      %v470 = vadd.f32 %v469, %v416
      %v471 = vadd.f32 %v470, %v419
      %v472 = vadd.f32 %v471, %v421
      %v473 = vadd.f32 %v472, %v424
      %v474 = vadd.f32 %v473, %v426
      %v475 = vrot.slane %v474, 4
      %v476 = vadd.f32 %v474, %v475
      %v477 = vrot.slane %v476, 2
      %v478 = vadd.f32 %v476, %v477
      %v479 = vrot.slane %v478, 1
      %v480 = vadd.f32 %v478, %v479
      %481 = vst [vmem:[%s241] sm:$0x1] %v480
      %v482 = vmul.f32 %v389, %v389
      %v483 = vmul.f32 %v391, %v391
      %v484 = vmul.f32 %v394, %v394
      %v485 = vmul.f32 %v396, %v396
      %v486 = vmul.f32 %v399, %v399
      %v487 = vmul.f32 %v401, %v401
      %v488 = vmul.f32 %v404, %v404
      %v489 = vmul.f32 %v406, %v406
      %v490 = vmul.f32 %v409, %v409
      %v491 = vmul.f32 %v411, %v411
      %v492 = vmul.f32 %v414, %v414
      %v493 = vmul.f32 %v416, %v416
      %v494 = vmul.f32 %v419, %v419
      %v495 = vmul.f32 %v421, %v421
      %v496 = vmul.f32 %v424, %v424
      %v497 = vmul.f32 %v426, %v426
      %v498 = vadd.f32 %v482, %v483
      %v499 = vadd.f32 %v498, %v484
      %v500 = vadd.f32 %v499, %v485
      %v501 = vadd.f32 %v500, %v486
      %v502 = vadd.f32 %v501, %v487
      %v503 = vadd.f32 %v502, %v488
      %v504 = vadd.f32 %v503, %v489
      %v505 = vadd.f32 %v504, %v490
      %v506 = vadd.f32 %v505, %v491
      %v507 = vadd.f32 %v506, %v492
      %v508 = vadd.f32 %v507, %v493
      %v509 = vadd.f32 %v508, %v494
      %v510 = vadd.f32 %v509, %v495
      %v511 = vadd.f32 %v510, %v496
      %v512 = vadd.f32 %v511, %v497
      %v513 = vrot.slane %v512, 4
      %v514 = vadd.f32 %v512, %v513
      %v515 = vrot.slane %v514, 2
      %v516 = vadd.f32 %v514, %v515
      %v517 = vrot.slane %v516, 1
      %v518 = vadd.f32 %v516, %v517
      %519 = vst [vmem:[%s244] sm:$0x1] %v518
      %s520 = smul.u32 16, %s17
      %p521 = scmp.lt.s32.totalorder %s520, 63
      %s522 = scalar_select %p521, %s520, 63
      %s523 = smul.addr %s522, 4
      %s524 = scalar_lea.vmem %s3, %s523
      %p525 = scmp.lt.s32.totalorder %s17, 3
      %s526 = scalar_select %p525, %s17, 3
      %s527 = scalar_lea.vmem %s4, %s526
      %p528 = scmp.lt.s32.totalorder %s17, 3
      %s529 = scalar_select %p528, %s17, 3
      %s530 = scalar_lea.vmem %s5, %s529
      // Predicated region
      $region33: #{bottleneck_forward.6} parent=31 // pred_check
        %p531 = pneg %p103
      $region34: #{bottleneck_forward.6} parent=31 // pred_check_branch
        %533 = sbr.rel (%p531) target = $region36
      $region35: #{bottleneck_forward.6} parent=31 // pred_region
        %s534 = smul.u32 16, %s17
      $region36: #{bottleneck_forward.6} parent=31 // pred_fallthru
        _
      // Predicated region
      $region37: #{bottleneck_forward.6} parent=31 // pred_check
        %p535 = pneg %p129
      $region38: #{bottleneck_forward.6} parent=31 // pred_check_branch
        %537 = sbr.rel (%p535) target = $region40
      $region39: #{bottleneck_forward.6} parent=31 // pred_region
        _
      $region40: #{bottleneck_forward.6} parent=31 // pred_fallthru
        _
      // Predicated region
      $region41: #{bottleneck_forward.6} parent=31 // pred_check
        %p538 = pneg %p155
      $region42: #{bottleneck_forward.6} parent=31 // pred_check_branch
        %540 = sbr.rel (%p538) target = $region44
      $region43: #{bottleneck_forward.6} parent=31 // pred_region
        _
      $region44: #{bottleneck_forward.6} parent=31 // pred_fallthru
        _
    $region32: #{bottleneck_forward.6} parent=5 // pred_fallthru
      _
    %p541 = scmp.le.s32.totalorder 2, %s12
    // Predicated region
    $region45: #{bottleneck_forward.6} parent=5 // pred_check
      %p542 = pneg %p541
    $region46: #{bottleneck_forward.6} parent=5 // pred_check_branch
      %544 = sbr.rel (%p542) target = $region48
    $region47: #{bottleneck_forward.6} parent=5 // pred_region
      %s545 = ssub.s32 %s12, 2
      // Predicated region
      $region49: #{bottleneck_forward.6} parent=47 // pred_check
        %p546 = pneg %p109
      $region50: #{bottleneck_forward.6} parent=47 // pred_check_branch
        %548 = sbr.rel (%p546) target = $region52
      $region51: #{bottleneck_forward.6} parent=47 // pred_region
        %s549 = smul.u32 16, %s18
        %p550 = scmp.lt.s32.totalorder %s549, 63
        %s551 = scalar_select %p550, %s549, 63
        %s552 = smul.addr %s551, 4
        %s553 = scalar_lea.vmem %s3, %s552
      $region52: #{bottleneck_forward.6} parent=47 // pred_fallthru
        _
      // Predicated region
      $region53: #{bottleneck_forward.6} parent=47 // pred_check
        %p554 = pneg %p135
      $region54: #{bottleneck_forward.6} parent=47 // pred_check_branch
        %556 = sbr.rel (%p554) target = $region56
      $region55: #{bottleneck_forward.6} parent=47 // pred_region
        %p557 = scmp.lt.s32.totalorder %s18, 3
        %s558 = scalar_select %p557, %s18, 3
        %s559 = scalar_lea.vmem %s4, %s558
      $region56: #{bottleneck_forward.6} parent=47 // pred_fallthru
        _
      // Predicated region
      $region57: #{bottleneck_forward.6} parent=47 // pred_check
        %p560 = pneg %p161
      $region58: #{bottleneck_forward.6} parent=47 // pred_check_branch
        %562 = sbr.rel (%p560) target = $region60
      $region59: #{bottleneck_forward.6} parent=47 // pred_region
        %p563 = scmp.lt.s32.totalorder %s18, 3
        %s564 = scalar_select %p563, %s18, 3
        %s565 = scalar_lea.vmem %s5, %s564
      $region60: #{bottleneck_forward.6} parent=47 // pred_fallthru
        _
    $region48: #{bottleneck_forward.6} parent=5 // pred_fallthru
      _
  $region6: #{bottleneck_forward.6} parent=0 // loop_footer
    %s16 = sadd.s32 1, %s12
  $region7: #{bottleneck_forward.6} parent=0 // loop_footer_branch
    %11 = sbr.rel target = $region3
  $region8: #{bottleneck_forward.6} parent=0 // loop_exit
    _

// kernel: bottleneck_forward.7
$region0: #{bottleneck_forward.7}
  #allocation0 [shape = 'u32[]', space=smem, size = 0x4, offset = 0x4, fixed_abs, tag = 'smem constant byte address 0x4 - core index']
  #allocation1 [shape = 'u32[72,128]{1,0:T(1,128)}', space=vmem, size = 0x9000, scoped, tag = 'internal scratch']
  %s0 = inlined_call_operand.vmem [shape: bf16[512,128], index: 0, kind: input, shape index: {}]
  %s1 = inlined_call_operand.vmem [shape: bf16[512,128], index: 1, kind: input, shape index: {}]
  %s2 = inlined_call_operand.vmem [shape: f32[2,128], index: 2, kind: input, shape index: {}]
  %s3 = inlined_call_operand.vmem [shape: f32[2,128], index: 3, kind: input, shape index: {}]
  %s4 = inlined_call_operand.hbm [shape: f32[512,128], index: 4, kind: output, shape index: {}]
  %s5 = sld [smem:[#allocation0]]
  $region49: #{bottleneck_forward.7} parent=0
    _
  %s7 = ssub.s32 1, %s5
  %s8 = scalar_select 0, %s7, %s5
  $region1: #{bottleneck_forward.7} parent=0
    #allocation2 [shape = 'u8[131072]{0}', space=vmem, size = 0x20000, scoped, tag = 'output window, operand 0']
    #allocation3 [shape = 's32[2]{0}', space=sflag, size = 0x8, scoped, tag = 'scoped memory for bottleneck_forward.7']
    %9 = vsyncpa [#allocation3], 0
    %s10 = scalar_lea.sflag [#allocation3], 1
    %11 = vsyncpa %s10, 0
    loop: start=0, step=1, limit=6
    $region2: #{bottleneck_forward.7} parent=1 // loop_pre_header
      _
    $region3: #{bottleneck_forward.7} parent=1 // loop_header
      %s13 = sphi 0, %s17
      %p14 = scmp.ge.s32.totalorder %s13, 6
      %s23 = sphi 0, %s25
      %s26 = sphi 0, %s23
      %s27 = sphi 0, %s26
      %s43 = sphi 0, %s27
      %s49 = sphi 0, %s51
      %s52 = sphi 0, %s49
      %s53 = sphi 0, %s52
      %s69 = sphi 0, %s53
      %s73 = sphi 0, %s73
      %s75 = sphi 0, %s73
      %s76 = sphi 0, %s75
      %s90 = sphi 0, %s76
      %s94 = sphi 0, %s94
      %s96 = sphi 0, %s94
      %s97 = sphi 0, %s96
      %s111 = sphi 0, %s97
      %s117 = sphi 0, %s119
      %s120 = sphi 0, %s117
      %s121 = sphi 0, %s120
      %s137 = sphi 0, %s121
    $region4: #{bottleneck_forward.7} parent=1 // loop_header_branch
      %16 = sbr.rel (%p14) target = $region8
    $region5: #{bottleneck_forward.7} parent=1 // loop_body
      %s18 = ssub.s32 %s13, 1
      %s19 = ssub.s32 %s13, 2
      %s20 = sadd.s32 %s13, 1
      %s21 = ssub.s32 %s13, %s20
      %p22 = scmp.eq.s32.totalorder %s21, 0
      %s24 = sadd.s32 %s23, 1
      %s25 = scalar_select %p22, %s23, %s24
      %p28 = pneg %p22
      %p29 = scmp.eq.s32.totalorder %s13, 3
      %p30 = por %p28, %p29
      %p31 = scmp.ne.s32.totalorder %s23, %s26
      %p32 = scmp.eq.s32.totalorder %s13, 0
      %p33 = por %p31, %p32
      %p34 = scmp.ne.s32.totalorder %s23, %s26
      %p35 = scmp.eq.s32.totalorder %s18, 3
      %p36 = por %p34, %p35
      %p37 = scmp.ne.s32.totalorder %s26, %s27
      %p38 = scmp.eq.s32.totalorder %s18, 0
      %p39 = por %p37, %p38
      %p40 = scmp.ne.s32.totalorder %s26, %s27
      %p41 = scmp.eq.s32.totalorder %s19, 3
      %p42 = por %p40, %p41
      %p44 = scmp.ne.s32.totalorder %s27, %s43
      %p45 = scmp.eq.s32.totalorder %s19, 0
      %p46 = por %p44, %p45
      %s47 = ssub.s32 %s13, %s20
      %p48 = scmp.eq.s32.totalorder %s47, 0
      %s50 = sadd.s32 %s49, 1
      %s51 = scalar_select %p48, %s49, %s50
      %p54 = pneg %p48
      %p55 = scmp.eq.s32.totalorder %s13, 3
      %p56 = por %p54, %p55
      %p57 = scmp.ne.s32.totalorder %s49, %s52
      %p58 = scmp.eq.s32.totalorder %s13, 0
      %p59 = por %p57, %p58
      %p60 = scmp.ne.s32.totalorder %s49, %s52
      %p61 = scmp.eq.s32.totalorder %s18, 3
      %p62 = por %p60, %p61
      %p63 = scmp.ne.s32.totalorder %s52, %s53
      %p64 = scmp.eq.s32.totalorder %s18, 0
      %p65 = por %p63, %p64
      %p66 = scmp.ne.s32.totalorder %s52, %s53
      %p67 = scmp.eq.s32.totalorder %s19, 3
      %p68 = por %p66, %p67
      %p70 = scmp.ne.s32.totalorder %s53, %s69
      %p71 = scmp.eq.s32.totalorder %s19, 0
      %p72 = por %p70, %p71
      %s74 = sadd.s32 %s73, 1
      %p77 = scmp.eq.s32.totalorder %s13, 3
      %p78 = scmp.ne.s32.totalorder %s73, %s75
      %p79 = scmp.eq.s32.totalorder %s13, 0
      %p80 = por %p78, %p79
      %p81 = scmp.ne.s32.totalorder %s73, %s75
      %p82 = scmp.eq.s32.totalorder %s18, 3
      %p83 = por %p81, %p82
      %p84 = scmp.ne.s32.totalorder %s75, %s76
      %p85 = scmp.eq.s32.totalorder %s18, 0
      %p86 = por %p84, %p85
      %p87 = scmp.ne.s32.totalorder %s75, %s76
      %p88 = scmp.eq.s32.totalorder %s19, 3
      %p89 = por %p87, %p88
      %p91 = scmp.ne.s32.totalorder %s76, %s90
      %p92 = scmp.eq.s32.totalorder %s19, 0
      %p93 = por %p91, %p92
      %s95 = sadd.s32 %s94, 1
      %p98 = scmp.eq.s32.totalorder %s13, 3
      %p99 = scmp.ne.s32.totalorder %s94, %s96
      %p100 = scmp.eq.s32.totalorder %s13, 0
      %p101 = por %p99, %p100
      %p102 = scmp.ne.s32.totalorder %s94, %s96
      %p103 = scmp.eq.s32.totalorder %s18, 3
      %p104 = por %p102, %p103
      %p105 = scmp.ne.s32.totalorder %s96, %s97
      %p106 = scmp.eq.s32.totalorder %s18, 0
      %p107 = por %p105, %p106
      %p108 = scmp.ne.s32.totalorder %s96, %s97
      %p109 = scmp.eq.s32.totalorder %s19, 3
      %p110 = por %p108, %p109
      %p112 = scmp.ne.s32.totalorder %s97, %s111
      %p113 = scmp.eq.s32.totalorder %s19, 0
      %p114 = por %p112, %p113
      %s115 = ssub.s32 %s13, %s20
      %p116 = scmp.eq.s32.totalorder %s115, 0
      %s118 = sadd.s32 %s117, 1
      %s119 = scalar_select %p116, %s117, %s118
      %p122 = pneg %p116
      %p123 = scmp.eq.s32.totalorder %s13, 3
      %p124 = por %p122, %p123
      %p125 = scmp.ne.s32.totalorder %s117, %s120
      %p126 = scmp.eq.s32.totalorder %s13, 0
      %p127 = por %p125, %p126
      %p128 = scmp.ne.s32.totalorder %s117, %s120
      %p129 = scmp.eq.s32.totalorder %s18, 3
      %p130 = por %p128, %p129
      %p131 = scmp.ne.s32.totalorder %s120, %s121
      %p132 = scmp.eq.s32.totalorder %s18, 0
      %p133 = por %p131, %p132
      %p134 = scmp.ne.s32.totalorder %s120, %s121
      %p135 = scmp.eq.s32.totalorder %s19, 3
      %p136 = por %p134, %p135
      %p138 = scmp.ne.s32.totalorder %s121, %s137
      %p139 = scmp.eq.s32.totalorder %s19, 0
      %p140 = por %p138, %p139
      %p141 = scmp.le.s32.totalorder 1, %s13
      %p142 = scmp.lt.s32.totalorder %s13, 5
      %p143 = pnand %p141, %p142
      %p144 = pneg %p143
      // Predicated region
      $region9: #{bottleneck_forward.7} parent=5 // pred_check
        _
      $region10: #{bottleneck_forward.7} parent=5 // pred_check_branch
        %146 = sbr.rel (%p143) target = $region12
      $region11: #{bottleneck_forward.7} parent=5 // pred_region
        %s147 = ssub.s32 %s13, 1
        // Predicated region
        $region13: #{bottleneck_forward.7} parent=11 // pred_check
          %p148 = pneg %p86
        $region14: #{bottleneck_forward.7} parent=11 // pred_check_branch
          %150 = sbr.rel (%p148) target = $region16
        $region15: #{bottleneck_forward.7} parent=11 // pred_region
          _
        $region16: #{bottleneck_forward.7} parent=11 // pred_fallthru
          _
        // Predicated region
        $region17: #{bottleneck_forward.7} parent=11 // pred_check
          %p151 = pneg %p107
        $region18: #{bottleneck_forward.7} parent=11 // pred_check_branch
          %153 = sbr.rel (%p151) target = $region20
        $region19: #{bottleneck_forward.7} parent=11 // pred_region
          _
        $region20: #{bottleneck_forward.7} parent=11 // pred_fallthru
          _
      $region12: #{bottleneck_forward.7} parent=5 // pred_fallthru
        _
      %p154 = scmp.lt.s32.totalorder %s13, 4
      // Predicated region
      $region21: #{bottleneck_forward.7} parent=5 // pred_check
        %p155 = pneg %p154
      $region22: #{bottleneck_forward.7} parent=5 // pred_check_branch
        %157 = sbr.rel (%p155) target = $region24
      $region23: #{bottleneck_forward.7} parent=5 // pred_region
        // Predicated region
        $region25: #{bottleneck_forward.7} parent=23 // pred_check
          %p158 = pneg %p33
        $region26: #{bottleneck_forward.7} parent=23 // pred_check_branch
          %160 = sbr.rel (%p158) target = $region28
        $region27: #{bottleneck_forward.7} parent=23 // pred_region
          %s161 = smul.u32 16, %s13
          %p162 = scmp.lt.s32.totalorder %s161, 63
          %s163 = scalar_select %p162, %s161, 63
          %s164 = smul.addr %s163, 4
          %s165 = scalar_lea.vmem %s0, %s164
          %s166 = smul.u32 16, %s13
        $region28: #{bottleneck_forward.7} parent=23 // pred_fallthru
          _
        // Predicated region
        $region29: #{bottleneck_forward.7} parent=23 // pred_check
          %p167 = pneg %p59
        $region30: #{bottleneck_forward.7} parent=23 // pred_check_branch
          %169 = sbr.rel (%p167) target = $region32
        $region31: #{bottleneck_forward.7} parent=23 // pred_region
          %s170 = smul.u32 16, %s13
          %p171 = scmp.lt.s32.totalorder %s170, 63
          %s172 = scalar_select %p171, %s170, 63
          %s173 = smul.addr %s172, 4
          %s174 = scalar_lea.vmem %s1, %s173
          %s175 = smul.u32 16, %s13
        $region32: #{bottleneck_forward.7} parent=23 // pred_fallthru
          _
      $region24: #{bottleneck_forward.7} parent=5 // pred_fallthru
        _
      %p176 = scmp.le.s32.totalorder 1, %s13
      %p177 = scmp.lt.s32.totalorder %s13, 5
      %p178 = pnand %p176, %p177
      %p179 = pneg %p178
      // Predicated region
      $region33: #{bottleneck_forward.7} parent=5 // pred_check
        _
      $region34: #{bottleneck_forward.7} parent=5 // pred_check_branch
        %181 = sbr.rel (%p178) target = $region36
      $region35: #{bottleneck_forward.7} parent=5 // pred_region
        %s182 = ssub.s32 %s13, 1
        %s183 = smul.u32 16, %s18
        %p184 = scmp.lt.s32.totalorder %s183, 63
        %s185 = scalar_select %p184, %s183, 63
        %s186 = smul.addr %s185, 4
        %s187 = scalar_lea.vmem %s0, %s186
        %p188 = pneg %p39
        %p189 = pneg %p36
        %s190 = smul.u32 16, %s18
        %p191 = scmp.lt.s32.totalorder %s190, 63
        %s192 = scalar_select %p191, %s190, 63
        %s193 = smul.addr %s192, 4
        %s194 = scalar_lea.vmem %s1, %s193
        %p195 = pneg %p65
        %p196 = pneg %p62
        %p197 = pneg %p86
        %p198 = pneg %p83
        %p199 = pneg %p107
        %p200 = pneg %p104
        %p201 = pneg %p133
        %p202 = pneg %p130
        %s203 = sand.u32 %s120, 1
        %s204 = scalar_lea.sflag [#allocation3], %s203
        %s205 = sand.u32 %s120, 1
        %s206 = smul.addr %s205, 128
        %s207 = scalar_lea.vmem [#allocation2], %s206
        %s208 = smul.u32 16, %s18
        %p209 = scmp.lt.s32.totalorder %s208, 63
        %s210 = scalar_select %p209, %s208, 63
        %s211 = smul.addr %s210, 4
        %s212 = scalar_lea.vmem %s0, %s211
        %s213 = smul.u32 16, %s18
        %s214 = smul.u32 16, %s18
        %p215 = scmp.lt.s32.totalorder %s214, 63
        %s216 = scalar_select %p215, %s214, 63
        %s217 = smul.addr %s216, 4
        %s218 = scalar_lea.vmem %s1, %s217
        %s219 = smul.u32 16, %s18
        %s220 = smul.u32 16, %s18
        %v221 = vld [vmem:[%s212] sm:$0xf]
        %v222 = vld [vmem:[%s212 + $0x4] sm:$0xf]
        %v223 = vld [vmem:[%s212 + $0x8] sm:$0xf]
        %v224 = vld [vmem:[%s212 + $0xc] sm:$0xf]
        %v225 = vld [vmem:[%s212 + $0x10] sm:$0xf]
        %v226 = vld [vmem:[%s212 + $0x14] sm:$0xf]
        %v227 = vld [vmem:[%s212 + $0x18] sm:$0xf]
        %v228 = vld [vmem:[%s212 + $0x1c] sm:$0xf]
        %v229 = vld [vmem:[%s212 + $0x20] sm:$0xf]
        %v230 = vld [vmem:[%s212 + $0x24] sm:$0xf]
        %v231 = vld [vmem:[%s212 + $0x28] sm:$0xf]
        %v232 = vld [vmem:[%s212 + $0x2c] sm:$0xf]
        %v233 = vld [vmem:[%s212 + $0x30] sm:$0xf]
        %v234 = vld [vmem:[%s212 + $0x34] sm:$0xf]
        %v235 = vld [vmem:[%s212 + $0x38] sm:$0xf]
        %v236 = vld [vmem:[%s212 + $0x3c] sm:$0xf]
        %v237 = vunpack.c.l.bf16 %v221
        %v238 = vunpack.c.l.bf16 %v222
        %v239 = vunpack.c.l.bf16 %v223
        %v240 = vunpack.c.l.bf16 %v224
        %v241 = vunpack.c.l.bf16 %v225
        %v242 = vunpack.c.l.bf16 %v226
        %v243 = vunpack.c.l.bf16 %v227
        %v244 = vunpack.c.l.bf16 %v228
        %v245 = vunpack.c.l.bf16 %v229
        %v246 = vunpack.c.l.bf16 %v230
        %v247 = vunpack.c.l.bf16 %v231
        %v248 = vunpack.c.l.bf16 %v232
        %v249 = vunpack.c.l.bf16 %v233
        %v250 = vunpack.c.l.bf16 %v234
        %v251 = vunpack.c.l.bf16 %v235
        %v252 = vunpack.c.l.bf16 %v236
        %v253 = vld [vmem:[%s2] sm:$0x1]
        %v254 = vperm.slane %v253, 0
        %v255 = vmul.f32 %v237, %v254
        %v256 = vmul.f32 %v238, %v254
        %v257 = vmul.f32 %v239, %v254
        %v258 = vmul.f32 %v240, %v254
        %v259 = vmul.f32 %v241, %v254
        %v260 = vmul.f32 %v242, %v254
        %v261 = vmul.f32 %v243, %v254
        %v262 = vmul.f32 %v244, %v254
        %v263 = vmul.f32 %v245, %v254
        %v264 = vmul.f32 %v246, %v254
        %v265 = vmul.f32 %v247, %v254
        %v266 = vmul.f32 %v248, %v254
        %v267 = vmul.f32 %v249, %v254
        %v268 = vmul.f32 %v250, %v254
        %v269 = vmul.f32 %v251, %v254
        %v270 = vmul.f32 %v252, %v254
        %v271 = vld [vmem:[%s2 + $0x1] sm:$0x1]
        %v272 = vperm.slane %v271, 0
        %v273 = vadd.f32 %v255, %v272
        %v274 = vadd.f32 %v256, %v272
        %v275 = vadd.f32 %v257, %v272
        %v276 = vadd.f32 %v258, %v272
        %v277 = vadd.f32 %v259, %v272
        %v278 = vadd.f32 %v260, %v272
        %v279 = vadd.f32 %v261, %v272
        %v280 = vadd.f32 %v262, %v272
        %v281 = vadd.f32 %v263, %v272
        %v282 = vadd.f32 %v264, %v272
        %v283 = vadd.f32 %v265, %v272
        %v284 = vadd.f32 %v266, %v272
        %v285 = vadd.f32 %v267, %v272
        %v286 = vadd.f32 %v268, %v272
        %v287 = vadd.f32 %v269, %v272
        %v288 = vadd.f32 %v270, %v272
        %v289 = vld [vmem:[%s218] sm:$0xf]
        %v290 = vld [vmem:[%s218 + $0x4] sm:$0xf]
        %v291 = vld [vmem:[%s218 + $0x8] sm:$0xf]
        %v292 = vld [vmem:[%s218 + $0xc] sm:$0xf]
        %v293 = vld [vmem:[%s218 + $0x10] sm:$0xf]
        %v294 = vld [vmem:[%s218 + $0x14] sm:$0xf]
        %v295 = vld [vmem:[%s218 + $0x18] sm:$0xf]
        %v296 = vld [vmem:[%s218 + $0x1c] sm:$0xf]
        %v297 = vld [vmem:[%s218 + $0x20] sm:$0xf]
        %v298 = vld [vmem:[%s218 + $0x24] sm:$0xf]
        %v299 = vld [vmem:[%s218 + $0x28] sm:$0xf]
        %v300 = vld [vmem:[%s218 + $0x2c] sm:$0xf]
        %v301 = vld [vmem:[%s218 + $0x30] sm:$0xf]
        %v302 = vld [vmem:[%s218 + $0x34] sm:$0xf]
        %v303 = vld [vmem:[%s218 + $0x38] sm:$0xf]
        %v304 = vld [vmem:[%s218 + $0x3c] sm:$0xf]
        %v305 = vunpack.c.l.bf16 %v289
        %v306 = vunpack.c.l.bf16 %v290
        %v307 = vunpack.c.l.bf16 %v291
        %v308 = vunpack.c.l.bf16 %v292
        %v309 = vunpack.c.l.bf16 %v293
        %v310 = vunpack.c.l.bf16 %v294
        %v311 = vunpack.c.l.bf16 %v295
        %v312 = vunpack.c.l.bf16 %v296
        %v313 = vunpack.c.l.bf16 %v297
        %v314 = vunpack.c.l.bf16 %v298
        %v315 = vunpack.c.l.bf16 %v299
        %v316 = vunpack.c.l.bf16 %v300
        %v317 = vunpack.c.l.bf16 %v301
        %v318 = vunpack.c.l.bf16 %v302
        %v319 = vunpack.c.l.bf16 %v303
        %v320 = vunpack.c.l.bf16 %v304
        %v321 = vld [vmem:[%s3] sm:$0x1]
        %v322 = vperm.slane %v321, 0
        %v323 = vmul.f32 %v305, %v322
        %v324 = vmul.f32 %v306, %v322
        %v325 = vmul.f32 %v307, %v322
        %v326 = vmul.f32 %v308, %v322
        %v327 = vmul.f32 %v309, %v322
        %v328 = vmul.f32 %v310, %v322
        %v329 = vmul.f32 %v311, %v322
        %v330 = vmul.f32 %v312, %v322
        %v331 = vmul.f32 %v313, %v322
        %v332 = vmul.f32 %v314, %v322
        %v333 = vmul.f32 %v315, %v322
        %v334 = vmul.f32 %v316, %v322
        %v335 = vmul.f32 %v317, %v322
        %v336 = vmul.f32 %v318, %v322
        %v337 = vmul.f32 %v319, %v322
        %v338 = vmul.f32 %v320, %v322
        %v339 = vld [vmem:[%s3 + $0x1] sm:$0x1]
        %v340 = vperm.slane %v339, 0
        %v341 = vadd.f32 %v323, %v340
        %v342 = vadd.f32 %v324, %v340
        %v343 = vadd.f32 %v325, %v340
        %v344 = vadd.f32 %v326, %v340
        %v345 = vadd.f32 %v327, %v340
        %v346 = vadd.f32 %v328, %v340
        %v347 = vadd.f32 %v329, %v340
        %v348 = vadd.f32 %v330, %v340
        %v349 = vadd.f32 %v331, %v340
        %v350 = vadd.f32 %v332, %v340
        %v351 = vadd.f32 %v333, %v340
        %v352 = vadd.f32 %v334, %v340
        %v353 = vadd.f32 %v335, %v340
        %v354 = vadd.f32 %v336, %v340
        %v355 = vadd.f32 %v337, %v340
        %v356 = vadd.f32 %v338, %v340
        %v357 = vadd.f32 %v273, %v341
        %v358 = vadd.f32 %v274, %v342
        %v359 = vadd.f32 %v275, %v343
        %v360 = vadd.f32 %v276, %v344
        %v361 = vadd.f32 %v277, %v345
        %v362 = vadd.f32 %v278, %v346
        %v363 = vadd.f32 %v279, %v347
        %v364 = vadd.f32 %v280, %v348
        %v365 = vadd.f32 %v281, %v349
        %v366 = vadd.f32 %v282, %v350
        %v367 = vadd.f32 %v283, %v351
        %v368 = vadd.f32 %v284, %v352
        %v369 = vadd.f32 %v285, %v353
        %v370 = vadd.f32 %v286, %v354
        %v371 = vadd.f32 %v287, %v355
        %v372 = vadd.f32 %v288, %v356
        %v373 = vmax.f32 %v357, 0.0
        %v374 = vmax.f32 %v358, 0.0
        %v375 = vmax.f32 %v359, 0.0
        %v376 = vmax.f32 %v360, 0.0
        %v377 = vmax.f32 %v361, 0.0
        %v378 = vmax.f32 %v362, 0.0
        %v379 = vmax.f32 %v363, 0.0
        %v380 = vmax.f32 %v364, 0.0
        %v381 = vmax.f32 %v365, 0.0
        %v382 = vmax.f32 %v366, 0.0
        %v383 = vmax.f32 %v367, 0.0
        %v384 = vmax.f32 %v368, 0.0
        %v385 = vmax.f32 %v369, 0.0
        %v386 = vmax.f32 %v370, 0.0
        %v387 = vmax.f32 %v371, 0.0
        %v388 = vmax.f32 %v372, 0.0
        %389 = vst [vmem:[%s207] sm:$0xff] %v373
        %390 = vst [vmem:[%s207 + $0x8] sm:$0xff] %v374
        %391 = vst [vmem:[%s207 + $0x10] sm:$0xff] %v375
        %392 = vst [vmem:[%s207 + $0x18] sm:$0xff] %v376
        %393 = vst [vmem:[%s207 + $0x20] sm:$0xff] %v377
        %394 = vst [vmem:[%s207 + $0x28] sm:$0xff] %v378
        %395 = vst [vmem:[%s207 + $0x30] sm:$0xff] %v379
        %396 = vst [vmem:[%s207 + $0x38] sm:$0xff] %v380
        %397 = vst [vmem:[%s207 + $0x40] sm:$0xff] %v381
        %398 = vst [vmem:[%s207 + $0x48] sm:$0xff] %v382
        %399 = vst [vmem:[%s207 + $0x50] sm:$0xff] %v383
        %400 = vst [vmem:[%s207 + $0x58] sm:$0xff] %v384
        %401 = vst [vmem:[%s207 + $0x60] sm:$0xff] %v385
        %402 = vst [vmem:[%s207 + $0x68] sm:$0xff] %v386
        %403 = vst [vmem:[%s207 + $0x70] sm:$0xff] %v387
        %404 = vst [vmem:[%s207 + $0x78] sm:$0xff] %v388
        %s405 = sand.u32 %s120, 1
        %s406 = scalar_lea.sflag [#allocation3], %s405
        %s407 = sand.u32 %s120, 1
        %s408 = smul.addr %s407, 128
        %s409 = scalar_lea.vmem [#allocation2], %s408
        // Predicated region
        $region37: #{bottleneck_forward.7} parent=35 // pred_check
          %p410 = pneg %p130
        $region38: #{bottleneck_forward.7} parent=35 // pred_check_branch
          %412 = sbr.rel (%p410) target = $region40
        $region39: #{bottleneck_forward.7} parent=35 // pred_region
          %s413 = smul.u32 16, %s18
          %415 = vsyncadd %s406, 0
          %s416 = smul.addr %s413, 8
          %s417 = scalar_lea.hbm %s4, %s416
          %s418 = sshll.u32 %s409, 4
          %s419 = int_to_ptr.vmem [resolvable:$true] %s418
          %s420 = sshll.u32 %s417, 4
          %s421 = int_to_ptr.hbm [resolvable:$true] %s420
          %426 = dma.vmem_to_hbm [thread:$0]  %s419, 2048, %s421, %s406, 128, 128, 8
        $region40: #{bottleneck_forward.7} parent=35 // pred_fallthru
          _
      $region36: #{bottleneck_forward.7} parent=5 // pred_fallthru
        _
      %p427 = scmp.le.s32.totalorder 2, %s13
      // Predicated region
      $region41: #{bottleneck_forward.7} parent=5 // pred_check
        %p428 = pneg %p427
      $region42: #{bottleneck_forward.7} parent=5 // pred_check_branch
        %430 = sbr.rel (%p428) target = $region44
      $region43: #{bottleneck_forward.7} parent=5 // pred_region
        %s431 = ssub.s32 %s13, 2
        // Predicated region
        $region45: #{bottleneck_forward.7} parent=43 // pred_check
          %p432 = pneg %p136
        $region46: #{bottleneck_forward.7} parent=43 // pred_check_branch
          %434 = sbr.rel (%p432) target = $region48
        $region47: #{bottleneck_forward.7} parent=43 // pred_region
          %s435 = sand.u32 %s121, 1
          %s436 = scalar_lea.sflag [#allocation3], %s435
          %s437 = sand.u32 %s121, 1
          %s438 = smul.addr %s437, 128
          %s439 = scalar_lea.vmem [#allocation2], %s438
          %441 = dma.done %s436, 2048
        $region48: #{bottleneck_forward.7} parent=43 // pred_fallthru
          _
      $region44: #{bottleneck_forward.7} parent=5 // pred_fallthru
        _
    $region6: #{bottleneck_forward.7} parent=1 // loop_footer
      %s17 = sadd.s32 1, %s13
    $region7: #{bottleneck_forward.7} parent=1 // loop_footer_branch
      %12 = sbr.rel target = $region3
    $region8: #{bottleneck_forward.7} parent=1 // loop_exit
      _
    %442 = vsyncpa [#allocation3], 1
    %s443 = scalar_lea.sflag [#allocation3], 1
    %444 = vsyncpa %s443, 1

// kernel: bottleneck_forward.5
$region0: #{bottleneck_forward.5}
  #allocation0 [shape = 'u32[]', space=smem, size = 0x4, offset = 0x4, fixed_abs, tag = 'smem constant byte address 0x4 - core index']
  #allocation1 [shape = 'u32[72,128]{1,0:T(1,128)}', space=vmem, size = 0x9000, scoped, tag = 'internal scratch']
  %s0 = inlined_call_operand.vmem [shape: bf16[2,18,18,32], index: 0, kind: input, shape index: {}]
  %s1 = inlined_call_operand.vmem [shape: bf16[9,32,32], index: 1, kind: input, shape index: {}]
  %s2 = inlined_call_operand.vmem [shape: bf16[2,16,16,32], index: 2, kind: output, shape index: {0}]
  %s3 = inlined_call_operand.vmem [shape: f32[2,2,1,32], index: 3, kind: output, shape index: {1}]
  %s4 = inlined_call_operand.vmem [shape: f32[2,2,1,32], index: 4, kind: output, shape index: {2}]
  %5 = xla_tuple %s2, %s3, %s4
  %s6 = sld [smem:[#allocation0]]
  $region57: #{bottleneck_forward.5} parent=0
    _
  %s8 = ssub.s32 1, %s6
  %s9 = scalar_select 0, %s8, %s6
  loop: start=0, step=1, limit=6
  $region2: #{bottleneck_forward.5} parent=0 // loop_pre_header
    _
  $region3: #{bottleneck_forward.5} parent=0 // loop_header
    %s11 = sphi 0, %s15
    %p12 = scmp.ge.s32.totalorder %s11, 6
    %s18 = sphi 0, %s30
    %s19 = sphi 0, %s26
    %s20 = sphi 0, %s18
    %s21 = sphi 0, %s19
    %s22 = sphi 0, %s20
    %s23 = sphi 0, %s21
    %s33 = sphi 0, %s35
    %s36 = sphi 0, %s33
    %s37 = sphi 0, %s36
    %s53 = sphi 0, %s37
    %s57 = sphi 0, %s57
    %s59 = sphi 0, %s57
    %s60 = sphi 0, %s59
    %s74 = sphi 0, %s60
    %s82 = sphi 0, %s84
    %s85 = sphi 0, %s82
    %s86 = sphi 0, %s85
    %s102 = sphi 0, %s86
    %s110 = sphi 0, %s112
    %s113 = sphi 0, %s110
    %s114 = sphi 0, %s113
    %s130 = sphi 0, %s114
    %s138 = sphi 0, %s140
    %s141 = sphi 0, %s138
    %s142 = sphi 0, %s141
    %s158 = sphi 0, %s142
  $region4: #{bottleneck_forward.5} parent=0 // loop_header_branch
    %14 = sbr.rel (%p12) target = $region8
  $region5: #{bottleneck_forward.5} parent=0 // loop_body
    %s16 = ssub.s32 %s11, 1
    %s17 = ssub.s32 %s11, 2
    %s24 = sadd.s32 1, %s19
    %p25 = scmp.ge.s32.totalorder %s24, 2
    %s26 = scalar_select %p25, 0, %s24
    %s27 = sadd.s32 1, %s18
    %s28 = scalar_select %p25, %s27, %s18
    %p29 = scmp.ge.s32.totalorder %s28, 2
    %s30 = scalar_select %p29, 0, %s28
    %s31 = ssub.s32 %s18, %s30
    %p32 = scmp.eq.s32.totalorder %s31, 0
    %s34 = sadd.s32 %s33, 1
    %s35 = scalar_select %p32, %s33, %s34
    %p38 = pneg %p32
    %p39 = scmp.eq.s32.totalorder %s11, 3
    %p40 = por %p38, %p39
    %p41 = scmp.ne.s32.totalorder %s33, %s36
    %p42 = scmp.eq.s32.totalorder %s11, 0
    %p43 = por %p41, %p42
    %p44 = scmp.ne.s32.totalorder %s33, %s36
    %p45 = scmp.eq.s32.totalorder %s16, 3
    %p46 = por %p44, %p45
    %p47 = scmp.ne.s32.totalorder %s36, %s37
    %p48 = scmp.eq.s32.totalorder %s16, 0
    %p49 = por %p47, %p48
    %p50 = scmp.ne.s32.totalorder %s36, %s37
    %p51 = scmp.eq.s32.totalorder %s17, 3
    %p52 = por %p50, %p51
    %p54 = scmp.ne.s32.totalorder %s37, %s53
    %p55 = scmp.eq.s32.totalorder %s17, 0
    %p56 = por %p54, %p55
    %s58 = sadd.s32 %s57, 1
    %p61 = scmp.eq.s32.totalorder %s11, 3
    %p62 = scmp.ne.s32.totalorder %s57, %s59
    %p63 = scmp.eq.s32.totalorder %s11, 0
    %p64 = por %p62, %p63
    %p65 = scmp.ne.s32.totalorder %s57, %s59
    %p66 = scmp.eq.s32.totalorder %s16, 3
    %p67 = por %p65, %p66
    %p68 = scmp.ne.s32.totalorder %s59, %s60
    %p69 = scmp.eq.s32.totalorder %s16, 0
    %p70 = por %p68, %p69
    %p71 = scmp.ne.s32.totalorder %s59, %s60
    %p72 = scmp.eq.s32.totalorder %s17, 3
    %p73 = por %p71, %p72
    %p75 = scmp.ne.s32.totalorder %s60, %s74
    %p76 = scmp.eq.s32.totalorder %s17, 0
    %p77 = por %p75, %p76
    %s78 = ssub.s32 %s18, %s30
    %s79 = ssub.s32 %s19, %s26
    %s80 = sor.u32 %s78, %s79
    %p81 = scmp.eq.s32.totalorder %s80, 0
    %s83 = sadd.s32 %s82, 1
    %s84 = scalar_select %p81, %s82, %s83
    %p87 = pneg %p81
    %p88 = scmp.eq.s32.totalorder %s11, 3
    %p89 = por %p87, %p88
    %p90 = scmp.ne.s32.totalorder %s82, %s85
    %p91 = scmp.eq.s32.totalorder %s11, 0
    %p92 = por %p90, %p91
    %p93 = scmp.ne.s32.totalorder %s82, %s85
    %p94 = scmp.eq.s32.totalorder %s16, 3
    %p95 = por %p93, %p94
    %p96 = scmp.ne.s32.totalorder %s85, %s86
    %p97 = scmp.eq.s32.totalorder %s16, 0
    %p98 = por %p96, %p97
    %p99 = scmp.ne.s32.totalorder %s85, %s86
    %p100 = scmp.eq.s32.totalorder %s17, 3
    %p101 = por %p99, %p100
    %p103 = scmp.ne.s32.totalorder %s86, %s102
    %p104 = scmp.eq.s32.totalorder %s17, 0
    %p105 = por %p103, %p104
    %s106 = ssub.s32 %s18, %s30
    %s107 = ssub.s32 %s19, %s26
    %s108 = sor.u32 %s106, %s107
    %p109 = scmp.eq.s32.totalorder %s108, 0
    %s111 = sadd.s32 %s110, 1
    %s112 = scalar_select %p109, %s110, %s111
    %p115 = pneg %p109
    %p116 = scmp.eq.s32.totalorder %s11, 3
    %p117 = por %p115, %p116
    %p118 = scmp.ne.s32.totalorder %s110, %s113
    %p119 = scmp.eq.s32.totalorder %s11, 0
    %p120 = por %p118, %p119
    %p121 = scmp.ne.s32.totalorder %s110, %s113
    %p122 = scmp.eq.s32.totalorder %s16, 3
    %p123 = por %p121, %p122
    %p124 = scmp.ne.s32.totalorder %s113, %s114
    %p125 = scmp.eq.s32.totalorder %s16, 0
    %p126 = por %p124, %p125
    %p127 = scmp.ne.s32.totalorder %s113, %s114
    %p128 = scmp.eq.s32.totalorder %s17, 3
    %p129 = por %p127, %p128
    %p131 = scmp.ne.s32.totalorder %s114, %s130
    %p132 = scmp.eq.s32.totalorder %s17, 0
    %p133 = por %p131, %p132
    %s134 = ssub.s32 %s18, %s30
    %s135 = ssub.s32 %s19, %s26
    %s136 = sor.u32 %s134, %s135
    %p137 = scmp.eq.s32.totalorder %s136, 0
    %s139 = sadd.s32 %s138, 1
    %s140 = scalar_select %p137, %s138, %s139
    %p143 = pneg %p137
    %p144 = scmp.eq.s32.totalorder %s11, 3
    %p145 = por %p143, %p144
    %p146 = scmp.ne.s32.totalorder %s138, %s141
    %p147 = scmp.eq.s32.totalorder %s11, 0
    %p148 = por %p146, %p147
    %p149 = scmp.ne.s32.totalorder %s138, %s141
    %p150 = scmp.eq.s32.totalorder %s16, 3
    %p151 = por %p149, %p150
    %p152 = scmp.ne.s32.totalorder %s141, %s142
    %p153 = scmp.eq.s32.totalorder %s16, 0
    %p154 = por %p152, %p153
    %p155 = scmp.ne.s32.totalorder %s141, %s142
    %p156 = scmp.eq.s32.totalorder %s17, 3
    %p157 = por %p155, %p156
    %p159 = scmp.ne.s32.totalorder %s142, %s158
    %p160 = scmp.eq.s32.totalorder %s17, 0
    %p161 = por %p159, %p160
    %p162 = scmp.le.s32.totalorder 1, %s11
    %p163 = scmp.lt.s32.totalorder %s11, 5
    %p164 = pnand %p162, %p163
    %p165 = pneg %p164
    // Predicated region
    $region9: #{bottleneck_forward.5} parent=5 // pred_check
      _
    $region10: #{bottleneck_forward.5} parent=5 // pred_check_branch
      %167 = sbr.rel (%p164) target = $region12
    $region11: #{bottleneck_forward.5} parent=5 // pred_region
      %s168 = ssub.s32 %s11, 1
      // Predicated region
      $region13: #{bottleneck_forward.5} parent=11 // pred_check
        %p169 = pneg %p70
      $region14: #{bottleneck_forward.5} parent=11 // pred_check_branch
        %171 = sbr.rel (%p169) target = $region16
      $region15: #{bottleneck_forward.5} parent=11 // pred_region
        _
      $region16: #{bottleneck_forward.5} parent=11 // pred_fallthru
        _
    $region12: #{bottleneck_forward.5} parent=5 // pred_fallthru
      _
    %p172 = scmp.lt.s32.totalorder %s11, 4
    // Predicated region
    $region17: #{bottleneck_forward.5} parent=5 // pred_check
      %p173 = pneg %p172
    $region18: #{bottleneck_forward.5} parent=5 // pred_check_branch
      %175 = sbr.rel (%p173) target = $region20
    $region19: #{bottleneck_forward.5} parent=5 // pred_region
      // Predicated region
      $region21: #{bottleneck_forward.5} parent=19 // pred_check
        %p176 = pneg %p43
      $region22: #{bottleneck_forward.5} parent=19 // pred_check_branch
        %178 = sbr.rel (%p176) target = $region24
      $region23: #{bottleneck_forward.5} parent=19 // pred_region
        %p179 = scmp.lt.s32.totalorder %s18, 1
        %s180 = scalar_select %p179, %s18, 1
        %s181 = smul.addr %s180, 54
        %s182 = smul.addr %s181, 4
        %s183 = scalar_lea.vmem %s0, %s182
      $region24: #{bottleneck_forward.5} parent=19 // pred_fallthru
        _
    $region20: #{bottleneck_forward.5} parent=5 // pred_fallthru
      _
    %p184 = scmp.le.s32.totalorder 1, %s11
    %p185 = scmp.lt.s32.totalorder %s11, 5
    %p186 = pnand %p184, %p185
    %p187 = pneg %p186
    // Predicated region
    $region25: #{bottleneck_forward.5} parent=5 // pred_check
      _
    $region26: #{bottleneck_forward.5} parent=5 // pred_check_branch
      %189 = sbr.rel (%p186) target = $region28
    $region27: #{bottleneck_forward.5} parent=5 // pred_region
      %s190 = ssub.s32 %s11, 1
      %p191 = scmp.lt.s32.totalorder %s20, 1
      %s192 = scalar_select %p191, %s20, 1
      %s193 = smul.addr %s192, 54
      %s194 = smul.addr %s193, 4
      %s195 = scalar_lea.vmem %s0, %s194
      %p196 = pneg %p49
      %p197 = pneg %p46
      %p198 = pneg %p70
      %p199 = pneg %p67
      %p200 = pneg %p98
      %p201 = pneg %p95
      %s202 = smul.u32 8, %s21
      %p203 = scmp.lt.s32.totalorder %s20, 1
      %s204 = scalar_select %p203, %s20, 1
      %p205 = scmp.lt.s32.totalorder %s202, 15
      %s206 = scalar_select %p205, %s202, 15
      %s207 = smul.addr %s206, 2
      %s208 = smul.addr %s204, 32
      %s209 = sadd.s32 %s207, %s208
      %s210 = smul.addr %s209, 4
      %s211 = scalar_lea.vmem %s2, %s210
      %p212 = pneg %p126
      %p213 = pneg %p123
      %p214 = scmp.lt.s32.totalorder %s20, 1
      %s215 = scalar_select %p214, %s20, 1
      %p216 = scmp.lt.s32.totalorder %s21, 1
      %s217 = scalar_select %p216, %s21, 1
      %s218 = smul.addr %s215, 2
      %s219 = sadd.s32 %s217, %s218
      %s220 = scalar_lea.vmem %s3, %s219
      %p221 = pneg %p154
      %p222 = pneg %p151
      %p223 = scmp.lt.s32.totalorder %s20, 1
      %s224 = scalar_select %p223, %s20, 1
      %p225 = scmp.lt.s32.totalorder %s21, 1
      %s226 = scalar_select %p225, %s21, 1
      %s227 = smul.addr %s224, 2
      %s228 = sadd.s32 %s226, %s227
      %s229 = scalar_lea.vmem %s4, %s228
      %p230 = scmp.lt.s32.totalorder %s20, 1
      %s231 = scalar_select %p230, %s20, 1
      %s232 = smul.addr %s231, 54
      %s233 = smul.addr %s232, 4
      %s234 = scalar_lea.vmem %s0, %s233
      %s235 = smul.u32 8, %s21
      %p236 = scmp.lt.s32.totalorder %s20, 1
      %s237 = scalar_select %p236, %s20, 1
      %p238 = scmp.lt.s32.totalorder %s235, 15
      %s239 = scalar_select %p238, %s235, 15
      %s240 = smul.addr %s239, 2
      %s241 = smul.addr %s237, 32
      %s242 = sadd.s32 %s240, %s241
      %s243 = smul.addr %s242, 4
      %s244 = scalar_lea.vmem %s2, %s243
      %s245 = smul.u32 8, %s21
      %p246 = scmp.lt.s32.totalorder %s20, 1
      %s247 = scalar_select %p246, %s20, 1
      %p248 = scmp.lt.s32.totalorder %s21, 1
      %s249 = scalar_select %p248, %s21, 1
      %s250 = smul.addr %s247, 2
      %s251 = sadd.s32 %s249, %s250
      %s252 = scalar_lea.vmem %s3, %s251
      %p253 = scmp.lt.s32.totalorder %s20, 1
      %s254 = scalar_select %p253, %s20, 1
      %p255 = scmp.lt.s32.totalorder %s21, 1
      %s256 = scalar_select %p255, %s21, 1
      %s257 = smul.addr %s254, 2
      %s258 = sadd.s32 %s256, %s257
      %s259 = scalar_lea.vmem %s4, %s258
      %s261 = smul.u32 %s21, 8
      %s262 = smul.u32 %s261, 3
      %s263 = smul.addr %s262, 4
      %s264 = scalar_lea.vmem %s234, %s263
      %v265 = vld [vmem:[%s264] sm:$0xf]
      %v266 = vld [vmem:[%s264 + $0x4] sm:$0xf]
      %v267 = vld [vmem:[%s264 + $0x8] sm:$0x1]
      %v268 = vld [vmem:[%s1] sm:$0xf]
      %v269 = vld [vmem:[%s1 + $0x4] sm:$0xf]
      %v270 = vld [vmem:[%s1 + $0x8] sm:$0xf]
      %v271 = vld [vmem:[%s1 + $0xc] sm:$0xf]
      %s272 = scalar_lea.vmem %s1, 16
      %v273 = vld [vmem:[%s272] sm:$0xf]
      %v274 = vld [vmem:[%s272 + $0x4] sm:$0xf]
      %v275 = vld [vmem:[%s272 + $0x8] sm:$0xf]
      %v276 = vld [vmem:[%s272 + $0xc] sm:$0xf]
      %v280 = vunpack.c.l.b16 %v265
      %v281 = vunpack.c.l.b16 %v266
      %v282 = vunpack.c.l.b16 %v267
      %v283 = vpack.c.b16 %v281, %v280
      %v284 = vpack.c.b16 %v282, %v282
      %vm285 = vsmask.f32 7424
      %v287 = vshrl.u32 %v283, 16
      %v289 = vshll.u32 %v283, 16
      %v291 = vrot.slane %v289, 1
      %v292 = vor.u32 %v287, %v291
      %v294 = vshll.u32 %v284, 16
      %v296 = vrot.slane %v294, 1
      %v297 = vsel %vm285, %v292, %v296
      %v302 = vunpack.c.l.b16 %v273
      %v303 = vunpack.c.l.b16 %v274
      %v304 = vunpack.c.l.b16 %v275
      %v305 = vunpack.c.l.b16 %v276
      %v306 = vpack.c.b16 %v303, %v302
      %v307 = vpack.c.b16 %v305, %v304
      %vm310 = vcmask 261120
      %v312 = vsel %vm310, %v297, 0
      %314 = vmatpush.bf16.msra.mxu0 0
      %315 = vmatpush.bf16.msra.mxu0 0
      %316 = vmatpush.bf16.msra.mxu0 0
      %317 = vmatpush.bf16.msra.mxu0 0
      %318 = vmatpush.bf16.msra.mxu0 0
      %319 = vmatpush.bf16.msra.mxu0 0
      %320 = vmatpush.bf16.msra.mxu0 %v307
      %321 = vmatpush.bf16.msra.mxu0 %v306
      %322 = vmatmul.bf16.gmra.mxu0 %v312
      %v323 = vpop.f32.mrf.mxu0
      %v324 = vadd.f32 0.0, %v323
      %v325 = vpop.f32.mrf.mxu0
      %v326 = vadd.f32 0.0, %v325
      %327 = vdwg.mxu0
      %v332 = vunpack.c.l.b16 %v268
      %v333 = vunpack.c.l.b16 %v269
      %v334 = vunpack.c.l.b16 %v270
      %v335 = vunpack.c.l.b16 %v271
      %v336 = vpack.c.b16 %v333, %v332
      %v337 = vpack.c.b16 %v335, %v334
      %v340 = vsel %vm310, %v283, 0
      %342 = vmatpush.bf16.msra.mxu0 0
      %343 = vmatpush.bf16.msra.mxu0 0
      %344 = vmatpush.bf16.msra.mxu0 0
      %345 = vmatpush.bf16.msra.mxu0 0
      %346 = vmatpush.bf16.msra.mxu0 0
      %347 = vmatpush.bf16.msra.mxu0 0
      %348 = vmatpush.bf16.msra.mxu0 %v337
      %349 = vmatpush.bf16.msra.mxu0 %v336
      %350 = vmatmul.bf16.gmra.mxu0 %v340
      %v351 = vpop.f32.mrf.mxu0
      %v352 = vadd.f32 %v324, %v351
      %v353 = vpop.f32.mrf.mxu0
      %v354 = vadd.f32 %v326, %v353
      %355 = vdwg.mxu0
      %s356 = scalar_lea.vmem %s1, 32
      %v357 = vld [vmem:[%s356] sm:$0xf]
      %v358 = vld [vmem:[%s356 + $0x4] sm:$0xf]
      %v359 = vld [vmem:[%s356 + $0x8] sm:$0xf]
      %v360 = vld [vmem:[%s356 + $0xc] sm:$0xf]
      %vm361 = vcmask 1046528
      %v362 = vrot.slane %v283, 1
      %v363 = vrot.slane %v284, 1
      %v364 = vsel %vm361, %v362, %v363
      %v369 = vunpack.c.l.b16 %v357
      %v370 = vunpack.c.l.b16 %v358
      %v371 = vunpack.c.l.b16 %v359
      %v372 = vunpack.c.l.b16 %v360
      %v373 = vpack.c.b16 %v370, %v369
      %v374 = vpack.c.b16 %v372, %v371
      %v378 = vsel %vm310, %v364, 0
      %380 = vmatpush.bf16.msra.mxu0 0
      %381 = vmatpush.bf16.msra.mxu0 0
      %382 = vmatpush.bf16.msra.mxu0 0
      %383 = vmatpush.bf16.msra.mxu0 0
      %384 = vmatpush.bf16.msra.mxu0 0
      %385 = vmatpush.bf16.msra.mxu0 0
      %386 = vmatpush.bf16.msra.mxu0 %v374
      %387 = vmatpush.bf16.msra.mxu0 %v373
      %388 = vmatmul.bf16.gmra.mxu0 %v378
      %v389 = vpop.f32.mrf.mxu0
      %v390 = vadd.f32 0.0, %v389
      %v391 = vpop.f32.mrf.mxu0
      %v392 = vadd.f32 0.0, %v391
      %393 = vdwg.mxu0
      %v394 = vadd.f32 %v352, %v390
      %v395 = vadd.f32 %v354, %v392
      %s396 = sadd.s32 %s261, 1
      %s397 = smul.u32 %s396, 3
      %s398 = smul.addr %s397, 4
      %s399 = scalar_lea.vmem %s234, %s398
      %v400 = vld [vmem:[%s399] sm:$0xf]
      %v401 = vld [vmem:[%s399 + $0x4] sm:$0xf]
      %v402 = vld [vmem:[%s399 + $0x8] sm:$0x1]
      %s403 = scalar_lea.vmem %s1, 48
      %v404 = vld [vmem:[%s403] sm:$0xf]
      %v405 = vld [vmem:[%s403 + $0x4] sm:$0xf]
      %v406 = vld [vmem:[%s403 + $0x8] sm:$0xf]
      %v407 = vld [vmem:[%s403 + $0xc] sm:$0xf]
      %v410 = vunpack.c.l.b16 %v400
      %v411 = vunpack.c.l.b16 %v401
      %v412 = vpack.c.b16 %v411, %v410
      %v417 = vunpack.c.l.b16 %v404
      %v418 = vunpack.c.l.b16 %v405
      %v419 = vunpack.c.l.b16 %v406
      %v420 = vunpack.c.l.b16 %v407
      %v421 = vpack.c.b16 %v418, %v417
      %v422 = vpack.c.b16 %v420, %v419
      %v426 = vsel %vm310, %v412, 0
      %428 = vmatpush.bf16.msra.mxu0 0
      %429 = vmatpush.bf16.msra.mxu0 0
      %430 = vmatpush.bf16.msra.mxu0 0
      %431 = vmatpush.bf16.msra.mxu0 0
      %432 = vmatpush.bf16.msra.mxu0 0
      %433 = vmatpush.bf16.msra.mxu0 0
      %434 = vmatpush.bf16.msra.mxu0 %v422
      %435 = vmatpush.bf16.msra.mxu0 %v421
      %436 = vmatmul.bf16.gmra.mxu0 %v426
      %v437 = vpop.f32.mrf.mxu0
      %v438 = vadd.f32 0.0, %v437
      %v439 = vpop.f32.mrf.mxu0
      %v440 = vadd.f32 0.0, %v439
      %441 = vdwg.mxu0
      %v442 = vadd.f32 %v394, %v438
      %v443 = vadd.f32 %v395, %v440
      %s444 = scalar_lea.vmem %s1, 64
      %v445 = vld [vmem:[%s444] sm:$0xf]
      %v446 = vld [vmem:[%s444 + $0x4] sm:$0xf]
      %v447 = vld [vmem:[%s444 + $0x8] sm:$0xf]
      %v448 = vld [vmem:[%s444 + $0xc] sm:$0xf]
      %v450 = vunpack.c.l.b16 %v402
      %v451 = vpack.c.b16 %v450, %v450
      %v452 = vshrl.u32 %v412, 16
      %v454 = vshll.u32 %v412, 16
      %v456 = vrot.slane %v454, 1
      %v457 = vor.u32 %v452, %v456
      %v459 = vshll.u32 %v451, 16
      %v461 = vrot.slane %v459, 1
      %v462 = vsel %vm285, %v457, %v461
      %v467 = vunpack.c.l.b16 %v445
      %v468 = vunpack.c.l.b16 %v446
      %v469 = vunpack.c.l.b16 %v447
      %v470 = vunpack.c.l.b16 %v448
      %v471 = vpack.c.b16 %v468, %v467
      %v472 = vpack.c.b16 %v470, %v469
      %v476 = vsel %vm310, %v462, 0
      %478 = vmatpush.bf16.msra.mxu0 0
      %479 = vmatpush.bf16.msra.mxu0 0
      %480 = vmatpush.bf16.msra.mxu0 0
      %481 = vmatpush.bf16.msra.mxu0 0
      %482 = vmatpush.bf16.msra.mxu0 0
      %483 = vmatpush.bf16.msra.mxu0 0
      %484 = vmatpush.bf16.msra.mxu0 %v472
      %485 = vmatpush.bf16.msra.mxu0 %v471
      %486 = vmatmul.bf16.gmra.mxu0 %v476
      %v487 = vpop.f32.mrf.mxu0
      %v488 = vadd.f32 0.0, %v487
      %v489 = vpop.f32.mrf.mxu0
      %v490 = vadd.f32 0.0, %v489
      %491 = vdwg.mxu0
      %v492 = vadd.f32 %v442, %v488
      %v493 = vadd.f32 %v443, %v490
      %s494 = scalar_lea.vmem %s1, 80
      %v495 = vld [vmem:[%s494] sm:$0xf]
      %v496 = vld [vmem:[%s494 + $0x4] sm:$0xf]
      %v497 = vld [vmem:[%s494 + $0x8] sm:$0xf]
      %v498 = vld [vmem:[%s494 + $0xc] sm:$0xf]
      %v499 = vrot.slane %v412, 1
      %v500 = vrot.slane %v451, 1
      %v501 = vsel %vm361, %v499, %v500
      %v506 = vunpack.c.l.b16 %v495
      %v507 = vunpack.c.l.b16 %v496
      %v508 = vunpack.c.l.b16 %v497
      %v509 = vunpack.c.l.b16 %v498
      %v510 = vpack.c.b16 %v507, %v506
      %v511 = vpack.c.b16 %v509, %v508
      %v515 = vsel %vm310, %v501, 0
      %517 = vmatpush.bf16.msra.mxu0 0
      %518 = vmatpush.bf16.msra.mxu0 0
      %519 = vmatpush.bf16.msra.mxu0 0
      %520 = vmatpush.bf16.msra.mxu0 0
      %521 = vmatpush.bf16.msra.mxu0 0
      %522 = vmatpush.bf16.msra.mxu0 0
      %523 = vmatpush.bf16.msra.mxu0 %v511
      %524 = vmatpush.bf16.msra.mxu0 %v510
      %525 = vmatmul.bf16.gmra.mxu0 %v515
      %v526 = vpop.f32.mrf.mxu0
      %v527 = vadd.f32 0.0, %v526
      %v528 = vpop.f32.mrf.mxu0
      %v529 = vadd.f32 0.0, %v528
      %530 = vdwg.mxu0
      %v531 = vadd.f32 %v492, %v527
      %v532 = vadd.f32 %v493, %v529
      %s533 = sadd.s32 %s261, 2
      %s534 = smul.u32 %s533, 3
      %s535 = smul.addr %s534, 4
      %s536 = scalar_lea.vmem %s234, %s535
      %v537 = vld [vmem:[%s536] sm:$0xf]
      %v538 = vld [vmem:[%s536 + $0x4] sm:$0xf]
      %v539 = vld [vmem:[%s536 + $0x8] sm:$0x1]
      %s540 = scalar_lea.vmem %s1, 96
      %v541 = vld [vmem:[%s540] sm:$0xf]
      %v542 = vld [vmem:[%s540 + $0x4] sm:$0xf]
      %v543 = vld [vmem:[%s540 + $0x8] sm:$0xf]
      %v544 = vld [vmem:[%s540 + $0xc] sm:$0xf]
      %v547 = vunpack.c.l.b16 %v537
      %v548 = vunpack.c.l.b16 %v538
      %v549 = vpack.c.b16 %v548, %v547
      %v554 = vunpack.c.l.b16 %v541
      %v555 = vunpack.c.l.b16 %v542
      %v556 = vunpack.c.l.b16 %v543
      %v557 = vunpack.c.l.b16 %v544
      %v558 = vpack.c.b16 %v555, %v554
      %v559 = vpack.c.b16 %v557, %v556
      %v563 = vsel %vm310, %v549, 0
      %565 = vmatpush.bf16.msra.mxu0 0
      %566 = vmatpush.bf16.msra.mxu0 0
      %567 = vmatpush.bf16.msra.mxu0 0
      %568 = vmatpush.bf16.msra.mxu0 0
      %569 = vmatpush.bf16.msra.mxu0 0
      %570 = vmatpush.bf16.msra.mxu0 0
      %571 = vmatpush.bf16.msra.mxu0 %v559
      %572 = vmatpush.bf16.msra.mxu0 %v558
      %573 = vmatmul.bf16.gmra.mxu0 %v563
      %v574 = vpop.f32.mrf.mxu0
      %v575 = vadd.f32 0.0, %v574
      %v576 = vpop.f32.mrf.mxu0
      %v577 = vadd.f32 0.0, %v576
      %578 = vdwg.mxu0
      %v579 = vadd.f32 %v531, %v575
      %v580 = vadd.f32 %v532, %v577
      %s581 = scalar_lea.vmem %s1, 112
      %v582 = vld [vmem:[%s581] sm:$0xf]
      %v583 = vld [vmem:[%s581 + $0x4] sm:$0xf]
      %v584 = vld [vmem:[%s581 + $0x8] sm:$0xf]
      %v585 = vld [vmem:[%s581 + $0xc] sm:$0xf]
      %v587 = vunpack.c.l.b16 %v539
      %v588 = vpack.c.b16 %v587, %v587
      %v589 = vshrl.u32 %v549, 16
      %v591 = vshll.u32 %v549, 16
      %v593 = vrot.slane %v591, 1
      %v594 = vor.u32 %v589, %v593
      %v596 = vshll.u32 %v588, 16
      %v598 = vrot.slane %v596, 1
      %v599 = vsel %vm285, %v594, %v598
      %v604 = vunpack.c.l.b16 %v582
      %v605 = vunpack.c.l.b16 %v583
      %v606 = vunpack.c.l.b16 %v584
      %v607 = vunpack.c.l.b16 %v585
      %v608 = vpack.c.b16 %v605, %v604
      %v609 = vpack.c.b16 %v607, %v606
      %v613 = vsel %vm310, %v599, 0
      %615 = vmatpush.bf16.msra.mxu0 0
      %616 = vmatpush.bf16.msra.mxu0 0
      %617 = vmatpush.bf16.msra.mxu0 0
      %618 = vmatpush.bf16.msra.mxu0 0
      %619 = vmatpush.bf16.msra.mxu0 0
      %620 = vmatpush.bf16.msra.mxu0 0
      %621 = vmatpush.bf16.msra.mxu0 %v609
      %622 = vmatpush.bf16.msra.mxu0 %v608
      %623 = vmatmul.bf16.gmra.mxu0 %v613
      %v624 = vpop.f32.mrf.mxu0
      %v625 = vadd.f32 0.0, %v624
      %v626 = vpop.f32.mrf.mxu0
      %v627 = vadd.f32 0.0, %v626
      %628 = vdwg.mxu0
      %v629 = vadd.f32 %v579, %v625
      %v630 = vadd.f32 %v580, %v627
      %s631 = scalar_lea.vmem %s1, 128
      %v632 = vld [vmem:[%s631] sm:$0xf]
      %v633 = vld [vmem:[%s631 + $0x4] sm:$0xf]
      %v634 = vld [vmem:[%s631 + $0x8] sm:$0xf]
      %v635 = vld [vmem:[%s631 + $0xc] sm:$0xf]
      %v636 = vrot.slane %v549, 1
      %v637 = vrot.slane %v588, 1
      %v638 = vsel %vm361, %v636, %v637
      %v643 = vunpack.c.l.b16 %v632
      %v644 = vunpack.c.l.b16 %v633
      %v645 = vunpack.c.l.b16 %v634
      %v646 = vunpack.c.l.b16 %v635
      %v647 = vpack.c.b16 %v644, %v643
      %v648 = vpack.c.b16 %v646, %v645
      %v652 = vsel %vm310, %v638, 0
      %654 = vmatpush.bf16.msra.mxu0 0
      %655 = vmatpush.bf16.msra.mxu0 0
      %656 = vmatpush.bf16.msra.mxu0 0
      %657 = vmatpush.bf16.msra.mxu0 0
      %658 = vmatpush.bf16.msra.mxu0 0
      %659 = vmatpush.bf16.msra.mxu0 0
      %660 = vmatpush.bf16.msra.mxu0 %v648
      %661 = vmatpush.bf16.msra.mxu0 %v647
      %662 = vmatmul.bf16.gmra.mxu0 %v652
      %v663 = vpop.f32.mrf.mxu0
      %v664 = vadd.f32 0.0, %v663
      %v665 = vpop.f32.mrf.mxu0
      %v666 = vadd.f32 0.0, %v665
      %667 = vdwg.mxu0
      %v668 = vadd.f32 %v629, %v664
      %v669 = vadd.f32 %v630, %v666
      %v670 = vpack.c.bf16 %v668, %v668
      %v671 = vpack.c.bf16 %v669, %v669
      %vm672 = vcmask 257024
      %673 = vst.msk [vmem:[%s244] sm:$0xf] %vm672, %v670
      %674 = vst.msk [vmem:[%s244 + $0x4] sm:$0xf] %vm672, %v671
      %v675 = vsel %vm310, %v668, 0.0
      %v676 = vsel %vm310, %v669, 0.0
      %v677 = vadd.f32 %v675, %v676
      %v678 = vrot.slane %v677, 4
      %v679 = vadd.f32 %v677, %v678
      %v680 = vrot.slane %v679, 2
      %v681 = vadd.f32 %v679, %v680
      %v682 = vrot.slane %v681, 1
      %v683 = vadd.f32 %v681, %v682
      %v684 = vadd.f32 %v683, 0.0
      %v685 = vmul.f32 %v668, %v668
      %v686 = vmul.f32 %v669, %v669
      %v687 = vsel %vm310, %v685, 0.0
      %v688 = vsel %vm310, %v686, 0.0
      %v689 = vadd.f32 %v687, %v688
      %v690 = vrot.slane %v689, 4
      %v691 = vadd.f32 %v689, %v690
      %v692 = vrot.slane %v691, 2
      %v693 = vadd.f32 %v691, %v692
      %v694 = vrot.slane %v693, 1
      %v695 = vadd.f32 %v693, %v694
      %v696 = vadd.f32 %v695, 0.0
      %v697 = vld [vmem:[%s399] sm:$0xf]
      %v698 = vld [vmem:[%s399 + $0x4] sm:$0xf]
      %v699 = vld [vmem:[%s399 + $0x8] sm:$0x1]
      %v700 = vld [vmem:[%s1] sm:$0xf]
      %v701 = vld [vmem:[%s1 + $0x4] sm:$0xf]
      %v702 = vld [vmem:[%s1 + $0x8] sm:$0xf]
      %v703 = vld [vmem:[%s1 + $0xc] sm:$0xf]
      %v704 = vld [vmem:[%s272] sm:$0xf]
      %v705 = vld [vmem:[%s272 + $0x4] sm:$0xf]
      %v706 = vld [vmem:[%s272 + $0x8] sm:$0xf]
      %v707 = vld [vmem:[%s272 + $0xc] sm:$0xf]
      %v711 = vunpack.c.l.b16 %v697
      %v712 = vunpack.c.l.b16 %v698
      %v713 = vunpack.c.l.b16 %v699
      %v714 = vpack.c.b16 %v712, %v711
      %v715 = vpack.c.b16 %v713, %v713
      %v717 = vshrl.u32 %v714, 16
      %v719 = vshll.u32 %v714, 16
      %v721 = vrot.slane %v719, 1
      %v722 = vor.u32 %v717, %v721
      %v724 = vshll.u32 %v715, 16
      %v726 = vrot.slane %v724, 1
      %v727 = vsel %vm285, %v722, %v726
      %v732 = vunpack.c.l.b16 %v704
      %v733 = vunpack.c.l.b16 %v705
      %v734 = vunpack.c.l.b16 %v706
      %v735 = vunpack.c.l.b16 %v707
      %v736 = vpack.c.b16 %v733, %v732
      %v737 = vpack.c.b16 %v735, %v734
      %v741 = vsel %vm310, %v727, 0
      %743 = vmatpush.bf16.msra.mxu0 0
      %744 = vmatpush.bf16.msra.mxu0 0
      %745 = vmatpush.bf16.msra.mxu0 0
      %746 = vmatpush.bf16.msra.mxu0 0
      %747 = vmatpush.bf16.msra.mxu0 0
      %748 = vmatpush.bf16.msra.mxu0 0
      %749 = vmatpush.bf16.msra.mxu0 %v737
      %750 = vmatpush.bf16.msra.mxu0 %v736
      %751 = vmatmul.bf16.gmra.mxu0 %v741
      %v752 = vpop.f32.mrf.mxu0
      %v753 = vadd.f32 0.0, %v752
      %v754 = vpop.f32.mrf.mxu0
      %v755 = vadd.f32 0.0, %v754
      %756 = vdwg.mxu0
      %v761 = vunpack.c.l.b16 %v700
      %v762 = vunpack.c.l.b16 %v701
      %v763 = vunpack.c.l.b16 %v702
      %v764 = vunpack.c.l.b16 %v703
      %v765 = vpack.c.b16 %v762, %v761
      %v766 = vpack.c.b16 %v764, %v763
      %v769 = vsel %vm310, %v714, 0
      %771 = vmatpush.bf16.msra.mxu0 0
      %772 = vmatpush.bf16.msra.mxu0 0
      %773 = vmatpush.bf16.msra.mxu0 0
      %774 = vmatpush.bf16.msra.mxu0 0
      %775 = vmatpush.bf16.msra.mxu0 0
      %776 = vmatpush.bf16.msra.mxu0 0
      %777 = vmatpush.bf16.msra.mxu0 %v766
      %778 = vmatpush.bf16.msra.mxu0 %v765
      %779 = vmatmul.bf16.gmra.mxu0 %v769
      %v780 = vpop.f32.mrf.mxu0
      %v781 = vadd.f32 %v753, %v780
      %v782 = vpop.f32.mrf.mxu0
      %v783 = vadd.f32 %v755, %v782
      %784 = vdwg.mxu0
      %v785 = vld [vmem:[%s356] sm:$0xf]
      %v786 = vld [vmem:[%s356 + $0x4] sm:$0xf]
      %v787 = vld [vmem:[%s356 + $0x8] sm:$0xf]
      %v788 = vld [vmem:[%s356 + $0xc] sm:$0xf]
      %v789 = vrot.slane %v714, 1
      %v790 = vrot.slane %v715, 1
      %v791 = vsel %vm361, %v789, %v790
      %v796 = vunpack.c.l.b16 %v785
      %v797 = vunpack.c.l.b16 %v786
      %v798 = vunpack.c.l.b16 %v787
      %v799 = vunpack.c.l.b16 %v788
      %v800 = vpack.c.b16 %v797, %v796
      %v801 = vpack.c.b16 %v799, %v798
      %v805 = vsel %vm310, %v791, 0
      %807 = vmatpush.bf16.msra.mxu0 0
      %808 = vmatpush.bf16.msra.mxu0 0
      %809 = vmatpush.bf16.msra.mxu0 0
      %810 = vmatpush.bf16.msra.mxu0 0
      %811 = vmatpush.bf16.msra.mxu0 0
      %812 = vmatpush.bf16.msra.mxu0 0
      %813 = vmatpush.bf16.msra.mxu0 %v801
      %814 = vmatpush.bf16.msra.mxu0 %v800
      %815 = vmatmul.bf16.gmra.mxu0 %v805
      %v816 = vpop.f32.mrf.mxu0
      %v817 = vadd.f32 0.0, %v816
      %v818 = vpop.f32.mrf.mxu0
      %v819 = vadd.f32 0.0, %v818
      %820 = vdwg.mxu0
      %v821 = vadd.f32 %v781, %v817
      %v822 = vadd.f32 %v783, %v819
      %v823 = vld [vmem:[%s536] sm:$0xf]
      %v824 = vld [vmem:[%s536 + $0x4] sm:$0xf]
      %v825 = vld [vmem:[%s536 + $0x8] sm:$0x1]
      %v826 = vld [vmem:[%s403] sm:$0xf]
      %v827 = vld [vmem:[%s403 + $0x4] sm:$0xf]
      %v828 = vld [vmem:[%s403 + $0x8] sm:$0xf]
      %v829 = vld [vmem:[%s403 + $0xc] sm:$0xf]
      %v832 = vunpack.c.l.b16 %v823
      %v833 = vunpack.c.l.b16 %v824
      %v834 = vpack.c.b16 %v833, %v832
      %v839 = vunpack.c.l.b16 %v826
      %v840 = vunpack.c.l.b16 %v827
      %v841 = vunpack.c.l.b16 %v828
      %v842 = vunpack.c.l.b16 %v829
      %v843 = vpack.c.b16 %v840, %v839
      %v844 = vpack.c.b16 %v842, %v841
      %v848 = vsel %vm310, %v834, 0
      %850 = vmatpush.bf16.msra.mxu0 0
      %851 = vmatpush.bf16.msra.mxu0 0
      %852 = vmatpush.bf16.msra.mxu0 0
      %853 = vmatpush.bf16.msra.mxu0 0
      %854 = vmatpush.bf16.msra.mxu0 0
      %855 = vmatpush.bf16.msra.mxu0 0
      %856 = vmatpush.bf16.msra.mxu0 %v844
      %857 = vmatpush.bf16.msra.mxu0 %v843
      %858 = vmatmul.bf16.gmra.mxu0 %v848
      %v859 = vpop.f32.mrf.mxu0
      %v860 = vadd.f32 0.0, %v859
      %v861 = vpop.f32.mrf.mxu0
      %v862 = vadd.f32 0.0, %v861
      %863 = vdwg.mxu0
      %v864 = vadd.f32 %v821, %v860
      %v865 = vadd.f32 %v822, %v862
      %v866 = vld [vmem:[%s444] sm:$0xf]
      %v867 = vld [vmem:[%s444 + $0x4] sm:$0xf]
      %v868 = vld [vmem:[%s444 + $0x8] sm:$0xf]
      %v869 = vld [vmem:[%s444 + $0xc] sm:$0xf]
      %v871 = vunpack.c.l.b16 %v825
      %v872 = vpack.c.b16 %v871, %v871
      %v873 = vshrl.u32 %v834, 16
      %v875 = vshll.u32 %v834, 16
      %v877 = vrot.slane %v875, 1
      %v878 = vor.u32 %v873, %v877
      %v880 = vshll.u32 %v872, 16
      %v882 = vrot.slane %v880, 1
      %v883 = vsel %vm285, %v878, %v882
      %v888 = vunpack.c.l.b16 %v866
      %v889 = vunpack.c.l.b16 %v867
      %v890 = vunpack.c.l.b16 %v868
      %v891 = vunpack.c.l.b16 %v869
      %v892 = vpack.c.b16 %v889, %v888
      %v893 = vpack.c.b16 %v891, %v890
      %v897 = vsel %vm310, %v883, 0
      %899 = vmatpush.bf16.msra.mxu0 0
      %900 = vmatpush.bf16.msra.mxu0 0
      %901 = vmatpush.bf16.msra.mxu0 0
      %902 = vmatpush.bf16.msra.mxu0 0
      %903 = vmatpush.bf16.msra.mxu0 0
      %904 = vmatpush.bf16.msra.mxu0 0
      %905 = vmatpush.bf16.msra.mxu0 %v893
      %906 = vmatpush.bf16.msra.mxu0 %v892
      %907 = vmatmul.bf16.gmra.mxu0 %v897
      %v908 = vpop.f32.mrf.mxu0
      %v909 = vadd.f32 0.0, %v908
      %v910 = vpop.f32.mrf.mxu0
      %v911 = vadd.f32 0.0, %v910
      %912 = vdwg.mxu0
      %v913 = vadd.f32 %v864, %v909
      %v914 = vadd.f32 %v865, %v911
      %v915 = vld [vmem:[%s494] sm:$0xf]
      %v916 = vld [vmem:[%s494 + $0x4] sm:$0xf]
      %v917 = vld [vmem:[%s494 + $0x8] sm:$0xf]
      %v918 = vld [vmem:[%s494 + $0xc] sm:$0xf]
      %v919 = vrot.slane %v834, 1
      %v920 = vrot.slane %v872, 1
      %v921 = vsel %vm361, %v919, %v920
      %v926 = vunpack.c.l.b16 %v915
      %v927 = vunpack.c.l.b16 %v916
      %v928 = vunpack.c.l.b16 %v917
      %v929 = vunpack.c.l.b16 %v918
      %v930 = vpack.c.b16 %v927, %v926
      %v931 = vpack.c.b16 %v929, %v928
      %v935 = vsel %vm310, %v921, 0
      %937 = vmatpush.bf16.msra.mxu0 0
      %938 = vmatpush.bf16.msra.mxu0 0
      %939 = vmatpush.bf16.msra.mxu0 0
      %940 = vmatpush.bf16.msra.mxu0 0
      %941 = vmatpush.bf16.msra.mxu0 0
      %942 = vmatpush.bf16.msra.mxu0 0
      %943 = vmatpush.bf16.msra.mxu0 %v931
      %944 = vmatpush.bf16.msra.mxu0 %v930
      %945 = vmatmul.bf16.gmra.mxu0 %v935
      %v946 = vpop.f32.mrf.mxu0
      %v947 = vadd.f32 0.0, %v946
      %v948 = vpop.f32.mrf.mxu0
      %v949 = vadd.f32 0.0, %v948
      %950 = vdwg.mxu0
      %v951 = vadd.f32 %v913, %v947
      %v952 = vadd.f32 %v914, %v949
      %s953 = sadd.s32 %s261, 3
      %s954 = smul.u32 %s953, 3
      %s955 = smul.addr %s954, 4
      %s956 = scalar_lea.vmem %s234, %s955
      %v957 = vld [vmem:[%s956] sm:$0xf]
      %v958 = vld [vmem:[%s956 + $0x4] sm:$0xf]
      %v959 = vld [vmem:[%s956 + $0x8] sm:$0x1]
      %v960 = vld [vmem:[%s540] sm:$0xf]
      %v961 = vld [vmem:[%s540 + $0x4] sm:$0xf]
      %v962 = vld [vmem:[%s540 + $0x8] sm:$0xf]
      %v963 = vld [vmem:[%s540 + $0xc] sm:$0xf]
      %v966 = vunpack.c.l.b16 %v957
      %v967 = vunpack.c.l.b16 %v958
      %v968 = vpack.c.b16 %v967, %v966
      %v973 = vunpack.c.l.b16 %v960
      %v974 = vunpack.c.l.b16 %v961
      %v975 = vunpack.c.l.b16 %v962
      %v976 = vunpack.c.l.b16 %v963
      %v977 = vpack.c.b16 %v974, %v973
      %v978 = vpack.c.b16 %v976, %v975
      %v982 = vsel %vm310, %v968, 0
      %984 = vmatpush.bf16.msra.mxu0 0
      %985 = vmatpush.bf16.msra.mxu0 0
      %986 = vmatpush.bf16.msra.mxu0 0
      %987 = vmatpush.bf16.msra.mxu0 0
      %988 = vmatpush.bf16.msra.mxu0 0
      %989 = vmatpush.bf16.msra.mxu0 0
      %990 = vmatpush.bf16.msra.mxu0 %v978
      %991 = vmatpush.bf16.msra.mxu0 %v977
      %992 = vmatmul.bf16.gmra.mxu0 %v982
      %v993 = vpop.f32.mrf.mxu0
      %v994 = vadd.f32 0.0, %v993
      %v995 = vpop.f32.mrf.mxu0
      %v996 = vadd.f32 0.0, %v995
      %997 = vdwg.mxu0
      %v998 = vadd.f32 %v951, %v994
      %v999 = vadd.f32 %v952, %v996
      %v1000 = vld [vmem:[%s581] sm:$0xf]
      %v1001 = vld [vmem:[%s581 + $0x4] sm:$0xf]
      %v1002 = vld [vmem:[%s581 + $0x8] sm:$0xf]
      %v1003 = vld [vmem:[%s581 + $0xc] sm:$0xf]
      %v1005 = vunpack.c.l.b16 %v959
      %v1006 = vpack.c.b16 %v1005, %v1005
      %v1007 = vshrl.u32 %v968, 16
      %v1009 = vshll.u32 %v968, 16
      %v1011 = vrot.slane %v1009, 1
      %v1012 = vor.u32 %v1007, %v1011
      %v1014 = vshll.u32 %v1006, 16
      %v1016 = vrot.slane %v1014, 1
      %v1017 = vsel %vm285, %v1012, %v1016
      %v1022 = vunpack.c.l.b16 %v1000
      %v1023 = vunpack.c.l.b16 %v1001
      %v1024 = vunpack.c.l.b16 %v1002
      %v1025 = vunpack.c.l.b16 %v1003
      %v1026 = vpack.c.b16 %v1023, %v1022
      %v1027 = vpack.c.b16 %v1025, %v1024
      %v1031 = vsel %vm310, %v1017, 0
      %1033 = vmatpush.bf16.msra.mxu0 0
      %1034 = vmatpush.bf16.msra.mxu0 0
      %1035 = vmatpush.bf16.msra.mxu0 0
      %1036 = vmatpush.bf16.msra.mxu0 0
      %1037 = vmatpush.bf16.msra.mxu0 0
      %1038 = vmatpush.bf16.msra.mxu0 0
      %1039 = vmatpush.bf16.msra.mxu0 %v1027
      %1040 = vmatpush.bf16.msra.mxu0 %v1026
      %1041 = vmatmul.bf16.gmra.mxu0 %v1031
      %v1042 = vpop.f32.mrf.mxu0
      %v1043 = vadd.f32 0.0, %v1042
      %v1044 = vpop.f32.mrf.mxu0
      %v1045 = vadd.f32 0.0, %v1044
      %1046 = vdwg.mxu0
      %v1047 = vadd.f32 %v998, %v1043
      %v1048 = vadd.f32 %v999, %v1045
      %v1049 = vld [vmem:[%s631] sm:$0xf]
      %v1050 = vld [vmem:[%s631 + $0x4] sm:$0xf]
      %v1051 = vld [vmem:[%s631 + $0x8] sm:$0xf]
      %v1052 = vld [vmem:[%s631 + $0xc] sm:$0xf]
      %v1053 = vrot.slane %v968, 1
      %v1054 = vrot.slane %v1006, 1
      %v1055 = vsel %vm361, %v1053, %v1054
      %v1060 = vunpack.c.l.b16 %v1049
      %v1061 = vunpack.c.l.b16 %v1050
      %v1062 = vunpack.c.l.b16 %v1051
      %v1063 = vunpack.c.l.b16 %v1052
      %v1064 = vpack.c.b16 %v1061, %v1060
      %v1065 = vpack.c.b16 %v1063, %v1062
      %v1069 = vsel %vm310, %v1055, 0
      %1071 = vmatpush.bf16.msra.mxu0 0
      %1072 = vmatpush.bf16.msra.mxu0 0
      %1073 = vmatpush.bf16.msra.mxu0 0
      %1074 = vmatpush.bf16.msra.mxu0 0
      %1075 = vmatpush.bf16.msra.mxu0 0
      %1076 = vmatpush.bf16.msra.mxu0 0
      %1077 = vmatpush.bf16.msra.mxu0 %v1065
      %1078 = vmatpush.bf16.msra.mxu0 %v1064
      %1079 = vmatmul.bf16.gmra.mxu0 %v1069
      %v1080 = vpop.f32.mrf.mxu0
      %v1081 = vadd.f32 0.0, %v1080
      %v1082 = vpop.f32.mrf.mxu0
      %v1083 = vadd.f32 0.0, %v1082
      %1084 = vdwg.mxu0
      %v1085 = vadd.f32 %v1047, %v1081
      %v1086 = vadd.f32 %v1048, %v1083
      %v1087 = vpack.c.bf16 %v1085, %v1085
      %v1088 = vpack.c.bf16 %v1086, %v1086
      %s1089 = scalar_lea.vmem %s244, 8
      %1090 = vst.msk [vmem:[%s1089] sm:$0xf] %vm672, %v1087
      %1091 = vst.msk [vmem:[%s1089 + $0x4] sm:$0xf] %vm672, %v1088
      %v1092 = vsel %vm310, %v1085, 0.0
      %v1093 = vsel %vm310, %v1086, 0.0
      %v1094 = vadd.f32 %v1092, %v1093
      %v1095 = vrot.slane %v1094, 4
      %v1096 = vadd.f32 %v1094, %v1095
      %v1097 = vrot.slane %v1096, 2
      %v1098 = vadd.f32 %v1096, %v1097
      %v1099 = vrot.slane %v1098, 1
      %v1100 = vadd.f32 %v1098, %v1099
      %v1101 = vadd.f32 %v684, %v1100
      %v1102 = vmul.f32 %v1085, %v1085
      %v1103 = vmul.f32 %v1086, %v1086
      %v1104 = vsel %vm310, %v1102, 0.0
      %v1105 = vsel %vm310, %v1103, 0.0
      %v1106 = vadd.f32 %v1104, %v1105
      %v1107 = vrot.slane %v1106, 4
      %v1108 = vadd.f32 %v1106, %v1107
      %v1109 = vrot.slane %v1108, 2
      %v1110 = vadd.f32 %v1108, %v1109
      %v1111 = vrot.slane %v1110, 1
      %v1112 = vadd.f32 %v1110, %v1111
      %v1113 = vadd.f32 %v696, %v1112
      %v1114 = vld [vmem:[%s536] sm:$0xf]
      %v1115 = vld [vmem:[%s536 + $0x4] sm:$0xf]
      %v1116 = vld [vmem:[%s536 + $0x8] sm:$0x1]
      %v1117 = vld [vmem:[%s1] sm:$0xf]
      %v1118 = vld [vmem:[%s1 + $0x4] sm:$0xf]
      %v1119 = vld [vmem:[%s1 + $0x8] sm:$0xf]
      %v1120 = vld [vmem:[%s1 + $0xc] sm:$0xf]
      %v1121 = vld [vmem:[%s272] sm:$0xf]
      %v1122 = vld [vmem:[%s272 + $0x4] sm:$0xf]
      %v1123 = vld [vmem:[%s272 + $0x8] sm:$0xf]
      %v1124 = vld [vmem:[%s272 + $0xc] sm:$0xf]
      %v1128 = vunpack.c.l.b16 %v1114
      %v1129 = vunpack.c.l.b16 %v1115
      %v1130 = vunpack.c.l.b16 %v1116
      %v1131 = vpack.c.b16 %v1129, %v1128
      %v1132 = vpack.c.b16 %v1130, %v1130
      %v1134 = vshrl.u32 %v1131, 16
      %v1136 = vshll.u32 %v1131, 16
      %v1138 = vrot.slane %v1136, 1
      %v1139 = vor.u32 %v1134, %v1138
      %v1141 = vshll.u32 %v1132, 16
      %v1143 = vrot.slane %v1141, 1
      %v1144 = vsel %vm285, %v1139, %v1143
      %v1149 = vunpack.c.l.b16 %v1121
      %v1150 = vunpack.c.l.b16 %v1122
      %v1151 = vunpack.c.l.b16 %v1123
      %v1152 = vunpack.c.l.b16 %v1124
      %v1153 = vpack.c.b16 %v1150, %v1149
      %v1154 = vpack.c.b16 %v1152, %v1151
      %v1158 = vsel %vm310, %v1144, 0
      %1160 = vmatpush.bf16.msra.mxu0 0
      %1161 = vmatpush.bf16.msra.mxu0 0
      %1162 = vmatpush.bf16.msra.mxu0 0
      %1163 = vmatpush.bf16.msra.mxu0 0
      %1164 = vmatpush.bf16.msra.mxu0 0
      %1165 = vmatpush.bf16.msra.mxu0 0
      %1166 = vmatpush.bf16.msra.mxu0 %v1154
      %1167 = vmatpush.bf16.msra.mxu0 %v1153
      %1168 = vmatmul.bf16.gmra.mxu0 %v1158
      %v1169 = vpop.f32.mrf.mxu0
      %v1170 = vadd.f32 0.0, %v1169
      %v1171 = vpop.f32.mrf.mxu0
      %v1172 = vadd.f32 0.0, %v1171
      %1173 = vdwg.mxu0
      %v1178 = vunpack.c.l.b16 %v1117
      %v1179 = vunpack.c.l.b16 %v1118
      %v1180 = vunpack.c.l.b16 %v1119
      %v1181 = vunpack.c.l.b16 %v1120
      %v1182 = vpack.c.b16 %v1179, %v1178
      %v1183 = vpack.c.b16 %v1181, %v1180
      %v1186 = vsel %vm310, %v1131, 0
      %1188 = vmatpush.bf16.msra.mxu0 0
      %1189 = vmatpush.bf16.msra.mxu0 0
      %1190 = vmatpush.bf16.msra.mxu0 0
      %1191 = vmatpush.bf16.msra.mxu0 0
      %1192 = vmatpush.bf16.msra.mxu0 0
      %1193 = vmatpush.bf16.msra.mxu0 0
      %1194 = vmatpush.bf16.msra.mxu0 %v1183
      %1195 = vmatpush.bf16.msra.mxu0 %v1182
      %1196 = vmatmul.bf16.gmra.mxu0 %v1186
      %v1197 = vpop.f32.mrf.mxu0
      %v1198 = vadd.f32 %v1170, %v1197
      %v1199 = vpop.f32.mrf.mxu0
      %v1200 = vadd.f32 %v1172, %v1199
      %1201 = vdwg.mxu0
      %v1202 = vld [vmem:[%s356] sm:$0xf]
      %v1203 = vld [vmem:[%s356 + $0x4] sm:$0xf]
      %v1204 = vld [vmem:[%s356 + $0x8] sm:$0xf]
      %v1205 = vld [vmem:[%s356 + $0xc] sm:$0xf]
      %v1206 = vrot.slane %v1131, 1
      %v1207 = vrot.slane %v1132, 1
      %v1208 = vsel %vm361, %v1206, %v1207
      %v1213 = vunpack.c.l.b16 %v1202
      %v1214 = vunpack.c.l.b16 %v1203
      %v1215 = vunpack.c.l.b16 %v1204
      %v1216 = vunpack.c.l.b16 %v1205
      %v1217 = vpack.c.b16 %v1214, %v1213
      %v1218 = vpack.c.b16 %v1216, %v1215
      %v1222 = vsel %vm310, %v1208, 0
      %1224 = vmatpush.bf16.msra.mxu0 0
      %1225 = vmatpush.bf16.msra.mxu0 0
      %1226 = vmatpush.bf16.msra.mxu0 0
      %1227 = vmatpush.bf16.msra.mxu0 0
      %1228 = vmatpush.bf16.msra.mxu0 0
      %1229 = vmatpush.bf16.msra.mxu0 0
      %1230 = vmatpush.bf16.msra.mxu0 %v1218
      %1231 = vmatpush.bf16.msra.mxu0 %v1217
      %1232 = vmatmul.bf16.gmra.mxu0 %v1222
      %v1233 = vpop.f32.mrf.mxu0
      %v1234 = vadd.f32 0.0, %v1233
      %v1235 = vpop.f32.mrf.mxu0
      %v1236 = vadd.f32 0.0, %v1235
      %1237 = vdwg.mxu0
      %v1238 = vadd.f32 %v1198, %v1234
      %v1239 = vadd.f32 %v1200, %v1236
      %v1240 = vld [vmem:[%s956] sm:$0xf]
      %v1241 = vld [vmem:[%s956 + $0x4] sm:$0xf]
      %v1242 = vld [vmem:[%s956 + $0x8] sm:$0x1]
      %v1243 = vld [vmem:[%s403] sm:$0xf]
      %v1244 = vld [vmem:[%s403 + $0x4] sm:$0xf]
      %v1245 = vld [vmem:[%s403 + $0x8] sm:$0xf]
      %v1246 = vld [vmem:[%s403 + $0xc] sm:$0xf]
      %v1249 = vunpack.c.l.b16 %v1240
      %v1250 = vunpack.c.l.b16 %v1241
      %v1251 = vpack.c.b16 %v1250, %v1249
      %v1256 = vunpack.c.l.b16 %v1243
      %v1257 = vunpack.c.l.b16 %v1244
      %v1258 = vunpack.c.l.b16 %v1245
      %v1259 = vunpack.c.l.b16 %v1246
      %v1260 = vpack.c.b16 %v1257, %v1256
      %v1261 = vpack.c.b16 %v1259, %v1258
      %v1265 = vsel %vm310, %v1251, 0
      %1267 = vmatpush.bf16.msra.mxu0 0
      %1268 = vmatpush.bf16.msra.mxu0 0
      %1269 = vmatpush.bf16.msra.mxu0 0
      %1270 = vmatpush.bf16.msra.mxu0 0
      %1271 = vmatpush.bf16.msra.mxu0 0
      %1272 = vmatpush.bf16.msra.mxu0 0
      %1273 = vmatpush.bf16.msra.mxu0 %v1261
      %1274 = vmatpush.bf16.msra.mxu0 %v1260
      %1275 = vmatmul.bf16.gmra.mxu0 %v1265
      %v1276 = vpop.f32.mrf.mxu0
      %v1277 = vadd.f32 0.0, %v1276
      %v1278 = vpop.f32.mrf.mxu0
      %v1279 = vadd.f32 0.0, %v1278
      %1280 = vdwg.mxu0
      %v1281 = vadd.f32 %v1238, %v1277
      %v1282 = vadd.f32 %v1239, %v1279
      %v1283 = vld [vmem:[%s444] sm:$0xf]
      %v1284 = vld [vmem:[%s444 + $0x4] sm:$0xf]
      %v1285 = vld [vmem:[%s444 + $0x8] sm:$0xf]
      %v1286 = vld [vmem:[%s444 + $0xc] sm:$0xf]
      %v1288 = vunpack.c.l.b16 %v1242
      %v1289 = vpack.c.b16 %v1288, %v1288
      %v1290 = vshrl.u32 %v1251, 16
      %v1292 = vshll.u32 %v1251, 16
      %v1294 = vrot.slane %v1292, 1
      %v1295 = vor.u32 %v1290, %v1294
      %v1297 = vshll.u32 %v1289, 16
      %v1299 = vrot.slane %v1297, 1
      %v1300 = vsel %vm285, %v1295, %v1299
      %v1305 = vunpack.c.l.b16 %v1283
      %v1306 = vunpack.c.l.b16 %v1284
      %v1307 = vunpack.c.l.b16 %v1285
      %v1308 = vunpack.c.l.b16 %v1286
      %v1309 = vpack.c.b16 %v1306, %v1305
      %v1310 = vpack.c.b16 %v1308, %v1307
      %v1314 = vsel %vm310, %v1300, 0
      %1316 = vmatpush.bf16.msra.mxu0 0
      %1317 = vmatpush.bf16.msra.mxu0 0
      %1318 = vmatpush.bf16.msra.mxu0 0
      %1319 = vmatpush.bf16.msra.mxu0 0
      %1320 = vmatpush.bf16.msra.mxu0 0
      %1321 = vmatpush.bf16.msra.mxu0 0
      %1322 = vmatpush.bf16.msra.mxu0 %v1310
      %1323 = vmatpush.bf16.msra.mxu0 %v1309
      %1324 = vmatmul.bf16.gmra.mxu0 %v1314
      %v1325 = vpop.f32.mrf.mxu0
      %v1326 = vadd.f32 0.0, %v1325
      %v1327 = vpop.f32.mrf.mxu0
      %v1328 = vadd.f32 0.0, %v1327
      %1329 = vdwg.mxu0
      %v1330 = vadd.f32 %v1281, %v1326
      %v1331 = vadd.f32 %v1282, %v1328
      %v1332 = vld [vmem:[%s494] sm:$0xf]
      %v1333 = vld [vmem:[%s494 + $0x4] sm:$0xf]
      %v1334 = vld [vmem:[%s494 + $0x8] sm:$0xf]
      %v1335 = vld [vmem:[%s494 + $0xc] sm:$0xf]
      %v1336 = vrot.slane %v1251, 1
      %v1337 = vrot.slane %v1289, 1
      %v1338 = vsel %vm361, %v1336, %v1337
      %v1343 = vunpack.c.l.b16 %v1332
      %v1344 = vunpack.c.l.b16 %v1333
      %v1345 = vunpack.c.l.b16 %v1334
      %v1346 = vunpack.c.l.b16 %v1335
      %v1347 = vpack.c.b16 %v1344, %v1343
      %v1348 = vpack.c.b16 %v1346, %v1345
      %v1352 = vsel %vm310, %v1338, 0
      %1354 = vmatpush.bf16.msra.mxu0 0
      %1355 = vmatpush.bf16.msra.mxu0 0
      %1356 = vmatpush.bf16.msra.mxu0 0
      %1357 = vmatpush.bf16.msra.mxu0 0
      %1358 = vmatpush.bf16.msra.mxu0 0
      %1359 = vmatpush.bf16.msra.mxu0 0
      %1360 = vmatpush.bf16.msra.mxu0 %v1348
      %1361 = vmatpush.bf16.msra.mxu0 %v1347
      %1362 = vmatmul.bf16.gmra.mxu0 %v1352
      %v1363 = vpop.f32.mrf.mxu0
      %v1364 = vadd.f32 0.0, %v1363
      %v1365 = vpop.f32.mrf.mxu0
      %v1366 = vadd.f32 0.0, %v1365
      %1367 = vdwg.mxu0
      %v1368 = vadd.f32 %v1330, %v1364
      %v1369 = vadd.f32 %v1331, %v1366
      %s1370 = sadd.s32 %s261, 4
      %s1371 = smul.u32 %s1370, 3
      %s1372 = smul.addr %s1371, 4
      %s1373 = scalar_lea.vmem %s234, %s1372
      %v1374 = vld [vmem:[%s1373] sm:$0xf]
      %v1375 = vld [vmem:[%s1373 + $0x4] sm:$0xf]
      %v1376 = vld [vmem:[%s1373 + $0x8] sm:$0x1]
      %v1377 = vld [vmem:[%s540] sm:$0xf]
      %v1378 = vld [vmem:[%s540 + $0x4] sm:$0xf]
      %v1379 = vld [vmem:[%s540 + $0x8] sm:$0xf]
      %v1380 = vld [vmem:[%s540 + $0xc] sm:$0xf]
      %v1383 = vunpack.c.l.b16 %v1374
      %v1384 = vunpack.c.l.b16 %v1375
      %v1385 = vpack.c.b16 %v1384, %v1383
      %v1390 = vunpack.c.l.b16 %v1377
      %v1391 = vunpack.c.l.b16 %v1378
      %v1392 = vunpack.c.l.b16 %v1379
      %v1393 = vunpack.c.l.b16 %v1380
      %v1394 = vpack.c.b16 %v1391, %v1390
      %v1395 = vpack.c.b16 %v1393, %v1392
      %v1399 = vsel %vm310, %v1385, 0
      %1401 = vmatpush.bf16.msra.mxu0 0
      %1402 = vmatpush.bf16.msra.mxu0 0
      %1403 = vmatpush.bf16.msra.mxu0 0
      %1404 = vmatpush.bf16.msra.mxu0 0
      %1405 = vmatpush.bf16.msra.mxu0 0
      %1406 = vmatpush.bf16.msra.mxu0 0
      %1407 = vmatpush.bf16.msra.mxu0 %v1395
      %1408 = vmatpush.bf16.msra.mxu0 %v1394
      %1409 = vmatmul.bf16.gmra.mxu0 %v1399
      %v1410 = vpop.f32.mrf.mxu0
      %v1411 = vadd.f32 0.0, %v1410
      %v1412 = vpop.f32.mrf.mxu0
      %v1413 = vadd.f32 0.0, %v1412
      %1414 = vdwg.mxu0
      %v1415 = vadd.f32 %v1368, %v1411
      %v1416 = vadd.f32 %v1369, %v1413
      %v1417 = vld [vmem:[%s581] sm:$0xf]
      %v1418 = vld [vmem:[%s581 + $0x4] sm:$0xf]
      %v1419 = vld [vmem:[%s581 + $0x8] sm:$0xf]
      %v1420 = vld [vmem:[%s581 + $0xc] sm:$0xf]
      %v1422 = vunpack.c.l.b16 %v1376
      %v1423 = vpack.c.b16 %v1422, %v1422
      %v1424 = vshrl.u32 %v1385, 16
      %v1426 = vshll.u32 %v1385, 16
      %v1428 = vrot.slane %v1426, 1
      %v1429 = vor.u32 %v1424, %v1428
      %v1431 = vshll.u32 %v1423, 16
      %v1433 = vrot.slane %v1431, 1
      %v1434 = vsel %vm285, %v1429, %v1433
      %v1439 = vunpack.c.l.b16 %v1417
      %v1440 = vunpack.c.l.b16 %v1418
      %v1441 = vunpack.c.l.b16 %v1419
      %v1442 = vunpack.c.l.b16 %v1420
      %v1443 = vpack.c.b16 %v1440, %v1439
      %v1444 = vpack.c.b16 %v1442, %v1441
      %v1448 = vsel %vm310, %v1434, 0
      %1450 = vmatpush.bf16.msra.mxu0 0
      %1451 = vmatpush.bf16.msra.mxu0 0
      %1452 = vmatpush.bf16.msra.mxu0 0
      %1453 = vmatpush.bf16.msra.mxu0 0
      %1454 = vmatpush.bf16.msra.mxu0 0
      %1455 = vmatpush.bf16.msra.mxu0 0
      %1456 = vmatpush.bf16.msra.mxu0 %v1444
      %1457 = vmatpush.bf16.msra.mxu0 %v1443
      %1458 = vmatmul.bf16.gmra.mxu0 %v1448
      %v1459 = vpop.f32.mrf.mxu0
      %v1460 = vadd.f32 0.0, %v1459
      %v1461 = vpop.f32.mrf.mxu0
      %v1462 = vadd.f32 0.0, %v1461
      %1463 = vdwg.mxu0
      %v1464 = vadd.f32 %v1415, %v1460
      %v1465 = vadd.f32 %v1416, %v1462
      %v1466 = vld [vmem:[%s631] sm:$0xf]
      %v1467 = vld [vmem:[%s631 + $0x4] sm:$0xf]
      %v1468 = vld [vmem:[%s631 + $0x8] sm:$0xf]
      %v1469 = vld [vmem:[%s631 + $0xc] sm:$0xf]
      %v1470 = vrot.slane %v1385, 1
      %v1471 = vrot.slane %v1423, 1
      %v1472 = vsel %vm361, %v1470, %v1471
      %v1477 = vunpack.c.l.b16 %v1466
      %v1478 = vunpack.c.l.b16 %v1467
      %v1479 = vunpack.c.l.b16 %v1468
      %v1480 = vunpack.c.l.b16 %v1469
      %v1481 = vpack.c.b16 %v1478, %v1477
      %v1482 = vpack.c.b16 %v1480, %v1479
      %v1486 = vsel %vm310, %v1472, 0
      %1488 = vmatpush.bf16.msra.mxu0 0
      %1489 = vmatpush.bf16.msra.mxu0 0
      %1490 = vmatpush.bf16.msra.mxu0 0
      %1491 = vmatpush.bf16.msra.mxu0 0
      %1492 = vmatpush.bf16.msra.mxu0 0
      %1493 = vmatpush.bf16.msra.mxu0 0
      %1494 = vmatpush.bf16.msra.mxu0 %v1482
      %1495 = vmatpush.bf16.msra.mxu0 %v1481
      %1496 = vmatmul.bf16.gmra.mxu0 %v1486
      %v1497 = vpop.f32.mrf.mxu0
      %v1498 = vadd.f32 0.0, %v1497
      %v1499 = vpop.f32.mrf.mxu0
      %v1500 = vadd.f32 0.0, %v1499
      %1501 = vdwg.mxu0
      %v1502 = vadd.f32 %v1464, %v1498
      %v1503 = vadd.f32 %v1465, %v1500
      %v1504 = vpack.c.bf16 %v1502, %v1502
      %v1505 = vpack.c.bf16 %v1503, %v1503
      %s1506 = scalar_lea.vmem %s244, 16
      %1507 = vst.msk [vmem:[%s1506] sm:$0xf] %vm672, %v1504
      %1508 = vst.msk [vmem:[%s1506 + $0x4] sm:$0xf] %vm672, %v1505
      %v1509 = vsel %vm310, %v1502, 0.0
      %v1510 = vsel %vm310, %v1503, 0.0
      %v1511 = vadd.f32 %v1509, %v1510
      %v1512 = vrot.slane %v1511, 4
      %v1513 = vadd.f32 %v1511, %v1512
      %v1514 = vrot.slane %v1513, 2
      %v1515 = vadd.f32 %v1513, %v1514
      %v1516 = vrot.slane %v1515, 1
      %v1517 = vadd.f32 %v1515, %v1516
      %v1518 = vadd.f32 %v1101, %v1517
      %v1519 = vmul.f32 %v1502, %v1502
      %v1520 = vmul.f32 %v1503, %v1503
      %v1521 = vsel %vm310, %v1519, 0.0
      %v1522 = vsel %vm310, %v1520, 0.0
      %v1523 = vadd.f32 %v1521, %v1522
      %v1524 = vrot.slane %v1523, 4
      %v1525 = vadd.f32 %v1523, %v1524
      %v1526 = vrot.slane %v1525, 2
      %v1527 = vadd.f32 %v1525, %v1526
      %v1528 = vrot.slane %v1527, 1
      %v1529 = vadd.f32 %v1527, %v1528
      %v1530 = vadd.f32 %v1113, %v1529
      %v1531 = vld [vmem:[%s956] sm:$0xf]
      %v1532 = vld [vmem:[%s956 + $0x4] sm:$0xf]
      %v1533 = vld [vmem:[%s956 + $0x8] sm:$0x1]
      %v1534 = vld [vmem:[%s1] sm:$0xf]
      %v1535 = vld [vmem:[%s1 + $0x4] sm:$0xf]
      %v1536 = vld [vmem:[%s1 + $0x8] sm:$0xf]
      %v1537 = vld [vmem:[%s1 + $0xc] sm:$0xf]
      %v1538 = vld [vmem:[%s272] sm:$0xf]
      %v1539 = vld [vmem:[%s272 + $0x4] sm:$0xf]
      %v1540 = vld [vmem:[%s272 + $0x8] sm:$0xf]
      %v1541 = vld [vmem:[%s272 + $0xc] sm:$0xf]
      %v1545 = vunpack.c.l.b16 %v1531
      %v1546 = vunpack.c.l.b16 %v1532
      %v1547 = vunpack.c.l.b16 %v1533
      %v1548 = vpack.c.b16 %v1546, %v1545
      %v1549 = vpack.c.b16 %v1547, %v1547
      %v1551 = vshrl.u32 %v1548, 16
      %v1553 = vshll.u32 %v1548, 16
      %v1555 = vrot.slane %v1553, 1
      %v1556 = vor.u32 %v1551, %v1555
      %v1558 = vshll.u32 %v1549, 16
      %v1560 = vrot.slane %v1558, 1
      %v1561 = vsel %vm285, %v1556, %v1560
      %v1566 = vunpack.c.l.b16 %v1538
      %v1567 = vunpack.c.l.b16 %v1539
      %v1568 = vunpack.c.l.b16 %v1540
      %v1569 = vunpack.c.l.b16 %v1541
      %v1570 = vpack.c.b16 %v1567, %v1566
      %v1571 = vpack.c.b16 %v1569, %v1568
      %v1575 = vsel %vm310, %v1561, 0
      %1577 = vmatpush.bf16.msra.mxu0 0
      %1578 = vmatpush.bf16.msra.mxu0 0
      %1579 = vmatpush.bf16.msra.mxu0 0
      %1580 = vmatpush.bf16.msra.mxu0 0
      %1581 = vmatpush.bf16.msra.mxu0 0
      %1582 = vmatpush.bf16.msra.mxu0 0
      %1583 = vmatpush.bf16.msra.mxu0 %v1571
      %1584 = vmatpush.bf16.msra.mxu0 %v1570
      %1585 = vmatmul.bf16.gmra.mxu0 %v1575
      %v1586 = vpop.f32.mrf.mxu0
      %v1587 = vadd.f32 0.0, %v1586
      %v1588 = vpop.f32.mrf.mxu0
      %v1589 = vadd.f32 0.0, %v1588
      %1590 = vdwg.mxu0
      %v1595 = vunpack.c.l.b16 %v1534
      %v1596 = vunpack.c.l.b16 %v1535
      %v1597 = vunpack.c.l.b16 %v1536
      %v1598 = vunpack.c.l.b16 %v1537
      %v1599 = vpack.c.b16 %v1596, %v1595
      %v1600 = vpack.c.b16 %v1598, %v1597
      %v1603 = vsel %vm310, %v1548, 0
      %1605 = vmatpush.bf16.msra.mxu0 0
      %1606 = vmatpush.bf16.msra.mxu0 0
      %1607 = vmatpush.bf16.msra.mxu0 0
      %1608 = vmatpush.bf16.msra.mxu0 0
      %1609 = vmatpush.bf16.msra.mxu0 0
      %1610 = vmatpush.bf16.msra.mxu0 0
      %1611 = vmatpush.bf16.msra.mxu0 %v1600
      %1612 = vmatpush.bf16.msra.mxu0 %v1599
      %1613 = vmatmul.bf16.gmra.mxu0 %v1603
      %v1614 = vpop.f32.mrf.mxu0
      %v1615 = vadd.f32 %v1587, %v1614
      %v1616 = vpop.f32.mrf.mxu0
      %v1617 = vadd.f32 %v1589, %v1616
      %1618 = vdwg.mxu0
      %v1619 = vld [vmem:[%s356] sm:$0xf]
      %v1620 = vld [vmem:[%s356 + $0x4] sm:$0xf]
      %v1621 = vld [vmem:[%s356 + $0x8] sm:$0xf]
      %v1622 = vld [vmem:[%s356 + $0xc] sm:$0xf]
      %v1623 = vrot.slane %v1548, 1
      %v1624 = vrot.slane %v1549, 1
      %v1625 = vsel %vm361, %v1623, %v1624
      %v1630 = vunpack.c.l.b16 %v1619
      %v1631 = vunpack.c.l.b16 %v1620
      %v1632 = vunpack.c.l.b16 %v1621
      %v1633 = vunpack.c.l.b16 %v1622
      %v1634 = vpack.c.b16 %v1631, %v1630
      %v1635 = vpack.c.b16 %v1633, %v1632
      %v1639 = vsel %vm310, %v1625, 0
      %1641 = vmatpush.bf16.msra.mxu0 0
      %1642 = vmatpush.bf16.msra.mxu0 0
      %1643 = vmatpush.bf16.msra.mxu0 0
      %1644 = vmatpush.bf16.msra.mxu0 0
      %1645 = vmatpush.bf16.msra.mxu0 0
      %1646 = vmatpush.bf16.msra.mxu0 0
      %1647 = vmatpush.bf16.msra.mxu0 %v1635
      %1648 = vmatpush.bf16.msra.mxu0 %v1634
      %1649 = vmatmul.bf16.gmra.mxu0 %v1639
      %v1650 = vpop.f32.mrf.mxu0
      %v1651 = vadd.f32 0.0, %v1650
      %v1652 = vpop.f32.mrf.mxu0
      %v1653 = vadd.f32 0.0, %v1652
      %1654 = vdwg.mxu0
      %v1655 = vadd.f32 %v1615, %v1651
      %v1656 = vadd.f32 %v1617, %v1653
      %v1657 = vld [vmem:[%s1373] sm:$0xf]
      %v1658 = vld [vmem:[%s1373 + $0x4] sm:$0xf]
      %v1659 = vld [vmem:[%s1373 + $0x8] sm:$0x1]
      %v1660 = vld [vmem:[%s403] sm:$0xf]
      %v1661 = vld [vmem:[%s403 + $0x4] sm:$0xf]
      %v1662 = vld [vmem:[%s403 + $0x8] sm:$0xf]
      %v1663 = vld [vmem:[%s403 + $0xc] sm:$0xf]
      %v1666 = vunpack.c.l.b16 %v1657
      %v1667 = vunpack.c.l.b16 %v1658
      %v1668 = vpack.c.b16 %v1667, %v1666
      %v1673 = vunpack.c.l.b16 %v1660
      %v1674 = vunpack.c.l.b16 %v1661
      %v1675 = vunpack.c.l.b16 %v1662
      %v1676 = vunpack.c.l.b16 %v1663
      %v1677 = vpack.c.b16 %v1674, %v1673
      %v1678 = vpack.c.b16 %v1676, %v1675
      %v1682 = vsel %vm310, %v1668, 0
      %1684 = vmatpush.bf16.msra.mxu0 0
      %1685 = vmatpush.bf16.msra.mxu0 0
      %1686 = vmatpush.bf16.msra.mxu0 0
      %1687 = vmatpush.bf16.msra.mxu0 0
      %1688 = vmatpush.bf16.msra.mxu0 0
      %1689 = vmatpush.bf16.msra.mxu0 0
      %1690 = vmatpush.bf16.msra.mxu0 %v1678
      %1691 = vmatpush.bf16.msra.mxu0 %v1677
      %1692 = vmatmul.bf16.gmra.mxu0 %v1682
      %v1693 = vpop.f32.mrf.mxu0
      %v1694 = vadd.f32 0.0, %v1693
      %v1695 = vpop.f32.mrf.mxu0
      %v1696 = vadd.f32 0.0, %v1695
      %1697 = vdwg.mxu0
      %v1698 = vadd.f32 %v1655, %v1694
      %v1699 = vadd.f32 %v1656, %v1696
      %v1700 = vld [vmem:[%s444] sm:$0xf]
      %v1701 = vld [vmem:[%s444 + $0x4] sm:$0xf]
      %v1702 = vld [vmem:[%s444 + $0x8] sm:$0xf]
      %v1703 = vld [vmem:[%s444 + $0xc] sm:$0xf]
      %v1705 = vunpack.c.l.b16 %v1659
      %v1706 = vpack.c.b16 %v1705, %v1705
      %v1707 = vshrl.u32 %v1668, 16
      %v1709 = vshll.u32 %v1668, 16
      %v1711 = vrot.slane %v1709, 1
      %v1712 = vor.u32 %v1707, %v1711
      %v1714 = vshll.u32 %v1706, 16
      %v1716 = vrot.slane %v1714, 1
      %v1717 = vsel %vm285, %v1712, %v1716
      %v1722 = vunpack.c.l.b16 %v1700
      %v1723 = vunpack.c.l.b16 %v1701
      %v1724 = vunpack.c.l.b16 %v1702
      %v1725 = vunpack.c.l.b16 %v1703
      %v1726 = vpack.c.b16 %v1723, %v1722
      %v1727 = vpack.c.b16 %v1725, %v1724
      %v1731 = vsel %vm310, %v1717, 0
      %1733 = vmatpush.bf16.msra.mxu0 0
      %1734 = vmatpush.bf16.msra.mxu0 0
      %1735 = vmatpush.bf16.msra.mxu0 0
      %1736 = vmatpush.bf16.msra.mxu0 0
      %1737 = vmatpush.bf16.msra.mxu0 0
      %1738 = vmatpush.bf16.msra.mxu0 0
      %1739 = vmatpush.bf16.msra.mxu0 %v1727
      %1740 = vmatpush.bf16.msra.mxu0 %v1726
      %1741 = vmatmul.bf16.gmra.mxu0 %v1731
      %v1742 = vpop.f32.mrf.mxu0
      %v1743 = vadd.f32 0.0, %v1742
      %v1744 = vpop.f32.mrf.mxu0
      %v1745 = vadd.f32 0.0, %v1744
      %1746 = vdwg.mxu0
      %v1747 = vadd.f32 %v1698, %v1743
      %v1748 = vadd.f32 %v1699, %v1745
      %v1749 = vld [vmem:[%s494] sm:$0xf]
      %v1750 = vld [vmem:[%s494 + $0x4] sm:$0xf]
      %v1751 = vld [vmem:[%s494 + $0x8] sm:$0xf]
      %v1752 = vld [vmem:[%s494 + $0xc] sm:$0xf]
      %v1753 = vrot.slane %v1668, 1
      %v1754 = vrot.slane %v1706, 1
      %v1755 = vsel %vm361, %v1753, %v1754
      %v1760 = vunpack.c.l.b16 %v1749
      %v1761 = vunpack.c.l.b16 %v1750
      %v1762 = vunpack.c.l.b16 %v1751
      %v1763 = vunpack.c.l.b16 %v1752
      %v1764 = vpack.c.b16 %v1761, %v1760
      %v1765 = vpack.c.b16 %v1763, %v1762
      %v1769 = vsel %vm310, %v1755, 0
      %1771 = vmatpush.bf16.msra.mxu0 0
      %1772 = vmatpush.bf16.msra.mxu0 0
      %1773 = vmatpush.bf16.msra.mxu0 0
      %1774 = vmatpush.bf16.msra.mxu0 0
      %1775 = vmatpush.bf16.msra.mxu0 0
      %1776 = vmatpush.bf16.msra.mxu0 0
      %1777 = vmatpush.bf16.msra.mxu0 %v1765
      %1778 = vmatpush.bf16.msra.mxu0 %v1764
      %1779 = vmatmul.bf16.gmra.mxu0 %v1769
      %v1780 = vpop.f32.mrf.mxu0
      %v1781 = vadd.f32 0.0, %v1780
      %v1782 = vpop.f32.mrf.mxu0
      %v1783 = vadd.f32 0.0, %v1782
      %1784 = vdwg.mxu0
      %v1785 = vadd.f32 %v1747, %v1781
      %v1786 = vadd.f32 %v1748, %v1783
      %s1787 = sadd.s32 %s261, 5
      %s1788 = smul.u32 %s1787, 3
      %s1789 = smul.addr %s1788, 4
      %s1790 = scalar_lea.vmem %s234, %s1789
      %v1791 = vld [vmem:[%s1790] sm:$0xf]
      %v1792 = vld [vmem:[%s1790 + $0x4] sm:$0xf]
      %v1793 = vld [vmem:[%s1790 + $0x8] sm:$0x1]
      %v1794 = vld [vmem:[%s540] sm:$0xf]
      %v1795 = vld [vmem:[%s540 + $0x4] sm:$0xf]
      %v1796 = vld [vmem:[%s540 + $0x8] sm:$0xf]
      %v1797 = vld [vmem:[%s540 + $0xc] sm:$0xf]
      %v1800 = vunpack.c.l.b16 %v1791
      %v1801 = vunpack.c.l.b16 %v1792
      %v1802 = vpack.c.b16 %v1801, %v1800
      %v1807 = vunpack.c.l.b16 %v1794
      %v1808 = vunpack.c.l.b16 %v1795
      %v1809 = vunpack.c.l.b16 %v1796
      %v1810 = vunpack.c.l.b16 %v1797
      %v1811 = vpack.c.b16 %v1808, %v1807
      %v1812 = vpack.c.b16 %v1810, %v1809
      %v1816 = vsel %vm310, %v1802, 0
      %1818 = vmatpush.bf16.msra.mxu0 0
      %1819 = vmatpush.bf16.msra.mxu0 0
      %1820 = vmatpush.bf16.msra.mxu0 0
      %1821 = vmatpush.bf16.msra.mxu0 0
      %1822 = vmatpush.bf16.msra.mxu0 0
      %1823 = vmatpush.bf16.msra.mxu0 0
      %1824 = vmatpush.bf16.msra.mxu0 %v1812
      %1825 = vmatpush.bf16.msra.mxu0 %v1811
      %1826 = vmatmul.bf16.gmra.mxu0 %v1816
      %v1827 = vpop.f32.mrf.mxu0
      %v1828 = vadd.f32 0.0, %v1827
      %v1829 = vpop.f32.mrf.mxu0
      %v1830 = vadd.f32 0.0, %v1829
      %1831 = vdwg.mxu0
      %v1832 = vadd.f32 %v1785, %v1828
      %v1833 = vadd.f32 %v1786, %v1830
      %v1834 = vld [vmem:[%s581] sm:$0xf]
      %v1835 = vld [vmem:[%s581 + $0x4] sm:$0xf]
      %v1836 = vld [vmem:[%s581 + $0x8] sm:$0xf]
      %v1837 = vld [vmem:[%s581 + $0xc] sm:$0xf]
      %v1839 = vunpack.c.l.b16 %v1793
      %v1840 = vpack.c.b16 %v1839, %v1839
      %v1841 = vshrl.u32 %v1802, 16
      %v1843 = vshll.u32 %v1802, 16
      %v1845 = vrot.slane %v1843, 1
      %v1846 = vor.u32 %v1841, %v1845
      %v1848 = vshll.u32 %v1840, 16
      %v1850 = vrot.slane %v1848, 1
      %v1851 = vsel %vm285, %v1846, %v1850
      %v1856 = vunpack.c.l.b16 %v1834
      %v1857 = vunpack.c.l.b16 %v1835
      %v1858 = vunpack.c.l.b16 %v1836
      %v1859 = vunpack.c.l.b16 %v1837
      %v1860 = vpack.c.b16 %v1857, %v1856
      %v1861 = vpack.c.b16 %v1859, %v1858
      %v1865 = vsel %vm310, %v1851, 0
      %1867 = vmatpush.bf16.msra.mxu0 0
      %1868 = vmatpush.bf16.msra.mxu0 0
      %1869 = vmatpush.bf16.msra.mxu0 0
      %1870 = vmatpush.bf16.msra.mxu0 0
      %1871 = vmatpush.bf16.msra.mxu0 0
      %1872 = vmatpush.bf16.msra.mxu0 0
      %1873 = vmatpush.bf16.msra.mxu0 %v1861
      %1874 = vmatpush.bf16.msra.mxu0 %v1860
      %1875 = vmatmul.bf16.gmra.mxu0 %v1865
      %v1876 = vpop.f32.mrf.mxu0
      %v1877 = vadd.f32 0.0, %v1876
      %v1878 = vpop.f32.mrf.mxu0
      %v1879 = vadd.f32 0.0, %v1878
      %1880 = vdwg.mxu0
      %v1881 = vadd.f32 %v1832, %v1877
      %v1882 = vadd.f32 %v1833, %v1879
      %v1883 = vld [vmem:[%s631] sm:$0xf]
      %v1884 = vld [vmem:[%s631 + $0x4] sm:$0xf]
      %v1885 = vld [vmem:[%s631 + $0x8] sm:$0xf]
      %v1886 = vld [vmem:[%s631 + $0xc] sm:$0xf]
      %v1887 = vrot.slane %v1802, 1
      %v1888 = vrot.slane %v1840, 1
      %v1889 = vsel %vm361, %v1887, %v1888
      %v1894 = vunpack.c.l.b16 %v1883
      %v1895 = vunpack.c.l.b16 %v1884
      %v1896 = vunpack.c.l.b16 %v1885
      %v1897 = vunpack.c.l.b16 %v1886
      %v1898 = vpack.c.b16 %v1895, %v1894
      %v1899 = vpack.c.b16 %v1897, %v1896
      %v1903 = vsel %vm310, %v1889, 0
      %1905 = vmatpush.bf16.msra.mxu0 0
      %1906 = vmatpush.bf16.msra.mxu0 0
      %1907 = vmatpush.bf16.msra.mxu0 0
      %1908 = vmatpush.bf16.msra.mxu0 0
      %1909 = vmatpush.bf16.msra.mxu0 0
      %1910 = vmatpush.bf16.msra.mxu0 0
      %1911 = vmatpush.bf16.msra.mxu0 %v1899
      %1912 = vmatpush.bf16.msra.mxu0 %v1898
      %1913 = vmatmul.bf16.gmra.mxu0 %v1903
      %v1914 = vpop.f32.mrf.mxu0
      %v1915 = vadd.f32 0.0, %v1914
      %v1916 = vpop.f32.mrf.mxu0
      %v1917 = vadd.f32 0.0, %v1916
      %1918 = vdwg.mxu0
      %v1919 = vadd.f32 %v1881, %v1915
      %v1920 = vadd.f32 %v1882, %v1917
      %v1921 = vpack.c.bf16 %v1919, %v1919
      %v1922 = vpack.c.bf16 %v1920, %v1920
      %s1923 = scalar_lea.vmem %s244, 24
      %1924 = vst.msk [vmem:[%s1923] sm:$0xf] %vm672, %v1921
      %1925 = vst.msk [vmem:[%s1923 + $0x4] sm:$0xf] %vm672, %v1922
      %v1926 = vsel %vm310, %v1919, 0.0
      %v1927 = vsel %vm310, %v1920, 0.0
      %v1928 = vadd.f32 %v1926, %v1927
      %v1929 = vrot.slane %v1928, 4
      %v1930 = vadd.f32 %v1928, %v1929
      %v1931 = vrot.slane %v1930, 2
      %v1932 = vadd.f32 %v1930, %v1931
      %v1933 = vrot.slane %v1932, 1
      %v1934 = vadd.f32 %v1932, %v1933
      %v1935 = vadd.f32 %v1518, %v1934
      %v1936 = vmul.f32 %v1919, %v1919
      %v1937 = vmul.f32 %v1920, %v1920
      %v1938 = vsel %vm310, %v1936, 0.0
      %v1939 = vsel %vm310, %v1937, 0.0
      %v1940 = vadd.f32 %v1938, %v1939
      %v1941 = vrot.slane %v1940, 4
      %v1942 = vadd.f32 %v1940, %v1941
      %v1943 = vrot.slane %v1942, 2
      %v1944 = vadd.f32 %v1942, %v1943
      %v1945 = vrot.slane %v1944, 1
      %v1946 = vadd.f32 %v1944, %v1945
      %v1947 = vadd.f32 %v1530, %v1946
      %v1948 = vld [vmem:[%s1373] sm:$0xf]
      %v1949 = vld [vmem:[%s1373 + $0x4] sm:$0xf]
      %v1950 = vld [vmem:[%s1373 + $0x8] sm:$0x1]
      %v1951 = vld [vmem:[%s1] sm:$0xf]
      %v1952 = vld [vmem:[%s1 + $0x4] sm:$0xf]
      %v1953 = vld [vmem:[%s1 + $0x8] sm:$0xf]
      %v1954 = vld [vmem:[%s1 + $0xc] sm:$0xf]
      %v1955 = vld [vmem:[%s272] sm:$0xf]
      %v1956 = vld [vmem:[%s272 + $0x4] sm:$0xf]
      %v1957 = vld [vmem:[%s272 + $0x8] sm:$0xf]
      %v1958 = vld [vmem:[%s272 + $0xc] sm:$0xf]
      %v1962 = vunpack.c.l.b16 %v1948
      %v1963 = vunpack.c.l.b16 %v1949
      %v1964 = vunpack.c.l.b16 %v1950
      %v1965 = vpack.c.b16 %v1963, %v1962
      %v1966 = vpack.c.b16 %v1964, %v1964
      %v1968 = vshrl.u32 %v1965, 16
      %v1970 = vshll.u32 %v1965, 16
      %v1972 = vrot.slane %v1970, 1
      %v1973 = vor.u32 %v1968, %v1972
      %v1975 = vshll.u32 %v1966, 16
      %v1977 = vrot.slane %v1975, 1
      %v1978 = vsel %vm285, %v1973, %v1977
      %v1983 = vunpack.c.l.b16 %v1955
      %v1984 = vunpack.c.l.b16 %v1956
      %v1985 = vunpack.c.l.b16 %v1957
      %v1986 = vunpack.c.l.b16 %v1958
      %v1987 = vpack.c.b16 %v1984, %v1983
      %v1988 = vpack.c.b16 %v1986, %v1985
      %v1992 = vsel %vm310, %v1978, 0
      %1994 = vmatpush.bf16.msra.mxu0 0
      %1995 = vmatpush.bf16.msra.mxu0 0
      %1996 = vmatpush.bf16.msra.mxu0 0
      %1997 = vmatpush.bf16.msra.mxu0 0
      %1998 = vmatpush.bf16.msra.mxu0 0
      %1999 = vmatpush.bf16.msra.mxu0 0
      %2000 = vmatpush.bf16.msra.mxu0 %v1988
      %2001 = vmatpush.bf16.msra.mxu0 %v1987
      %2002 = vmatmul.bf16.gmra.mxu0 %v1992
      %v2003 = vpop.f32.mrf.mxu0
      %v2004 = vadd.f32 0.0, %v2003
      %v2005 = vpop.f32.mrf.mxu0
      %v2006 = vadd.f32 0.0, %v2005
      %2007 = vdwg.mxu0
      %v2012 = vunpack.c.l.b16 %v1951
      %v2013 = vunpack.c.l.b16 %v1952
      %v2014 = vunpack.c.l.b16 %v1953
      %v2015 = vunpack.c.l.b16 %v1954
      %v2016 = vpack.c.b16 %v2013, %v2012
      %v2017 = vpack.c.b16 %v2015, %v2014
      %v2020 = vsel %vm310, %v1965, 0
      %2022 = vmatpush.bf16.msra.mxu0 0
      %2023 = vmatpush.bf16.msra.mxu0 0
      %2024 = vmatpush.bf16.msra.mxu0 0
      %2025 = vmatpush.bf16.msra.mxu0 0
      %2026 = vmatpush.bf16.msra.mxu0 0
      %2027 = vmatpush.bf16.msra.mxu0 0
      %2028 = vmatpush.bf16.msra.mxu0 %v2017
      %2029 = vmatpush.bf16.msra.mxu0 %v2016
      %2030 = vmatmul.bf16.gmra.mxu0 %v2020
      %v2031 = vpop.f32.mrf.mxu0
      %v2032 = vadd.f32 %v2004, %v2031
      %v2033 = vpop.f32.mrf.mxu0
      %v2034 = vadd.f32 %v2006, %v2033
      %2035 = vdwg.mxu0
      %v2036 = vld [vmem:[%s356] sm:$0xf]
      %v2037 = vld [vmem:[%s356 + $0x4] sm:$0xf]
      %v2038 = vld [vmem:[%s356 + $0x8] sm:$0xf]
      %v2039 = vld [vmem:[%s356 + $0xc] sm:$0xf]
      %v2040 = vrot.slane %v1965, 1
      %v2041 = vrot.slane %v1966, 1
      %v2042 = vsel %vm361, %v2040, %v2041
      %v2047 = vunpack.c.l.b16 %v2036
      %v2048 = vunpack.c.l.b16 %v2037
      %v2049 = vunpack.c.l.b16 %v2038
      %v2050 = vunpack.c.l.b16 %v2039
      %v2051 = vpack.c.b16 %v2048, %v2047
      %v2052 = vpack.c.b16 %v2050, %v2049
      %v2056 = vsel %vm310, %v2042, 0
      %2058 = vmatpush.bf16.msra.mxu0 0
      %2059 = vmatpush.bf16.msra.mxu0 0
      %2060 = vmatpush.bf16.msra.mxu0 0
      %2061 = vmatpush.bf16.msra.mxu0 0
      %2062 = vmatpush.bf16.msra.mxu0 0
      %2063 = vmatpush.bf16.msra.mxu0 0
      %2064 = vmatpush.bf16.msra.mxu0 %v2052
      %2065 = vmatpush.bf16.msra.mxu0 %v2051
      %2066 = vmatmul.bf16.gmra.mxu0 %v2056
      %v2067 = vpop.f32.mrf.mxu0
      %v2068 = vadd.f32 0.0, %v2067
      %v2069 = vpop.f32.mrf.mxu0
      %v2070 = vadd.f32 0.0, %v2069
      %2071 = vdwg.mxu0
      %v2072 = vadd.f32 %v2032, %v2068
      %v2073 = vadd.f32 %v2034, %v2070
      %v2074 = vld [vmem:[%s1790] sm:$0xf]
      %v2075 = vld [vmem:[%s1790 + $0x4] sm:$0xf]
      %v2076 = vld [vmem:[%s1790 + $0x8] sm:$0x1]
      %v2077 = vld [vmem:[%s403] sm:$0xf]
      %v2078 = vld [vmem:[%s403 + $0x4] sm:$0xf]
      %v2079 = vld [vmem:[%s403 + $0x8] sm:$0xf]
      %v2080 = vld [vmem:[%s403 + $0xc] sm:$0xf]
      %v2083 = vunpack.c.l.b16 %v2074
      %v2084 = vunpack.c.l.b16 %v2075
      %v2085 = vpack.c.b16 %v2084, %v2083
      %v2090 = vunpack.c.l.b16 %v2077
      %v2091 = vunpack.c.l.b16 %v2078
      %v2092 = vunpack.c.l.b16 %v2079
      %v2093 = vunpack.c.l.b16 %v2080
      %v2094 = vpack.c.b16 %v2091, %v2090
      %v2095 = vpack.c.b16 %v2093, %v2092
      %v2099 = vsel %vm310, %v2085, 0
      %2101 = vmatpush.bf16.msra.mxu0 0
      %2102 = vmatpush.bf16.msra.mxu0 0
      %2103 = vmatpush.bf16.msra.mxu0 0
      %2104 = vmatpush.bf16.msra.mxu0 0
      %2105 = vmatpush.bf16.msra.mxu0 0
      %2106 = vmatpush.bf16.msra.mxu0 0
      %2107 = vmatpush.bf16.msra.mxu0 %v2095
      %2108 = vmatpush.bf16.msra.mxu0 %v2094
      %2109 = vmatmul.bf16.gmra.mxu0 %v2099
      %v2110 = vpop.f32.mrf.mxu0
      %v2111 = vadd.f32 0.0, %v2110
      %v2112 = vpop.f32.mrf.mxu0
      %v2113 = vadd.f32 0.0, %v2112
      %2114 = vdwg.mxu0
      %v2115 = vadd.f32 %v2072, %v2111
      %v2116 = vadd.f32 %v2073, %v2113
      %v2117 = vld [vmem:[%s444] sm:$0xf]
      %v2118 = vld [vmem:[%s444 + $0x4] sm:$0xf]
      %v2119 = vld [vmem:[%s444 + $0x8] sm:$0xf]
      %v2120 = vld [vmem:[%s444 + $0xc] sm:$0xf]
      %v2122 = vunpack.c.l.b16 %v2076
      %v2123 = vpack.c.b16 %v2122, %v2122
      %v2124 = vshrl.u32 %v2085, 16
      %v2126 = vshll.u32 %v2085, 16
      %v2128 = vrot.slane %v2126, 1
      %v2129 = vor.u32 %v2124, %v2128
      %v2131 = vshll.u32 %v2123, 16
      %v2133 = vrot.slane %v2131, 1
      %v2134 = vsel %vm285, %v2129, %v2133
      %v2139 = vunpack.c.l.b16 %v2117
      %v2140 = vunpack.c.l.b16 %v2118
      %v2141 = vunpack.c.l.b16 %v2119
      %v2142 = vunpack.c.l.b16 %v2120
      %v2143 = vpack.c.b16 %v2140, %v2139
      %v2144 = vpack.c.b16 %v2142, %v2141
      %v2148 = vsel %vm310, %v2134, 0
      %2150 = vmatpush.bf16.msra.mxu0 0
      %2151 = vmatpush.bf16.msra.mxu0 0
      %2152 = vmatpush.bf16.msra.mxu0 0
      %2153 = vmatpush.bf16.msra.mxu0 0
      %2154 = vmatpush.bf16.msra.mxu0 0
      %2155 = vmatpush.bf16.msra.mxu0 0
      %2156 = vmatpush.bf16.msra.mxu0 %v2144
      %2157 = vmatpush.bf16.msra.mxu0 %v2143
      %2158 = vmatmul.bf16.gmra.mxu0 %v2148
      %v2159 = vpop.f32.mrf.mxu0
      %v2160 = vadd.f32 0.0, %v2159
      %v2161 = vpop.f32.mrf.mxu0
      %v2162 = vadd.f32 0.0, %v2161
      %2163 = vdwg.mxu0
      %v2164 = vadd.f32 %v2115, %v2160
      %v2165 = vadd.f32 %v2116, %v2162
      %v2166 = vld [vmem:[%s494] sm:$0xf]
      %v2167 = vld [vmem:[%s494 + $0x4] sm:$0xf]
      %v2168 = vld [vmem:[%s494 + $0x8] sm:$0xf]
      %v2169 = vld [vmem:[%s494 + $0xc] sm:$0xf]
      %v2170 = vrot.slane %v2085, 1
      %v2171 = vrot.slane %v2123, 1
      %v2172 = vsel %vm361, %v2170, %v2171
      %v2177 = vunpack.c.l.b16 %v2166
      %v2178 = vunpack.c.l.b16 %v2167
      %v2179 = vunpack.c.l.b16 %v2168
      %v2180 = vunpack.c.l.b16 %v2169
      %v2181 = vpack.c.b16 %v2178, %v2177
      %v2182 = vpack.c.b16 %v2180, %v2179
      %v2186 = vsel %vm310, %v2172, 0
      %2188 = vmatpush.bf16.msra.mxu0 0
      %2189 = vmatpush.bf16.msra.mxu0 0
      %2190 = vmatpush.bf16.msra.mxu0 0
      %2191 = vmatpush.bf16.msra.mxu0 0
      %2192 = vmatpush.bf16.msra.mxu0 0
      %2193 = vmatpush.bf16.msra.mxu0 0
      %2194 = vmatpush.bf16.msra.mxu0 %v2182
      %2195 = vmatpush.bf16.msra.mxu0 %v2181
      %2196 = vmatmul.bf16.gmra.mxu0 %v2186
      %v2197 = vpop.f32.mrf.mxu0
      %v2198 = vadd.f32 0.0, %v2197
      %v2199 = vpop.f32.mrf.mxu0
      %v2200 = vadd.f32 0.0, %v2199
      %2201 = vdwg.mxu0
      %v2202 = vadd.f32 %v2164, %v2198
      %v2203 = vadd.f32 %v2165, %v2200
      %s2204 = sadd.s32 %s261, 6
      %s2205 = smul.u32 %s2204, 3
      %s2206 = smul.addr %s2205, 4
      %s2207 = scalar_lea.vmem %s234, %s2206
      %v2208 = vld [vmem:[%s2207] sm:$0xf]
      %v2209 = vld [vmem:[%s2207 + $0x4] sm:$0xf]
      %v2210 = vld [vmem:[%s2207 + $0x8] sm:$0x1]
      %v2211 = vld [vmem:[%s540] sm:$0xf]
      %v2212 = vld [vmem:[%s540 + $0x4] sm:$0xf]
      %v2213 = vld [vmem:[%s540 + $0x8] sm:$0xf]
      %v2214 = vld [vmem:[%s540 + $0xc] sm:$0xf]
      %v2217 = vunpack.c.l.b16 %v2208
      %v2218 = vunpack.c.l.b16 %v2209
      %v2219 = vpack.c.b16 %v2218, %v2217
      %v2224 = vunpack.c.l.b16 %v2211
      %v2225 = vunpack.c.l.b16 %v2212
      %v2226 = vunpack.c.l.b16 %v2213
      %v2227 = vunpack.c.l.b16 %v2214
      %v2228 = vpack.c.b16 %v2225, %v2224
      %v2229 = vpack.c.b16 %v2227, %v2226
      %v2233 = vsel %vm310, %v2219, 0
      %2235 = vmatpush.bf16.msra.mxu0 0
      %2236 = vmatpush.bf16.msra.mxu0 0
      %2237 = vmatpush.bf16.msra.mxu0 0
      %2238 = vmatpush.bf16.msra.mxu0 0
      %2239 = vmatpush.bf16.msra.mxu0 0
      %2240 = vmatpush.bf16.msra.mxu0 0
      %2241 = vmatpush.bf16.msra.mxu0 %v2229
      %2242 = vmatpush.bf16.msra.mxu0 %v2228
      %2243 = vmatmul.bf16.gmra.mxu0 %v2233
      %v2244 = vpop.f32.mrf.mxu0
      %v2245 = vadd.f32 0.0, %v2244
      %v2246 = vpop.f32.mrf.mxu0
      %v2247 = vadd.f32 0.0, %v2246
      %2248 = vdwg.mxu0
      %v2249 = vadd.f32 %v2202, %v2245
      %v2250 = vadd.f32 %v2203, %v2247
      %v2251 = vld [vmem:[%s581] sm:$0xf]
      %v2252 = vld [vmem:[%s581 + $0x4] sm:$0xf]
      %v2253 = vld [vmem:[%s581 + $0x8] sm:$0xf]
      %v2254 = vld [vmem:[%s581 + $0xc] sm:$0xf]
      %v2256 = vunpack.c.l.b16 %v2210
      %v2257 = vpack.c.b16 %v2256, %v2256
      %v2258 = vshrl.u32 %v2219, 16
      %v2260 = vshll.u32 %v2219, 16
      %v2262 = vrot.slane %v2260, 1
      %v2263 = vor.u32 %v2258, %v2262
      %v2265 = vshll.u32 %v2257, 16
      %v2267 = vrot.slane %v2265, 1
      %v2268 = vsel %vm285, %v2263, %v2267
      %v2273 = vunpack.c.l.b16 %v2251
      %v2274 = vunpack.c.l.b16 %v2252
      %v2275 = vunpack.c.l.b16 %v2253
      %v2276 = vunpack.c.l.b16 %v2254
      %v2277 = vpack.c.b16 %v2274, %v2273
      %v2278 = vpack.c.b16 %v2276, %v2275
      %v2282 = vsel %vm310, %v2268, 0
      %2284 = vmatpush.bf16.msra.mxu0 0
      %2285 = vmatpush.bf16.msra.mxu0 0
      %2286 = vmatpush.bf16.msra.mxu0 0
      %2287 = vmatpush.bf16.msra.mxu0 0
      %2288 = vmatpush.bf16.msra.mxu0 0
      %2289 = vmatpush.bf16.msra.mxu0 0
      %2290 = vmatpush.bf16.msra.mxu0 %v2278
      %2291 = vmatpush.bf16.msra.mxu0 %v2277
      %2292 = vmatmul.bf16.gmra.mxu0 %v2282
      %v2293 = vpop.f32.mrf.mxu0
      %v2294 = vadd.f32 0.0, %v2293
      %v2295 = vpop.f32.mrf.mxu0
      %v2296 = vadd.f32 0.0, %v2295
      %2297 = vdwg.mxu0
      %v2298 = vadd.f32 %v2249, %v2294
      %v2299 = vadd.f32 %v2250, %v2296
      %v2300 = vld [vmem:[%s631] sm:$0xf]
      %v2301 = vld [vmem:[%s631 + $0x4] sm:$0xf]
      %v2302 = vld [vmem:[%s631 + $0x8] sm:$0xf]
      %v2303 = vld [vmem:[%s631 + $0xc] sm:$0xf]
      %v2304 = vrot.slane %v2219, 1
      %v2305 = vrot.slane %v2257, 1
      %v2306 = vsel %vm361, %v2304, %v2305
      %v2311 = vunpack.c.l.b16 %v2300
      %v2312 = vunpack.c.l.b16 %v2301
      %v2313 = vunpack.c.l.b16 %v2302
      %v2314 = vunpack.c.l.b16 %v2303
      %v2315 = vpack.c.b16 %v2312, %v2311
      %v2316 = vpack.c.b16 %v2314, %v2313
      %v2320 = vsel %vm310, %v2306, 0
      %2322 = vmatpush.bf16.msra.mxu0 0
      %2323 = vmatpush.bf16.msra.mxu0 0
      %2324 = vmatpush.bf16.msra.mxu0 0
      %2325 = vmatpush.bf16.msra.mxu0 0
      %2326 = vmatpush.bf16.msra.mxu0 0
      %2327 = vmatpush.bf16.msra.mxu0 0
      %2328 = vmatpush.bf16.msra.mxu0 %v2316
      %2329 = vmatpush.bf16.msra.mxu0 %v2315
      %2330 = vmatmul.bf16.gmra.mxu0 %v2320
      %v2331 = vpop.f32.mrf.mxu0
      %v2332 = vadd.f32 0.0, %v2331
      %v2333 = vpop.f32.mrf.mxu0
      %v2334 = vadd.f32 0.0, %v2333
      %2335 = vdwg.mxu0
      %v2336 = vadd.f32 %v2298, %v2332
      %v2337 = vadd.f32 %v2299, %v2334
      %v2338 = vpack.c.bf16 %v2336, %v2336
      %v2339 = vpack.c.bf16 %v2337, %v2337
      %s2340 = scalar_lea.vmem %s244, 32
      %2341 = vst.msk [vmem:[%s2340] sm:$0xf] %vm672, %v2338
      %2342 = vst.msk [vmem:[%s2340 + $0x4] sm:$0xf] %vm672, %v2339
      %v2343 = vsel %vm310, %v2336, 0.0
      %v2344 = vsel %vm310, %v2337, 0.0
      %v2345 = vadd.f32 %v2343, %v2344
      %v2346 = vrot.slane %v2345, 4
      %v2347 = vadd.f32 %v2345, %v2346
      %v2348 = vrot.slane %v2347, 2
      %v2349 = vadd.f32 %v2347, %v2348
      %v2350 = vrot.slane %v2349, 1
      %v2351 = vadd.f32 %v2349, %v2350
      %v2352 = vadd.f32 %v1935, %v2351
      %v2353 = vmul.f32 %v2336, %v2336
      %v2354 = vmul.f32 %v2337, %v2337
      %v2355 = vsel %vm310, %v2353, 0.0
      %v2356 = vsel %vm310, %v2354, 0.0
      %v2357 = vadd.f32 %v2355, %v2356
      %v2358 = vrot.slane %v2357, 4
      %v2359 = vadd.f32 %v2357, %v2358
      %v2360 = vrot.slane %v2359, 2
      %v2361 = vadd.f32 %v2359, %v2360
      %v2362 = vrot.slane %v2361, 1
      %v2363 = vadd.f32 %v2361, %v2362
      %v2364 = vadd.f32 %v1947, %v2363
      %v2365 = vld [vmem:[%s1790] sm:$0xf]
      %v2366 = vld [vmem:[%s1790 + $0x4] sm:$0xf]
      %v2367 = vld [vmem:[%s1790 + $0x8] sm:$0x1]
      %v2368 = vld [vmem:[%s1] sm:$0xf]
      %v2369 = vld [vmem:[%s1 + $0x4] sm:$0xf]
      %v2370 = vld [vmem:[%s1 + $0x8] sm:$0xf]
      %v2371 = vld [vmem:[%s1 + $0xc] sm:$0xf]
      %v2372 = vld [vmem:[%s272] sm:$0xf]
      %v2373 = vld [vmem:[%s272 + $0x4] sm:$0xf]
      %v2374 = vld [vmem:[%s272 + $0x8] sm:$0xf]
      %v2375 = vld [vmem:[%s272 + $0xc] sm:$0xf]
      %v2379 = vunpack.c.l.b16 %v2365
      %v2380 = vunpack.c.l.b16 %v2366
      %v2381 = vunpack.c.l.b16 %v2367
      %v2382 = vpack.c.b16 %v2380, %v2379
      %v2383 = vpack.c.b16 %v2381, %v2381
      %v2385 = vshrl.u32 %v2382, 16
      %v2387 = vshll.u32 %v2382, 16
      %v2389 = vrot.slane %v2387, 1
      %v2390 = vor.u32 %v2385, %v2389
      %v2392 = vshll.u32 %v2383, 16
      %v2394 = vrot.slane %v2392, 1
      %v2395 = vsel %vm285, %v2390, %v2394
      %v2400 = vunpack.c.l.b16 %v2372
      %v2401 = vunpack.c.l.b16 %v2373
      %v2402 = vunpack.c.l.b16 %v2374
      %v2403 = vunpack.c.l.b16 %v2375
      %v2404 = vpack.c.b16 %v2401, %v2400
      %v2405 = vpack.c.b16 %v2403, %v2402
      %v2409 = vsel %vm310, %v2395, 0
      %2411 = vmatpush.bf16.msra.mxu0 0
      %2412 = vmatpush.bf16.msra.mxu0 0
      %2413 = vmatpush.bf16.msra.mxu0 0
      %2414 = vmatpush.bf16.msra.mxu0 0
      %2415 = vmatpush.bf16.msra.mxu0 0
      %2416 = vmatpush.bf16.msra.mxu0 0
      %2417 = vmatpush.bf16.msra.mxu0 %v2405
      %2418 = vmatpush.bf16.msra.mxu0 %v2404
      %2419 = vmatmul.bf16.gmra.mxu0 %v2409
      %v2420 = vpop.f32.mrf.mxu0
      %v2421 = vadd.f32 0.0, %v2420
      %v2422 = vpop.f32.mrf.mxu0
      %v2423 = vadd.f32 0.0, %v2422
      %2424 = vdwg.mxu0
      %v2429 = vunpack.c.l.b16 %v2368
      %v2430 = vunpack.c.l.b16 %v2369
      %v2431 = vunpack.c.l.b16 %v2370
      %v2432 = vunpack.c.l.b16 %v2371
      %v2433 = vpack.c.b16 %v2430, %v2429
      %v2434 = vpack.c.b16 %v2432, %v2431
      %v2437 = vsel %vm310, %v2382, 0
      %2439 = vmatpush.bf16.msra.mxu0 0
      %2440 = vmatpush.bf16.msra.mxu0 0
      %2441 = vmatpush.bf16.msra.mxu0 0
      %2442 = vmatpush.bf16.msra.mxu0 0
      %2443 = vmatpush.bf16.msra.mxu0 0
      %2444 = vmatpush.bf16.msra.mxu0 0
      %2445 = vmatpush.bf16.msra.mxu0 %v2434
      %2446 = vmatpush.bf16.msra.mxu0 %v2433
      %2447 = vmatmul.bf16.gmra.mxu0 %v2437
      %v2448 = vpop.f32.mrf.mxu0
      %v2449 = vadd.f32 %v2421, %v2448
      %v2450 = vpop.f32.mrf.mxu0
      %v2451 = vadd.f32 %v2423, %v2450
      %2452 = vdwg.mxu0
      %v2453 = vld [vmem:[%s356] sm:$0xf]
      %v2454 = vld [vmem:[%s356 + $0x4] sm:$0xf]
      %v2455 = vld [vmem:[%s356 + $0x8] sm:$0xf]
      %v2456 = vld [vmem:[%s356 + $0xc] sm:$0xf]
      %v2457 = vrot.slane %v2382, 1
      %v2458 = vrot.slane %v2383, 1
      %v2459 = vsel %vm361, %v2457, %v2458
      %v2464 = vunpack.c.l.b16 %v2453
      %v2465 = vunpack.c.l.b16 %v2454
      %v2466 = vunpack.c.l.b16 %v2455
      %v2467 = vunpack.c.l.b16 %v2456
      %v2468 = vpack.c.b16 %v2465, %v2464
      %v2469 = vpack.c.b16 %v2467, %v2466
      %v2473 = vsel %vm310, %v2459, 0
      %2475 = vmatpush.bf16.msra.mxu0 0
      %2476 = vmatpush.bf16.msra.mxu0 0
      %2477 = vmatpush.bf16.msra.mxu0 0
      %2478 = vmatpush.bf16.msra.mxu0 0
      %2479 = vmatpush.bf16.msra.mxu0 0
      %2480 = vmatpush.bf16.msra.mxu0 0
      %2481 = vmatpush.bf16.msra.mxu0 %v2469
      %2482 = vmatpush.bf16.msra.mxu0 %v2468
      %2483 = vmatmul.bf16.gmra.mxu0 %v2473
      %v2484 = vpop.f32.mrf.mxu0
      %v2485 = vadd.f32 0.0, %v2484
      %v2486 = vpop.f32.mrf.mxu0
      %v2487 = vadd.f32 0.0, %v2486
      %2488 = vdwg.mxu0
      %v2489 = vadd.f32 %v2449, %v2485
      %v2490 = vadd.f32 %v2451, %v2487
      %v2491 = vld [vmem:[%s2207] sm:$0xf]
      %v2492 = vld [vmem:[%s2207 + $0x4] sm:$0xf]
      %v2493 = vld [vmem:[%s2207 + $0x8] sm:$0x1]
      %v2494 = vld [vmem:[%s403] sm:$0xf]
      %v2495 = vld [vmem:[%s403 + $0x4] sm:$0xf]
      %v2496 = vld [vmem:[%s403 + $0x8] sm:$0xf]
      %v2497 = vld [vmem:[%s403 + $0xc] sm:$0xf]
      %v2500 = vunpack.c.l.b16 %v2491
      %v2501 = vunpack.c.l.b16 %v2492
      %v2502 = vpack.c.b16 %v2501, %v2500
      %v2507 = vunpack.c.l.b16 %v2494
      %v2508 = vunpack.c.l.b16 %v2495
      %v2509 = vunpack.c.l.b16 %v2496
      %v2510 = vunpack.c.l.b16 %v2497
      %v2511 = vpack.c.b16 %v2508, %v2507
      %v2512 = vpack.c.b16 %v2510, %v2509
      %v2516 = vsel %vm310, %v2502, 0
      %2518 = vmatpush.bf16.msra.mxu0 0
      %2519 = vmatpush.bf16.msra.mxu0 0
      %2520 = vmatpush.bf16.msra.mxu0 0
      %2521 = vmatpush.bf16.msra.mxu0 0
      %2522 = vmatpush.bf16.msra.mxu0 0
      %2523 = vmatpush.bf16.msra.mxu0 0
      %2524 = vmatpush.bf16.msra.mxu0 %v2512
      %2525 = vmatpush.bf16.msra.mxu0 %v2511
      %2526 = vmatmul.bf16.gmra.mxu0 %v2516
      %v2527 = vpop.f32.mrf.mxu0
      %v2528 = vadd.f32 0.0, %v2527
      %v2529 = vpop.f32.mrf.mxu0
      %v2530 = vadd.f32 0.0, %v2529
      %2531 = vdwg.mxu0
      %v2532 = vadd.f32 %v2489, %v2528
      %v2533 = vadd.f32 %v2490, %v2530
      %v2534 = vld [vmem:[%s444] sm:$0xf]
      %v2535 = vld [vmem:[%s444 + $0x4] sm:$0xf]
      %v2536 = vld [vmem:[%s444 + $0x8] sm:$0xf]
      %v2537 = vld [vmem:[%s444 + $0xc] sm:$0xf]
      %v2539 = vunpack.c.l.b16 %v2493
      %v2540 = vpack.c.b16 %v2539, %v2539
      %v2541 = vshrl.u32 %v2502, 16
      %v2543 = vshll.u32 %v2502, 16
      %v2545 = vrot.slane %v2543, 1
      %v2546 = vor.u32 %v2541, %v2545
      %v2548 = vshll.u32 %v2540, 16
      %v2550 = vrot.slane %v2548, 1
      %v2551 = vsel %vm285, %v2546, %v2550
      %v2556 = vunpack.c.l.b16 %v2534
      %v2557 = vunpack.c.l.b16 %v2535
      %v2558 = vunpack.c.l.b16 %v2536
      %v2559 = vunpack.c.l.b16 %v2537
      %v2560 = vpack.c.b16 %v2557, %v2556
      %v2561 = vpack.c.b16 %v2559, %v2558
      %v2565 = vsel %vm310, %v2551, 0
      %2567 = vmatpush.bf16.msra.mxu0 0
      %2568 = vmatpush.bf16.msra.mxu0 0
      %2569 = vmatpush.bf16.msra.mxu0 0
      %2570 = vmatpush.bf16.msra.mxu0 0
      %2571 = vmatpush.bf16.msra.mxu0 0
      %2572 = vmatpush.bf16.msra.mxu0 0
      %2573 = vmatpush.bf16.msra.mxu0 %v2561
      %2574 = vmatpush.bf16.msra.mxu0 %v2560
      %2575 = vmatmul.bf16.gmra.mxu0 %v2565
      %v2576 = vpop.f32.mrf.mxu0
      %v2577 = vadd.f32 0.0, %v2576
      %v2578 = vpop.f32.mrf.mxu0
      %v2579 = vadd.f32 0.0, %v2578
      %2580 = vdwg.mxu0
      %v2581 = vadd.f32 %v2532, %v2577
      %v2582 = vadd.f32 %v2533, %v2579
      %v2583 = vld [vmem:[%s494] sm:$0xf]
      %v2584 = vld [vmem:[%s494 + $0x4] sm:$0xf]
      %v2585 = vld [vmem:[%s494 + $0x8] sm:$0xf]
      %v2586 = vld [vmem:[%s494 + $0xc] sm:$0xf]
      %v2587 = vrot.slane %v2502, 1
      %v2588 = vrot.slane %v2540, 1
      %v2589 = vsel %vm361, %v2587, %v2588
      %v2594 = vunpack.c.l.b16 %v2583
      %v2595 = vunpack.c.l.b16 %v2584
      %v2596 = vunpack.c.l.b16 %v2585
      %v2597 = vunpack.c.l.b16 %v2586
      %v2598 = vpack.c.b16 %v2595, %v2594
      %v2599 = vpack.c.b16 %v2597, %v2596
      %v2603 = vsel %vm310, %v2589, 0
      %2605 = vmatpush.bf16.msra.mxu0 0
      %2606 = vmatpush.bf16.msra.mxu0 0
      %2607 = vmatpush.bf16.msra.mxu0 0
      %2608 = vmatpush.bf16.msra.mxu0 0
      %2609 = vmatpush.bf16.msra.mxu0 0
      %2610 = vmatpush.bf16.msra.mxu0 0
      %2611 = vmatpush.bf16.msra.mxu0 %v2599
      %2612 = vmatpush.bf16.msra.mxu0 %v2598
      %2613 = vmatmul.bf16.gmra.mxu0 %v2603
      %v2614 = vpop.f32.mrf.mxu0
      %v2615 = vadd.f32 0.0, %v2614
      %v2616 = vpop.f32.mrf.mxu0
      %v2617 = vadd.f32 0.0, %v2616
      %2618 = vdwg.mxu0
      %v2619 = vadd.f32 %v2581, %v2615
      %v2620 = vadd.f32 %v2582, %v2617
      %s2621 = sadd.s32 %s261, 7
      %s2622 = smul.u32 %s2621, 3
      %s2623 = smul.addr %s2622, 4
      %s2624 = scalar_lea.vmem %s234, %s2623
      %v2625 = vld [vmem:[%s2624] sm:$0xf]
      %v2626 = vld [vmem:[%s2624 + $0x4] sm:$0xf]
      %v2627 = vld [vmem:[%s2624 + $0x8] sm:$0x1]
      %v2628 = vld [vmem:[%s540] sm:$0xf]
      %v2629 = vld [vmem:[%s540 + $0x4] sm:$0xf]
      %v2630 = vld [vmem:[%s540 + $0x8] sm:$0xf]
      %v2631 = vld [vmem:[%s540 + $0xc] sm:$0xf]
      %v2634 = vunpack.c.l.b16 %v2625
      %v2635 = vunpack.c.l.b16 %v2626
      %v2636 = vpack.c.b16 %v2635, %v2634
      %v2641 = vunpack.c.l.b16 %v2628
      %v2642 = vunpack.c.l.b16 %v2629
      %v2643 = vunpack.c.l.b16 %v2630
      %v2644 = vunpack.c.l.b16 %v2631
      %v2645 = vpack.c.b16 %v2642, %v2641
      %v2646 = vpack.c.b16 %v2644, %v2643
      %v2650 = vsel %vm310, %v2636, 0
      %2652 = vmatpush.bf16.msra.mxu0 0
      %2653 = vmatpush.bf16.msra.mxu0 0
      %2654 = vmatpush.bf16.msra.mxu0 0
      %2655 = vmatpush.bf16.msra.mxu0 0
      %2656 = vmatpush.bf16.msra.mxu0 0
      %2657 = vmatpush.bf16.msra.mxu0 0
      %2658 = vmatpush.bf16.msra.mxu0 %v2646
      %2659 = vmatpush.bf16.msra.mxu0 %v2645
      %2660 = vmatmul.bf16.gmra.mxu0 %v2650
      %v2661 = vpop.f32.mrf.mxu0
      %v2662 = vadd.f32 0.0, %v2661
      %v2663 = vpop.f32.mrf.mxu0
      %v2664 = vadd.f32 0.0, %v2663
      %2665 = vdwg.mxu0
      %v2666 = vadd.f32 %v2619, %v2662
      %v2667 = vadd.f32 %v2620, %v2664
      %v2668 = vld [vmem:[%s581] sm:$0xf]
      %v2669 = vld [vmem:[%s581 + $0x4] sm:$0xf]
      %v2670 = vld [vmem:[%s581 + $0x8] sm:$0xf]
      %v2671 = vld [vmem:[%s581 + $0xc] sm:$0xf]
      %v2673 = vunpack.c.l.b16 %v2627
      %v2674 = vpack.c.b16 %v2673, %v2673
      %v2675 = vshrl.u32 %v2636, 16
      %v2677 = vshll.u32 %v2636, 16
      %v2679 = vrot.slane %v2677, 1
      %v2680 = vor.u32 %v2675, %v2679
      %v2682 = vshll.u32 %v2674, 16
      %v2684 = vrot.slane %v2682, 1
      %v2685 = vsel %vm285, %v2680, %v2684
      %v2690 = vunpack.c.l.b16 %v2668
      %v2691 = vunpack.c.l.b16 %v2669
      %v2692 = vunpack.c.l.b16 %v2670
      %v2693 = vunpack.c.l.b16 %v2671
      %v2694 = vpack.c.b16 %v2691, %v2690
      %v2695 = vpack.c.b16 %v2693, %v2692
      %v2699 = vsel %vm310, %v2685, 0
      %2701 = vmatpush.bf16.msra.mxu0 0
      %2702 = vmatpush.bf16.msra.mxu0 0
      %2703 = vmatpush.bf16.msra.mxu0 0
      %2704 = vmatpush.bf16.msra.mxu0 0
      %2705 = vmatpush.bf16.msra.mxu0 0
      %2706 = vmatpush.bf16.msra.mxu0 0
      %2707 = vmatpush.bf16.msra.mxu0 %v2695
      %2708 = vmatpush.bf16.msra.mxu0 %v2694
      %2709 = vmatmul.bf16.gmra.mxu0 %v2699
      %v2710 = vpop.f32.mrf.mxu0
      %v2711 = vadd.f32 0.0, %v2710
      %v2712 = vpop.f32.mrf.mxu0
      %v2713 = vadd.f32 0.0, %v2712
      %2714 = vdwg.mxu0
      %v2715 = vadd.f32 %v2666, %v2711
      %v2716 = vadd.f32 %v2667, %v2713
      %v2717 = vld [vmem:[%s631] sm:$0xf]
      %v2718 = vld [vmem:[%s631 + $0x4] sm:$0xf]
      %v2719 = vld [vmem:[%s631 + $0x8] sm:$0xf]
      %v2720 = vld [vmem:[%s631 + $0xc] sm:$0xf]
      %v2721 = vrot.slane %v2636, 1
      %v2722 = vrot.slane %v2674, 1
      %v2723 = vsel %vm361, %v2721, %v2722
      %v2728 = vunpack.c.l.b16 %v2717
      %v2729 = vunpack.c.l.b16 %v2718
      %v2730 = vunpack.c.l.b16 %v2719
      %v2731 = vunpack.c.l.b16 %v2720
      %v2732 = vpack.c.b16 %v2729, %v2728
      %v2733 = vpack.c.b16 %v2731, %v2730
      %v2737 = vsel %vm310, %v2723, 0
      %2739 = vmatpush.bf16.msra.mxu0 0
      %2740 = vmatpush.bf16.msra.mxu0 0
      %2741 = vmatpush.bf16.msra.mxu0 0
      %2742 = vmatpush.bf16.msra.mxu0 0
      %2743 = vmatpush.bf16.msra.mxu0 0
      %2744 = vmatpush.bf16.msra.mxu0 0
      %2745 = vmatpush.bf16.msra.mxu0 %v2733
      %2746 = vmatpush.bf16.msra.mxu0 %v2732
      %2747 = vmatmul.bf16.gmra.mxu0 %v2737
      %v2748 = vpop.f32.mrf.mxu0
      %v2749 = vadd.f32 0.0, %v2748
      %v2750 = vpop.f32.mrf.mxu0
      %v2751 = vadd.f32 0.0, %v2750
      %2752 = vdwg.mxu0
      %v2753 = vadd.f32 %v2715, %v2749
      %v2754 = vadd.f32 %v2716, %v2751
      %v2755 = vpack.c.bf16 %v2753, %v2753
      %v2756 = vpack.c.bf16 %v2754, %v2754
      %s2757 = scalar_lea.vmem %s244, 40
      %2758 = vst.msk [vmem:[%s2757] sm:$0xf] %vm672, %v2755
      %2759 = vst.msk [vmem:[%s2757 + $0x4] sm:$0xf] %vm672, %v2756
      %v2760 = vsel %vm310, %v2753, 0.0
      %v2761 = vsel %vm310, %v2754, 0.0
      %v2762 = vadd.f32 %v2760, %v2761
      %v2763 = vrot.slane %v2762, 4
      %v2764 = vadd.f32 %v2762, %v2763
      %v2765 = vrot.slane %v2764, 2
      %v2766 = vadd.f32 %v2764, %v2765
      %v2767 = vrot.slane %v2766, 1
      %v2768 = vadd.f32 %v2766, %v2767
      %v2769 = vadd.f32 %v2352, %v2768
      %v2770 = vmul.f32 %v2753, %v2753
      %v2771 = vmul.f32 %v2754, %v2754
      %v2772 = vsel %vm310, %v2770, 0.0
      %v2773 = vsel %vm310, %v2771, 0.0
      %v2774 = vadd.f32 %v2772, %v2773
      %v2775 = vrot.slane %v2774, 4
      %v2776 = vadd.f32 %v2774, %v2775
      %v2777 = vrot.slane %v2776, 2
      %v2778 = vadd.f32 %v2776, %v2777
      %v2779 = vrot.slane %v2778, 1
      %v2780 = vadd.f32 %v2778, %v2779
      %v2781 = vadd.f32 %v2364, %v2780
      %v2782 = vld [vmem:[%s2207] sm:$0xf]
      %v2783 = vld [vmem:[%s2207 + $0x4] sm:$0xf]
      %v2784 = vld [vmem:[%s2207 + $0x8] sm:$0x1]
      %v2785 = vld [vmem:[%s1] sm:$0xf]
      %v2786 = vld [vmem:[%s1 + $0x4] sm:$0xf]
      %v2787 = vld [vmem:[%s1 + $0x8] sm:$0xf]
      %v2788 = vld [vmem:[%s1 + $0xc] sm:$0xf]
      %v2789 = vld [vmem:[%s272] sm:$0xf]
      %v2790 = vld [vmem:[%s272 + $0x4] sm:$0xf]
      %v2791 = vld [vmem:[%s272 + $0x8] sm:$0xf]
      %v2792 = vld [vmem:[%s272 + $0xc] sm:$0xf]
      %v2796 = vunpack.c.l.b16 %v2782
      %v2797 = vunpack.c.l.b16 %v2783
      %v2798 = vunpack.c.l.b16 %v2784
      %v2799 = vpack.c.b16 %v2797, %v2796
      %v2800 = vpack.c.b16 %v2798, %v2798
      %v2802 = vshrl.u32 %v2799, 16
      %v2804 = vshll.u32 %v2799, 16
      %v2806 = vrot.slane %v2804, 1
      %v2807 = vor.u32 %v2802, %v2806
      %v2809 = vshll.u32 %v2800, 16
      %v2811 = vrot.slane %v2809, 1
      %v2812 = vsel %vm285, %v2807, %v2811
      %v2817 = vunpack.c.l.b16 %v2789
      %v2818 = vunpack.c.l.b16 %v2790
      %v2819 = vunpack.c.l.b16 %v2791
      %v2820 = vunpack.c.l.b16 %v2792
      %v2821 = vpack.c.b16 %v2818, %v2817
      %v2822 = vpack.c.b16 %v2820, %v2819
      %v2826 = vsel %vm310, %v2812, 0
      %2828 = vmatpush.bf16.msra.mxu0 0
      %2829 = vmatpush.bf16.msra.mxu0 0
      %2830 = vmatpush.bf16.msra.mxu0 0
      %2831 = vmatpush.bf16.msra.mxu0 0
      %2832 = vmatpush.bf16.msra.mxu0 0
      %2833 = vmatpush.bf16.msra.mxu0 0
      %2834 = vmatpush.bf16.msra.mxu0 %v2822
      %2835 = vmatpush.bf16.msra.mxu0 %v2821
      %2836 = vmatmul.bf16.gmra.mxu0 %v2826
      %v2837 = vpop.f32.mrf.mxu0
      %v2838 = vadd.f32 0.0, %v2837
      %v2839 = vpop.f32.mrf.mxu0
      %v2840 = vadd.f32 0.0, %v2839
      %2841 = vdwg.mxu0
      %v2846 = vunpack.c.l.b16 %v2785
      %v2847 = vunpack.c.l.b16 %v2786
      %v2848 = vunpack.c.l.b16 %v2787
      %v2849 = vunpack.c.l.b16 %v2788
      %v2850 = vpack.c.b16 %v2847, %v2846
      %v2851 = vpack.c.b16 %v2849, %v2848
      %v2854 = vsel %vm310, %v2799, 0
      %2856 = vmatpush.bf16.msra.mxu0 0
      %2857 = vmatpush.bf16.msra.mxu0 0
      %2858 = vmatpush.bf16.msra.mxu0 0
      %2859 = vmatpush.bf16.msra.mxu0 0
      %2860 = vmatpush.bf16.msra.mxu0 0
      %2861 = vmatpush.bf16.msra.mxu0 0
      %2862 = vmatpush.bf16.msra.mxu0 %v2851
      %2863 = vmatpush.bf16.msra.mxu0 %v2850
      %2864 = vmatmul.bf16.gmra.mxu0 %v2854
      %v2865 = vpop.f32.mrf.mxu0
      %v2866 = vadd.f32 %v2838, %v2865
      %v2867 = vpop.f32.mrf.mxu0
      %v2868 = vadd.f32 %v2840, %v2867
      %2869 = vdwg.mxu0
      %v2870 = vld [vmem:[%s356] sm:$0xf]
      %v2871 = vld [vmem:[%s356 + $0x4] sm:$0xf]
      %v2872 = vld [vmem:[%s356 + $0x8] sm:$0xf]
      %v2873 = vld [vmem:[%s356 + $0xc] sm:$0xf]
      %v2874 = vrot.slane %v2799, 1
      %v2875 = vrot.slane %v2800, 1
      %v2876 = vsel %vm361, %v2874, %v2875
      %v2881 = vunpack.c.l.b16 %v2870
      %v2882 = vunpack.c.l.b16 %v2871
      %v2883 = vunpack.c.l.b16 %v2872
      %v2884 = vunpack.c.l.b16 %v2873
      %v2885 = vpack.c.b16 %v2882, %v2881
      %v2886 = vpack.c.b16 %v2884, %v2883
      %v2890 = vsel %vm310, %v2876, 0
      %2892 = vmatpush.bf16.msra.mxu0 0
      %2893 = vmatpush.bf16.msra.mxu0 0
      %2894 = vmatpush.bf16.msra.mxu0 0
      %2895 = vmatpush.bf16.msra.mxu0 0
      %2896 = vmatpush.bf16.msra.mxu0 0
      %2897 = vmatpush.bf16.msra.mxu0 0
      %2898 = vmatpush.bf16.msra.mxu0 %v2886
      %2899 = vmatpush.bf16.msra.mxu0 %v2885
      %2900 = vmatmul.bf16.gmra.mxu0 %v2890
      %v2901 = vpop.f32.mrf.mxu0
      %v2902 = vadd.f32 0.0, %v2901
      %v2903 = vpop.f32.mrf.mxu0
      %v2904 = vadd.f32 0.0, %v2903
      %2905 = vdwg.mxu0
      %v2906 = vadd.f32 %v2866, %v2902
      %v2907 = vadd.f32 %v2868, %v2904
      %v2908 = vld [vmem:[%s2624] sm:$0xf]
      %v2909 = vld [vmem:[%s2624 + $0x4] sm:$0xf]
      %v2910 = vld [vmem:[%s2624 + $0x8] sm:$0x1]
      %v2911 = vld [vmem:[%s403] sm:$0xf]
      %v2912 = vld [vmem:[%s403 + $0x4] sm:$0xf]
      %v2913 = vld [vmem:[%s403 + $0x8] sm:$0xf]
      %v2914 = vld [vmem:[%s403 + $0xc] sm:$0xf]
      %v2917 = vunpack.c.l.b16 %v2908
      %v2918 = vunpack.c.l.b16 %v2909
      %v2919 = vpack.c.b16 %v2918, %v2917
      %v2924 = vunpack.c.l.b16 %v2911
      %v2925 = vunpack.c.l.b16 %v2912
      %v2926 = vunpack.c.l.b16 %v2913
      %v2927 = vunpack.c.l.b16 %v2914
      %v2928 = vpack.c.b16 %v2925, %v2924
      %v2929 = vpack.c.b16 %v2927, %v2926
      %v2933 = vsel %vm310, %v2919, 0
      %2935 = vmatpush.bf16.msra.mxu0 0
      %2936 = vmatpush.bf16.msra.mxu0 0
      %2937 = vmatpush.bf16.msra.mxu0 0
      %2938 = vmatpush.bf16.msra.mxu0 0
      %2939 = vmatpush.bf16.msra.mxu0 0
      %2940 = vmatpush.bf16.msra.mxu0 0
      %2941 = vmatpush.bf16.msra.mxu0 %v2929
      %2942 = vmatpush.bf16.msra.mxu0 %v2928
      %2943 = vmatmul.bf16.gmra.mxu0 %v2933
      %v2944 = vpop.f32.mrf.mxu0
      %v2945 = vadd.f32 0.0, %v2944
      %v2946 = vpop.f32.mrf.mxu0
      %v2947 = vadd.f32 0.0, %v2946
      %2948 = vdwg.mxu0
      %v2949 = vadd.f32 %v2906, %v2945
      %v2950 = vadd.f32 %v2907, %v2947
      %v2951 = vld [vmem:[%s444] sm:$0xf]
      %v2952 = vld [vmem:[%s444 + $0x4] sm:$0xf]
      %v2953 = vld [vmem:[%s444 + $0x8] sm:$0xf]
      %v2954 = vld [vmem:[%s444 + $0xc] sm:$0xf]
      %v2956 = vunpack.c.l.b16 %v2910
      %v2957 = vpack.c.b16 %v2956, %v2956
      %v2958 = vshrl.u32 %v2919, 16
      %v2960 = vshll.u32 %v2919, 16
      %v2962 = vrot.slane %v2960, 1
      %v2963 = vor.u32 %v2958, %v2962
      %v2965 = vshll.u32 %v2957, 16
      %v2967 = vrot.slane %v2965, 1
      %v2968 = vsel %vm285, %v2963, %v2967
      %v2973 = vunpack.c.l.b16 %v2951
      %v2974 = vunpack.c.l.b16 %v2952
      %v2975 = vunpack.c.l.b16 %v2953
      %v2976 = vunpack.c.l.b16 %v2954
      %v2977 = vpack.c.b16 %v2974, %v2973
      %v2978 = vpack.c.b16 %v2976, %v2975
      %v2982 = vsel %vm310, %v2968, 0
      %2984 = vmatpush.bf16.msra.mxu0 0
      %2985 = vmatpush.bf16.msra.mxu0 0
      %2986 = vmatpush.bf16.msra.mxu0 0
      %2987 = vmatpush.bf16.msra.mxu0 0
      %2988 = vmatpush.bf16.msra.mxu0 0
      %2989 = vmatpush.bf16.msra.mxu0 0
      %2990 = vmatpush.bf16.msra.mxu0 %v2978
      %2991 = vmatpush.bf16.msra.mxu0 %v2977
      %2992 = vmatmul.bf16.gmra.mxu0 %v2982
      %v2993 = vpop.f32.mrf.mxu0
      %v2994 = vadd.f32 0.0, %v2993
      %v2995 = vpop.f32.mrf.mxu0
      %v2996 = vadd.f32 0.0, %v2995
      %2997 = vdwg.mxu0
      %v2998 = vadd.f32 %v2949, %v2994
      %v2999 = vadd.f32 %v2950, %v2996
      %v3000 = vld [vmem:[%s494] sm:$0xf]
      %v3001 = vld [vmem:[%s494 + $0x4] sm:$0xf]
      %v3002 = vld [vmem:[%s494 + $0x8] sm:$0xf]
      %v3003 = vld [vmem:[%s494 + $0xc] sm:$0xf]
      %v3004 = vrot.slane %v2919, 1
      %v3005 = vrot.slane %v2957, 1
      %v3006 = vsel %vm361, %v3004, %v3005
      %v3011 = vunpack.c.l.b16 %v3000
      %v3012 = vunpack.c.l.b16 %v3001
      %v3013 = vunpack.c.l.b16 %v3002
      %v3014 = vunpack.c.l.b16 %v3003
      %v3015 = vpack.c.b16 %v3012, %v3011
      %v3016 = vpack.c.b16 %v3014, %v3013
      %v3020 = vsel %vm310, %v3006, 0
      %3022 = vmatpush.bf16.msra.mxu0 0
      %3023 = vmatpush.bf16.msra.mxu0 0
      %3024 = vmatpush.bf16.msra.mxu0 0
      %3025 = vmatpush.bf16.msra.mxu0 0
      %3026 = vmatpush.bf16.msra.mxu0 0
      %3027 = vmatpush.bf16.msra.mxu0 0
      %3028 = vmatpush.bf16.msra.mxu0 %v3016
      %3029 = vmatpush.bf16.msra.mxu0 %v3015
      %3030 = vmatmul.bf16.gmra.mxu0 %v3020
      %v3031 = vpop.f32.mrf.mxu0
      %v3032 = vadd.f32 0.0, %v3031
      %v3033 = vpop.f32.mrf.mxu0
      %v3034 = vadd.f32 0.0, %v3033
      %3035 = vdwg.mxu0
      %v3036 = vadd.f32 %v2998, %v3032
      %v3037 = vadd.f32 %v2999, %v3034
      %s3038 = sadd.s32 %s261, 8
      %s3039 = smul.u32 %s3038, 3
      %s3040 = smul.addr %s3039, 4
      %s3041 = scalar_lea.vmem %s234, %s3040
      %v3042 = vld [vmem:[%s3041] sm:$0xf]
      %v3043 = vld [vmem:[%s3041 + $0x4] sm:$0xf]
      %v3044 = vld [vmem:[%s3041 + $0x8] sm:$0x1]
      %v3045 = vld [vmem:[%s540] sm:$0xf]
      %v3046 = vld [vmem:[%s540 + $0x4] sm:$0xf]
      %v3047 = vld [vmem:[%s540 + $0x8] sm:$0xf]
      %v3048 = vld [vmem:[%s540 + $0xc] sm:$0xf]
      %v3051 = vunpack.c.l.b16 %v3042
      %v3052 = vunpack.c.l.b16 %v3043
      %v3053 = vpack.c.b16 %v3052, %v3051
      %v3058 = vunpack.c.l.b16 %v3045
      %v3059 = vunpack.c.l.b16 %v3046
      %v3060 = vunpack.c.l.b16 %v3047
      %v3061 = vunpack.c.l.b16 %v3048
      %v3062 = vpack.c.b16 %v3059, %v3058
      %v3063 = vpack.c.b16 %v3061, %v3060
      %v3067 = vsel %vm310, %v3053, 0
      %3069 = vmatpush.bf16.msra.mxu0 0
      %3070 = vmatpush.bf16.msra.mxu0 0
      %3071 = vmatpush.bf16.msra.mxu0 0
      %3072 = vmatpush.bf16.msra.mxu0 0
      %3073 = vmatpush.bf16.msra.mxu0 0
      %3074 = vmatpush.bf16.msra.mxu0 0
      %3075 = vmatpush.bf16.msra.mxu0 %v3063
      %3076 = vmatpush.bf16.msra.mxu0 %v3062
      %3077 = vmatmul.bf16.gmra.mxu0 %v3067
      %v3078 = vpop.f32.mrf.mxu0
      %v3079 = vadd.f32 0.0, %v3078
      %v3080 = vpop.f32.mrf.mxu0
      %v3081 = vadd.f32 0.0, %v3080
      %3082 = vdwg.mxu0
      %v3083 = vadd.f32 %v3036, %v3079
      %v3084 = vadd.f32 %v3037, %v3081
      %v3085 = vld [vmem:[%s581] sm:$0xf]
      %v3086 = vld [vmem:[%s581 + $0x4] sm:$0xf]
      %v3087 = vld [vmem:[%s581 + $0x8] sm:$0xf]
      %v3088 = vld [vmem:[%s581 + $0xc] sm:$0xf]
      %v3090 = vunpack.c.l.b16 %v3044
      %v3091 = vpack.c.b16 %v3090, %v3090
      %v3092 = vshrl.u32 %v3053, 16
      %v3094 = vshll.u32 %v3053, 16
      %v3096 = vrot.slane %v3094, 1
      %v3097 = vor.u32 %v3092, %v3096
      %v3099 = vshll.u32 %v3091, 16
      %v3101 = vrot.slane %v3099, 1
      %v3102 = vsel %vm285, %v3097, %v3101
      %v3107 = vunpack.c.l.b16 %v3085
      %v3108 = vunpack.c.l.b16 %v3086
      %v3109 = vunpack.c.l.b16 %v3087
      %v3110 = vunpack.c.l.b16 %v3088
      %v3111 = vpack.c.b16 %v3108, %v3107
      %v3112 = vpack.c.b16 %v3110, %v3109
      %v3116 = vsel %vm310, %v3102, 0
      %3118 = vmatpush.bf16.msra.mxu0 0
      %3119 = vmatpush.bf16.msra.mxu0 0
      %3120 = vmatpush.bf16.msra.mxu0 0
      %3121 = vmatpush.bf16.msra.mxu0 0
      %3122 = vmatpush.bf16.msra.mxu0 0
      %3123 = vmatpush.bf16.msra.mxu0 0
      %3124 = vmatpush.bf16.msra.mxu0 %v3112
      %3125 = vmatpush.bf16.msra.mxu0 %v3111
      %3126 = vmatmul.bf16.gmra.mxu0 %v3116
      %v3127 = vpop.f32.mrf.mxu0
      %v3128 = vadd.f32 0.0, %v3127
      %v3129 = vpop.f32.mrf.mxu0
      %v3130 = vadd.f32 0.0, %v3129
      %3131 = vdwg.mxu0
      %v3132 = vadd.f32 %v3083, %v3128
      %v3133 = vadd.f32 %v3084, %v3130
      %v3134 = vld [vmem:[%s631] sm:$0xf]
      %v3135 = vld [vmem:[%s631 + $0x4] sm:$0xf]
      %v3136 = vld [vmem:[%s631 + $0x8] sm:$0xf]
      %v3137 = vld [vmem:[%s631 + $0xc] sm:$0xf]
      %v3138 = vrot.slane %v3053, 1
      %v3139 = vrot.slane %v3091, 1
      %v3140 = vsel %vm361, %v3138, %v3139
      %v3145 = vunpack.c.l.b16 %v3134
      %v3146 = vunpack.c.l.b16 %v3135
      %v3147 = vunpack.c.l.b16 %v3136
      %v3148 = vunpack.c.l.b16 %v3137
      %v3149 = vpack.c.b16 %v3146, %v3145
      %v3150 = vpack.c.b16 %v3148, %v3147
      %v3154 = vsel %vm310, %v3140, 0
      %3156 = vmatpush.bf16.msra.mxu0 0
      %3157 = vmatpush.bf16.msra.mxu0 0
      %3158 = vmatpush.bf16.msra.mxu0 0
      %3159 = vmatpush.bf16.msra.mxu0 0
      %3160 = vmatpush.bf16.msra.mxu0 0
      %3161 = vmatpush.bf16.msra.mxu0 0
      %3162 = vmatpush.bf16.msra.mxu0 %v3150
      %3163 = vmatpush.bf16.msra.mxu0 %v3149
      %3164 = vmatmul.bf16.gmra.mxu0 %v3154
      %v3165 = vpop.f32.mrf.mxu0
      %v3166 = vadd.f32 0.0, %v3165
      %v3167 = vpop.f32.mrf.mxu0
      %v3168 = vadd.f32 0.0, %v3167
      %3169 = vdwg.mxu0
      %v3170 = vadd.f32 %v3132, %v3166
      %v3171 = vadd.f32 %v3133, %v3168
      %v3172 = vpack.c.bf16 %v3170, %v3170
      %v3173 = vpack.c.bf16 %v3171, %v3171
      %s3174 = scalar_lea.vmem %s244, 48
      %3175 = vst.msk [vmem:[%s3174] sm:$0xf] %vm672, %v3172
      %3176 = vst.msk [vmem:[%s3174 + $0x4] sm:$0xf] %vm672, %v3173
      %v3177 = vsel %vm310, %v3170, 0.0
      %v3178 = vsel %vm310, %v3171, 0.0
      %v3179 = vadd.f32 %v3177, %v3178
      %v3180 = vrot.slane %v3179, 4
      %v3181 = vadd.f32 %v3179, %v3180
      %v3182 = vrot.slane %v3181, 2
      %v3183 = vadd.f32 %v3181, %v3182
      %v3184 = vrot.slane %v3183, 1
      %v3185 = vadd.f32 %v3183, %v3184
      %v3186 = vadd.f32 %v2769, %v3185
      %v3187 = vmul.f32 %v3170, %v3170
      %v3188 = vmul.f32 %v3171, %v3171
      %v3189 = vsel %vm310, %v3187, 0.0
      %v3190 = vsel %vm310, %v3188, 0.0
      %v3191 = vadd.f32 %v3189, %v3190
      %v3192 = vrot.slane %v3191, 4
      %v3193 = vadd.f32 %v3191, %v3192
      %v3194 = vrot.slane %v3193, 2
      %v3195 = vadd.f32 %v3193, %v3194
      %v3196 = vrot.slane %v3195, 1
      %v3197 = vadd.f32 %v3195, %v3196
      %v3198 = vadd.f32 %v2781, %v3197
      %v3199 = vld [vmem:[%s2624] sm:$0xf]
      %v3200 = vld [vmem:[%s2624 + $0x4] sm:$0xf]
      %v3201 = vld [vmem:[%s2624 + $0x8] sm:$0x1]
      %v3202 = vld [vmem:[%s1] sm:$0xf]
      %v3203 = vld [vmem:[%s1 + $0x4] sm:$0xf]
      %v3204 = vld [vmem:[%s1 + $0x8] sm:$0xf]
      %v3205 = vld [vmem:[%s1 + $0xc] sm:$0xf]
      %v3206 = vld [vmem:[%s272] sm:$0xf]
      %v3207 = vld [vmem:[%s272 + $0x4] sm:$0xf]
      %v3208 = vld [vmem:[%s272 + $0x8] sm:$0xf]
      %v3209 = vld [vmem:[%s272 + $0xc] sm:$0xf]
      %v3213 = vunpack.c.l.b16 %v3199
      %v3214 = vunpack.c.l.b16 %v3200
      %v3215 = vunpack.c.l.b16 %v3201
      %v3216 = vpack.c.b16 %v3214, %v3213
      %v3217 = vpack.c.b16 %v3215, %v3215
      %v3219 = vshrl.u32 %v3216, 16
      %v3221 = vshll.u32 %v3216, 16
      %v3223 = vrot.slane %v3221, 1
      %v3224 = vor.u32 %v3219, %v3223
      %v3226 = vshll.u32 %v3217, 16
      %v3228 = vrot.slane %v3226, 1
      %v3229 = vsel %vm285, %v3224, %v3228
      %v3234 = vunpack.c.l.b16 %v3206
      %v3235 = vunpack.c.l.b16 %v3207
      %v3236 = vunpack.c.l.b16 %v3208
      %v3237 = vunpack.c.l.b16 %v3209
      %v3238 = vpack.c.b16 %v3235, %v3234
      %v3239 = vpack.c.b16 %v3237, %v3236
      %v3243 = vsel %vm310, %v3229, 0
      %3245 = vmatpush.bf16.msra.mxu0 0
      %3246 = vmatpush.bf16.msra.mxu0 0
      %3247 = vmatpush.bf16.msra.mxu0 0
      %3248 = vmatpush.bf16.msra.mxu0 0
      %3249 = vmatpush.bf16.msra.mxu0 0
      %3250 = vmatpush.bf16.msra.mxu0 0
      %3251 = vmatpush.bf16.msra.mxu0 %v3239
      %3252 = vmatpush.bf16.msra.mxu0 %v3238
      %3253 = vmatmul.bf16.gmra.mxu0 %v3243
      %v3254 = vpop.f32.mrf.mxu0
      %v3255 = vadd.f32 0.0, %v3254
      %v3256 = vpop.f32.mrf.mxu0
      %v3257 = vadd.f32 0.0, %v3256
      %3258 = vdwg.mxu0
      %v3263 = vunpack.c.l.b16 %v3202
      %v3264 = vunpack.c.l.b16 %v3203
      %v3265 = vunpack.c.l.b16 %v3204
      %v3266 = vunpack.c.l.b16 %v3205
      %v3267 = vpack.c.b16 %v3264, %v3263
      %v3268 = vpack.c.b16 %v3266, %v3265
      %v3271 = vsel %vm310, %v3216, 0
      %3273 = vmatpush.bf16.msra.mxu0 0
      %3274 = vmatpush.bf16.msra.mxu0 0
      %3275 = vmatpush.bf16.msra.mxu0 0
      %3276 = vmatpush.bf16.msra.mxu0 0
      %3277 = vmatpush.bf16.msra.mxu0 0
      %3278 = vmatpush.bf16.msra.mxu0 0
      %3279 = vmatpush.bf16.msra.mxu0 %v3268
      %3280 = vmatpush.bf16.msra.mxu0 %v3267
      %3281 = vmatmul.bf16.gmra.mxu0 %v3271
      %v3282 = vpop.f32.mrf.mxu0
      %v3283 = vadd.f32 %v3255, %v3282
      %v3284 = vpop.f32.mrf.mxu0
      %v3285 = vadd.f32 %v3257, %v3284
      %3286 = vdwg.mxu0
      %v3287 = vld [vmem:[%s356] sm:$0xf]
      %v3288 = vld [vmem:[%s356 + $0x4] sm:$0xf]
      %v3289 = vld [vmem:[%s356 + $0x8] sm:$0xf]
      %v3290 = vld [vmem:[%s356 + $0xc] sm:$0xf]
      %v3291 = vrot.slane %v3216, 1
      %v3292 = vrot.slane %v3217, 1
      %v3293 = vsel %vm361, %v3291, %v3292
      %v3298 = vunpack.c.l.b16 %v3287
      %v3299 = vunpack.c.l.b16 %v3288
      %v3300 = vunpack.c.l.b16 %v3289
      %v3301 = vunpack.c.l.b16 %v3290
      %v3302 = vpack.c.b16 %v3299, %v3298
      %v3303 = vpack.c.b16 %v3301, %v3300
      %v3307 = vsel %vm310, %v3293, 0
      %3309 = vmatpush.bf16.msra.mxu0 0
      %3310 = vmatpush.bf16.msra.mxu0 0
      %3311 = vmatpush.bf16.msra.mxu0 0
      %3312 = vmatpush.bf16.msra.mxu0 0
      %3313 = vmatpush.bf16.msra.mxu0 0
      %3314 = vmatpush.bf16.msra.mxu0 0
      %3315 = vmatpush.bf16.msra.mxu0 %v3303
      %3316 = vmatpush.bf16.msra.mxu0 %v3302
      %3317 = vmatmul.bf16.gmra.mxu0 %v3307
      %v3318 = vpop.f32.mrf.mxu0
      %v3319 = vadd.f32 0.0, %v3318
      %v3320 = vpop.f32.mrf.mxu0
      %v3321 = vadd.f32 0.0, %v3320
      %3322 = vdwg.mxu0
      %v3323 = vadd.f32 %v3283, %v3319
      %v3324 = vadd.f32 %v3285, %v3321
      %v3325 = vld [vmem:[%s3041] sm:$0xf]
      %v3326 = vld [vmem:[%s3041 + $0x4] sm:$0xf]
      %v3327 = vld [vmem:[%s3041 + $0x8] sm:$0x1]
      %v3328 = vld [vmem:[%s403] sm:$0xf]
      %v3329 = vld [vmem:[%s403 + $0x4] sm:$0xf]
      %v3330 = vld [vmem:[%s403 + $0x8] sm:$0xf]
      %v3331 = vld [vmem:[%s403 + $0xc] sm:$0xf]
      %v3334 = vunpack.c.l.b16 %v3325
      %v3335 = vunpack.c.l.b16 %v3326
      %v3336 = vpack.c.b16 %v3335, %v3334
      %v3341 = vunpack.c.l.b16 %v3328
      %v3342 = vunpack.c.l.b16 %v3329
      %v3343 = vunpack.c.l.b16 %v3330
      %v3344 = vunpack.c.l.b16 %v3331
      %v3345 = vpack.c.b16 %v3342, %v3341
      %v3346 = vpack.c.b16 %v3344, %v3343
      %v3350 = vsel %vm310, %v3336, 0
      %3352 = vmatpush.bf16.msra.mxu0 0
      %3353 = vmatpush.bf16.msra.mxu0 0
      %3354 = vmatpush.bf16.msra.mxu0 0
      %3355 = vmatpush.bf16.msra.mxu0 0
      %3356 = vmatpush.bf16.msra.mxu0 0
      %3357 = vmatpush.bf16.msra.mxu0 0
      %3358 = vmatpush.bf16.msra.mxu0 %v3346
      %3359 = vmatpush.bf16.msra.mxu0 %v3345
      %3360 = vmatmul.bf16.gmra.mxu0 %v3350
      %v3361 = vpop.f32.mrf.mxu0
      %v3362 = vadd.f32 0.0, %v3361
      %v3363 = vpop.f32.mrf.mxu0
      %v3364 = vadd.f32 0.0, %v3363
      %3365 = vdwg.mxu0
      %v3366 = vadd.f32 %v3323, %v3362
      %v3367 = vadd.f32 %v3324, %v3364
      %v3368 = vld [vmem:[%s444] sm:$0xf]
      %v3369 = vld [vmem:[%s444 + $0x4] sm:$0xf]
      %v3370 = vld [vmem:[%s444 + $0x8] sm:$0xf]
      %v3371 = vld [vmem:[%s444 + $0xc] sm:$0xf]
      %v3373 = vunpack.c.l.b16 %v3327
      %v3374 = vpack.c.b16 %v3373, %v3373
      %v3375 = vshrl.u32 %v3336, 16
      %v3377 = vshll.u32 %v3336, 16
      %v3379 = vrot.slane %v3377, 1
      %v3380 = vor.u32 %v3375, %v3379
      %v3382 = vshll.u32 %v3374, 16
      %v3384 = vrot.slane %v3382, 1
      %v3385 = vsel %vm285, %v3380, %v3384
      %v3390 = vunpack.c.l.b16 %v3368
      %v3391 = vunpack.c.l.b16 %v3369
      %v3392 = vunpack.c.l.b16 %v3370
      %v3393 = vunpack.c.l.b16 %v3371
      %v3394 = vpack.c.b16 %v3391, %v3390
      %v3395 = vpack.c.b16 %v3393, %v3392
      %v3399 = vsel %vm310, %v3385, 0
      %3401 = vmatpush.bf16.msra.mxu0 0
      %3402 = vmatpush.bf16.msra.mxu0 0
      %3403 = vmatpush.bf16.msra.mxu0 0
      %3404 = vmatpush.bf16.msra.mxu0 0
      %3405 = vmatpush.bf16.msra.mxu0 0
      %3406 = vmatpush.bf16.msra.mxu0 0
      %3407 = vmatpush.bf16.msra.mxu0 %v3395
      %3408 = vmatpush.bf16.msra.mxu0 %v3394
      %3409 = vmatmul.bf16.gmra.mxu0 %v3399
      %v3410 = vpop.f32.mrf.mxu0
      %v3411 = vadd.f32 0.0, %v3410
      %v3412 = vpop.f32.mrf.mxu0
      %v3413 = vadd.f32 0.0, %v3412
      %3414 = vdwg.mxu0
      %v3415 = vadd.f32 %v3366, %v3411
      %v3416 = vadd.f32 %v3367, %v3413
      %v3417 = vld [vmem:[%s494] sm:$0xf]
      %v3418 = vld [vmem:[%s494 + $0x4] sm:$0xf]
      %v3419 = vld [vmem:[%s494 + $0x8] sm:$0xf]
      %v3420 = vld [vmem:[%s494 + $0xc] sm:$0xf]
      %v3421 = vrot.slane %v3336, 1
      %v3422 = vrot.slane %v3374, 1
      %v3423 = vsel %vm361, %v3421, %v3422
      %v3428 = vunpack.c.l.b16 %v3417
      %v3429 = vunpack.c.l.b16 %v3418
      %v3430 = vunpack.c.l.b16 %v3419
      %v3431 = vunpack.c.l.b16 %v3420
      %v3432 = vpack.c.b16 %v3429, %v3428
      %v3433 = vpack.c.b16 %v3431, %v3430
      %v3437 = vsel %vm310, %v3423, 0
      %3439 = vmatpush.bf16.msra.mxu0 0
      %3440 = vmatpush.bf16.msra.mxu0 0
      %3441 = vmatpush.bf16.msra.mxu0 0
      %3442 = vmatpush.bf16.msra.mxu0 0
      %3443 = vmatpush.bf16.msra.mxu0 0
      %3444 = vmatpush.bf16.msra.mxu0 0
      %3445 = vmatpush.bf16.msra.mxu0 %v3433
      %3446 = vmatpush.bf16.msra.mxu0 %v3432
      %3447 = vmatmul.bf16.gmra.mxu0 %v3437
      %v3448 = vpop.f32.mrf.mxu0
      %v3449 = vadd.f32 0.0, %v3448
      %v3450 = vpop.f32.mrf.mxu0
      %v3451 = vadd.f32 0.0, %v3450
      %3452 = vdwg.mxu0
      %v3453 = vadd.f32 %v3415, %v3449
      %v3454 = vadd.f32 %v3416, %v3451
      %s3455 = sadd.s32 %s261, 9
      %s3456 = smul.u32 %s3455, 3
      %s3457 = smul.addr %s3456, 4
      %s3458 = scalar_lea.vmem %s234, %s3457
      %v3459 = vld [vmem:[%s3458] sm:$0xf]
      %v3460 = vld [vmem:[%s3458 + $0x4] sm:$0xf]
      %v3461 = vld [vmem:[%s3458 + $0x8] sm:$0x1]
      %v3462 = vld [vmem:[%s540] sm:$0xf]
      %v3463 = vld [vmem:[%s540 + $0x4] sm:$0xf]
      %v3464 = vld [vmem:[%s540 + $0x8] sm:$0xf]
      %v3465 = vld [vmem:[%s540 + $0xc] sm:$0xf]
      %v3468 = vunpack.c.l.b16 %v3459
      %v3469 = vunpack.c.l.b16 %v3460
      %v3470 = vpack.c.b16 %v3469, %v3468
      %v3475 = vunpack.c.l.b16 %v3462
      %v3476 = vunpack.c.l.b16 %v3463
      %v3477 = vunpack.c.l.b16 %v3464
      %v3478 = vunpack.c.l.b16 %v3465
      %v3479 = vpack.c.b16 %v3476, %v3475
      %v3480 = vpack.c.b16 %v3478, %v3477
      %v3484 = vsel %vm310, %v3470, 0
      %3486 = vmatpush.bf16.msra.mxu0 0
      %3487 = vmatpush.bf16.msra.mxu0 0
      %3488 = vmatpush.bf16.msra.mxu0 0
      %3489 = vmatpush.bf16.msra.mxu0 0
      %3490 = vmatpush.bf16.msra.mxu0 0
      %3491 = vmatpush.bf16.msra.mxu0 0
      %3492 = vmatpush.bf16.msra.mxu0 %v3480
      %3493 = vmatpush.bf16.msra.mxu0 %v3479
      %3494 = vmatmul.bf16.gmra.mxu0 %v3484
      %v3495 = vpop.f32.mrf.mxu0
      %v3496 = vadd.f32 0.0, %v3495
      %v3497 = vpop.f32.mrf.mxu0
      %v3498 = vadd.f32 0.0, %v3497
      %3499 = vdwg.mxu0
      %v3500 = vadd.f32 %v3453, %v3496
      %v3501 = vadd.f32 %v3454, %v3498
      %v3502 = vld [vmem:[%s581] sm:$0xf]
      %v3503 = vld [vmem:[%s581 + $0x4] sm:$0xf]
      %v3504 = vld [vmem:[%s581 + $0x8] sm:$0xf]
      %v3505 = vld [vmem:[%s581 + $0xc] sm:$0xf]
      %v3507 = vunpack.c.l.b16 %v3461
      %v3508 = vpack.c.b16 %v3507, %v3507
      %v3509 = vshrl.u32 %v3470, 16
      %v3511 = vshll.u32 %v3470, 16
      %v3513 = vrot.slane %v3511, 1
      %v3514 = vor.u32 %v3509, %v3513
      %v3516 = vshll.u32 %v3508, 16
      %v3518 = vrot.slane %v3516, 1
      %v3519 = vsel %vm285, %v3514, %v3518
      %v3524 = vunpack.c.l.b16 %v3502
      %v3525 = vunpack.c.l.b16 %v3503
      %v3526 = vunpack.c.l.b16 %v3504
      %v3527 = vunpack.c.l.b16 %v3505
      %v3528 = vpack.c.b16 %v3525, %v3524
      %v3529 = vpack.c.b16 %v3527, %v3526
      %v3533 = vsel %vm310, %v3519, 0
      %3535 = vmatpush.bf16.msra.mxu0 0
      %3536 = vmatpush.bf16.msra.mxu0 0
      %3537 = vmatpush.bf16.msra.mxu0 0
      %3538 = vmatpush.bf16.msra.mxu0 0
      %3539 = vmatpush.bf16.msra.mxu0 0
      %3540 = vmatpush.bf16.msra.mxu0 0
      %3541 = vmatpush.bf16.msra.mxu0 %v3529
      %3542 = vmatpush.bf16.msra.mxu0 %v3528
      %3543 = vmatmul.bf16.gmra.mxu0 %v3533
      %v3544 = vpop.f32.mrf.mxu0
      %v3545 = vadd.f32 0.0, %v3544
      %v3546 = vpop.f32.mrf.mxu0
      %v3547 = vadd.f32 0.0, %v3546
      %3548 = vdwg.mxu0
      %v3549 = vadd.f32 %v3500, %v3545
      %v3550 = vadd.f32 %v3501, %v3547
      %v3551 = vld [vmem:[%s631] sm:$0xf]
      %v3552 = vld [vmem:[%s631 + $0x4] sm:$0xf]
      %v3553 = vld [vmem:[%s631 + $0x8] sm:$0xf]
      %v3554 = vld [vmem:[%s631 + $0xc] sm:$0xf]
      %v3555 = vrot.slane %v3470, 1
      %v3556 = vrot.slane %v3508, 1
      %v3557 = vsel %vm361, %v3555, %v3556
      %v3562 = vunpack.c.l.b16 %v3551
      %v3563 = vunpack.c.l.b16 %v3552
      %v3564 = vunpack.c.l.b16 %v3553
      %v3565 = vunpack.c.l.b16 %v3554
      %v3566 = vpack.c.b16 %v3563, %v3562
      %v3567 = vpack.c.b16 %v3565, %v3564
      %v3571 = vsel %vm310, %v3557, 0
      %3573 = vmatpush.bf16.msra.mxu0 0
      %3574 = vmatpush.bf16.msra.mxu0 0
      %3575 = vmatpush.bf16.msra.mxu0 0
      %3576 = vmatpush.bf16.msra.mxu0 0
      %3577 = vmatpush.bf16.msra.mxu0 0
      %3578 = vmatpush.bf16.msra.mxu0 0
      %3579 = vmatpush.bf16.msra.mxu0 %v3567
      %3580 = vmatpush.bf16.msra.mxu0 %v3566
      %3581 = vmatmul.bf16.gmra.mxu0 %v3571
      %v3582 = vpop.f32.mrf.mxu0
      %v3583 = vadd.f32 0.0, %v3582
      %v3584 = vpop.f32.mrf.mxu0
      %v3585 = vadd.f32 0.0, %v3584
      %3586 = vdwg.mxu0
      %v3587 = vadd.f32 %v3549, %v3583
      %v3588 = vadd.f32 %v3550, %v3585
      %v3589 = vpack.c.bf16 %v3587, %v3587
      %v3590 = vpack.c.bf16 %v3588, %v3588
      %s3591 = scalar_lea.vmem %s244, 56
      %3592 = vst.msk [vmem:[%s3591] sm:$0xf] %vm672, %v3589
      %3593 = vst.msk [vmem:[%s3591 + $0x4] sm:$0xf] %vm672, %v3590
      %v3594 = vsel %vm310, %v3587, 0.0
      %v3595 = vsel %vm310, %v3588, 0.0
      %v3596 = vadd.f32 %v3594, %v3595
      %v3597 = vrot.slane %v3596, 4
      %v3598 = vadd.f32 %v3596, %v3597
      %v3599 = vrot.slane %v3598, 2
      %v3600 = vadd.f32 %v3598, %v3599
      %v3601 = vrot.slane %v3600, 1
      %v3602 = vadd.f32 %v3600, %v3601
      %v3603 = vadd.f32 %v3186, %v3602
      %v3604 = vmul.f32 %v3587, %v3587
      %v3605 = vmul.f32 %v3588, %v3588
      %v3606 = vsel %vm310, %v3604, 0.0
      %v3607 = vsel %vm310, %v3605, 0.0
      %v3608 = vadd.f32 %v3606, %v3607
      %v3609 = vrot.slane %v3608, 4
      %v3610 = vadd.f32 %v3608, %v3609
      %v3611 = vrot.slane %v3610, 2
      %v3612 = vadd.f32 %v3610, %v3611
      %v3613 = vrot.slane %v3612, 1
      %v3614 = vadd.f32 %v3612, %v3613
      %v3615 = vadd.f32 %v3198, %v3614
      %vm3616 = vcmask 253952
      %3617 = vst.msk [vmem:[%s252] sm:$0x1] %vm3616, %v3603
      %3618 = vst.msk [vmem:[%s259] sm:$0x1] %vm3616, %v3615
      %s3619 = smul.u32 8, %s21
      %p3620 = scmp.lt.s32.totalorder %s20, 1
      %s3621 = scalar_select %p3620, %s20, 1
      %p3622 = scmp.lt.s32.totalorder %s3619, 15
      %s3623 = scalar_select %p3622, %s3619, 15
      %s3624 = smul.addr %s3623, 2
      %s3625 = smul.addr %s3621, 32
      %s3626 = sadd.s32 %s3624, %s3625
      %s3627 = smul.addr %s3626, 4
      %s3628 = scalar_lea.vmem %s2, %s3627
      %p3629 = scmp.lt.s32.totalorder %s20, 1
      %s3630 = scalar_select %p3629, %s20, 1
      %p3631 = scmp.lt.s32.totalorder %s21, 1
      %s3632 = scalar_select %p3631, %s21, 1
      %s3633 = smul.addr %s3630, 2
      %s3634 = sadd.s32 %s3632, %s3633
      %s3635 = scalar_lea.vmem %s3, %s3634
      %p3636 = scmp.lt.s32.totalorder %s20, 1
      %s3637 = scalar_select %p3636, %s20, 1
      %p3638 = scmp.lt.s32.totalorder %s21, 1
      %s3639 = scalar_select %p3638, %s21, 1
      %s3640 = smul.addr %s3637, 2
      %s3641 = sadd.s32 %s3639, %s3640
      %s3642 = scalar_lea.vmem %s4, %s3641
      // Predicated region
      $region29: #{bottleneck_forward.5} parent=27 // pred_check
        %p3643 = pneg %p95
      $region30: #{bottleneck_forward.5} parent=27 // pred_check_branch
        %3645 = sbr.rel (%p3643) target = $region32
      $region31: #{bottleneck_forward.5} parent=27 // pred_region
        %s3646 = smul.u32 8, %s21
      $region32: #{bottleneck_forward.5} parent=27 // pred_fallthru
        _
      // Predicated region
      $region33: #{bottleneck_forward.5} parent=27 // pred_check
        %p3647 = pneg %p123
      $region34: #{bottleneck_forward.5} parent=27 // pred_check_branch
        %3649 = sbr.rel (%p3647) target = $region36
      $region35: #{bottleneck_forward.5} parent=27 // pred_region
        _
      $region36: #{bottleneck_forward.5} parent=27 // pred_fallthru
        _
      // Predicated region
      $region37: #{bottleneck_forward.5} parent=27 // pred_check
        %p3650 = pneg %p151
      $region38: #{bottleneck_forward.5} parent=27 // pred_check_branch
        %3652 = sbr.rel (%p3650) target = $region40
      $region39: #{bottleneck_forward.5} parent=27 // pred_region
        _
      $region40: #{bottleneck_forward.5} parent=27 // pred_fallthru
        _
    $region28: #{bottleneck_forward.5} parent=5 // pred_fallthru
      _
    %p3653 = scmp.le.s32.totalorder 2, %s11
    // Predicated region
    $region41: #{bottleneck_forward.5} parent=5 // pred_check
      %p3654 = pneg %p3653
    $region42: #{bottleneck_forward.5} parent=5 // pred_check_branch
      %3656 = sbr.rel (%p3654) target = $region44
    $region43: #{bottleneck_forward.5} parent=5 // pred_region
      %s3657 = ssub.s32 %s11, 2
      // Predicated region
      $region45: #{bottleneck_forward.5} parent=43 // pred_check
        %p3658 = pneg %p101
      $region46: #{bottleneck_forward.5} parent=43 // pred_check_branch
        %3660 = sbr.rel (%p3658) target = $region48
      $region47: #{bottleneck_forward.5} parent=43 // pred_region
        %s3661 = smul.u32 8, %s23
        %p3662 = scmp.lt.s32.totalorder %s22, 1
        %s3663 = scalar_select %p3662, %s22, 1
        %p3664 = scmp.lt.s32.totalorder %s3661, 15
        %s3665 = scalar_select %p3664, %s3661, 15
        %s3666 = smul.addr %s3665, 2
        %s3667 = smul.addr %s3663, 32
        %s3668 = sadd.s32 %s3666, %s3667
        %s3669 = smul.addr %s3668, 4
        %s3670 = scalar_lea.vmem %s2, %s3669
      $region48: #{bottleneck_forward.5} parent=43 // pred_fallthru
        _
      // Predicated region
      $region49: #{bottleneck_forward.5} parent=43 // pred_check
        %p3671 = pneg %p129
      $region50: #{bottleneck_forward.5} parent=43 // pred_check_branch
        %3673 = sbr.rel (%p3671) target = $region52
      $region51: #{bottleneck_forward.5} parent=43 // pred_region
        %p3674 = scmp.lt.s32.totalorder %s22, 1
        %s3675 = scalar_select %p3674, %s22, 1
        %p3676 = scmp.lt.s32.totalorder %s23, 1
        %s3677 = scalar_select %p3676, %s23, 1
        %s3678 = smul.addr %s3675, 2
        %s3679 = sadd.s32 %s3677, %s3678
        %s3680 = scalar_lea.vmem %s3, %s3679
      $region52: #{bottleneck_forward.5} parent=43 // pred_fallthru
        _
      // Predicated region
      $region53: #{bottleneck_forward.5} parent=43 // pred_check
        %p3681 = pneg %p157
      $region54: #{bottleneck_forward.5} parent=43 // pred_check_branch
        %3683 = sbr.rel (%p3681) target = $region56
      $region55: #{bottleneck_forward.5} parent=43 // pred_region
        %p3684 = scmp.lt.s32.totalorder %s22, 1
        %s3685 = scalar_select %p3684, %s22, 1
        %p3686 = scmp.lt.s32.totalorder %s23, 1
        %s3687 = scalar_select %p3686, %s23, 1
        %s3688 = smul.addr %s3685, 2
        %s3689 = sadd.s32 %s3687, %s3688
        %s3690 = scalar_lea.vmem %s4, %s3689
      $region56: #{bottleneck_forward.5} parent=43 // pred_fallthru
        _
    $region44: #{bottleneck_forward.5} parent=5 // pred_fallthru
      _
  $region6: #{bottleneck_forward.5} parent=0 // loop_footer
    %s15 = sadd.s32 1, %s11
  $region7: #{bottleneck_forward.5} parent=0 // loop_footer_branch
    %10 = sbr.rel target = $region3
  $region8: #{bottleneck_forward.5} parent=0 // loop_exit
    _

</llo_original>
